<compile_context>
chip_gen: v7x
topology: tpu7x:2x2x1
jax: 0.10.0
libtpu: 0.0.40
codegen_flags: <defaults>
</compile_context>

<pallas_src>
import functools

import jax
import jax.numpy as jnp
from jax.experimental import pallas as pl
from jax.experimental.pallas import tpu as pltpu

LANE = 128
EPS = 1e-5


def _round_up(x, m):
    return (x + m - 1) // m * m


@functools.lru_cache(maxsize=None)
def _vmem_limit_bytes():
    # Generation-aware scoped-VMEM cap: ~3/4 of physical VMEM (v7x: 64 MiB,
    # v5e/v6e: 128 MiB), capped at 100 MiB.  Falls back to 48 MiB if the query
    # is unavailable.
    try:
        cap = pltpu.get_tpu_info().vmem_capacity_bytes
        return int(min(cap * 3 // 4, 100 * 1024 * 1024))
    except Exception:
        return 48 * 1024 * 1024


# --------------------------------------------------------------------------------------
# Fused 3x3-conv + BN-statistics kernel (one image block per grid step).
# --------------------------------------------------------------------------------------
def _make_conv_stats_kernel(tap_plan, ho, wo, cin, cp):
    """tap_plan[t] = (phase_idx, row_off, col_off) for tap t = kh*3 + kw.

    Refs (in order): phase_0..phase_{P-1} (Hr, Wr, Cin) bf16,  w (9, Cin, Cp) bf16,
                     y (Ho*Wo, Cp) bf16,  s (8, Cp) f32,  ss (8, Cp) f32.
    """
    mt = ho * wo
    n_phase = max(p for p, _, _ in tap_plan) + 1

    def kernel(*refs):
        phase_refs = refs[:n_phase]
        w_ref = refs[n_phase]
        y_ref, s_ref, ss_ref = refs[n_phase + 1:]

        # Unrolled 9-tap loop: static shifted slices of the VMEM-resident image block
        # feed the MXU directly (no HBM im2col).  For lane-aligned Cin (>=128) the 9
        # accumulated dots cost the same number of MXU passes as one big-K dot.
        acc = None
        for t, (p, ro, co) in enumerate(tap_plan):
            tap = phase_refs[p][ro:ro + ho, co:co + wo, :].reshape(mt, cin)
            d = jnp.dot(tap, w_ref[t], preferred_element_type=jnp.float32)
            acc = d if acc is None else acc + d

        # bf16 intermediate (largest array of the stage); stats still from the f32 acc.
        y_ref[...] = acc.astype(jnp.bfloat16)

        # Per-grid-step partial sums -> "parallel" grid + stable f32 accumulation.
        # (For tiny-K stages these axis-0 reductions could be pushed onto the idle MXU
        #  via a ones-matmul; kept on the VPU/XLU for simplicity.)
        s = jnp.sum(acc, axis=0, keepdims=True)
        ss = jnp.sum(acc * acc, axis=0, keepdims=True)
        s_ref[...] = jnp.broadcast_to(s, (8, cp))
        ss_ref[...] = jnp.broadcast_to(ss, (8, cp))

    return kernel


def conv3x3_bn_stats(x_pad, w_hwio, stride):
    """3x3 conv (pad already applied to the NHWC bf16 input) + batch statistics.

    Returns (y, ssum, ssq, meta):
      y    : (N*Ho*Wo, Cp) bf16 pre-BN conv output (channels zero-padded to 128 lanes)
      ssum : (Cp,) f32 per-channel sum over all N*Ho*Wo pixels
      ssq  : (Cp,) f32 per-channel sum of squares
      meta : (n, ho, wo, cout, cp)
    """
    n, hp, wp, cin = x_pad.shape
    h, w_sp = hp - 2, wp - 2
    ho = (h - 1) // stride + 1
    wo = (w_sp - 1) // stride + 1
    cout = w_hwio.shape[-1]
    cp = _round_up(cout, LANE)
    mt = ho * wo
    assert mt % 8 == 0, "per-image pixel count must be a multiple of 8 (sublane tile)"

    # (3,3,Cin,Cout) -> (9, Cin, Cp) bf16, tap index t = kh*3 + kw.
    wk = jnp.pad(w_hwio, ((0, 0), (0, 0), (0, 0), (0, cp - cout)))
    wk = wk.reshape(9, cin, cp).astype(jnp.bfloat16)

    if stride == 1:
        phases = [x_pad]
        tap_plan = [(0, kh, kw) for kh in range(3) for kw in range(3)]
    else:
        # Parity-phase split (same total bytes as x_pad, fused by XLA with the
        # activation/pad that produced x_pad) so the strided taps become
        # unit-stride slices inside the kernel.
        phases = [x_pad[:, i::2, j::2, :] for i in (0, 1) for j in (0, 1)]
        tap_plan = [((kh % 2) * 2 + (kw % 2), kh // 2, kw // 2)
                    for kh in range(3) for kw in range(3)]

    kernel = _make_conv_stats_kernel(tap_plan, ho, wo, cin, cp)

    in_specs = [pl.BlockSpec((None,) + tuple(p.shape[1:]), lambda i: (i, 0, 0, 0))
                for p in phases]
    in_specs.append(pl.BlockSpec((9, cin, cp), lambda i: (0, 0, 0)))  # constant weights

    y, s_part, ss_part = pl.pallas_call(
        kernel,
        grid=(n,),  # one (small) image per step; see halo-band TODO for large images
        in_specs=in_specs,
        out_specs=[
            pl.BlockSpec((mt, cp), lambda i: (i, 0)),
            pl.BlockSpec((8, cp), lambda i: (i, 0)),   # per-step partial sum slab
            pl.BlockSpec((8, cp), lambda i: (i, 0)),   # per-step partial sumsq slab
        ],
        out_shape=[
            jax.ShapeDtypeStruct((n * mt, cp), jnp.bfloat16),
            jax.ShapeDtypeStruct((n * 8, cp), jnp.float32),
            jax.ShapeDtypeStruct((n * 8, cp), jnp.float32),
        ],
        compiler_params=pltpu.CompilerParams(
            dimension_semantics=("parallel",),        # no resident accumulator anymore
            vmem_limit_bytes=_vmem_limit_bytes(),
        ),
    )(*phases, wk)

    ssum = jnp.sum(s_part.reshape(n, 8, cp)[:, 0, :], axis=0)
    ssq = jnp.sum(ss_part.reshape(n, 8, cp)[:, 0, :], axis=0)
    return y, ssum, ssq, (n, ho, wo, cout, cp)


# --------------------------------------------------------------------------------------
# BN finalize + elementwise glue (deliberately XLA-fused; see review item 3).
# --------------------------------------------------------------------------------------
def _bn_scale_shift(ssum, ssq, count, gamma, beta, cp):
    cout = gamma.shape[0]
    mean = ssum / count
    var = jnp.maximum(ssq / count - mean * mean, 0.0)   # clamp: f32 cancellation safety
    gamma_p = jnp.pad(gamma, (0, cp - cout))
    beta_p = jnp.pad(beta, (0, cp - cout))
    scale = gamma_p * jax.lax.rsqrt(var + EPS)          # padded channels: scale=shift=0
    shift = beta_p - mean * scale
    return scale.reshape(1, cp), shift.reshape(1, cp)


def _activate(y, scale, shift, n, ho, wo, cout):
    """relu(y*scale + shift) on the valid channels -> (N, Ho, Wo, Cout) f32.
    Pure elementwise: left to XLA so it fuses with the pad/cast/transpose of its
    consumer(s) instead of a standalone BN/ReLU pallas round trip."""
    h = jnp.maximum(y.astype(jnp.float32) * scale + shift, 0.0)
    return h[:, :cout].reshape(n, ho, wo, cout)


def _pad_bf16(x_nhwc):
    return jnp.pad(x_nhwc, ((0, 0), (1, 1), (1, 1), (0, 0))).astype(jnp.bfloat16)


# --------------------------------------------------------------------------------------
# Module
# --------------------------------------------------------------------------------------
def init_params(key, in_ch, out_ch):
    """Deterministic synthetic parameters (same shapes as the PyTorch module)."""
    keys = jax.random.split(key, 6)

    def conv_p(kw, kb, cin, cout):
        w = 0.1 * jax.random.normal(kw, (3, 3, cin, cout), jnp.float32)  # HWIO
        b = 0.1 * jax.random.normal(kb, (cout,), jnp.float32)
        return w, b

    w1, b1 = conv_p(keys[0], keys[1], in_ch, out_ch)
    w2, b2 = conv_p(keys[2], keys[3], out_ch, out_ch)
    w3, b3 = conv_p(keys[4], keys[5], out_ch, out_ch)
    bn = lambda c: (jnp.ones((c,), jnp.float32), jnp.zeros((c,), jnp.float32))
    g1, be1 = bn(out_ch)
    g2, be2 = bn(out_ch)
    g3, be3 = bn(out_ch)
    # Conv biases are kept only for parity with the PyTorch module; they are exactly
    # cancelled by the training-mode BN mean subtraction, so the kernels skip them.
    return dict(w1=w1, b1=b1, g1=g1, be1=be1,
                w2=w2, b2=b2, g2=g2, be2=be2,
                w3=w3, b3=b3, g3=g3, be3=be3)


@jax.jit
def downsample_layer(x_nchw, params):
    # NCHW -> NHWC, zero-pad spatially, bf16 conv operands.
    x = jnp.transpose(x_nchw, (0, 2, 3, 1)).astype(jnp.float32)
    x0 = _pad_bf16(x)

    # stage 1: conv s1 + BN + ReLU  (activation folded into stage-2 input build)
    y1, s1, q1, (n, ho1, wo1, c1, cp1) = conv3x3_bn_stats(x0, params["w1"], stride=1)
    sc1, sh1 = _bn_scale_shift(s1, q1, n * ho1 * wo1, params["g1"], params["be1"], cp1)
    x1 = _pad_bf16(_activate(y1, sc1, sh1, n, ho1, wo1, c1))

    # stage 2: conv s1 + BN + ReLU  -> returned `out` and stage-3 input
    y2, s2, q2, (_, ho2, wo2, c2, cp2) = conv3x3_bn_stats(x1, params["w2"], stride=1)
    sc2, sh2 = _bn_scale_shift(s2, q2, n * ho2 * wo2, params["g2"], params["be2"], cp2)
    h2 = _activate(y2, sc2, sh2, n, ho2, wo2, c2)
    out = jnp.transpose(h2, (0, 3, 1, 2))                 # NCHW f32 (PyTorch layout)
    x2 = _pad_bf16(h2)

    # stage 3: conv s2 + BN + ReLU  -> returned `out_2`
    y3, s3, q3, (_, ho3, wo3, c3, cp3) = conv3x3_bn_stats(x2, params["w3"], stride=2)
    sc3, sh3 = _bn_scale_shift(s3, q3, n * ho3 * wo3, params["g3"], params["be3"], cp3)
    out_2 = jnp.transpose(_activate(y3, sc3, sh3, n, ho3, wo3, c3), (0, 3, 1, 2))

    return out, out_2


# --------------------------------------------------------------------------------------
# Pure-JAX reference (faithful to the PyTorch module, bf16 conv operands / f32 rest).
# --------------------------------------------------------------------------------------
def _reference(x_nchw, params):
    def block(x, w, b, g, be, stride):
        y = jax.lax.conv_general_dilated(
            x.astype(jnp.bfloat16), w.astype(jnp.bfloat16),
            window_strides=(stride, stride), padding=[(1, 1), (1, 1)],
            dimension_numbers=("NHWC", "HWIO", "NHWC"),
            preferred_element_type=jnp.float32)
        y = y + b
        mean = jnp.mean(y, axis=(0, 1, 2), keepdims=True)
        var = jnp.mean((y - mean) ** 2, axis=(0, 1, 2), keepdims=True)
        y = (y - mean) * jax.lax.rsqrt(var + EPS) * g + be
        return jnp.maximum(y, 0.0)

    x = jnp.transpose(x_nchw, (0, 2, 3, 1)).astype(jnp.float32)
    h1 = block(x, params["w1"], params["b1"], params["g1"], params["be1"], 1)
    out = block(h1, params["w2"], params["b2"], params["g2"], params["be2"], 1)
    out_2 = block(out, params["w3"], params["b3"], params["g3"], params["be3"], 2)
    return jnp.transpose(out, (0, 3, 1, 2)), jnp.transpose(out_2, (0, 3, 1, 2))


if __name__ == "__main__":
    key = jax.random.PRNGKey(0)
    k_x, k_p = jax.random.split(key)

    in_ch, out_ch = 4, 8
    x = jax.random.normal(k_x, (2, in_ch, 16, 16), jnp.float32)  # NCHW like PyTorch
    params = init_params(k_p, in_ch, out_ch)

    out, out_2 = downsample_layer(x, params)
    jax.block_until_ready((out, out_2))

    assert out.shape == (2, out_ch, 16, 16), out.shape
    assert out_2.shape == (2, out_ch, 8, 8), out_2.shape

    ref_out, ref_out_2 = _reference(x, params)
    d1 = float(jnp.max(jnp.abs(out - ref_out)))
    d2 = float(jnp.max(jnp.abs(out_2 - ref_out_2)))
    # bf16 conv operands + bf16 conv intermediate (per perf review) vs a mostly-f32
    # reference -> slightly looser tolerance than a pure-f32 pipeline.
    assert jnp.allclose(out, ref_out, atol=3e-2, rtol=3e-2), d1
    assert jnp.allclose(out_2, ref_out_2, atol=3e-2, rtol=3e-2), d2

    print("KERNEL_OK")
</pallas_src>

<mosaic_0001>
module attributes {stable_mosaic.version = 11 : i64} {
  func.func @kernel(%arg0: i32, %arg1: memref<1x18x18x4xbf16, #tpu.memory_space<vmem>>, %arg2: memref<9x4x128xbf16, #tpu.memory_space<vmem>>, %arg3: memref<256x128xbf16, #tpu.memory_space<vmem>>, %arg4: memref<8x128xf32, #tpu.memory_space<vmem>>, %arg5: memref<8x128xf32, #tpu.memory_space<vmem>>) attributes {dimension_semantics = [#tpu.dimension_semantics<parallel>], iteration_bounds = array<i64: 2>, scalar_prefetch = 0 : i64, scratch_operands = 0 : i64, tpu.core_type = #tpu.core_type<tc>, window_params = [{transform_indices = @transform_0, window_bounds = array<i64: 1, 18, 18, 4>}, {pipeline_mode = #tpu.pipeline_mode<synchronous>, transform_indices = @transform_1, window_bounds = array<i64: 9, 4, 128>}, {transform_indices = @transform_2, window_bounds = array<i64: 256, 128>}, {transform_indices = @transform_3, window_bounds = array<i64: 8, 128>}, {transform_indices = @transform_4, window_bounds = array<i64: 8, 128>}]} {
    %c0 = arith.constant 0 : index
    %c0_0 = arith.constant 0 : index
    %c0_1 = arith.constant 0 : index
    %c0_2 = arith.constant 0 : index
    %0 = vector.load %arg1[%c0, %c0_0, %c0_1, %c0_2] : memref<1x18x18x4xbf16, #tpu.memory_space<vmem>>, vector<1x16x16x4xbf16>
    %1 = vector.shape_cast %0 : vector<1x16x16x4xbf16> to vector<16x16x4xbf16>
    %2 = vector.shape_cast %1 : vector<16x16x4xbf16> to vector<256x4xbf16>
    %c0_3 = arith.constant 0 : index
    %c0_4 = arith.constant 0 : index
    %c0_5 = arith.constant 0 : index
    %3 = vector.load %arg2[%c0_3, %c0_4, %c0_5] : memref<9x4x128xbf16, #tpu.memory_space<vmem>>, vector<1x4x128xbf16>
    %4 = vector.shape_cast %3 : vector<1x4x128xbf16> to vector<4x128xbf16>
    %cst = arith.constant dense<0.000000e+00> : vector<256x128xf32>
    %5 = tpu.matmul %2, %4, %cst {dimension_numbers = #tpu.dot_dimension_numbers<[1], [0], [0], [1], [0, 0, 1, 1], [], []>} : vector<256x4xbf16>, vector<4x128xbf16>, vector<256x128xf32> -> vector<256x128xf32>
    %c0_6 = arith.constant 0 : index
    %c0_7 = arith.constant 0 : index
    %c1 = arith.constant 1 : index
    %c0_8 = arith.constant 0 : index
    %6 = vector.load %arg1[%c0_6, %c0_7, %c1, %c0_8] : memref<1x18x18x4xbf16, #tpu.memory_space<vmem>>, vector<1x16x16x4xbf16>
    %7 = vector.shape_cast %6 : vector<1x16x16x4xbf16> to vector<16x16x4xbf16>
    %8 = vector.shape_cast %7 : vector<16x16x4xbf16> to vector<256x4xbf16>
    %c1_9 = arith.constant 1 : index
    %c0_10 = arith.constant 0 : index
    %c0_11 = arith.constant 0 : index
    %9 = vector.load %arg2[%c1_9, %c0_10, %c0_11] : memref<9x4x128xbf16, #tpu.memory_space<vmem>>, vector<1x4x128xbf16>
    %10 = vector.shape_cast %9 : vector<1x4x128xbf16> to vector<4x128xbf16>
    %cst_12 = arith.constant dense<0.000000e+00> : vector<256x128xf32>
    %11 = tpu.matmul %8, %10, %cst_12 {dimension_numbers = #tpu.dot_dimension_numbers<[1], [0], [0], [1], [0, 0, 1, 1], [], []>} : vector<256x4xbf16>, vector<4x128xbf16>, vector<256x128xf32> -> vector<256x128xf32>
    %12 = arith.addf %5, %11 : vector<256x128xf32>
    %c0_13 = arith.constant 0 : index
    %c0_14 = arith.constant 0 : index
    %c2 = arith.constant 2 : index
    %c0_15 = arith.constant 0 : index
    %13 = vector.load %arg1[%c0_13, %c0_14, %c2, %c0_15] : memref<1x18x18x4xbf16, #tpu.memory_space<vmem>>, vector<1x16x16x4xbf16>
    %14 = vector.shape_cast %13 : vector<1x16x16x4xbf16> to vector<16x16x4xbf16>
    %15 = vector.shape_cast %14 : vector<16x16x4xbf16> to vector<256x4xbf16>
    %c2_16 = arith.constant 2 : index
    %c0_17 = arith.constant 0 : index
    %c0_18 = arith.constant 0 : index
    %16 = vector.load %arg2[%c2_16, %c0_17, %c0_18] : memref<9x4x128xbf16, #tpu.memory_space<vmem>>, vector<1x4x128xbf16>
    %17 = vector.shape_cast %16 : vector<1x4x128xbf16> to vector<4x128xbf16>
    %cst_19 = arith.constant dense<0.000000e+00> : vector<256x128xf32>
    %18 = tpu.matmul %15, %17, %cst_19 {dimension_numbers = #tpu.dot_dimension_numbers<[1], [0], [0], [1], [0, 0, 1, 1], [], []>} : vector<256x4xbf16>, vector<4x128xbf16>, vector<256x128xf32> -> vector<256x128xf32>
    %19 = arith.addf %12, %18 : vector<256x128xf32>
    %c0_20 = arith.constant 0 : index
    %c1_21 = arith.constant 1 : index
    %c0_22 = arith.constant 0 : index
    %c0_23 = arith.constant 0 : index
    %20 = vector.load %arg1[%c0_20, %c1_21, %c0_22, %c0_23] : memref<1x18x18x4xbf16, #tpu.memory_space<vmem>>, vector<1x16x16x4xbf16>
    %21 = vector.shape_cast %20 : vector<1x16x16x4xbf16> to vector<16x16x4xbf16>
    %22 = vector.shape_cast %21 : vector<16x16x4xbf16> to vector<256x4xbf16>
    %c3 = arith.constant 3 : index
    %c0_24 = arith.constant 0 : index
    %c0_25 = arith.constant 0 : index
    %23 = vector.load %arg2[%c3, %c0_24, %c0_25] : memref<9x4x128xbf16, #tpu.memory_space<vmem>>, vector<1x4x128xbf16>
    %24 = vector.shape_cast %23 : vector<1x4x128xbf16> to vector<4x128xbf16>
    %cst_26 = arith.constant dense<0.000000e+00> : vector<256x128xf32>
    %25 = tpu.matmul %22, %24, %cst_26 {dimension_numbers = #tpu.dot_dimension_numbers<[1], [0], [0], [1], [0, 0, 1, 1], [], []>} : vector<256x4xbf16>, vector<4x128xbf16>, vector<256x128xf32> -> vector<256x128xf32>
    %26 = arith.addf %19, %25 : vector<256x128xf32>
    %c0_27 = arith.constant 0 : index
    %c1_28 = arith.constant 1 : index
    %c1_29 = arith.constant 1 : index
    %c0_30 = arith.constant 0 : index
    %27 = vector.load %arg1[%c0_27, %c1_28, %c1_29, %c0_30] : memref<1x18x18x4xbf16, #tpu.memory_space<vmem>>, vector<1x16x16x4xbf16>
    %28 = vector.shape_cast %27 : vector<1x16x16x4xbf16> to vector<16x16x4xbf16>
    %29 = vector.shape_cast %28 : vector<16x16x4xbf16> to vector<256x4xbf16>
    %c4 = arith.constant 4 : index
    %c0_31 = arith.constant 0 : index
    %c0_32 = arith.constant 0 : index
    %30 = vector.load %arg2[%c4, %c0_31, %c0_32] : memref<9x4x128xbf16, #tpu.memory_space<vmem>>, vector<1x4x128xbf16>
    %31 = vector.shape_cast %30 : vector<1x4x128xbf16> to vector<4x128xbf16>
    %cst_33 = arith.constant dense<0.000000e+00> : vector<256x128xf32>
    %32 = tpu.matmul %29, %31, %cst_33 {dimension_numbers = #tpu.dot_dimension_numbers<[1], [0], [0], [1], [0, 0, 1, 1], [], []>} : vector<256x4xbf16>, vector<4x128xbf16>, vector<256x128xf32> -> vector<256x128xf32>
    %33 = arith.addf %26, %32 : vector<256x128xf32>
    %c0_34 = arith.constant 0 : index
    %c1_35 = arith.constant 1 : index
    %c2_36 = arith.constant 2 : index
    %c0_37 = arith.constant 0 : index
    %34 = vector.load %arg1[%c0_34, %c1_35, %c2_36, %c0_37] : memref<1x18x18x4xbf16, #tpu.memory_space<vmem>>, vector<1x16x16x4xbf16>
    %35 = vector.shape_cast %34 : vector<1x16x16x4xbf16> to vector<16x16x4xbf16>
    %36 = vector.shape_cast %35 : vector<16x16x4xbf16> to vector<256x4xbf16>
    %c5 = arith.constant 5 : index
    %c0_38 = arith.constant 0 : index
    %c0_39 = arith.constant 0 : index
    %37 = vector.load %arg2[%c5, %c0_38, %c0_39] : memref<9x4x128xbf16, #tpu.memory_space<vmem>>, vector<1x4x128xbf16>
    %38 = vector.shape_cast %37 : vector<1x4x128xbf16> to vector<4x128xbf16>
    %cst_40 = arith.constant dense<0.000000e+00> : vector<256x128xf32>
    %39 = tpu.matmul %36, %38, %cst_40 {dimension_numbers = #tpu.dot_dimension_numbers<[1], [0], [0], [1], [0, 0, 1, 1], [], []>} : vector<256x4xbf16>, vector<4x128xbf16>, vector<256x128xf32> -> vector<256x128xf32>
    %40 = arith.addf %33, %39 : vector<256x128xf32>
    %c0_41 = arith.constant 0 : index
    %c2_42 = arith.constant 2 : index
    %c0_43 = arith.constant 0 : index
    %c0_44 = arith.constant 0 : index
    %41 = vector.load %arg1[%c0_41, %c2_42, %c0_43, %c0_44] : memref<1x18x18x4xbf16, #tpu.memory_space<vmem>>, vector<1x16x16x4xbf16>
    %42 = vector.shape_cast %41 : vector<1x16x16x4xbf16> to vector<16x16x4xbf16>
    %43 = vector.shape_cast %42 : vector<16x16x4xbf16> to vector<256x4xbf16>
    %c6 = arith.constant 6 : index
    %c0_45 = arith.constant 0 : index
    %c0_46 = arith.constant 0 : index
    %44 = vector.load %arg2[%c6, %c0_45, %c0_46] : memref<9x4x128xbf16, #tpu.memory_space<vmem>>, vector<1x4x128xbf16>
    %45 = vector.shape_cast %44 : vector<1x4x128xbf16> to vector<4x128xbf16>
    %cst_47 = arith.constant dense<0.000000e+00> : vector<256x128xf32>
    %46 = tpu.matmul %43, %45, %cst_47 {dimension_numbers = #tpu.dot_dimension_numbers<[1], [0], [0], [1], [0, 0, 1, 1], [], []>} : vector<256x4xbf16>, vector<4x128xbf16>, vector<256x128xf32> -> vector<256x128xf32>
    %47 = arith.addf %40, %46 : vector<256x128xf32>
    %c0_48 = arith.constant 0 : index
    %c2_49 = arith.constant 2 : index
    %c1_50 = arith.constant 1 : index
    %c0_51 = arith.constant 0 : index
    %48 = vector.load %arg1[%c0_48, %c2_49, %c1_50, %c0_51] : memref<1x18x18x4xbf16, #tpu.memory_space<vmem>>, vector<1x16x16x4xbf16>
    %49 = vector.shape_cast %48 : vector<1x16x16x4xbf16> to vector<16x16x4xbf16>
    %50 = vector.shape_cast %49 : vector<16x16x4xbf16> to vector<256x4xbf16>
    %c7 = arith.constant 7 : index
    %c0_52 = arith.constant 0 : index
    %c0_53 = arith.constant 0 : index
    %51 = vector.load %arg2[%c7, %c0_52, %c0_53] : memref<9x4x128xbf16, #tpu.memory_space<vmem>>, vector<1x4x128xbf16>
    %52 = vector.shape_cast %51 : vector<1x4x128xbf16> to vector<4x128xbf16>
    %cst_54 = arith.constant dense<0.000000e+00> : vector<256x128xf32>
    %53 = tpu.matmul %50, %52, %cst_54 {dimension_numbers = #tpu.dot_dimension_numbers<[1], [0], [0], [1], [0, 0, 1, 1], [], []>} : vector<256x4xbf16>, vector<4x128xbf16>, vector<256x128xf32> -> vector<256x128xf32>
    %54 = arith.addf %47, %53 : vector<256x128xf32>
    %c0_55 = arith.constant 0 : index
    %c2_56 = arith.constant 2 : index
    %c2_57 = arith.constant 2 : index
    %c0_58 = arith.constant 0 : index
    %55 = vector.load %arg1[%c0_55, %c2_56, %c2_57, %c0_58] : memref<1x18x18x4xbf16, #tpu.memory_space<vmem>>, vector<1x16x16x4xbf16>
    %56 = vector.shape_cast %55 : vector<1x16x16x4xbf16> to vector<16x16x4xbf16>
    %57 = vector.shape_cast %56 : vector<16x16x4xbf16> to vector<256x4xbf16>
    %c8 = arith.constant 8 : index
    %c0_59 = arith.constant 0 : index
    %c0_60 = arith.constant 0 : index
    %58 = vector.load %arg2[%c8, %c0_59, %c0_60] : memref<9x4x128xbf16, #tpu.memory_space<vmem>>, vector<1x4x128xbf16>
    %59 = vector.shape_cast %58 : vector<1x4x128xbf16> to vector<4x128xbf16>
    %cst_61 = arith.constant dense<0.000000e+00> : vector<256x128xf32>
    %60 = tpu.matmul %57, %59, %cst_61 {dimension_numbers = #tpu.dot_dimension_numbers<[1], [0], [0], [1], [0, 0, 1, 1], [], []>} : vector<256x4xbf16>, vector<4x128xbf16>, vector<256x128xf32> -> vector<256x128xf32>
    %61 = arith.addf %54, %60 : vector<256x128xf32>
    %62 = arith.truncf %61 : vector<256x128xf32> to vector<256x128xbf16>
    %c0_62 = arith.constant 0 : index
    %c0_63 = arith.constant 0 : index
    %63 = vector.load %arg3[%c0_62, %c0_63] : memref<256x128xbf16, #tpu.memory_space<vmem>>, vector<256x128xbf16>
    tpu.vector_store %arg3[%c0_62, %c0_63], %62 {strides = array<i32>} : memref<256x128xbf16, #tpu.memory_space<vmem>>, vector<256x128xbf16>,
    %cst_64 = arith.constant dense<0.000000e+00> : vector<128xf32>
    %64 = vector.multi_reduction <add>, %61, %cst_64 [0] : vector<256x128xf32> to vector<128xf32>
    %65 = vector.shape_cast %64 : vector<128xf32> to vector<1x128xf32>
    %66 = arith.mulf %61, %61 : vector<256x128xf32>
    %cst_65 = arith.constant dense<0.000000e+00> : vector<128xf32>
    %67 = vector.multi_reduction <add>, %66, %cst_65 [0] : vector<256x128xf32> to vector<128xf32>
    %68 = vector.shape_cast %67 : vector<128xf32> to vector<1x128xf32>
    %69 = vector.shape_cast %65 : vector<1x128xf32> to vector<1x128xf32>
    %70 = vector.broadcast %69 : vector<1x128xf32> to vector<8x128xf32>
    %c0_66 = arith.constant 0 : index
    %c0_67 = arith.constant 0 : index
    %71 = vector.load %arg4[%c0_66, %c0_67] : memref<8x128xf32, #tpu.memory_space<vmem>>, vector<8x128xf32>
    tpu.vector_store %arg4[%c0_66, %c0_67], %70 {strides = array<i32>} : memref<8x128xf32, #tpu.memory_space<vmem>>, vector<8x128xf32>,
    %72 = vector.shape_cast %68 : vector<1x128xf32> to vector<1x128xf32>
    %73 = vector.broadcast %72 : vector<1x128xf32> to vector<8x128xf32>
    %c0_68 = arith.constant 0 : index
    %c0_69 = arith.constant 0 : index
    %74 = vector.load %arg5[%c0_68, %c0_69] : memref<8x128xf32, #tpu.memory_space<vmem>>, vector<8x128xf32>
    tpu.vector_store %arg5[%c0_68, %c0_69], %73 {strides = array<i32>} : memref<8x128xf32, #tpu.memory_space<vmem>>, vector<8x128xf32>,
    return
  }
  func.func @transform_0(%arg0: i32) -> (i32, i32, i32, i32) {
    %c0_i32 = arith.constant 0 : i32
    %c0_i32_0 = arith.constant 0 : i32
    %c0_i32_1 = arith.constant 0 : i32
    %c0_i32_2 = arith.constant 0 : i32
    return %arg0, %c0_i32, %c0_i32_0, %c0_i32_1 : i32, i32, i32, i32
  }
  func.func @transform_1(%arg0: i32) -> (i32, i32, i32) {
    %c0_i32 = arith.constant 0 : i32
    %c0_i32_0 = arith.constant 0 : i32
    %c0_i32_1 = arith.constant 0 : i32
    %c0_i32_2 = arith.constant 0 : i32
    return %c0_i32, %c0_i32_0, %c0_i32_1 : i32, i32, i32
  }
  func.func @transform_2(%arg0: i32) -> (i32, i32) {
    %c0_i32 = arith.constant 0 : i32
    %c0_i32_0 = arith.constant 0 : i32
    return %arg0, %c0_i32 : i32, i32
  }
  func.func @transform_3(%arg0: i32) -> (i32, i32) {
    %c0_i32 = arith.constant 0 : i32
    %c0_i32_0 = arith.constant 0 : i32
    return %arg0, %c0_i32 : i32, i32
  }
  func.func @transform_4(%arg0: i32) -> (i32, i32) {
    %c0_i32 = arith.constant 0 : i32
    %c0_i32_0 = arith.constant 0 : i32
    return %arg0, %c0_i32 : i32, i32
  }
}

module attributes {stable_mosaic.version = 11 : i64} {
  func.func @kernel(%arg0: i32, %arg1: memref<1x18x18x8xbf16, #tpu.memory_space<vmem>>, %arg2: memref<9x8x128xbf16, #tpu.memory_space<vmem>>, %arg3: memref<256x128xbf16, #tpu.memory_space<vmem>>, %arg4: memref<8x128xf32, #tpu.memory_space<vmem>>, %arg5: memref<8x128xf32, #tpu.memory_space<vmem>>) attributes {dimension_semantics = [#tpu.dimension_semantics<parallel>], iteration_bounds = array<i64: 2>, scalar_prefetch = 0 : i64, scratch_operands = 0 : i64, tpu.core_type = #tpu.core_type<tc>, window_params = [{transform_indices = @transform_0, window_bounds = array<i64: 1, 18, 18, 8>}, {pipeline_mode = #tpu.pipeline_mode<synchronous>, transform_indices = @transform_1, window_bounds = array<i64: 9, 8, 128>}, {transform_indices = @transform_2, window_bounds = array<i64: 256, 128>}, {transform_indices = @transform_3, window_bounds = array<i64: 8, 128>}, {transform_indices = @transform_4, window_bounds = array<i64: 8, 128>}]} {
    %c0 = arith.constant 0 : index
    %c0_0 = arith.constant 0 : index
    %c0_1 = arith.constant 0 : index
    %c0_2 = arith.constant 0 : index
    %0 = vector.load %arg1[%c0, %c0_0, %c0_1, %c0_2] : memref<1x18x18x8xbf16, #tpu.memory_space<vmem>>, vector<1x16x16x8xbf16>
    %1 = vector.shape_cast %0 : vector<1x16x16x8xbf16> to vector<16x16x8xbf16>
    %2 = vector.shape_cast %1 : vector<16x16x8xbf16> to vector<256x8xbf16>
    %c0_3 = arith.constant 0 : index
    %c0_4 = arith.constant 0 : index
    %c0_5 = arith.constant 0 : index
    %3 = vector.load %arg2[%c0_3, %c0_4, %c0_5] : memref<9x8x128xbf16, #tpu.memory_space<vmem>>, vector<1x8x128xbf16>
    %4 = vector.shape_cast %3 : vector<1x8x128xbf16> to vector<8x128xbf16>
    %cst = arith.constant dense<0.000000e+00> : vector<256x128xf32>
    %5 = tpu.matmul %2, %4, %cst {dimension_numbers = #tpu.dot_dimension_numbers<[1], [0], [0], [1], [0, 0, 1, 1], [], []>} : vector<256x8xbf16>, vector<8x128xbf16>, vector<256x128xf32> -> vector<256x128xf32>
    %c0_6 = arith.constant 0 : index
    %c0_7 = arith.constant 0 : index
    %c1 = arith.constant 1 : index
    %c0_8 = arith.constant 0 : index
    %6 = vector.load %arg1[%c0_6, %c0_7, %c1, %c0_8] : memref<1x18x18x8xbf16, #tpu.memory_space<vmem>>, vector<1x16x16x8xbf16>
    %7 = vector.shape_cast %6 : vector<1x16x16x8xbf16> to vector<16x16x8xbf16>
    %8 = vector.shape_cast %7 : vector<16x16x8xbf16> to vector<256x8xbf16>
    %c1_9 = arith.constant 1 : index
    %c0_10 = arith.constant 0 : index
    %c0_11 = arith.constant 0 : index
    %9 = vector.load %arg2[%c1_9, %c0_10, %c0_11] : memref<9x8x128xbf16, #tpu.memory_space<vmem>>, vector<1x8x128xbf16>
    %10 = vector.shape_cast %9 : vector<1x8x128xbf16> to vector<8x128xbf16>
    %cst_12 = arith.constant dense<0.000000e+00> : vector<256x128xf32>
    %11 = tpu.matmul %8, %10, %cst_12 {dimension_numbers = #tpu.dot_dimension_numbers<[1], [0], [0], [1], [0, 0, 1, 1], [], []>} : vector<256x8xbf16>, vector<8x128xbf16>, vector<256x128xf32> -> vector<256x128xf32>
    %12 = arith.addf %5, %11 : vector<256x128xf32>
    %c0_13 = arith.constant 0 : index
    %c0_14 = arith.constant 0 : index
    %c2 = arith.constant 2 : index
    %c0_15 = arith.constant 0 : index
    %13 = vector.load %arg1[%c0_13, %c0_14, %c2, %c0_15] : memref<1x18x18x8xbf16, #tpu.memory_space<vmem>>, vector<1x16x16x8xbf16>
    %14 = vector.shape_cast %13 : vector<1x16x16x8xbf16> to vector<16x16x8xbf16>
    %15 = vector.shape_cast %14 : vector<16x16x8xbf16> to vector<256x8xbf16>
    %c2_16 = arith.constant 2 : index
    %c0_17 = arith.constant 0 : index
    %c0_18 = arith.constant 0 : index
    %16 = vector.load %arg2[%c2_16, %c0_17, %c0_18] : memref<9x8x128xbf16, #tpu.memory_space<vmem>>, vector<1x8x128xbf16>
    %17 = vector.shape_cast %16 : vector<1x8x128xbf16> to vector<8x128xbf16>
    %cst_19 = arith.constant dense<0.000000e+00> : vector<256x128xf32>
    %18 = tpu.matmul %15, %17, %cst_19 {dimension_numbers = #tpu.dot_dimension_numbers<[1], [0], [0], [1], [0, 0, 1, 1], [], []>} : vector<256x8xbf16>, vector<8x128xbf16>, vector<256x128xf32> -> vector<256x128xf32>
    %19 = arith.addf %12, %18 : vector<256x128xf32>
    %c0_20 = arith.constant 0 : index
    %c1_21 = arith.constant 1 : index
    %c0_22 = arith.constant 0 : index
    %c0_23 = arith.constant 0 : index
    %20 = vector.load %arg1[%c0_20, %c1_21, %c0_22, %c0_23] : memref<1x18x18x8xbf16, #tpu.memory_space<vmem>>, vector<1x16x16x8xbf16>
    %21 = vector.shape_cast %20 : vector<1x16x16x8xbf16> to vector<16x16x8xbf16>
    %22 = vector.shape_cast %21 : vector<16x16x8xbf16> to vector<256x8xbf16>
    %c3 = arith.constant 3 : index
    %c0_24 = arith.constant 0 : index
    %c0_25 = arith.constant 0 : index
    %23 = vector.load %arg2[%c3, %c0_24, %c0_25] : memref<9x8x128xbf16, #tpu.memory_space<vmem>>, vector<1x8x128xbf16>
    %24 = vector.shape_cast %23 : vector<1x8x128xbf16> to vector<8x128xbf16>
    %cst_26 = arith.constant dense<0.000000e+00> : vector<256x128xf32>
    %25 = tpu.matmul %22, %24, %cst_26 {dimension_numbers = #tpu.dot_dimension_numbers<[1], [0], [0], [1], [0, 0, 1, 1], [], []>} : vector<256x8xbf16>, vector<8x128xbf16>, vector<256x128xf32> -> vector<256x128xf32>
    %26 = arith.addf %19, %25 : vector<256x128xf32>
    %c0_27 = arith.constant 0 : index
    %c1_28 = arith.constant 1 : index
    %c1_29 = arith.constant 1 : index
    %c0_30 = arith.constant 0 : index
    %27 = vector.load %arg1[%c0_27, %c1_28, %c1_29, %c0_30] : memref<1x18x18x8xbf16, #tpu.memory_space<vmem>>, vector<1x16x16x8xbf16>
    %28 = vector.shape_cast %27 : vector<1x16x16x8xbf16> to vector<16x16x8xbf16>
    %29 = vector.shape_cast %28 : vector<16x16x8xbf16> to vector<256x8xbf16>
    %c4 = arith.constant 4 : index
    %c0_31 = arith.constant 0 : index
    %c0_32 = arith.constant 0 : index
    %30 = vector.load %arg2[%c4, %c0_31, %c0_32] : memref<9x8x128xbf16, #tpu.memory_space<vmem>>, vector<1x8x128xbf16>
    %31 = vector.shape_cast %30 : vector<1x8x128xbf16> to vector<8x128xbf16>
    %cst_33 = arith.constant dense<0.000000e+00> : vector<256x128xf32>
    %32 = tpu.matmul %29, %31, %cst_33 {dimension_numbers = #tpu.dot_dimension_numbers<[1], [0], [0], [1], [0, 0, 1, 1], [], []>} : vector<256x8xbf16>, vector<8x128xbf16>, vector<256x128xf32> -> vector<256x128xf32>
    %33 = arith.addf %26, %32 : vector<256x128xf32>
    %c0_34 = arith.constant 0 : index
    %c1_35 = arith.constant 1 : index
    %c2_36 = arith.constant 2 : index
    %c0_37 = arith.constant 0 : index
    %34 = vector.load %arg1[%c0_34, %c1_35, %c2_36, %c0_37] : memref<1x18x18x8xbf16, #tpu.memory_space<vmem>>, vector<1x16x16x8xbf16>
    %35 = vector.shape_cast %34 : vector<1x16x16x8xbf16> to vector<16x16x8xbf16>
    %36 = vector.shape_cast %35 : vector<16x16x8xbf16> to vector<256x8xbf16>
    %c5 = arith.constant 5 : index
    %c0_38 = arith.constant 0 : index
    %c0_39 = arith.constant 0 : index
    %37 = vector.load %arg2[%c5, %c0_38, %c0_39] : memref<9x8x128xbf16, #tpu.memory_space<vmem>>, vector<1x8x128xbf16>
    %38 = vector.shape_cast %37 : vector<1x8x128xbf16> to vector<8x128xbf16>
    %cst_40 = arith.constant dense<0.000000e+00> : vector<256x128xf32>
    %39 = tpu.matmul %36, %38, %cst_40 {dimension_numbers = #tpu.dot_dimension_numbers<[1], [0], [0], [1], [0, 0, 1, 1], [], []>} : vector<256x8xbf16>, vector<8x128xbf16>, vector<256x128xf32> -> vector<256x128xf32>
    %40 = arith.addf %33, %39 : vector<256x128xf32>
    %c0_41 = arith.constant 0 : index
    %c2_42 = arith.constant 2 : index
    %c0_43 = arith.constant 0 : index
    %c0_44 = arith.constant 0 : index
    %41 = vector.load %arg1[%c0_41, %c2_42, %c0_43, %c0_44] : memref<1x18x18x8xbf16, #tpu.memory_space<vmem>>, vector<1x16x16x8xbf16>
    %42 = vector.shape_cast %41 : vector<1x16x16x8xbf16> to vector<16x16x8xbf16>
    %43 = vector.shape_cast %42 : vector<16x16x8xbf16> to vector<256x8xbf16>
    %c6 = arith.constant 6 : index
    %c0_45 = arith.constant 0 : index
    %c0_46 = arith.constant 0 : index
    %44 = vector.load %arg2[%c6, %c0_45, %c0_46] : memref<9x8x128xbf16, #tpu.memory_space<vmem>>, vector<1x8x128xbf16>
    %45 = vector.shape_cast %44 : vector<1x8x128xbf16> to vector<8x128xbf16>
    %cst_47 = arith.constant dense<0.000000e+00> : vector<256x128xf32>
    %46 = tpu.matmul %43, %45, %cst_47 {dimension_numbers = #tpu.dot_dimension_numbers<[1], [0], [0], [1], [0, 0, 1, 1], [], []>} : vector<256x8xbf16>, vector<8x128xbf16>, vector<256x128xf32> -> vector<256x128xf32>
    %47 = arith.addf %40, %46 : vector<256x128xf32>
    %c0_48 = arith.constant 0 : index
    %c2_49 = arith.constant 2 : index
    %c1_50 = arith.constant 1 : index
    %c0_51 = arith.constant 0 : index
    %48 = vector.load %arg1[%c0_48, %c2_49, %c1_50, %c0_51] : memref<1x18x18x8xbf16, #tpu.memory_space<vmem>>, vector<1x16x16x8xbf16>
    %49 = vector.shape_cast %48 : vector<1x16x16x8xbf16> to vector<16x16x8xbf16>
    %50 = vector.shape_cast %49 : vector<16x16x8xbf16> to vector<256x8xbf16>
    %c7 = arith.constant 7 : index
    %c0_52 = arith.constant 0 : index
    %c0_53 = arith.constant 0 : index
    %51 = vector.load %arg2[%c7, %c0_52, %c0_53] : memref<9x8x128xbf16, #tpu.memory_space<vmem>>, vector<1x8x128xbf16>
    %52 = vector.shape_cast %51 : vector<1x8x128xbf16> to vector<8x128xbf16>
    %cst_54 = arith.constant dense<0.000000e+00> : vector<256x128xf32>
    %53 = tpu.matmul %50, %52, %cst_54 {dimension_numbers = #tpu.dot_dimension_numbers<[1], [0], [0], [1], [0, 0, 1, 1], [], []>} : vector<256x8xbf16>, vector<8x128xbf16>, vector<256x128xf32> -> vector<256x128xf32>
    %54 = arith.addf %47, %53 : vector<256x128xf32>
    %c0_55 = arith.constant 0 : index
    %c2_56 = arith.constant 2 : index
    %c2_57 = arith.constant 2 : index
    %c0_58 = arith.constant 0 : index
    %55 = vector.load %arg1[%c0_55, %c2_56, %c2_57, %c0_58] : memref<1x18x18x8xbf16, #tpu.memory_space<vmem>>, vector<1x16x16x8xbf16>
    %56 = vector.shape_cast %55 : vector<1x16x16x8xbf16> to vector<16x16x8xbf16>
    %57 = vector.shape_cast %56 : vector<16x16x8xbf16> to vector<256x8xbf16>
    %c8 = arith.constant 8 : index
    %c0_59 = arith.constant 0 : index
    %c0_60 = arith.constant 0 : index
    %58 = vector.load %arg2[%c8, %c0_59, %c0_60] : memref<9x8x128xbf16, #tpu.memory_space<vmem>>, vector<1x8x128xbf16>
    %59 = vector.shape_cast %58 : vector<1x8x128xbf16> to vector<8x128xbf16>
    %cst_61 = arith.constant dense<0.000000e+00> : vector<256x128xf32>
    %60 = tpu.matmul %57, %59, %cst_61 {dimension_numbers = #tpu.dot_dimension_numbers<[1], [0], [0], [1], [0, 0, 1, 1], [], []>} : vector<256x8xbf16>, vector<8x128xbf16>, vector<256x128xf32> -> vector<256x128xf32>
    %61 = arith.addf %54, %60 : vector<256x128xf32>
    %62 = arith.truncf %61 : vector<256x128xf32> to vector<256x128xbf16>
    %c0_62 = arith.constant 0 : index
    %c0_63 = arith.constant 0 : index
    %63 = vector.load %arg3[%c0_62, %c0_63] : memref<256x128xbf16, #tpu.memory_space<vmem>>, vector<256x128xbf16>
    tpu.vector_store %arg3[%c0_62, %c0_63], %62 {strides = array<i32>} : memref<256x128xbf16, #tpu.memory_space<vmem>>, vector<256x128xbf16>,
    %cst_64 = arith.constant dense<0.000000e+00> : vector<128xf32>
    %64 = vector.multi_reduction <add>, %61, %cst_64 [0] : vector<256x128xf32> to vector<128xf32>
    %65 = vector.shape_cast %64 : vector<128xf32> to vector<1x128xf32>
    %66 = arith.mulf %61, %61 : vector<256x128xf32>
    %cst_65 = arith.constant dense<0.000000e+00> : vector<128xf32>
    %67 = vector.multi_reduction <add>, %66, %cst_65 [0] : vector<256x128xf32> to vector<128xf32>
    %68 = vector.shape_cast %67 : vector<128xf32> to vector<1x128xf32>
    %69 = vector.shape_cast %65 : vector<1x128xf32> to vector<1x128xf32>
    %70 = vector.broadcast %69 : vector<1x128xf32> to vector<8x128xf32>
    %c0_66 = arith.constant 0 : index
    %c0_67 = arith.constant 0 : index
    %71 = vector.load %arg4[%c0_66, %c0_67] : memref<8x128xf32, #tpu.memory_space<vmem>>, vector<8x128xf32>
    tpu.vector_store %arg4[%c0_66, %c0_67], %70 {strides = array<i32>} : memref<8x128xf32, #tpu.memory_space<vmem>>, vector<8x128xf32>,
    %72 = vector.shape_cast %68 : vector<1x128xf32> to vector<1x128xf32>
    %73 = vector.broadcast %72 : vector<1x128xf32> to vector<8x128xf32>
    %c0_68 = arith.constant 0 : index
    %c0_69 = arith.constant 0 : index
    %74 = vector.load %arg5[%c0_68, %c0_69] : memref<8x128xf32, #tpu.memory_space<vmem>>, vector<8x128xf32>
    tpu.vector_store %arg5[%c0_68, %c0_69], %73 {strides = array<i32>} : memref<8x128xf32, #tpu.memory_space<vmem>>, vector<8x128xf32>,
    return
  }
  func.func @transform_0(%arg0: i32) -> (i32, i32, i32, i32) {
    %c0_i32 = arith.constant 0 : i32
    %c0_i32_0 = arith.constant 0 : i32
    %c0_i32_1 = arith.constant 0 : i32
    %c0_i32_2 = arith.constant 0 : i32
    return %arg0, %c0_i32, %c0_i32_0, %c0_i32_1 : i32, i32, i32, i32
  }
  func.func @transform_1(%arg0: i32) -> (i32, i32, i32) {
    %c0_i32 = arith.constant 0 : i32
    %c0_i32_0 = arith.constant 0 : i32
    %c0_i32_1 = arith.constant 0 : i32
    %c0_i32_2 = arith.constant 0 : i32
    return %c0_i32, %c0_i32_0, %c0_i32_1 : i32, i32, i32
  }
  func.func @transform_2(%arg0: i32) -> (i32, i32) {
    %c0_i32 = arith.constant 0 : i32
    %c0_i32_0 = arith.constant 0 : i32
    return %arg0, %c0_i32 : i32, i32
  }
  func.func @transform_3(%arg0: i32) -> (i32, i32) {
    %c0_i32 = arith.constant 0 : i32
    %c0_i32_0 = arith.constant 0 : i32
    return %arg0, %c0_i32 : i32, i32
  }
  func.func @transform_4(%arg0: i32) -> (i32, i32) {
    %c0_i32 = arith.constant 0 : i32
    %c0_i32_0 = arith.constant 0 : i32
    return %arg0, %c0_i32 : i32, i32
  }
}

module attributes {stable_mosaic.version = 11 : i64} {
  func.func @kernel(%arg0: i32, %arg1: memref<1x9x9x8xbf16, #tpu.memory_space<vmem>>, %arg2: memref<1x9x9x8xbf16, #tpu.memory_space<vmem>>, %arg3: memref<1x9x9x8xbf16, #tpu.memory_space<vmem>>, %arg4: memref<1x9x9x8xbf16, #tpu.memory_space<vmem>>, %arg5: memref<9x8x128xbf16, #tpu.memory_space<vmem>>, %arg6: memref<64x128xbf16, #tpu.memory_space<vmem>>, %arg7: memref<8x128xf32, #tpu.memory_space<vmem>>, %arg8: memref<8x128xf32, #tpu.memory_space<vmem>>) attributes {dimension_semantics = [#tpu.dimension_semantics<parallel>], iteration_bounds = array<i64: 2>, scalar_prefetch = 0 : i64, scratch_operands = 0 : i64, tpu.core_type = #tpu.core_type<tc>, window_params = [{transform_indices = @transform_0, window_bounds = array<i64: 1, 9, 9, 8>}, {transform_indices = @transform_1, window_bounds = array<i64: 1, 9, 9, 8>}, {transform_indices = @transform_2, window_bounds = array<i64: 1, 9, 9, 8>}, {transform_indices = @transform_3, window_bounds = array<i64: 1, 9, 9, 8>}, {pipeline_mode = #tpu.pipeline_mode<synchronous>, transform_indices = @transform_4, window_bounds = array<i64: 9, 8, 128>}, {transform_indices = @transform_5, window_bounds = array<i64: 64, 128>}, {transform_indices = @transform_6, window_bounds = array<i64: 8, 128>}, {transform_indices = @transform_7, window_bounds = array<i64: 8, 128>}]} {
    %c0 = arith.constant 0 : index
    %c0_0 = arith.constant 0 : index
    %c0_1 = arith.constant 0 : index
    %c0_2 = arith.constant 0 : index
    %0 = vector.load %arg1[%c0, %c0_0, %c0_1, %c0_2] : memref<1x9x9x8xbf16, #tpu.memory_space<vmem>>, vector<1x8x8x8xbf16>
    %1 = vector.shape_cast %0 : vector<1x8x8x8xbf16> to vector<8x8x8xbf16>
    %2 = vector.shape_cast %1 : vector<8x8x8xbf16> to vector<64x8xbf16>
    %c0_3 = arith.constant 0 : index
    %c0_4 = arith.constant 0 : index
    %c0_5 = arith.constant 0 : index
    %3 = vector.load %arg5[%c0_3, %c0_4, %c0_5] : memref<9x8x128xbf16, #tpu.memory_space<vmem>>, vector<1x8x128xbf16>
    %4 = vector.shape_cast %3 : vector<1x8x128xbf16> to vector<8x128xbf16>
    %cst = arith.constant dense<0.000000e+00> : vector<64x128xf32>
    %5 = tpu.matmul %2, %4, %cst {dimension_numbers = #tpu.dot_dimension_numbers<[1], [0], [0], [1], [0, 0, 1, 1], [], []>} : vector<64x8xbf16>, vector<8x128xbf16>, vector<64x128xf32> -> vector<64x128xf32>
    %c0_6 = arith.constant 0 : index
    %c0_7 = arith.constant 0 : index
    %c0_8 = arith.constant 0 : index
    %c0_9 = arith.constant 0 : index
    %6 = vector.load %arg2[%c0_6, %c0_7, %c0_8, %c0_9] : memref<1x9x9x8xbf16, #tpu.memory_space<vmem>>, vector<1x8x8x8xbf16>
    %7 = vector.shape_cast %6 : vector<1x8x8x8xbf16> to vector<8x8x8xbf16>
    %8 = vector.shape_cast %7 : vector<8x8x8xbf16> to vector<64x8xbf16>
    %c1 = arith.constant 1 : index
    %c0_10 = arith.constant 0 : index
    %c0_11 = arith.constant 0 : index
    %9 = vector.load %arg5[%c1, %c0_10, %c0_11] : memref<9x8x128xbf16, #tpu.memory_space<vmem>>, vector<1x8x128xbf16>
    %10 = vector.shape_cast %9 : vector<1x8x128xbf16> to vector<8x128xbf16>
    %cst_12 = arith.constant dense<0.000000e+00> : vector<64x128xf32>
    %11 = tpu.matmul %8, %10, %cst_12 {dimension_numbers = #tpu.dot_dimension_numbers<[1], [0], [0], [1], [0, 0, 1, 1], [], []>} : vector<64x8xbf16>, vector<8x128xbf16>, vector<64x128xf32> -> vector<64x128xf32>
    %12 = arith.addf %5, %11 : vector<64x128xf32>
    %c0_13 = arith.constant 0 : index
    %c0_14 = arith.constant 0 : index
    %c1_15 = arith.constant 1 : index
    %c0_16 = arith.constant 0 : index
    %13 = vector.load %arg1[%c0_13, %c0_14, %c1_15, %c0_16] : memref<1x9x9x8xbf16, #tpu.memory_space<vmem>>, vector<1x8x8x8xbf16>
    %14 = vector.shape_cast %13 : vector<1x8x8x8xbf16> to vector<8x8x8xbf16>
    %15 = vector.shape_cast %14 : vector<8x8x8xbf16> to vector<64x8xbf16>
    %c2 = arith.constant 2 : index
    %c0_17 = arith.constant 0 : index
    %c0_18 = arith.constant 0 : index
    %16 = vector.load %arg5[%c2, %c0_17, %c0_18] : memref<9x8x128xbf16, #tpu.memory_space<vmem>>, vector<1x8x128xbf16>
    %17 = vector.shape_cast %16 : vector<1x8x128xbf16> to vector<8x128xbf16>
    %cst_19 = arith.constant dense<0.000000e+00> : vector<64x128xf32>
    %18 = tpu.matmul %15, %17, %cst_19 {dimension_numbers = #tpu.dot_dimension_numbers<[1], [0], [0], [1], [0, 0, 1, 1], [], []>} : vector<64x8xbf16>, vector<8x128xbf16>, vector<64x128xf32> -> vector<64x128xf32>
    %19 = arith.addf %12, %18 : vector<64x128xf32>
    %c0_20 = arith.constant 0 : index
    %c0_21 = arith.constant 0 : index
    %c0_22 = arith.constant 0 : index
    %c0_23 = arith.constant 0 : index
    %20 = vector.load %arg3[%c0_20, %c0_21, %c0_22, %c0_23] : memref<1x9x9x8xbf16, #tpu.memory_space<vmem>>, vector<1x8x8x8xbf16>
    %21 = vector.shape_cast %20 : vector<1x8x8x8xbf16> to vector<8x8x8xbf16>
    %22 = vector.shape_cast %21 : vector<8x8x8xbf16> to vector<64x8xbf16>
    %c3 = arith.constant 3 : index
    %c0_24 = arith.constant 0 : index
    %c0_25 = arith.constant 0 : index
    %23 = vector.load %arg5[%c3, %c0_24, %c0_25] : memref<9x8x128xbf16, #tpu.memory_space<vmem>>, vector<1x8x128xbf16>
    %24 = vector.shape_cast %23 : vector<1x8x128xbf16> to vector<8x128xbf16>
    %cst_26 = arith.constant dense<0.000000e+00> : vector<64x128xf32>
    %25 = tpu.matmul %22, %24, %cst_26 {dimension_numbers = #tpu.dot_dimension_numbers<[1], [0], [0], [1], [0, 0, 1, 1], [], []>} : vector<64x8xbf16>, vector<8x128xbf16>, vector<64x128xf32> -> vector<64x128xf32>
    %26 = arith.addf %19, %25 : vector<64x128xf32>
    %c0_27 = arith.constant 0 : index
    %c0_28 = arith.constant 0 : index
    %c0_29 = arith.constant 0 : index
    %c0_30 = arith.constant 0 : index
    %27 = vector.load %arg4[%c0_27, %c0_28, %c0_29, %c0_30] : memref<1x9x9x8xbf16, #tpu.memory_space<vmem>>, vector<1x8x8x8xbf16>
    %28 = vector.shape_cast %27 : vector<1x8x8x8xbf16> to vector<8x8x8xbf16>
    %29 = vector.shape_cast %28 : vector<8x8x8xbf16> to vector<64x8xbf16>
    %c4 = arith.constant 4 : index
    %c0_31 = arith.constant 0 : index
    %c0_32 = arith.constant 0 : index
    %30 = vector.load %arg5[%c4, %c0_31, %c0_32] : memref<9x8x128xbf16, #tpu.memory_space<vmem>>, vector<1x8x128xbf16>
    %31 = vector.shape_cast %30 : vector<1x8x128xbf16> to vector<8x128xbf16>
    %cst_33 = arith.constant dense<0.000000e+00> : vector<64x128xf32>
    %32 = tpu.matmul %29, %31, %cst_33 {dimension_numbers = #tpu.dot_dimension_numbers<[1], [0], [0], [1], [0, 0, 1, 1], [], []>} : vector<64x8xbf16>, vector<8x128xbf16>, vector<64x128xf32> -> vector<64x128xf32>
    %33 = arith.addf %26, %32 : vector<64x128xf32>
    %c0_34 = arith.constant 0 : index
    %c0_35 = arith.constant 0 : index
    %c1_36 = arith.constant 1 : index
    %c0_37 = arith.constant 0 : index
    %34 = vector.load %arg3[%c0_34, %c0_35, %c1_36, %c0_37] : memref<1x9x9x8xbf16, #tpu.memory_space<vmem>>, vector<1x8x8x8xbf16>
    %35 = vector.shape_cast %34 : vector<1x8x8x8xbf16> to vector<8x8x8xbf16>
    %36 = vector.shape_cast %35 : vector<8x8x8xbf16> to vector<64x8xbf16>
    %c5 = arith.constant 5 : index
    %c0_38 = arith.constant 0 : index
    %c0_39 = arith.constant 0 : index
    %37 = vector.load %arg5[%c5, %c0_38, %c0_39] : memref<9x8x128xbf16, #tpu.memory_space<vmem>>, vector<1x8x128xbf16>
    %38 = vector.shape_cast %37 : vector<1x8x128xbf16> to vector<8x128xbf16>
    %cst_40 = arith.constant dense<0.000000e+00> : vector<64x128xf32>
    %39 = tpu.matmul %36, %38, %cst_40 {dimension_numbers = #tpu.dot_dimension_numbers<[1], [0], [0], [1], [0, 0, 1, 1], [], []>} : vector<64x8xbf16>, vector<8x128xbf16>, vector<64x128xf32> -> vector<64x128xf32>
    %40 = arith.addf %33, %39 : vector<64x128xf32>
    %c0_41 = arith.constant 0 : index
    %c1_42 = arith.constant 1 : index
    %c0_43 = arith.constant 0 : index
    %c0_44 = arith.constant 0 : index
    %41 = vector.load %arg1[%c0_41, %c1_42, %c0_43, %c0_44] : memref<1x9x9x8xbf16, #tpu.memory_space<vmem>>, vector<1x8x8x8xbf16>
    %42 = vector.shape_cast %41 : vector<1x8x8x8xbf16> to vector<8x8x8xbf16>
    %43 = vector.shape_cast %42 : vector<8x8x8xbf16> to vector<64x8xbf16>
    %c6 = arith.constant 6 : index
    %c0_45 = arith.constant 0 : index
    %c0_46 = arith.constant 0 : index
    %44 = vector.load %arg5[%c6, %c0_45, %c0_46] : memref<9x8x128xbf16, #tpu.memory_space<vmem>>, vector<1x8x128xbf16>
    %45 = vector.shape_cast %44 : vector<1x8x128xbf16> to vector<8x128xbf16>
    %cst_47 = arith.constant dense<0.000000e+00> : vector<64x128xf32>
    %46 = tpu.matmul %43, %45, %cst_47 {dimension_numbers = #tpu.dot_dimension_numbers<[1], [0], [0], [1], [0, 0, 1, 1], [], []>} : vector<64x8xbf16>, vector<8x128xbf16>, vector<64x128xf32> -> vector<64x128xf32>
    %47 = arith.addf %40, %46 : vector<64x128xf32>
    %c0_48 = arith.constant 0 : index
    %c1_49 = arith.constant 1 : index
    %c0_50 = arith.constant 0 : index
    %c0_51 = arith.constant 0 : index
    %48 = vector.load %arg2[%c0_48, %c1_49, %c0_50, %c0_51] : memref<1x9x9x8xbf16, #tpu.memory_space<vmem>>, vector<1x8x8x8xbf16>
    %49 = vector.shape_cast %48 : vector<1x8x8x8xbf16> to vector<8x8x8xbf16>
    %50 = vector.shape_cast %49 : vector<8x8x8xbf16> to vector<64x8xbf16>
    %c7 = arith.constant 7 : index
    %c0_52 = arith.constant 0 : index
    %c0_53 = arith.constant 0 : index
    %51 = vector.load %arg5[%c7, %c0_52, %c0_53] : memref<9x8x128xbf16, #tpu.memory_space<vmem>>, vector<1x8x128xbf16>
    %52 = vector.shape_cast %51 : vector<1x8x128xbf16> to vector<8x128xbf16>
    %cst_54 = arith.constant dense<0.000000e+00> : vector<64x128xf32>
    %53 = tpu.matmul %50, %52, %cst_54 {dimension_numbers = #tpu.dot_dimension_numbers<[1], [0], [0], [1], [0, 0, 1, 1], [], []>} : vector<64x8xbf16>, vector<8x128xbf16>, vector<64x128xf32> -> vector<64x128xf32>
    %54 = arith.addf %47, %53 : vector<64x128xf32>
    %c0_55 = arith.constant 0 : index
    %c1_56 = arith.constant 1 : index
    %c1_57 = arith.constant 1 : index
    %c0_58 = arith.constant 0 : index
    %55 = vector.load %arg1[%c0_55, %c1_56, %c1_57, %c0_58] : memref<1x9x9x8xbf16, #tpu.memory_space<vmem>>, vector<1x8x8x8xbf16>
    %56 = vector.shape_cast %55 : vector<1x8x8x8xbf16> to vector<8x8x8xbf16>
    %57 = vector.shape_cast %56 : vector<8x8x8xbf16> to vector<64x8xbf16>
    %c8 = arith.constant 8 : index
    %c0_59 = arith.constant 0 : index
    %c0_60 = arith.constant 0 : index
    %58 = vector.load %arg5[%c8, %c0_59, %c0_60] : memref<9x8x128xbf16, #tpu.memory_space<vmem>>, vector<1x8x128xbf16>
    %59 = vector.shape_cast %58 : vector<1x8x128xbf16> to vector<8x128xbf16>
    %cst_61 = arith.constant dense<0.000000e+00> : vector<64x128xf32>
    %60 = tpu.matmul %57, %59, %cst_61 {dimension_numbers = #tpu.dot_dimension_numbers<[1], [0], [0], [1], [0, 0, 1, 1], [], []>} : vector<64x8xbf16>, vector<8x128xbf16>, vector<64x128xf32> -> vector<64x128xf32>
    %61 = arith.addf %54, %60 : vector<64x128xf32>
    %62 = arith.truncf %61 : vector<64x128xf32> to vector<64x128xbf16>
    %c0_62 = arith.constant 0 : index
    %c0_63 = arith.constant 0 : index
    %63 = vector.load %arg6[%c0_62, %c0_63] : memref<64x128xbf16, #tpu.memory_space<vmem>>, vector<64x128xbf16>
    tpu.vector_store %arg6[%c0_62, %c0_63], %62 {strides = array<i32>} : memref<64x128xbf16, #tpu.memory_space<vmem>>, vector<64x128xbf16>,
    %cst_64 = arith.constant dense<0.000000e+00> : vector<128xf32>
    %64 = vector.multi_reduction <add>, %61, %cst_64 [0] : vector<64x128xf32> to vector<128xf32>
    %65 = vector.shape_cast %64 : vector<128xf32> to vector<1x128xf32>
    %66 = arith.mulf %61, %61 : vector<64x128xf32>
    %cst_65 = arith.constant dense<0.000000e+00> : vector<128xf32>
    %67 = vector.multi_reduction <add>, %66, %cst_65 [0] : vector<64x128xf32> to vector<128xf32>
    %68 = vector.shape_cast %67 : vector<128xf32> to vector<1x128xf32>
    %69 = vector.shape_cast %65 : vector<1x128xf32> to vector<1x128xf32>
    %70 = vector.broadcast %69 : vector<1x128xf32> to vector<8x128xf32>
    %c0_66 = arith.constant 0 : index
    %c0_67 = arith.constant 0 : index
    %71 = vector.load %arg7[%c0_66, %c0_67] : memref<8x128xf32, #tpu.memory_space<vmem>>, vector<8x128xf32>
    tpu.vector_store %arg7[%c0_66, %c0_67], %70 {strides = array<i32>} : memref<8x128xf32, #tpu.memory_space<vmem>>, vector<8x128xf32>,
    %72 = vector.shape_cast %68 : vector<1x128xf32> to vector<1x128xf32>
    %73 = vector.broadcast %72 : vector<1x128xf32> to vector<8x128xf32>
    %c0_68 = arith.constant 0 : index
    %c0_69 = arith.constant 0 : index
    %74 = vector.load %arg8[%c0_68, %c0_69] : memref<8x128xf32, #tpu.memory_space<vmem>>, vector<8x128xf32>
    tpu.vector_store %arg8[%c0_68, %c0_69], %73 {strides = array<i32>} : memref<8x128xf32, #tpu.memory_space<vmem>>, vector<8x128xf32>,
    return
  }
  func.func @transform_0(%arg0: i32) -> (i32, i32, i32, i32) {
    %c0_i32 = arith.constant 0 : i32
    %c0_i32_0 = arith.constant 0 : i32
    %c0_i32_1 = arith.constant 0 : i32
    %c0_i32_2 = arith.constant 0 : i32
    return %arg0, %c0_i32, %c0_i32_0, %c0_i32_1 : i32, i32, i32, i32
  }
  func.func @transform_1(%arg0: i32) -> (i32, i32, i32, i32) {
    %c0_i32 = arith.constant 0 : i32
    %c0_i32_0 = arith.constant 0 : i32
    %c0_i32_1 = arith.constant 0 : i32
    %c0_i32_2 = arith.constant 0 : i32
    return %arg0, %c0_i32, %c0_i32_0, %c0_i32_1 : i32, i32, i32, i32
  }
  func.func @transform_2(%arg0: i32) -> (i32, i32, i32, i32) {
    %c0_i32 = arith.constant 0 : i32
    %c0_i32_0 = arith.constant 0 : i32
    %c0_i32_1 = arith.constant 0 : i32
    %c0_i32_2 = arith.constant 0 : i32
    return %arg0, %c0_i32, %c0_i32_0, %c0_i32_1 : i32, i32, i32, i32
  }
  func.func @transform_3(%arg0: i32) -> (i32, i32, i32, i32) {
    %c0_i32 = arith.constant 0 : i32
    %c0_i32_0 = arith.constant 0 : i32
    %c0_i32_1 = arith.constant 0 : i32
    %c0_i32_2 = arith.constant 0 : i32
    return %arg0, %c0_i32, %c0_i32_0, %c0_i32_1 : i32, i32, i32, i32
  }
  func.func @transform_4(%arg0: i32) -> (i32, i32, i32) {
    %c0_i32 = arith.constant 0 : i32
    %c0_i32_0 = arith.constant 0 : i32
    %c0_i32_1 = arith.constant 0 : i32
    %c0_i32_2 = arith.constant 0 : i32
    return %c0_i32, %c0_i32_0, %c0_i32_1 : i32, i32, i32
  }
  func.func @transform_5(%arg0: i32) -> (i32, i32) {
    %c0_i32 = arith.constant 0 : i32
    %c0_i32_0 = arith.constant 0 : i32
    return %arg0, %c0_i32 : i32, i32
  }
  func.func @transform_6(%arg0: i32) -> (i32, i32) {
    %c0_i32 = arith.constant 0 : i32
    %c0_i32_0 = arith.constant 0 : i32
    return %arg0, %c0_i32 : i32, i32
  }
  func.func @transform_7(%arg0: i32) -> (i32, i32) {
    %c0_i32 = arith.constant 0 : i32
    %c0_i32_0 = arith.constant 0 : i32
    return %arg0, %c0_i32 : i32, i32
  }
}

</mosaic_0001>

<llo_original>
// kernel: downsample_layer.5
$region0: #{downsample_layer.5}
  #allocation0 [shape = 'u32[]', space=smem, size = 0x4, offset = 0x4, fixed_abs, tag = 'smem constant byte address 0x4 - core index']
  #allocation1 [shape = 'u32[144,128]{1,0:T(1,128)}', space=vmem, size = 0x12000, scoped, tag = 'internal scratch']
  %s0 = inlined_call_operand.vmem [shape: bf16[2,9,9,8], index: 0, kind: input, shape index: {}]
  %s1 = inlined_call_operand.vmem [shape: bf16[2,9,9,8], index: 1, kind: input, shape index: {}]
  %s2 = inlined_call_operand.vmem [shape: bf16[2,9,9,8], index: 2, kind: input, shape index: {}]
  %s3 = inlined_call_operand.vmem [shape: bf16[2,9,9,8], index: 3, kind: input, shape index: {}]
  %s4 = inlined_call_operand.vmem [shape: bf16[9,8,128], index: 4, kind: input, shape index: {}]
  %s5 = inlined_call_operand.vmem [shape: bf16[128,128], index: 5, kind: output, shape index: {0}]
  %s6 = inlined_call_operand.vmem [shape: f32[16,128], index: 6, kind: output, shape index: {1}]
  %s7 = inlined_call_operand.vmem [shape: f32[16,128], index: 7, kind: output, shape index: {2}]
  %8 = xla_tuple %s5, %s6, %s7
  %s9 = sld [smem:[#allocation0]]
  $region69: #{downsample_layer.5} parent=0
    _
  %s11 = ssub.s32 1, %s9
  %s12 = scalar_select 0, %s11, %s9
  loop: start=0, step=1, limit=4
  $region2: #{downsample_layer.5} parent=0 // loop_pre_header
    _
  $region3: #{downsample_layer.5} parent=0 // loop_header
    %s14 = sphi 0, %s18
    %p15 = scmp.ge.s32.totalorder %s14, 4
    %s24 = sphi 0, %s26
    %s27 = sphi 0, %s24
    %s28 = sphi 0, %s27
    %s44 = sphi 0, %s28
    %s50 = sphi 0, %s52
    %s53 = sphi 0, %s50
    %s54 = sphi 0, %s53
    %s70 = sphi 0, %s54
    %s76 = sphi 0, %s78
    %s79 = sphi 0, %s76
    %s80 = sphi 0, %s79
    %s96 = sphi 0, %s80
    %s102 = sphi 0, %s104
    %s105 = sphi 0, %s102
    %s106 = sphi 0, %s105
    %s122 = sphi 0, %s106
    %s126 = sphi 0, %s126
    %s128 = sphi 0, %s126
    %s129 = sphi 0, %s128
    %s143 = sphi 0, %s129
    %s149 = sphi 0, %s151
    %s152 = sphi 0, %s149
    %s153 = sphi 0, %s152
    %s169 = sphi 0, %s153
    %s175 = sphi 0, %s177
    %s178 = sphi 0, %s175
    %s179 = sphi 0, %s178
    %s195 = sphi 0, %s179
    %s201 = sphi 0, %s203
    %s204 = sphi 0, %s201
    %s205 = sphi 0, %s204
    %s221 = sphi 0, %s205
  $region4: #{downsample_layer.5} parent=0 // loop_header_branch
    %17 = sbr.rel (%p15) target = $region8
  $region5: #{downsample_layer.5} parent=0 // loop_body
    %s19 = ssub.s32 %s14, 1
    %s20 = ssub.s32 %s14, 2
    %s21 = sadd.s32 %s14, 1
    %s22 = ssub.s32 %s14, %s21
    %p23 = scmp.eq.s32.totalorder %s22, 0
    %s25 = sadd.s32 %s24, 1
    %s26 = scalar_select %p23, %s24, %s25
    %p29 = pneg %p23
    %p30 = scmp.eq.s32.totalorder %s14, 1
    %p31 = por %p29, %p30
    %p32 = scmp.ne.s32.totalorder %s24, %s27
    %p33 = scmp.eq.s32.totalorder %s14, 0
    %p34 = por %p32, %p33
    %p35 = scmp.ne.s32.totalorder %s24, %s27
    %p36 = scmp.eq.s32.totalorder %s19, 1
    %p37 = por %p35, %p36
    %p38 = scmp.ne.s32.totalorder %s27, %s28
    %p39 = scmp.eq.s32.totalorder %s19, 0
    %p40 = por %p38, %p39
    %p41 = scmp.ne.s32.totalorder %s27, %s28
    %p42 = scmp.eq.s32.totalorder %s20, 1
    %p43 = por %p41, %p42
    %p45 = scmp.ne.s32.totalorder %s28, %s44
    %p46 = scmp.eq.s32.totalorder %s20, 0
    %p47 = por %p45, %p46
    %s48 = ssub.s32 %s14, %s21
    %p49 = scmp.eq.s32.totalorder %s48, 0
    %s51 = sadd.s32 %s50, 1
    %s52 = scalar_select %p49, %s50, %s51
    %p55 = pneg %p49
    %p56 = scmp.eq.s32.totalorder %s14, 1
    %p57 = por %p55, %p56
    %p58 = scmp.ne.s32.totalorder %s50, %s53
    %p59 = scmp.eq.s32.totalorder %s14, 0
    %p60 = por %p58, %p59
    %p61 = scmp.ne.s32.totalorder %s50, %s53
    %p62 = scmp.eq.s32.totalorder %s19, 1
    %p63 = por %p61, %p62
    %p64 = scmp.ne.s32.totalorder %s53, %s54
    %p65 = scmp.eq.s32.totalorder %s19, 0
    %p66 = por %p64, %p65
    %p67 = scmp.ne.s32.totalorder %s53, %s54
    %p68 = scmp.eq.s32.totalorder %s20, 1
    %p69 = por %p67, %p68
    %p71 = scmp.ne.s32.totalorder %s54, %s70
    %p72 = scmp.eq.s32.totalorder %s20, 0
    %p73 = por %p71, %p72
    %s74 = ssub.s32 %s14, %s21
    %p75 = scmp.eq.s32.totalorder %s74, 0
    %s77 = sadd.s32 %s76, 1
    %s78 = scalar_select %p75, %s76, %s77
    %p81 = pneg %p75
    %p82 = scmp.eq.s32.totalorder %s14, 1
    %p83 = por %p81, %p82
    %p84 = scmp.ne.s32.totalorder %s76, %s79
    %p85 = scmp.eq.s32.totalorder %s14, 0
    %p86 = por %p84, %p85
    %p87 = scmp.ne.s32.totalorder %s76, %s79
    %p88 = scmp.eq.s32.totalorder %s19, 1
    %p89 = por %p87, %p88
    %p90 = scmp.ne.s32.totalorder %s79, %s80
    %p91 = scmp.eq.s32.totalorder %s19, 0
    %p92 = por %p90, %p91
    %p93 = scmp.ne.s32.totalorder %s79, %s80
    %p94 = scmp.eq.s32.totalorder %s20, 1
    %p95 = por %p93, %p94
    %p97 = scmp.ne.s32.totalorder %s80, %s96
    %p98 = scmp.eq.s32.totalorder %s20, 0
    %p99 = por %p97, %p98
    %s100 = ssub.s32 %s14, %s21
    %p101 = scmp.eq.s32.totalorder %s100, 0
    %s103 = sadd.s32 %s102, 1
    %s104 = scalar_select %p101, %s102, %s103
    %p107 = pneg %p101
    %p108 = scmp.eq.s32.totalorder %s14, 1
    %p109 = por %p107, %p108
    %p110 = scmp.ne.s32.totalorder %s102, %s105
    %p111 = scmp.eq.s32.totalorder %s14, 0
    %p112 = por %p110, %p111
    %p113 = scmp.ne.s32.totalorder %s102, %s105
    %p114 = scmp.eq.s32.totalorder %s19, 1
    %p115 = por %p113, %p114
    %p116 = scmp.ne.s32.totalorder %s105, %s106
    %p117 = scmp.eq.s32.totalorder %s19, 0
    %p118 = por %p116, %p117
    %p119 = scmp.ne.s32.totalorder %s105, %s106
    %p120 = scmp.eq.s32.totalorder %s20, 1
    %p121 = por %p119, %p120
    %p123 = scmp.ne.s32.totalorder %s106, %s122
    %p124 = scmp.eq.s32.totalorder %s20, 0
    %p125 = por %p123, %p124
    %s127 = sadd.s32 %s126, 1
    %p130 = scmp.eq.s32.totalorder %s14, 1
    %p131 = scmp.ne.s32.totalorder %s126, %s128
    %p132 = scmp.eq.s32.totalorder %s14, 0
    %p133 = por %p131, %p132
    %p134 = scmp.ne.s32.totalorder %s126, %s128
    %p135 = scmp.eq.s32.totalorder %s19, 1
    %p136 = por %p134, %p135
    %p137 = scmp.ne.s32.totalorder %s128, %s129
    %p138 = scmp.eq.s32.totalorder %s19, 0
    %p139 = por %p137, %p138
    %p140 = scmp.ne.s32.totalorder %s128, %s129
    %p141 = scmp.eq.s32.totalorder %s20, 1
    %p142 = por %p140, %p141
    %p144 = scmp.ne.s32.totalorder %s129, %s143
    %p145 = scmp.eq.s32.totalorder %s20, 0
    %p146 = por %p144, %p145
    %s147 = ssub.s32 %s14, %s21
    %p148 = scmp.eq.s32.totalorder %s147, 0
    %s150 = sadd.s32 %s149, 1
    %s151 = scalar_select %p148, %s149, %s150
    %p154 = pneg %p148
    %p155 = scmp.eq.s32.totalorder %s14, 1
    %p156 = por %p154, %p155
    %p157 = scmp.ne.s32.totalorder %s149, %s152
    %p158 = scmp.eq.s32.totalorder %s14, 0
    %p159 = por %p157, %p158
    %p160 = scmp.ne.s32.totalorder %s149, %s152
    %p161 = scmp.eq.s32.totalorder %s19, 1
    %p162 = por %p160, %p161
    %p163 = scmp.ne.s32.totalorder %s152, %s153
    %p164 = scmp.eq.s32.totalorder %s19, 0
    %p165 = por %p163, %p164
    %p166 = scmp.ne.s32.totalorder %s152, %s153
    %p167 = scmp.eq.s32.totalorder %s20, 1
    %p168 = por %p166, %p167
    %p170 = scmp.ne.s32.totalorder %s153, %s169
    %p171 = scmp.eq.s32.totalorder %s20, 0
    %p172 = por %p170, %p171
    %s173 = ssub.s32 %s14, %s21
    %p174 = scmp.eq.s32.totalorder %s173, 0
    %s176 = sadd.s32 %s175, 1
    %s177 = scalar_select %p174, %s175, %s176
    %p180 = pneg %p174
    %p181 = scmp.eq.s32.totalorder %s14, 1
    %p182 = por %p180, %p181
    %p183 = scmp.ne.s32.totalorder %s175, %s178
    %p184 = scmp.eq.s32.totalorder %s14, 0
    %p185 = por %p183, %p184
    %p186 = scmp.ne.s32.totalorder %s175, %s178
    %p187 = scmp.eq.s32.totalorder %s19, 1
    %p188 = por %p186, %p187
    %p189 = scmp.ne.s32.totalorder %s178, %s179
    %p190 = scmp.eq.s32.totalorder %s19, 0
    %p191 = por %p189, %p190
    %p192 = scmp.ne.s32.totalorder %s178, %s179
    %p193 = scmp.eq.s32.totalorder %s20, 1
    %p194 = por %p192, %p193
    %p196 = scmp.ne.s32.totalorder %s179, %s195
    %p197 = scmp.eq.s32.totalorder %s20, 0
    %p198 = por %p196, %p197
    %s199 = ssub.s32 %s14, %s21
    %p200 = scmp.eq.s32.totalorder %s199, 0
    %s202 = sadd.s32 %s201, 1
    %s203 = scalar_select %p200, %s201, %s202
    %p206 = pneg %p200
    %p207 = scmp.eq.s32.totalorder %s14, 1
    %p208 = por %p206, %p207
    %p209 = scmp.ne.s32.totalorder %s201, %s204
    %p210 = scmp.eq.s32.totalorder %s14, 0
    %p211 = por %p209, %p210
    %p212 = scmp.ne.s32.totalorder %s201, %s204
    %p213 = scmp.eq.s32.totalorder %s19, 1
    %p214 = por %p212, %p213
    %p215 = scmp.ne.s32.totalorder %s204, %s205
    %p216 = scmp.eq.s32.totalorder %s19, 0
    %p217 = por %p215, %p216
    %p218 = scmp.ne.s32.totalorder %s204, %s205
    %p219 = scmp.eq.s32.totalorder %s20, 1
    %p220 = por %p218, %p219
    %p222 = scmp.ne.s32.totalorder %s205, %s221
    %p223 = scmp.eq.s32.totalorder %s20, 0
    %p224 = por %p222, %p223
    %p225 = scmp.le.s32.totalorder 1, %s14
    %p226 = scmp.lt.s32.totalorder %s14, 3
    %p227 = pnand %p225, %p226
    %p228 = pneg %p227
    // Predicated region
    $region9: #{downsample_layer.5} parent=5 // pred_check
      _
    $region10: #{downsample_layer.5} parent=5 // pred_check_branch
      %230 = sbr.rel (%p227) target = $region12
    $region11: #{downsample_layer.5} parent=5 // pred_region
      %s231 = ssub.s32 %s14, 1
      // Predicated region
      $region13: #{downsample_layer.5} parent=11 // pred_check
        %p232 = pneg %p139
      $region14: #{downsample_layer.5} parent=11 // pred_check_branch
        %234 = sbr.rel (%p232) target = $region16
      $region15: #{downsample_layer.5} parent=11 // pred_region
        _
      $region16: #{downsample_layer.5} parent=11 // pred_fallthru
        _
    $region12: #{downsample_layer.5} parent=5 // pred_fallthru
      _
    %p235 = scmp.lt.s32.totalorder %s14, 2
    // Predicated region
    $region17: #{downsample_layer.5} parent=5 // pred_check
      %p236 = pneg %p235
    $region18: #{downsample_layer.5} parent=5 // pred_check_branch
      %238 = sbr.rel (%p236) target = $region20
    $region19: #{downsample_layer.5} parent=5 // pred_region
      // Predicated region
      $region21: #{downsample_layer.5} parent=19 // pred_check
        %p239 = pneg %p34
      $region22: #{downsample_layer.5} parent=19 // pred_check_branch
        %241 = sbr.rel (%p239) target = $region24
      $region23: #{downsample_layer.5} parent=19 // pred_region
        %p242 = scmp.lt.s32.totalorder %s14, 1
        %s243 = scalar_select %p242, %s14, 1
        %s244 = smul.addr %s243, 18
        %s245 = smul.addr %s244, 4
        %s246 = scalar_lea.vmem %s0, %s245
      $region24: #{downsample_layer.5} parent=19 // pred_fallthru
        _
      // Predicated region
      $region25: #{downsample_layer.5} parent=19 // pred_check
        %p247 = pneg %p60
      $region26: #{downsample_layer.5} parent=19 // pred_check_branch
        %249 = sbr.rel (%p247) target = $region28
      $region27: #{downsample_layer.5} parent=19 // pred_region
        %p250 = scmp.lt.s32.totalorder %s14, 1
        %s251 = scalar_select %p250, %s14, 1
        %s252 = smul.addr %s251, 18
        %s253 = smul.addr %s252, 4
        %s254 = scalar_lea.vmem %s1, %s253
      $region28: #{downsample_layer.5} parent=19 // pred_fallthru
        _
      // Predicated region
      $region29: #{downsample_layer.5} parent=19 // pred_check
        %p255 = pneg %p86
      $region30: #{downsample_layer.5} parent=19 // pred_check_branch
        %257 = sbr.rel (%p255) target = $region32
      $region31: #{downsample_layer.5} parent=19 // pred_region
        %p258 = scmp.lt.s32.totalorder %s14, 1
        %s259 = scalar_select %p258, %s14, 1
        %s260 = smul.addr %s259, 18
        %s261 = smul.addr %s260, 4
        %s262 = scalar_lea.vmem %s2, %s261
      $region32: #{downsample_layer.5} parent=19 // pred_fallthru
        _
      // Predicated region
      $region33: #{downsample_layer.5} parent=19 // pred_check
        %p263 = pneg %p112
      $region34: #{downsample_layer.5} parent=19 // pred_check_branch
        %265 = sbr.rel (%p263) target = $region36
      $region35: #{downsample_layer.5} parent=19 // pred_region
        %p266 = scmp.lt.s32.totalorder %s14, 1
        %s267 = scalar_select %p266, %s14, 1
        %s268 = smul.addr %s267, 18
        %s269 = smul.addr %s268, 4
        %s270 = scalar_lea.vmem %s3, %s269
      $region36: #{downsample_layer.5} parent=19 // pred_fallthru
        _
    $region20: #{downsample_layer.5} parent=5 // pred_fallthru
      _
    %p271 = scmp.le.s32.totalorder 1, %s14
    %p272 = scmp.lt.s32.totalorder %s14, 3
    %p273 = pnand %p271, %p272
    %p274 = pneg %p273
    // Predicated region
    $region37: #{downsample_layer.5} parent=5 // pred_check
      _
    $region38: #{downsample_layer.5} parent=5 // pred_check_branch
      %276 = sbr.rel (%p273) target = $region40
    $region39: #{downsample_layer.5} parent=5 // pred_region
      %s277 = ssub.s32 %s14, 1
      %p278 = scmp.lt.s32.totalorder %s19, 1
      %s279 = scalar_select %p278, %s19, 1
      %s280 = smul.addr %s279, 18
      %s281 = smul.addr %s280, 4
      %s282 = scalar_lea.vmem %s0, %s281
      %p283 = pneg %p40
      %p284 = pneg %p37
      %p285 = scmp.lt.s32.totalorder %s19, 1
      %s286 = scalar_select %p285, %s19, 1
      %s287 = smul.addr %s286, 18
      %s288 = smul.addr %s287, 4
      %s289 = scalar_lea.vmem %s1, %s288
      %p290 = pneg %p66
      %p291 = pneg %p63
      %p292 = scmp.lt.s32.totalorder %s19, 1
      %s293 = scalar_select %p292, %s19, 1
      %s294 = smul.addr %s293, 18
      %s295 = smul.addr %s294, 4
      %s296 = scalar_lea.vmem %s2, %s295
      %p297 = pneg %p92
      %p298 = pneg %p89
      %p299 = scmp.lt.s32.totalorder %s19, 1
      %s300 = scalar_select %p299, %s19, 1
      %s301 = smul.addr %s300, 18
      %s302 = smul.addr %s301, 4
      %s303 = scalar_lea.vmem %s3, %s302
      %p304 = pneg %p118
      %p305 = pneg %p115
      %p306 = pneg %p139
      %p307 = pneg %p136
      %p308 = pneg %p165
      %p309 = pneg %p162
      %s310 = smul.u32 8, %s19
      %p311 = scmp.lt.s32.totalorder %s310, 15
      %s312 = scalar_select %p311, %s310, 15
      %s313 = smul.addr %s312, 4
      %s314 = scalar_lea.vmem %s5, %s313
      %p315 = pneg %p191
      %p316 = pneg %p188
      %p317 = scmp.lt.s32.totalorder %s19, 1
      %s318 = scalar_select %p317, %s19, 1
      %s319 = smul.addr %s318, 8
      %s320 = scalar_lea.vmem %s6, %s319
      %p321 = pneg %p217
      %p322 = pneg %p214
      %p323 = scmp.lt.s32.totalorder %s19, 1
      %s324 = scalar_select %p323, %s19, 1
      %s325 = smul.addr %s324, 8
      %s326 = scalar_lea.vmem %s7, %s325
      %p327 = scmp.lt.s32.totalorder %s19, 1
      %s328 = scalar_select %p327, %s19, 1
      %s329 = smul.addr %s328, 18
      %s330 = smul.addr %s329, 4
      %s331 = scalar_lea.vmem %s0, %s330
      %p332 = scmp.lt.s32.totalorder %s19, 1
      %s333 = scalar_select %p332, %s19, 1
      %s334 = smul.addr %s333, 18
      %s335 = smul.addr %s334, 4
      %s336 = scalar_lea.vmem %s1, %s335
      %p337 = scmp.lt.s32.totalorder %s19, 1
      %s338 = scalar_select %p337, %s19, 1
      %s339 = smul.addr %s338, 18
      %s340 = smul.addr %s339, 4
      %s341 = scalar_lea.vmem %s2, %s340
      %p342 = scmp.lt.s32.totalorder %s19, 1
      %s343 = scalar_select %p342, %s19, 1
      %s344 = smul.addr %s343, 18
      %s345 = smul.addr %s344, 4
      %s346 = scalar_lea.vmem %s3, %s345
      %s347 = smul.u32 8, %s19
      %p348 = scmp.lt.s32.totalorder %s347, 15
      %s349 = scalar_select %p348, %s347, 15
      %s350 = smul.addr %s349, 4
      %s351 = scalar_lea.vmem %s5, %s350
      %s352 = smul.u32 8, %s19
      %p353 = scmp.lt.s32.totalorder %s19, 1
      %s354 = scalar_select %p353, %s19, 1
      %s355 = smul.addr %s354, 8
      %s356 = scalar_lea.vmem %s6, %s355
      %p357 = scmp.lt.s32.totalorder %s19, 1
      %s358 = scalar_select %p357, %s19, 1
      %s359 = smul.addr %s358, 8
      %s360 = scalar_lea.vmem %s7, %s359
      %v362 = vld [vmem:[%s331] sm:$0xf]
      %v363 = vld [vmem:[%s331 + $0x8] sm:$0xf]
      %v364 = vld [vmem:[%s331 + $0x10] sm:$0xf]
      %v365 = vld [vmem:[%s331 + $0x18] sm:$0xf]
      %v366 = vld [vmem:[%s331 + $0x20] sm:$0xf]
      %v367 = vld [vmem:[%s331 + $0x28] sm:$0xf]
      %v368 = vld [vmem:[%s331 + $0x30] sm:$0xf]
      %v369 = vld [vmem:[%s331 + $0x38] sm:$0xf]
      %v370 = vld [vmem:[%s4] sm:$0xf]
      %v371 = vld [vmem:[%s336] sm:$0xf]
      %v372 = vld [vmem:[%s336 + $0x8] sm:$0xf]
      %v373 = vld [vmem:[%s336 + $0x10] sm:$0xf]
      %v374 = vld [vmem:[%s336 + $0x18] sm:$0xf]
      %v375 = vld [vmem:[%s336 + $0x20] sm:$0xf]
      %v376 = vld [vmem:[%s336 + $0x28] sm:$0xf]
      %v377 = vld [vmem:[%s336 + $0x30] sm:$0xf]
      %v378 = vld [vmem:[%s336 + $0x38] sm:$0xf]
      %s379 = scalar_lea.vmem %s4, 4
      %v380 = vld [vmem:[%s379] sm:$0xf]
      %v389 = vunpack.c.l.b16 %v371
      %v390 = vunpack.c.l.b16 %v372
      %v391 = vunpack.c.l.b16 %v373
      %v392 = vunpack.c.l.b16 %v374
      %v393 = vunpack.c.l.b16 %v375
      %v394 = vunpack.c.l.b16 %v376
      %v395 = vunpack.c.l.b16 %v377
      %v396 = vunpack.c.l.b16 %v378
      %v397 = vpack.c.b16 %v390, %v389
      %v398 = vpack.c.b16 %v392, %v391
      %v399 = vpack.c.b16 %v394, %v393
      %v400 = vpack.c.b16 %v396, %v395
      %vm401 = vcmask 64512
      %v403 = vsel %vm401, %v397, 0
      %v406 = vsel %vm401, %v398, 0
      %v409 = vsel %vm401, %v399, 0
      %v412 = vsel %vm401, %v400, 0
      %vm414 = vcmask 1043456
      %v416 = vsel %vm414, %v380, 0
      %418 = vmatprep.subr.bf16.mxu0 0
      %419 = vmatpush1.bf16.msra.mxu0 %v416
      %420 = vmatprep.subr.bf16.mxu0 0
      %421 = vmatpush1.bf16.msra.mxu0 0
      %422 = vmatprep.subr.bf16.mxu0 0
      %423 = vmatpush1.bf16.msra.mxu0 0
      %424 = vmatprep.subr.bf16.mxu0 0
      %425 = vmatpush1.bf16.msra.mxu0 0
      %426 = vmatprep.subr.bf16.mxu0 0
      %427 = vmatpush1.bf16.msra.mxu0 0
      %428 = vmatprep.subr.bf16.mxu0 0
      %429 = vmatpush1.bf16.msra.mxu0 0
      %430 = vmatprep.subr.bf16.mxu0 0
      %431 = vmatpush1.bf16.msra.mxu0 0
      %432 = vmatprep.subr.bf16.mxu0 0
      %433 = vmatpush1.bf16.msra.mxu0 0
      %434 = vmatprep.subr.bf16.mxu0 0
      %435 = vmatpush1.bf16.msra.mxu0 0
      %436 = vmatprep.subr.bf16.mxu0 0
      %437 = vmatpush1.bf16.msra.mxu0 0
      %438 = vmatprep.subr.bf16.mxu0 0
      %439 = vmatpush1.bf16.msra.mxu0 0
      %440 = vmatprep.subr.bf16.mxu0 0
      %441 = vmatpush1.bf16.msra.mxu0 0
      %442 = vmatprep.subr.bf16.mxu0 0
      %443 = vmatpush1.bf16.msra.mxu0 0
      %444 = vmatprep.subr.bf16.mxu0 0
      %445 = vmatpush1.bf16.msra.mxu0 0
      %446 = vmatprep.subr.bf16.mxu0 0
      %447 = vmatpush1.bf16.msra.mxu0 0
      %448 = vmatprep.subr.bf16.mxu0 0
      %449 = vmatpush1.bf16.msra.mxu0 0
      %450 = vmatprep.mubr.bf16.mxu0 0
      %451 = vmatmul.mubr.bf16.gmra.mrb[0].mxu0 %v403
      %v452 = vpop.f32.mrb[0].mxu0
      %v453 = vadd.f32 0.0, %v452
      %v454 = vpop.f32.mrb[0].mxu0
      %v455 = vpop.f32.mrb[0].mxu0
      %v456 = vadd.f32 0.0, %v455
      %v457 = vpop.f32.mrb[0].mxu0
      %458 = vmatprep.mubr.bf16.mxu0 0
      %459 = vmatmul.mubr.bf16.gmra.mrb[0].mxu0 %v406
      %v460 = vpop.f32.mrb[0].mxu0
      %v461 = vadd.f32 0.0, %v460
      %v462 = vpop.f32.mrb[0].mxu0
      %v463 = vpop.f32.mrb[0].mxu0
      %v464 = vadd.f32 0.0, %v463
      %v465 = vpop.f32.mrb[0].mxu0
      %466 = vmatprep.mubr.bf16.mxu0 0
      %467 = vmatmul.mubr.bf16.gmra.mrb[0].mxu0 %v409
      %v468 = vpop.f32.mrb[0].mxu0
      %v469 = vadd.f32 0.0, %v468
      %v470 = vpop.f32.mrb[0].mxu0
      %v471 = vpop.f32.mrb[0].mxu0
      %v472 = vadd.f32 0.0, %v471
      %v473 = vpop.f32.mrb[0].mxu0
      %474 = vmatprep.mubr.bf16.mxu0 0
      %475 = vmatmul.mubr.bf16.gmra.mrb[0].mxu0 %v412
      %v476 = vpop.f32.mrb[0].mxu0
      %v477 = vadd.f32 0.0, %v476
      %v478 = vpop.f32.mrb[0].mxu0
      %v479 = vpop.f32.mrb[0].mxu0
      %v480 = vadd.f32 0.0, %v479
      %v481 = vpop.f32.mrb[0].mxu0
      %482 = vdwg.mxu0
      %v491 = vunpack.c.l.b16 %v362
      %v492 = vunpack.c.l.b16 %v363
      %v493 = vunpack.c.l.b16 %v364
      %v494 = vunpack.c.l.b16 %v365
      %v495 = vunpack.c.l.b16 %v366
      %v496 = vunpack.c.l.b16 %v367
      %v497 = vunpack.c.l.b16 %v368
      %v498 = vunpack.c.l.b16 %v369
      %v499 = vpack.c.b16 %v492, %v491
      %v500 = vpack.c.b16 %v494, %v493
      %v501 = vpack.c.b16 %v496, %v495
      %v502 = vpack.c.b16 %v498, %v497
      %v504 = vsel %vm401, %v499, 0
      %v507 = vsel %vm401, %v500, 0
      %v510 = vsel %vm401, %v501, 0
      %v513 = vsel %vm401, %v502, 0
      %v516 = vsel %vm414, %v370, 0
      %518 = vmatprep.subr.bf16.mxu0 0
      %519 = vmatpush1.bf16.msra.mxu0 %v516
      %520 = vmatprep.subr.bf16.mxu0 0
      %521 = vmatpush1.bf16.msra.mxu0 0
      %522 = vmatprep.subr.bf16.mxu0 0
      %523 = vmatpush1.bf16.msra.mxu0 0
      %524 = vmatprep.subr.bf16.mxu0 0
      %525 = vmatpush1.bf16.msra.mxu0 0
      %526 = vmatprep.subr.bf16.mxu0 0
      %527 = vmatpush1.bf16.msra.mxu0 0
      %528 = vmatprep.subr.bf16.mxu0 0
      %529 = vmatpush1.bf16.msra.mxu0 0
      %530 = vmatprep.subr.bf16.mxu0 0
      %531 = vmatpush1.bf16.msra.mxu0 0
      %532 = vmatprep.subr.bf16.mxu0 0
      %533 = vmatpush1.bf16.msra.mxu0 0
      %534 = vmatprep.subr.bf16.mxu0 0
      %535 = vmatpush1.bf16.msra.mxu0 0
      %536 = vmatprep.subr.bf16.mxu0 0
      %537 = vmatpush1.bf16.msra.mxu0 0
      %538 = vmatprep.subr.bf16.mxu0 0
      %539 = vmatpush1.bf16.msra.mxu0 0
      %540 = vmatprep.subr.bf16.mxu0 0
      %541 = vmatpush1.bf16.msra.mxu0 0
      %542 = vmatprep.subr.bf16.mxu0 0
      %543 = vmatpush1.bf16.msra.mxu0 0
      %544 = vmatprep.subr.bf16.mxu0 0
      %545 = vmatpush1.bf16.msra.mxu0 0
      %546 = vmatprep.subr.bf16.mxu0 0
      %547 = vmatpush1.bf16.msra.mxu0 0
      %548 = vmatprep.subr.bf16.mxu0 0
      %549 = vmatpush1.bf16.msra.mxu0 0
      %550 = vmatprep.mubr.bf16.mxu0 0
      %551 = vmatmul.mubr.bf16.gmra.mrb[0].mxu0 %v504
      %v552 = vpop.f32.mrb[0].mxu0
      %v553 = vadd.f32 %v453, %v552
      %v554 = vpop.f32.mrb[0].mxu0
      %v555 = vpop.f32.mrb[0].mxu0
      %v556 = vadd.f32 %v456, %v555
      %v557 = vpop.f32.mrb[0].mxu0
      %558 = vmatprep.mubr.bf16.mxu0 0
      %559 = vmatmul.mubr.bf16.gmra.mrb[0].mxu0 %v507
      %v560 = vpop.f32.mrb[0].mxu0
      %v561 = vadd.f32 %v461, %v560
      %v562 = vpop.f32.mrb[0].mxu0
      %v563 = vpop.f32.mrb[0].mxu0
      %v564 = vadd.f32 %v464, %v563
      %v565 = vpop.f32.mrb[0].mxu0
      %566 = vmatprep.mubr.bf16.mxu0 0
      %567 = vmatmul.mubr.bf16.gmra.mrb[0].mxu0 %v510
      %v568 = vpop.f32.mrb[0].mxu0
      %v569 = vadd.f32 %v469, %v568
      %v570 = vpop.f32.mrb[0].mxu0
      %v571 = vpop.f32.mrb[0].mxu0
      %v572 = vadd.f32 %v472, %v571
      %v573 = vpop.f32.mrb[0].mxu0
      %574 = vmatprep.mubr.bf16.mxu0 0
      %575 = vmatmul.mubr.bf16.gmra.mrb[0].mxu0 %v513
      %v576 = vpop.f32.mrb[0].mxu0
      %v577 = vadd.f32 %v477, %v576
      %v578 = vpop.f32.mrb[0].mxu0
      %v579 = vpop.f32.mrb[0].mxu0
      %v580 = vadd.f32 %v480, %v579
      %v581 = vpop.f32.mrb[0].mxu0
      %582 = vdwg.mxu0
      %v583 = vld [vmem:[%s331] sm:$0xf]
      %v584 = vld [vmem:[%s331 + $0x4] sm:$0x1]
      %v585 = vld [vmem:[%s331 + $0x8] sm:$0xf]
      %v586 = vld [vmem:[%s331 + $0xc] sm:$0x1]
      %v587 = vld [vmem:[%s331 + $0x10] sm:$0xf]
      %v588 = vld [vmem:[%s331 + $0x14] sm:$0x1]
      %v589 = vld [vmem:[%s331 + $0x18] sm:$0xf]
      %v590 = vld [vmem:[%s331 + $0x1c] sm:$0x1]
      %v591 = vld [vmem:[%s331 + $0x20] sm:$0xf]
      %v592 = vld [vmem:[%s331 + $0x24] sm:$0x1]
      %v593 = vld [vmem:[%s331 + $0x28] sm:$0xf]
      %v594 = vld [vmem:[%s331 + $0x2c] sm:$0x1]
      %v595 = vld [vmem:[%s331 + $0x30] sm:$0xf]
      %v596 = vld [vmem:[%s331 + $0x34] sm:$0x1]
      %v597 = vld [vmem:[%s331 + $0x38] sm:$0xf]
      %v598 = vld [vmem:[%s331 + $0x3c] sm:$0x1]
      %vm599 = vsmask.f32 3328
      %vm600 = vsmask.f32 7440
      %vm601 = vmor %vm599, %vm600
      %v603 = vshrl.u32 %v583, 16
      %v605 = vrot.slane %v603, 4
      %v606 = vshll.u32 %v583, 16
      %v608 = vrot.slane %v606, 5
      %v609 = vor.u32 %v605, %v608
      %v610 = vrot.slane %v609, 4
      %v612 = vshll.u32 %v584, 16
      %v614 = vrot.slane %v612, 5
      %v615 = vsel %vm601, %v610, %v614
      %v617 = vshrl.u32 %v585, 16
      %v619 = vrot.slane %v617, 4
      %v620 = vshll.u32 %v585, 16
      %v622 = vrot.slane %v620, 5
      %v623 = vor.u32 %v619, %v622
      %v624 = vrot.slane %v623, 4
      %v626 = vshll.u32 %v586, 16
      %v628 = vrot.slane %v626, 5
      %v629 = vsel %vm601, %v624, %v628
      %v631 = vshrl.u32 %v587, 16
      %v633 = vrot.slane %v631, 4
      %v634 = vshll.u32 %v587, 16
      %v636 = vrot.slane %v634, 5
      %v637 = vor.u32 %v633, %v636
      %v638 = vrot.slane %v637, 4
      %v640 = vshll.u32 %v588, 16
      %v642 = vrot.slane %v640, 5
      %v643 = vsel %vm601, %v638, %v642
      %v645 = vshrl.u32 %v589, 16
      %v647 = vrot.slane %v645, 4
      %v648 = vshll.u32 %v589, 16
      %v650 = vrot.slane %v648, 5
      %v651 = vor.u32 %v647, %v650
      %v652 = vrot.slane %v651, 4
      %v654 = vshll.u32 %v590, 16
      %v656 = vrot.slane %v654, 5
      %v657 = vsel %vm601, %v652, %v656
      %v659 = vshrl.u32 %v591, 16
      %v661 = vrot.slane %v659, 4
      %v662 = vshll.u32 %v591, 16
      %v664 = vrot.slane %v662, 5
      %v665 = vor.u32 %v661, %v664
      %v666 = vrot.slane %v665, 4
      %v668 = vshll.u32 %v592, 16
      %v670 = vrot.slane %v668, 5
      %v671 = vsel %vm601, %v666, %v670
      %v673 = vshrl.u32 %v593, 16
      %v675 = vrot.slane %v673, 4
      %v676 = vshll.u32 %v593, 16
      %v678 = vrot.slane %v676, 5
      %v679 = vor.u32 %v675, %v678
      %v680 = vrot.slane %v679, 4
      %v682 = vshll.u32 %v594, 16
      %v684 = vrot.slane %v682, 5
      %v685 = vsel %vm601, %v680, %v684
      %v687 = vshrl.u32 %v595, 16
      %v689 = vrot.slane %v687, 4
      %v690 = vshll.u32 %v595, 16
      %v692 = vrot.slane %v690, 5
      %v693 = vor.u32 %v689, %v692
      %v694 = vrot.slane %v693, 4
      %v696 = vshll.u32 %v596, 16
      %v698 = vrot.slane %v696, 5
      %v699 = vsel %vm601, %v694, %v698
      %v701 = vshrl.u32 %v597, 16
      %v703 = vrot.slane %v701, 4
      %v704 = vshll.u32 %v597, 16
      %v706 = vrot.slane %v704, 5
      %v707 = vor.u32 %v703, %v706
      %v708 = vrot.slane %v707, 4
      %v710 = vshll.u32 %v598, 16
      %v712 = vrot.slane %v710, 5
      %v713 = vsel %vm601, %v708, %v712
      %s714 = scalar_lea.vmem %s4, 8
      %v715 = vld [vmem:[%s714] sm:$0xf]
      %v716 = vunpack.c.l.b16 %v615
      %v717 = vunpack.c.l.b16 %v629
      %v718 = vunpack.c.l.b16 %v643
      %v719 = vunpack.c.l.b16 %v657
      %v720 = vunpack.c.l.b16 %v671
      %v721 = vunpack.c.l.b16 %v685
      %v722 = vunpack.c.l.b16 %v699
      %v723 = vunpack.c.l.b16 %v713
      %v724 = vpack.c.b16 %v717, %v716
      %v725 = vpack.c.b16 %v719, %v718
      %v726 = vpack.c.b16 %v721, %v720
      %v727 = vpack.c.b16 %v723, %v722
      %v729 = vsel %vm401, %v724, 0
      %v732 = vsel %vm401, %v725, 0
      %v735 = vsel %vm401, %v726, 0
      %v738 = vsel %vm401, %v727, 0
      %v741 = vsel %vm414, %v715, 0
      %743 = vmatprep.subr.bf16.mxu0 0
      %744 = vmatpush1.bf16.msra.mxu0 %v741
      %745 = vmatprep.subr.bf16.mxu0 0
      %746 = vmatpush1.bf16.msra.mxu0 0
      %747 = vmatprep.subr.bf16.mxu0 0
      %748 = vmatpush1.bf16.msra.mxu0 0
      %749 = vmatprep.subr.bf16.mxu0 0
      %750 = vmatpush1.bf16.msra.mxu0 0
      %751 = vmatprep.subr.bf16.mxu0 0
      %752 = vmatpush1.bf16.msra.mxu0 0
      %753 = vmatprep.subr.bf16.mxu0 0
      %754 = vmatpush1.bf16.msra.mxu0 0
      %755 = vmatprep.subr.bf16.mxu0 0
      %756 = vmatpush1.bf16.msra.mxu0 0
      %757 = vmatprep.subr.bf16.mxu0 0
      %758 = vmatpush1.bf16.msra.mxu0 0
      %759 = vmatprep.subr.bf16.mxu0 0
      %760 = vmatpush1.bf16.msra.mxu0 0
      %761 = vmatprep.subr.bf16.mxu0 0
      %762 = vmatpush1.bf16.msra.mxu0 0
      %763 = vmatprep.subr.bf16.mxu0 0
      %764 = vmatpush1.bf16.msra.mxu0 0
      %765 = vmatprep.subr.bf16.mxu0 0
      %766 = vmatpush1.bf16.msra.mxu0 0
      %767 = vmatprep.subr.bf16.mxu0 0
      %768 = vmatpush1.bf16.msra.mxu0 0
      %769 = vmatprep.subr.bf16.mxu0 0
      %770 = vmatpush1.bf16.msra.mxu0 0
      %771 = vmatprep.subr.bf16.mxu0 0
      %772 = vmatpush1.bf16.msra.mxu0 0
      %773 = vmatprep.subr.bf16.mxu0 0
      %774 = vmatpush1.bf16.msra.mxu0 0
      %775 = vmatprep.mubr.bf16.mxu0 0
      %776 = vmatmul.mubr.bf16.gmra.mrb[0].mxu0 %v729
      %v777 = vpop.f32.mrb[0].mxu0
      %v778 = vadd.f32 0.0, %v777
      %v779 = vpop.f32.mrb[0].mxu0
      %v780 = vpop.f32.mrb[0].mxu0
      %v781 = vadd.f32 0.0, %v780
      %v782 = vpop.f32.mrb[0].mxu0
      %783 = vmatprep.mubr.bf16.mxu0 0
      %784 = vmatmul.mubr.bf16.gmra.mrb[0].mxu0 %v732
      %v785 = vpop.f32.mrb[0].mxu0
      %v786 = vadd.f32 0.0, %v785
      %v787 = vpop.f32.mrb[0].mxu0
      %v788 = vpop.f32.mrb[0].mxu0
      %v789 = vadd.f32 0.0, %v788
      %v790 = vpop.f32.mrb[0].mxu0
      %791 = vmatprep.mubr.bf16.mxu0 0
      %792 = vmatmul.mubr.bf16.gmra.mrb[0].mxu0 %v735
      %v793 = vpop.f32.mrb[0].mxu0
      %v794 = vadd.f32 0.0, %v793
      %v795 = vpop.f32.mrb[0].mxu0
      %v796 = vpop.f32.mrb[0].mxu0
      %v797 = vadd.f32 0.0, %v796
      %v798 = vpop.f32.mrb[0].mxu0
      %799 = vmatprep.mubr.bf16.mxu0 0
      %800 = vmatmul.mubr.bf16.gmra.mrb[0].mxu0 %v738
      %v801 = vpop.f32.mrb[0].mxu0
      %v802 = vadd.f32 0.0, %v801
      %v803 = vpop.f32.mrb[0].mxu0
      %v804 = vpop.f32.mrb[0].mxu0
      %v805 = vadd.f32 0.0, %v804
      %v806 = vpop.f32.mrb[0].mxu0
      %807 = vdwg.mxu0
      %v808 = vadd.f32 %v553, %v778
      %v809 = vadd.f32 %v556, %v781
      %v810 = vadd.f32 %v561, %v786
      %v811 = vadd.f32 %v564, %v789
      %v812 = vadd.f32 %v569, %v794
      %v813 = vadd.f32 %v572, %v797
      %v814 = vadd.f32 %v577, %v802
      %v815 = vadd.f32 %v580, %v805
      %v816 = vld [vmem:[%s341] sm:$0xf]
      %v817 = vld [vmem:[%s341 + $0x8] sm:$0xf]
      %v818 = vld [vmem:[%s341 + $0x10] sm:$0xf]
      %v819 = vld [vmem:[%s341 + $0x18] sm:$0xf]
      %v820 = vld [vmem:[%s341 + $0x20] sm:$0xf]
      %v821 = vld [vmem:[%s341 + $0x28] sm:$0xf]
      %v822 = vld [vmem:[%s341 + $0x30] sm:$0xf]
      %v823 = vld [vmem:[%s341 + $0x38] sm:$0xf]
      %s824 = scalar_lea.vmem %s4, 12
      %v825 = vld [vmem:[%s824] sm:$0xf]
      %v834 = vunpack.c.l.b16 %v816
      %v835 = vunpack.c.l.b16 %v817
      %v836 = vunpack.c.l.b16 %v818
      %v837 = vunpack.c.l.b16 %v819
      %v838 = vunpack.c.l.b16 %v820
      %v839 = vunpack.c.l.b16 %v821
      %v840 = vunpack.c.l.b16 %v822
      %v841 = vunpack.c.l.b16 %v823
      %v842 = vpack.c.b16 %v835, %v834
      %v843 = vpack.c.b16 %v837, %v836
      %v844 = vpack.c.b16 %v839, %v838
      %v845 = vpack.c.b16 %v841, %v840
      %v847 = vsel %vm401, %v842, 0
      %v850 = vsel %vm401, %v843, 0
      %v853 = vsel %vm401, %v844, 0
      %v856 = vsel %vm401, %v845, 0
      %v859 = vsel %vm414, %v825, 0
      %861 = vmatprep.subr.bf16.mxu0 0
      %862 = vmatpush1.bf16.msra.mxu0 %v859
      %863 = vmatprep.subr.bf16.mxu0 0
      %864 = vmatpush1.bf16.msra.mxu0 0
      %865 = vmatprep.subr.bf16.mxu0 0
      %866 = vmatpush1.bf16.msra.mxu0 0
      %867 = vmatprep.subr.bf16.mxu0 0
      %868 = vmatpush1.bf16.msra.mxu0 0
      %869 = vmatprep.subr.bf16.mxu0 0
      %870 = vmatpush1.bf16.msra.mxu0 0
      %871 = vmatprep.subr.bf16.mxu0 0
      %872 = vmatpush1.bf16.msra.mxu0 0
      %873 = vmatprep.subr.bf16.mxu0 0
      %874 = vmatpush1.bf16.msra.mxu0 0
      %875 = vmatprep.subr.bf16.mxu0 0
      %876 = vmatpush1.bf16.msra.mxu0 0
      %877 = vmatprep.subr.bf16.mxu0 0
      %878 = vmatpush1.bf16.msra.mxu0 0
      %879 = vmatprep.subr.bf16.mxu0 0
      %880 = vmatpush1.bf16.msra.mxu0 0
      %881 = vmatprep.subr.bf16.mxu0 0
      %882 = vmatpush1.bf16.msra.mxu0 0
      %883 = vmatprep.subr.bf16.mxu0 0
      %884 = vmatpush1.bf16.msra.mxu0 0
      %885 = vmatprep.subr.bf16.mxu0 0
      %886 = vmatpush1.bf16.msra.mxu0 0
      %887 = vmatprep.subr.bf16.mxu0 0
      %888 = vmatpush1.bf16.msra.mxu0 0
      %889 = vmatprep.subr.bf16.mxu0 0
      %890 = vmatpush1.bf16.msra.mxu0 0
      %891 = vmatprep.subr.bf16.mxu0 0
      %892 = vmatpush1.bf16.msra.mxu0 0
      %893 = vmatprep.mubr.bf16.mxu0 0
      %894 = vmatmul.mubr.bf16.gmra.mrb[0].mxu0 %v847
      %v895 = vpop.f32.mrb[0].mxu0
      %v896 = vadd.f32 0.0, %v895
      %v897 = vpop.f32.mrb[0].mxu0
      %v898 = vpop.f32.mrb[0].mxu0
      %v899 = vadd.f32 0.0, %v898
      %v900 = vpop.f32.mrb[0].mxu0
      %901 = vmatprep.mubr.bf16.mxu0 0
      %902 = vmatmul.mubr.bf16.gmra.mrb[0].mxu0 %v850
      %v903 = vpop.f32.mrb[0].mxu0
      %v904 = vadd.f32 0.0, %v903
      %v905 = vpop.f32.mrb[0].mxu0
      %v906 = vpop.f32.mrb[0].mxu0
      %v907 = vadd.f32 0.0, %v906
      %v908 = vpop.f32.mrb[0].mxu0
      %909 = vmatprep.mubr.bf16.mxu0 0
      %910 = vmatmul.mubr.bf16.gmra.mrb[0].mxu0 %v853
      %v911 = vpop.f32.mrb[0].mxu0
      %v912 = vadd.f32 0.0, %v911
      %v913 = vpop.f32.mrb[0].mxu0
      %v914 = vpop.f32.mrb[0].mxu0
      %v915 = vadd.f32 0.0, %v914
      %v916 = vpop.f32.mrb[0].mxu0
      %917 = vmatprep.mubr.bf16.mxu0 0
      %918 = vmatmul.mubr.bf16.gmra.mrb[0].mxu0 %v856
      %v919 = vpop.f32.mrb[0].mxu0
      %v920 = vadd.f32 0.0, %v919
      %v921 = vpop.f32.mrb[0].mxu0
      %v922 = vpop.f32.mrb[0].mxu0
      %v923 = vadd.f32 0.0, %v922
      %v924 = vpop.f32.mrb[0].mxu0
      %925 = vdwg.mxu0
      %v926 = vadd.f32 %v808, %v896
      %v927 = vadd.f32 %v809, %v899
      %v928 = vadd.f32 %v810, %v904
      %v929 = vadd.f32 %v811, %v907
      %v930 = vadd.f32 %v812, %v912
      %v931 = vadd.f32 %v813, %v915
      %v932 = vadd.f32 %v814, %v920
      %v933 = vadd.f32 %v815, %v923
      %v934 = vld [vmem:[%s346] sm:$0xf]
      %v935 = vld [vmem:[%s346 + $0x8] sm:$0xf]
      %v936 = vld [vmem:[%s346 + $0x10] sm:$0xf]
      %v937 = vld [vmem:[%s346 + $0x18] sm:$0xf]
      %v938 = vld [vmem:[%s346 + $0x20] sm:$0xf]
      %v939 = vld [vmem:[%s346 + $0x28] sm:$0xf]
      %v940 = vld [vmem:[%s346 + $0x30] sm:$0xf]
      %v941 = vld [vmem:[%s346 + $0x38] sm:$0xf]
      %s942 = scalar_lea.vmem %s4, 16
      %v943 = vld [vmem:[%s942] sm:$0xf]
      %v952 = vunpack.c.l.b16 %v934
      %v953 = vunpack.c.l.b16 %v935
      %v954 = vunpack.c.l.b16 %v936
      %v955 = vunpack.c.l.b16 %v937
      %v956 = vunpack.c.l.b16 %v938
      %v957 = vunpack.c.l.b16 %v939
      %v958 = vunpack.c.l.b16 %v940
      %v959 = vunpack.c.l.b16 %v941
      %v960 = vpack.c.b16 %v953, %v952
      %v961 = vpack.c.b16 %v955, %v954
      %v962 = vpack.c.b16 %v957, %v956
      %v963 = vpack.c.b16 %v959, %v958
      %v965 = vsel %vm401, %v960, 0
      %v968 = vsel %vm401, %v961, 0
      %v971 = vsel %vm401, %v962, 0
      %v974 = vsel %vm401, %v963, 0
      %v977 = vsel %vm414, %v943, 0
      %979 = vmatprep.subr.bf16.mxu0 0
      %980 = vmatpush1.bf16.msra.mxu0 %v977
      %981 = vmatprep.subr.bf16.mxu0 0
      %982 = vmatpush1.bf16.msra.mxu0 0
      %983 = vmatprep.subr.bf16.mxu0 0
      %984 = vmatpush1.bf16.msra.mxu0 0
      %985 = vmatprep.subr.bf16.mxu0 0
      %986 = vmatpush1.bf16.msra.mxu0 0
      %987 = vmatprep.subr.bf16.mxu0 0
      %988 = vmatpush1.bf16.msra.mxu0 0
      %989 = vmatprep.subr.bf16.mxu0 0
      %990 = vmatpush1.bf16.msra.mxu0 0
      %991 = vmatprep.subr.bf16.mxu0 0
      %992 = vmatpush1.bf16.msra.mxu0 0
      %993 = vmatprep.subr.bf16.mxu0 0
      %994 = vmatpush1.bf16.msra.mxu0 0
      %995 = vmatprep.subr.bf16.mxu0 0
      %996 = vmatpush1.bf16.msra.mxu0 0
      %997 = vmatprep.subr.bf16.mxu0 0
      %998 = vmatpush1.bf16.msra.mxu0 0
      %999 = vmatprep.subr.bf16.mxu0 0
      %1000 = vmatpush1.bf16.msra.mxu0 0
      %1001 = vmatprep.subr.bf16.mxu0 0
      %1002 = vmatpush1.bf16.msra.mxu0 0
      %1003 = vmatprep.subr.bf16.mxu0 0
      %1004 = vmatpush1.bf16.msra.mxu0 0
      %1005 = vmatprep.subr.bf16.mxu0 0
      %1006 = vmatpush1.bf16.msra.mxu0 0
      %1007 = vmatprep.subr.bf16.mxu0 0
      %1008 = vmatpush1.bf16.msra.mxu0 0
      %1009 = vmatprep.subr.bf16.mxu0 0
      %1010 = vmatpush1.bf16.msra.mxu0 0
      %1011 = vmatprep.mubr.bf16.mxu0 0
      %1012 = vmatmul.mubr.bf16.gmra.mrb[0].mxu0 %v965
      %v1013 = vpop.f32.mrb[0].mxu0
      %v1014 = vadd.f32 0.0, %v1013
      %v1015 = vpop.f32.mrb[0].mxu0
      %v1016 = vpop.f32.mrb[0].mxu0
      %v1017 = vadd.f32 0.0, %v1016
      %v1018 = vpop.f32.mrb[0].mxu0
      %1019 = vmatprep.mubr.bf16.mxu0 0
      %1020 = vmatmul.mubr.bf16.gmra.mrb[0].mxu0 %v968
      %v1021 = vpop.f32.mrb[0].mxu0
      %v1022 = vadd.f32 0.0, %v1021
      %v1023 = vpop.f32.mrb[0].mxu0
      %v1024 = vpop.f32.mrb[0].mxu0
      %v1025 = vadd.f32 0.0, %v1024
      %v1026 = vpop.f32.mrb[0].mxu0
      %1027 = vmatprep.mubr.bf16.mxu0 0
      %1028 = vmatmul.mubr.bf16.gmra.mrb[0].mxu0 %v971
      %v1029 = vpop.f32.mrb[0].mxu0
      %v1030 = vadd.f32 0.0, %v1029
      %v1031 = vpop.f32.mrb[0].mxu0
      %v1032 = vpop.f32.mrb[0].mxu0
      %v1033 = vadd.f32 0.0, %v1032
      %v1034 = vpop.f32.mrb[0].mxu0
      %1035 = vmatprep.mubr.bf16.mxu0 0
      %1036 = vmatmul.mubr.bf16.gmra.mrb[0].mxu0 %v974
      %v1037 = vpop.f32.mrb[0].mxu0
      %v1038 = vadd.f32 0.0, %v1037
      %v1039 = vpop.f32.mrb[0].mxu0
      %v1040 = vpop.f32.mrb[0].mxu0
      %v1041 = vadd.f32 0.0, %v1040
      %v1042 = vpop.f32.mrb[0].mxu0
      %1043 = vdwg.mxu0
      %v1044 = vadd.f32 %v926, %v1014
      %v1045 = vadd.f32 %v927, %v1017
      %v1046 = vadd.f32 %v928, %v1022
      %v1047 = vadd.f32 %v929, %v1025
      %v1048 = vadd.f32 %v930, %v1030
      %v1049 = vadd.f32 %v931, %v1033
      %v1050 = vadd.f32 %v932, %v1038
      %v1051 = vadd.f32 %v933, %v1041
      %v1052 = vld [vmem:[%s341] sm:$0xf]
      %v1053 = vld [vmem:[%s341 + $0x4] sm:$0x1]
      %v1054 = vld [vmem:[%s341 + $0x8] sm:$0xf]
      %v1055 = vld [vmem:[%s341 + $0xc] sm:$0x1]
      %v1056 = vld [vmem:[%s341 + $0x10] sm:$0xf]
      %v1057 = vld [vmem:[%s341 + $0x14] sm:$0x1]
      %v1058 = vld [vmem:[%s341 + $0x18] sm:$0xf]
      %v1059 = vld [vmem:[%s341 + $0x1c] sm:$0x1]
      %v1060 = vld [vmem:[%s341 + $0x20] sm:$0xf]
      %v1061 = vld [vmem:[%s341 + $0x24] sm:$0x1]
      %v1062 = vld [vmem:[%s341 + $0x28] sm:$0xf]
      %v1063 = vld [vmem:[%s341 + $0x2c] sm:$0x1]
      %v1064 = vld [vmem:[%s341 + $0x30] sm:$0xf]
      %v1065 = vld [vmem:[%s341 + $0x34] sm:$0x1]
      %v1066 = vld [vmem:[%s341 + $0x38] sm:$0xf]
      %v1067 = vld [vmem:[%s341 + $0x3c] sm:$0x1]
      %v1069 = vshrl.u32 %v1052, 16
      %v1071 = vrot.slane %v1069, 4
      %v1072 = vshll.u32 %v1052, 16
      %v1074 = vrot.slane %v1072, 5
      %v1075 = vor.u32 %v1071, %v1074
      %v1076 = vrot.slane %v1075, 4
      %v1078 = vshll.u32 %v1053, 16
      %v1080 = vrot.slane %v1078, 5
      %v1081 = vsel %vm601, %v1076, %v1080
      %v1083 = vshrl.u32 %v1054, 16
      %v1085 = vrot.slane %v1083, 4
      %v1086 = vshll.u32 %v1054, 16
      %v1088 = vrot.slane %v1086, 5
      %v1089 = vor.u32 %v1085, %v1088
      %v1090 = vrot.slane %v1089, 4
      %v1092 = vshll.u32 %v1055, 16
      %v1094 = vrot.slane %v1092, 5
      %v1095 = vsel %vm601, %v1090, %v1094
      %v1097 = vshrl.u32 %v1056, 16
      %v1099 = vrot.slane %v1097, 4
      %v1100 = vshll.u32 %v1056, 16
      %v1102 = vrot.slane %v1100, 5
      %v1103 = vor.u32 %v1099, %v1102
      %v1104 = vrot.slane %v1103, 4
      %v1106 = vshll.u32 %v1057, 16
      %v1108 = vrot.slane %v1106, 5
      %v1109 = vsel %vm601, %v1104, %v1108
      %v1111 = vshrl.u32 %v1058, 16
      %v1113 = vrot.slane %v1111, 4
      %v1114 = vshll.u32 %v1058, 16
      %v1116 = vrot.slane %v1114, 5
      %v1117 = vor.u32 %v1113, %v1116
      %v1118 = vrot.slane %v1117, 4
      %v1120 = vshll.u32 %v1059, 16
      %v1122 = vrot.slane %v1120, 5
      %v1123 = vsel %vm601, %v1118, %v1122
      %v1125 = vshrl.u32 %v1060, 16
      %v1127 = vrot.slane %v1125, 4
      %v1128 = vshll.u32 %v1060, 16
      %v1130 = vrot.slane %v1128, 5
      %v1131 = vor.u32 %v1127, %v1130
      %v1132 = vrot.slane %v1131, 4
      %v1134 = vshll.u32 %v1061, 16
      %v1136 = vrot.slane %v1134, 5
      %v1137 = vsel %vm601, %v1132, %v1136
      %v1139 = vshrl.u32 %v1062, 16
      %v1141 = vrot.slane %v1139, 4
      %v1142 = vshll.u32 %v1062, 16
      %v1144 = vrot.slane %v1142, 5
      %v1145 = vor.u32 %v1141, %v1144
      %v1146 = vrot.slane %v1145, 4
      %v1148 = vshll.u32 %v1063, 16
      %v1150 = vrot.slane %v1148, 5
      %v1151 = vsel %vm601, %v1146, %v1150
      %v1153 = vshrl.u32 %v1064, 16
      %v1155 = vrot.slane %v1153, 4
      %v1156 = vshll.u32 %v1064, 16
      %v1158 = vrot.slane %v1156, 5
      %v1159 = vor.u32 %v1155, %v1158
      %v1160 = vrot.slane %v1159, 4
      %v1162 = vshll.u32 %v1065, 16
      %v1164 = vrot.slane %v1162, 5
      %v1165 = vsel %vm601, %v1160, %v1164
      %v1167 = vshrl.u32 %v1066, 16
      %v1169 = vrot.slane %v1167, 4
      %v1170 = vshll.u32 %v1066, 16
      %v1172 = vrot.slane %v1170, 5
      %v1173 = vor.u32 %v1169, %v1172
      %v1174 = vrot.slane %v1173, 4
      %v1176 = vshll.u32 %v1067, 16
      %v1178 = vrot.slane %v1176, 5
      %v1179 = vsel %vm601, %v1174, %v1178
      %s1180 = scalar_lea.vmem %s4, 20
      %v1181 = vld [vmem:[%s1180] sm:$0xf]
      %v1182 = vunpack.c.l.b16 %v1081
      %v1183 = vunpack.c.l.b16 %v1095
      %v1184 = vunpack.c.l.b16 %v1109
      %v1185 = vunpack.c.l.b16 %v1123
      %v1186 = vunpack.c.l.b16 %v1137
      %v1187 = vunpack.c.l.b16 %v1151
      %v1188 = vunpack.c.l.b16 %v1165
      %v1189 = vunpack.c.l.b16 %v1179
      %v1190 = vpack.c.b16 %v1183, %v1182
      %v1191 = vpack.c.b16 %v1185, %v1184
      %v1192 = vpack.c.b16 %v1187, %v1186
      %v1193 = vpack.c.b16 %v1189, %v1188
      %v1195 = vsel %vm401, %v1190, 0
      %v1198 = vsel %vm401, %v1191, 0
      %v1201 = vsel %vm401, %v1192, 0
      %v1204 = vsel %vm401, %v1193, 0
      %v1207 = vsel %vm414, %v1181, 0
      %1209 = vmatprep.subr.bf16.mxu0 0
      %1210 = vmatpush1.bf16.msra.mxu0 %v1207
      %1211 = vmatprep.subr.bf16.mxu0 0
      %1212 = vmatpush1.bf16.msra.mxu0 0
      %1213 = vmatprep.subr.bf16.mxu0 0
      %1214 = vmatpush1.bf16.msra.mxu0 0
      %1215 = vmatprep.subr.bf16.mxu0 0
      %1216 = vmatpush1.bf16.msra.mxu0 0
      %1217 = vmatprep.subr.bf16.mxu0 0
      %1218 = vmatpush1.bf16.msra.mxu0 0
      %1219 = vmatprep.subr.bf16.mxu0 0
      %1220 = vmatpush1.bf16.msra.mxu0 0
      %1221 = vmatprep.subr.bf16.mxu0 0
      %1222 = vmatpush1.bf16.msra.mxu0 0
      %1223 = vmatprep.subr.bf16.mxu0 0
      %1224 = vmatpush1.bf16.msra.mxu0 0
      %1225 = vmatprep.subr.bf16.mxu0 0
      %1226 = vmatpush1.bf16.msra.mxu0 0
      %1227 = vmatprep.subr.bf16.mxu0 0
      %1228 = vmatpush1.bf16.msra.mxu0 0
      %1229 = vmatprep.subr.bf16.mxu0 0
      %1230 = vmatpush1.bf16.msra.mxu0 0
      %1231 = vmatprep.subr.bf16.mxu0 0
      %1232 = vmatpush1.bf16.msra.mxu0 0
      %1233 = vmatprep.subr.bf16.mxu0 0
      %1234 = vmatpush1.bf16.msra.mxu0 0
      %1235 = vmatprep.subr.bf16.mxu0 0
      %1236 = vmatpush1.bf16.msra.mxu0 0
      %1237 = vmatprep.subr.bf16.mxu0 0
      %1238 = vmatpush1.bf16.msra.mxu0 0
      %1239 = vmatprep.subr.bf16.mxu0 0
      %1240 = vmatpush1.bf16.msra.mxu0 0
      %1241 = vmatprep.mubr.bf16.mxu0 0
      %1242 = vmatmul.mubr.bf16.gmra.mrb[0].mxu0 %v1195
      %v1243 = vpop.f32.mrb[0].mxu0
      %v1244 = vadd.f32 0.0, %v1243
      %v1245 = vpop.f32.mrb[0].mxu0
      %v1246 = vpop.f32.mrb[0].mxu0
      %v1247 = vadd.f32 0.0, %v1246
      %v1248 = vpop.f32.mrb[0].mxu0
      %1249 = vmatprep.mubr.bf16.mxu0 0
      %1250 = vmatmul.mubr.bf16.gmra.mrb[0].mxu0 %v1198
      %v1251 = vpop.f32.mrb[0].mxu0
      %v1252 = vadd.f32 0.0, %v1251
      %v1253 = vpop.f32.mrb[0].mxu0
      %v1254 = vpop.f32.mrb[0].mxu0
      %v1255 = vadd.f32 0.0, %v1254
      %v1256 = vpop.f32.mrb[0].mxu0
      %1257 = vmatprep.mubr.bf16.mxu0 0
      %1258 = vmatmul.mubr.bf16.gmra.mrb[0].mxu0 %v1201
      %v1259 = vpop.f32.mrb[0].mxu0
      %v1260 = vadd.f32 0.0, %v1259
      %v1261 = vpop.f32.mrb[0].mxu0
      %v1262 = vpop.f32.mrb[0].mxu0
      %v1263 = vadd.f32 0.0, %v1262
      %v1264 = vpop.f32.mrb[0].mxu0
      %1265 = vmatprep.mubr.bf16.mxu0 0
      %1266 = vmatmul.mubr.bf16.gmra.mrb[0].mxu0 %v1204
      %v1267 = vpop.f32.mrb[0].mxu0
      %v1268 = vadd.f32 0.0, %v1267
      %v1269 = vpop.f32.mrb[0].mxu0
      %v1270 = vpop.f32.mrb[0].mxu0
      %v1271 = vadd.f32 0.0, %v1270
      %v1272 = vpop.f32.mrb[0].mxu0
      %1273 = vdwg.mxu0
      %v1274 = vadd.f32 %v1044, %v1244
      %v1275 = vadd.f32 %v1045, %v1247
      %v1276 = vadd.f32 %v1046, %v1252
      %v1277 = vadd.f32 %v1047, %v1255
      %v1278 = vadd.f32 %v1048, %v1260
      %v1279 = vadd.f32 %v1049, %v1263
      %v1280 = vadd.f32 %v1050, %v1268
      %v1281 = vadd.f32 %v1051, %v1271
      %s1282 = scalar_lea.vmem %s331, 8
      %v1283 = vld [vmem:[%s1282] sm:$0xf]
      %v1284 = vld [vmem:[%s1282 + $0x8] sm:$0xf]
      %v1285 = vld [vmem:[%s1282 + $0x10] sm:$0xf]
      %v1286 = vld [vmem:[%s1282 + $0x18] sm:$0xf]
      %v1287 = vld [vmem:[%s1282 + $0x20] sm:$0xf]
      %v1288 = vld [vmem:[%s1282 + $0x28] sm:$0xf]
      %v1289 = vld [vmem:[%s1282 + $0x30] sm:$0xf]
      %v1290 = vld [vmem:[%s1282 + $0x38] sm:$0xf]
      %s1291 = scalar_lea.vmem %s4, 24
      %v1292 = vld [vmem:[%s1291] sm:$0xf]
      %v1301 = vunpack.c.l.b16 %v1283
      %v1302 = vunpack.c.l.b16 %v1284
      %v1303 = vunpack.c.l.b16 %v1285
      %v1304 = vunpack.c.l.b16 %v1286
      %v1305 = vunpack.c.l.b16 %v1287
      %v1306 = vunpack.c.l.b16 %v1288
      %v1307 = vunpack.c.l.b16 %v1289
      %v1308 = vunpack.c.l.b16 %v1290
      %v1309 = vpack.c.b16 %v1302, %v1301
      %v1310 = vpack.c.b16 %v1304, %v1303
      %v1311 = vpack.c.b16 %v1306, %v1305
      %v1312 = vpack.c.b16 %v1308, %v1307
      %v1314 = vsel %vm401, %v1309, 0
      %v1317 = vsel %vm401, %v1310, 0
      %v1320 = vsel %vm401, %v1311, 0
      %v1323 = vsel %vm401, %v1312, 0
      %v1326 = vsel %vm414, %v1292, 0
      %1328 = vmatprep.subr.bf16.mxu0 0
      %1329 = vmatpush1.bf16.msra.mxu0 %v1326
      %1330 = vmatprep.subr.bf16.mxu0 0
      %1331 = vmatpush1.bf16.msra.mxu0 0
      %1332 = vmatprep.subr.bf16.mxu0 0
      %1333 = vmatpush1.bf16.msra.mxu0 0
      %1334 = vmatprep.subr.bf16.mxu0 0
      %1335 = vmatpush1.bf16.msra.mxu0 0
      %1336 = vmatprep.subr.bf16.mxu0 0
      %1337 = vmatpush1.bf16.msra.mxu0 0
      %1338 = vmatprep.subr.bf16.mxu0 0
      %1339 = vmatpush1.bf16.msra.mxu0 0
      %1340 = vmatprep.subr.bf16.mxu0 0
      %1341 = vmatpush1.bf16.msra.mxu0 0
      %1342 = vmatprep.subr.bf16.mxu0 0
      %1343 = vmatpush1.bf16.msra.mxu0 0
      %1344 = vmatprep.subr.bf16.mxu0 0
      %1345 = vmatpush1.bf16.msra.mxu0 0
      %1346 = vmatprep.subr.bf16.mxu0 0
      %1347 = vmatpush1.bf16.msra.mxu0 0
      %1348 = vmatprep.subr.bf16.mxu0 0
      %1349 = vmatpush1.bf16.msra.mxu0 0
      %1350 = vmatprep.subr.bf16.mxu0 0
      %1351 = vmatpush1.bf16.msra.mxu0 0
      %1352 = vmatprep.subr.bf16.mxu0 0
      %1353 = vmatpush1.bf16.msra.mxu0 0
      %1354 = vmatprep.subr.bf16.mxu0 0
      %1355 = vmatpush1.bf16.msra.mxu0 0
      %1356 = vmatprep.subr.bf16.mxu0 0
      %1357 = vmatpush1.bf16.msra.mxu0 0
      %1358 = vmatprep.subr.bf16.mxu0 0
      %1359 = vmatpush1.bf16.msra.mxu0 0
      %1360 = vmatprep.mubr.bf16.mxu0 0
      %1361 = vmatmul.mubr.bf16.gmra.mrb[0].mxu0 %v1314
      %v1362 = vpop.f32.mrb[0].mxu0
      %v1363 = vadd.f32 0.0, %v1362
      %v1364 = vpop.f32.mrb[0].mxu0
      %v1365 = vpop.f32.mrb[0].mxu0
      %v1366 = vadd.f32 0.0, %v1365
      %v1367 = vpop.f32.mrb[0].mxu0
      %1368 = vmatprep.mubr.bf16.mxu0 0
      %1369 = vmatmul.mubr.bf16.gmra.mrb[0].mxu0 %v1317
      %v1370 = vpop.f32.mrb[0].mxu0
      %v1371 = vadd.f32 0.0, %v1370
      %v1372 = vpop.f32.mrb[0].mxu0
      %v1373 = vpop.f32.mrb[0].mxu0
      %v1374 = vadd.f32 0.0, %v1373
      %v1375 = vpop.f32.mrb[0].mxu0
      %1376 = vmatprep.mubr.bf16.mxu0 0
      %1377 = vmatmul.mubr.bf16.gmra.mrb[0].mxu0 %v1320
      %v1378 = vpop.f32.mrb[0].mxu0
      %v1379 = vadd.f32 0.0, %v1378
      %v1380 = vpop.f32.mrb[0].mxu0
      %v1381 = vpop.f32.mrb[0].mxu0
      %v1382 = vadd.f32 0.0, %v1381
      %v1383 = vpop.f32.mrb[0].mxu0
      %1384 = vmatprep.mubr.bf16.mxu0 0
      %1385 = vmatmul.mubr.bf16.gmra.mrb[0].mxu0 %v1323
      %v1386 = vpop.f32.mrb[0].mxu0
      %v1387 = vadd.f32 0.0, %v1386
      %v1388 = vpop.f32.mrb[0].mxu0
      %v1389 = vpop.f32.mrb[0].mxu0
      %v1390 = vadd.f32 0.0, %v1389
      %v1391 = vpop.f32.mrb[0].mxu0
      %1392 = vdwg.mxu0
      %v1393 = vadd.f32 %v1274, %v1363
      %v1394 = vadd.f32 %v1275, %v1366
      %v1395 = vadd.f32 %v1276, %v1371
      %v1396 = vadd.f32 %v1277, %v1374
      %v1397 = vadd.f32 %v1278, %v1379
      %v1398 = vadd.f32 %v1279, %v1382
      %v1399 = vadd.f32 %v1280, %v1387
      %v1400 = vadd.f32 %v1281, %v1390
      %s1401 = scalar_lea.vmem %s336, 8
      %v1402 = vld [vmem:[%s1401] sm:$0xf]
      %v1403 = vld [vmem:[%s1401 + $0x8] sm:$0xf]
      %v1404 = vld [vmem:[%s1401 + $0x10] sm:$0xf]
      %v1405 = vld [vmem:[%s1401 + $0x18] sm:$0xf]
      %v1406 = vld [vmem:[%s1401 + $0x20] sm:$0xf]
      %v1407 = vld [vmem:[%s1401 + $0x28] sm:$0xf]
      %v1408 = vld [vmem:[%s1401 + $0x30] sm:$0xf]
      %v1409 = vld [vmem:[%s1401 + $0x38] sm:$0xf]
      %s1410 = scalar_lea.vmem %s4, 28
      %v1411 = vld [vmem:[%s1410] sm:$0xf]
      %v1420 = vunpack.c.l.b16 %v1402
      %v1421 = vunpack.c.l.b16 %v1403
      %v1422 = vunpack.c.l.b16 %v1404
      %v1423 = vunpack.c.l.b16 %v1405
      %v1424 = vunpack.c.l.b16 %v1406
      %v1425 = vunpack.c.l.b16 %v1407
      %v1426 = vunpack.c.l.b16 %v1408
      %v1427 = vunpack.c.l.b16 %v1409
      %v1428 = vpack.c.b16 %v1421, %v1420
      %v1429 = vpack.c.b16 %v1423, %v1422
      %v1430 = vpack.c.b16 %v1425, %v1424
      %v1431 = vpack.c.b16 %v1427, %v1426
      %v1433 = vsel %vm401, %v1428, 0
      %v1436 = vsel %vm401, %v1429, 0
      %v1439 = vsel %vm401, %v1430, 0
      %v1442 = vsel %vm401, %v1431, 0
      %v1445 = vsel %vm414, %v1411, 0
      %1447 = vmatprep.subr.bf16.mxu0 0
      %1448 = vmatpush1.bf16.msra.mxu0 %v1445
      %1449 = vmatprep.subr.bf16.mxu0 0
      %1450 = vmatpush1.bf16.msra.mxu0 0
      %1451 = vmatprep.subr.bf16.mxu0 0
      %1452 = vmatpush1.bf16.msra.mxu0 0
      %1453 = vmatprep.subr.bf16.mxu0 0
      %1454 = vmatpush1.bf16.msra.mxu0 0
      %1455 = vmatprep.subr.bf16.mxu0 0
      %1456 = vmatpush1.bf16.msra.mxu0 0
      %1457 = vmatprep.subr.bf16.mxu0 0
      %1458 = vmatpush1.bf16.msra.mxu0 0
      %1459 = vmatprep.subr.bf16.mxu0 0
      %1460 = vmatpush1.bf16.msra.mxu0 0
      %1461 = vmatprep.subr.bf16.mxu0 0
      %1462 = vmatpush1.bf16.msra.mxu0 0
      %1463 = vmatprep.subr.bf16.mxu0 0
      %1464 = vmatpush1.bf16.msra.mxu0 0
      %1465 = vmatprep.subr.bf16.mxu0 0
      %1466 = vmatpush1.bf16.msra.mxu0 0
      %1467 = vmatprep.subr.bf16.mxu0 0
      %1468 = vmatpush1.bf16.msra.mxu0 0
      %1469 = vmatprep.subr.bf16.mxu0 0
      %1470 = vmatpush1.bf16.msra.mxu0 0
      %1471 = vmatprep.subr.bf16.mxu0 0
      %1472 = vmatpush1.bf16.msra.mxu0 0
      %1473 = vmatprep.subr.bf16.mxu0 0
      %1474 = vmatpush1.bf16.msra.mxu0 0
      %1475 = vmatprep.subr.bf16.mxu0 0
      %1476 = vmatpush1.bf16.msra.mxu0 0
      %1477 = vmatprep.subr.bf16.mxu0 0
      %1478 = vmatpush1.bf16.msra.mxu0 0
      %1479 = vmatprep.mubr.bf16.mxu0 0
      %1480 = vmatmul.mubr.bf16.gmra.mrb[0].mxu0 %v1433
      %v1481 = vpop.f32.mrb[0].mxu0
      %v1482 = vadd.f32 0.0, %v1481
      %v1483 = vpop.f32.mrb[0].mxu0
      %v1484 = vpop.f32.mrb[0].mxu0
      %v1485 = vadd.f32 0.0, %v1484
      %v1486 = vpop.f32.mrb[0].mxu0
      %1487 = vmatprep.mubr.bf16.mxu0 0
      %1488 = vmatmul.mubr.bf16.gmra.mrb[0].mxu0 %v1436
      %v1489 = vpop.f32.mrb[0].mxu0
      %v1490 = vadd.f32 0.0, %v1489
      %v1491 = vpop.f32.mrb[0].mxu0
      %v1492 = vpop.f32.mrb[0].mxu0
      %v1493 = vadd.f32 0.0, %v1492
      %v1494 = vpop.f32.mrb[0].mxu0
      %1495 = vmatprep.mubr.bf16.mxu0 0
      %1496 = vmatmul.mubr.bf16.gmra.mrb[0].mxu0 %v1439
      %v1497 = vpop.f32.mrb[0].mxu0
      %v1498 = vadd.f32 0.0, %v1497
      %v1499 = vpop.f32.mrb[0].mxu0
      %v1500 = vpop.f32.mrb[0].mxu0
      %v1501 = vadd.f32 0.0, %v1500
      %v1502 = vpop.f32.mrb[0].mxu0
      %1503 = vmatprep.mubr.bf16.mxu0 0
      %1504 = vmatmul.mubr.bf16.gmra.mrb[0].mxu0 %v1442
      %v1505 = vpop.f32.mrb[0].mxu0
      %v1506 = vadd.f32 0.0, %v1505
      %v1507 = vpop.f32.mrb[0].mxu0
      %v1508 = vpop.f32.mrb[0].mxu0
      %v1509 = vadd.f32 0.0, %v1508
      %v1510 = vpop.f32.mrb[0].mxu0
      %1511 = vdwg.mxu0
      %v1512 = vadd.f32 %v1393, %v1482
      %v1513 = vadd.f32 %v1394, %v1485
      %v1514 = vadd.f32 %v1395, %v1490
      %v1515 = vadd.f32 %v1396, %v1493
      %v1516 = vadd.f32 %v1397, %v1498
      %v1517 = vadd.f32 %v1398, %v1501
      %v1518 = vadd.f32 %v1399, %v1506
      %v1519 = vadd.f32 %v1400, %v1509
      %v1520 = vld [vmem:[%s1282] sm:$0xf]
      %v1521 = vld [vmem:[%s1282 + $0x4] sm:$0x1]
      %v1522 = vld [vmem:[%s1282 + $0x8] sm:$0xf]
      %v1523 = vld [vmem:[%s1282 + $0xc] sm:$0x1]
      %v1524 = vld [vmem:[%s1282 + $0x10] sm:$0xf]
      %v1525 = vld [vmem:[%s1282 + $0x14] sm:$0x1]
      %v1526 = vld [vmem:[%s1282 + $0x18] sm:$0xf]
      %v1527 = vld [vmem:[%s1282 + $0x1c] sm:$0x1]
      %v1528 = vld [vmem:[%s1282 + $0x20] sm:$0xf]
      %v1529 = vld [vmem:[%s1282 + $0x24] sm:$0x1]
      %v1530 = vld [vmem:[%s1282 + $0x28] sm:$0xf]
      %v1531 = vld [vmem:[%s1282 + $0x2c] sm:$0x1]
      %v1532 = vld [vmem:[%s1282 + $0x30] sm:$0xf]
      %v1533 = vld [vmem:[%s1282 + $0x34] sm:$0x1]
      %v1534 = vld [vmem:[%s1282 + $0x38] sm:$0xf]
      %v1535 = vld [vmem:[%s1282 + $0x3c] sm:$0x1]
      %v1537 = vshrl.u32 %v1520, 16
      %v1539 = vrot.slane %v1537, 4
      %v1540 = vshll.u32 %v1520, 16
      %v1542 = vrot.slane %v1540, 5
      %v1543 = vor.u32 %v1539, %v1542
      %v1544 = vrot.slane %v1543, 4
      %v1546 = vshll.u32 %v1521, 16
      %v1548 = vrot.slane %v1546, 5
      %v1549 = vsel %vm601, %v1544, %v1548
      %v1551 = vshrl.u32 %v1522, 16
      %v1553 = vrot.slane %v1551, 4
      %v1554 = vshll.u32 %v1522, 16
      %v1556 = vrot.slane %v1554, 5
      %v1557 = vor.u32 %v1553, %v1556
      %v1558 = vrot.slane %v1557, 4
      %v1560 = vshll.u32 %v1523, 16
      %v1562 = vrot.slane %v1560, 5
      %v1563 = vsel %vm601, %v1558, %v1562
      %v1565 = vshrl.u32 %v1524, 16
      %v1567 = vrot.slane %v1565, 4
      %v1568 = vshll.u32 %v1524, 16
      %v1570 = vrot.slane %v1568, 5
      %v1571 = vor.u32 %v1567, %v1570
      %v1572 = vrot.slane %v1571, 4
      %v1574 = vshll.u32 %v1525, 16
      %v1576 = vrot.slane %v1574, 5
      %v1577 = vsel %vm601, %v1572, %v1576
      %v1579 = vshrl.u32 %v1526, 16
      %v1581 = vrot.slane %v1579, 4
      %v1582 = vshll.u32 %v1526, 16
      %v1584 = vrot.slane %v1582, 5
      %v1585 = vor.u32 %v1581, %v1584
      %v1586 = vrot.slane %v1585, 4
      %v1588 = vshll.u32 %v1527, 16
      %v1590 = vrot.slane %v1588, 5
      %v1591 = vsel %vm601, %v1586, %v1590
      %v1593 = vshrl.u32 %v1528, 16
      %v1595 = vrot.slane %v1593, 4
      %v1596 = vshll.u32 %v1528, 16
      %v1598 = vrot.slane %v1596, 5
      %v1599 = vor.u32 %v1595, %v1598
      %v1600 = vrot.slane %v1599, 4
      %v1602 = vshll.u32 %v1529, 16
      %v1604 = vrot.slane %v1602, 5
      %v1605 = vsel %vm601, %v1600, %v1604
      %v1607 = vshrl.u32 %v1530, 16
      %v1609 = vrot.slane %v1607, 4
      %v1610 = vshll.u32 %v1530, 16
      %v1612 = vrot.slane %v1610, 5
      %v1613 = vor.u32 %v1609, %v1612
      %v1614 = vrot.slane %v1613, 4
      %v1616 = vshll.u32 %v1531, 16
      %v1618 = vrot.slane %v1616, 5
      %v1619 = vsel %vm601, %v1614, %v1618
      %v1621 = vshrl.u32 %v1532, 16
      %v1623 = vrot.slane %v1621, 4
      %v1624 = vshll.u32 %v1532, 16
      %v1626 = vrot.slane %v1624, 5
      %v1627 = vor.u32 %v1623, %v1626
      %v1628 = vrot.slane %v1627, 4
      %v1630 = vshll.u32 %v1533, 16
      %v1632 = vrot.slane %v1630, 5
      %v1633 = vsel %vm601, %v1628, %v1632
      %v1635 = vshrl.u32 %v1534, 16
      %v1637 = vrot.slane %v1635, 4
      %v1638 = vshll.u32 %v1534, 16
      %v1640 = vrot.slane %v1638, 5
      %v1641 = vor.u32 %v1637, %v1640
      %v1642 = vrot.slane %v1641, 4
      %v1644 = vshll.u32 %v1535, 16
      %v1646 = vrot.slane %v1644, 5
      %v1647 = vsel %vm601, %v1642, %v1646
      %s1648 = scalar_lea.vmem %s4, 32
      %v1649 = vld [vmem:[%s1648] sm:$0xf]
      %v1650 = vunpack.c.l.b16 %v1549
      %v1651 = vunpack.c.l.b16 %v1563
      %v1652 = vunpack.c.l.b16 %v1577
      %v1653 = vunpack.c.l.b16 %v1591
      %v1654 = vunpack.c.l.b16 %v1605
      %v1655 = vunpack.c.l.b16 %v1619
      %v1656 = vunpack.c.l.b16 %v1633
      %v1657 = vunpack.c.l.b16 %v1647
      %v1658 = vpack.c.b16 %v1651, %v1650
      %v1659 = vpack.c.b16 %v1653, %v1652
      %v1660 = vpack.c.b16 %v1655, %v1654
      %v1661 = vpack.c.b16 %v1657, %v1656
      %v1663 = vsel %vm401, %v1658, 0
      %v1666 = vsel %vm401, %v1659, 0
      %v1669 = vsel %vm401, %v1660, 0
      %v1672 = vsel %vm401, %v1661, 0
      %v1675 = vsel %vm414, %v1649, 0
      %1677 = vmatprep.subr.bf16.mxu0 0
      %1678 = vmatpush1.bf16.msra.mxu0 %v1675
      %1679 = vmatprep.subr.bf16.mxu0 0
      %1680 = vmatpush1.bf16.msra.mxu0 0
      %1681 = vmatprep.subr.bf16.mxu0 0
      %1682 = vmatpush1.bf16.msra.mxu0 0
      %1683 = vmatprep.subr.bf16.mxu0 0
      %1684 = vmatpush1.bf16.msra.mxu0 0
      %1685 = vmatprep.subr.bf16.mxu0 0
      %1686 = vmatpush1.bf16.msra.mxu0 0
      %1687 = vmatprep.subr.bf16.mxu0 0
      %1688 = vmatpush1.bf16.msra.mxu0 0
      %1689 = vmatprep.subr.bf16.mxu0 0
      %1690 = vmatpush1.bf16.msra.mxu0 0
      %1691 = vmatprep.subr.bf16.mxu0 0
      %1692 = vmatpush1.bf16.msra.mxu0 0
      %1693 = vmatprep.subr.bf16.mxu0 0
      %1694 = vmatpush1.bf16.msra.mxu0 0
      %1695 = vmatprep.subr.bf16.mxu0 0
      %1696 = vmatpush1.bf16.msra.mxu0 0
      %1697 = vmatprep.subr.bf16.mxu0 0
      %1698 = vmatpush1.bf16.msra.mxu0 0
      %1699 = vmatprep.subr.bf16.mxu0 0
      %1700 = vmatpush1.bf16.msra.mxu0 0
      %1701 = vmatprep.subr.bf16.mxu0 0
      %1702 = vmatpush1.bf16.msra.mxu0 0
      %1703 = vmatprep.subr.bf16.mxu0 0
      %1704 = vmatpush1.bf16.msra.mxu0 0
      %1705 = vmatprep.subr.bf16.mxu0 0
      %1706 = vmatpush1.bf16.msra.mxu0 0
      %1707 = vmatprep.subr.bf16.mxu0 0
      %1708 = vmatpush1.bf16.msra.mxu0 0
      %1709 = vmatprep.mubr.bf16.mxu0 0
      %1710 = vmatmul.mubr.bf16.gmra.mrb[0].mxu0 %v1663
      %v1711 = vpop.f32.mrb[0].mxu0
      %v1712 = vadd.f32 0.0, %v1711
      %v1713 = vpop.f32.mrb[0].mxu0
      %v1714 = vpop.f32.mrb[0].mxu0
      %v1715 = vadd.f32 0.0, %v1714
      %v1716 = vpop.f32.mrb[0].mxu0
      %1717 = vmatprep.mubr.bf16.mxu0 0
      %1718 = vmatmul.mubr.bf16.gmra.mrb[0].mxu0 %v1666
      %v1719 = vpop.f32.mrb[0].mxu0
      %v1720 = vadd.f32 0.0, %v1719
      %v1721 = vpop.f32.mrb[0].mxu0
      %v1722 = vpop.f32.mrb[0].mxu0
      %v1723 = vadd.f32 0.0, %v1722
      %v1724 = vpop.f32.mrb[0].mxu0
      %1725 = vmatprep.mubr.bf16.mxu0 0
      %1726 = vmatmul.mubr.bf16.gmra.mrb[0].mxu0 %v1669
      %v1727 = vpop.f32.mrb[0].mxu0
      %v1728 = vadd.f32 0.0, %v1727
      %v1729 = vpop.f32.mrb[0].mxu0
      %v1730 = vpop.f32.mrb[0].mxu0
      %v1731 = vadd.f32 0.0, %v1730
      %v1732 = vpop.f32.mrb[0].mxu0
      %1733 = vmatprep.mubr.bf16.mxu0 0
      %1734 = vmatmul.mubr.bf16.gmra.mrb[0].mxu0 %v1672
      %v1735 = vpop.f32.mrb[0].mxu0
      %v1736 = vadd.f32 0.0, %v1735
      %v1737 = vpop.f32.mrb[0].mxu0
      %v1738 = vpop.f32.mrb[0].mxu0
      %v1739 = vadd.f32 0.0, %v1738
      %v1740 = vpop.f32.mrb[0].mxu0
      %1741 = vdwg.mxu0
      %v1742 = vadd.f32 %v1512, %v1712
      %v1743 = vadd.f32 %v1513, %v1715
      %v1744 = vadd.f32 %v1514, %v1720
      %v1745 = vadd.f32 %v1515, %v1723
      %v1746 = vadd.f32 %v1516, %v1728
      %v1747 = vadd.f32 %v1517, %v1731
      %v1748 = vadd.f32 %v1518, %v1736
      %v1749 = vadd.f32 %v1519, %v1739
      %v1750 = vpack.c.bf16 %v1743, %v1742
      %v1751 = vpack.c.bf16 %v1745, %v1744
      %v1752 = vpack.c.bf16 %v1747, %v1746
      %v1753 = vpack.c.bf16 %v1749, %v1748
      %v1758 = vunpack.c.l.b16 %v1750
      %v1759 = vunpack.c.h.b16 %v1750
      %v1760 = vunpack.c.l.b16 %v1751
      %v1761 = vunpack.c.h.b16 %v1751
      %v1762 = vunpack.c.l.b16 %v1752
      %v1763 = vunpack.c.h.b16 %v1752
      %v1764 = vunpack.c.l.b16 %v1753
      %v1765 = vunpack.c.h.b16 %v1753
      %v1766 = vpack.c.b16 %v1758, %v1758
      %v1767 = vpack.c.b16 %v1759, %v1759
      %v1768 = vpack.c.b16 %v1760, %v1760
      %v1769 = vpack.c.b16 %v1761, %v1761
      %v1770 = vpack.c.b16 %v1762, %v1762
      %v1771 = vpack.c.b16 %v1763, %v1763
      %v1772 = vpack.c.b16 %v1764, %v1764
      %v1773 = vpack.c.b16 %v1765, %v1765
      %1782 = vst [vmem:[%s351] sm:$0xf] %v1766
      %1783 = vst [vmem:[%s351 + $0x4] sm:$0xf] %v1767
      %1784 = vst [vmem:[%s351 + $0x8] sm:$0xf] %v1768
      %1785 = vst [vmem:[%s351 + $0xc] sm:$0xf] %v1769
      %1786 = vst [vmem:[%s351 + $0x10] sm:$0xf] %v1770
      %1787 = vst [vmem:[%s351 + $0x14] sm:$0xf] %v1771
      %1788 = vst [vmem:[%s351 + $0x18] sm:$0xf] %v1772
      %1789 = vst [vmem:[%s351 + $0x1c] sm:$0xf] %v1773
      %v1790 = vadd.f32 %v1742, %v1743
      %v1791 = vadd.f32 %v1790, %v1744
      %v1792 = vadd.f32 %v1791, %v1745
      %v1793 = vadd.f32 %v1792, %v1746
      %v1794 = vadd.f32 %v1793, %v1747
      %v1795 = vadd.f32 %v1794, %v1748
      %v1796 = vadd.f32 %v1795, %v1749
      %v1797 = vrot.slane %v1796, 4
      %v1798 = vadd.f32 %v1796, %v1797
      %v1799 = vrot.slane %v1798, 2
      %v1800 = vadd.f32 %v1798, %v1799
      %v1801 = vrot.slane %v1800, 1
      %v1802 = vadd.f32 %v1800, %v1801
      %v1803 = vmul.f32 %v1742, %v1742
      %v1804 = vmul.f32 %v1743, %v1743
      %v1805 = vmul.f32 %v1744, %v1744
      %v1806 = vmul.f32 %v1745, %v1745
      %v1807 = vmul.f32 %v1746, %v1746
      %v1808 = vmul.f32 %v1747, %v1747
      %v1809 = vmul.f32 %v1748, %v1748
      %v1810 = vmul.f32 %v1749, %v1749
      %v1811 = vadd.f32 %v1803, %v1804
      %v1812 = vadd.f32 %v1811, %v1805
      %v1813 = vadd.f32 %v1812, %v1806
      %v1814 = vadd.f32 %v1813, %v1807
      %v1815 = vadd.f32 %v1814, %v1808
      %v1816 = vadd.f32 %v1815, %v1809
      %v1817 = vadd.f32 %v1816, %v1810
      %v1818 = vrot.slane %v1817, 4
      %v1819 = vadd.f32 %v1817, %v1818
      %v1820 = vrot.slane %v1819, 2
      %v1821 = vadd.f32 %v1819, %v1820
      %v1822 = vrot.slane %v1821, 1
      %v1823 = vadd.f32 %v1821, %v1822
      %1824 = vst [vmem:[%s356] sm:$0xff] %v1802
      %1825 = vst [vmem:[%s360] sm:$0xff] %v1823
      %s1826 = smul.u32 8, %s19
      %p1827 = scmp.lt.s32.totalorder %s1826, 15
      %s1828 = scalar_select %p1827, %s1826, 15
      %s1829 = smul.addr %s1828, 4
      %s1830 = scalar_lea.vmem %s5, %s1829
      %p1831 = scmp.lt.s32.totalorder %s19, 1
      %s1832 = scalar_select %p1831, %s19, 1
      %s1833 = smul.addr %s1832, 8
      %s1834 = scalar_lea.vmem %s6, %s1833
      %p1835 = scmp.lt.s32.totalorder %s19, 1
      %s1836 = scalar_select %p1835, %s19, 1
      %s1837 = smul.addr %s1836, 8
      %s1838 = scalar_lea.vmem %s7, %s1837
      // Predicated region
      $region41: #{downsample_layer.5} parent=39 // pred_check
        %p1839 = pneg %p162
      $region42: #{downsample_layer.5} parent=39 // pred_check_branch
        %1841 = sbr.rel (%p1839) target = $region44
      $region43: #{downsample_layer.5} parent=39 // pred_region
        %s1842 = smul.u32 8, %s19
      $region44: #{downsample_layer.5} parent=39 // pred_fallthru
        _
      // Predicated region
      $region45: #{downsample_layer.5} parent=39 // pred_check
        %p1843 = pneg %p188
      $region46: #{downsample_layer.5} parent=39 // pred_check_branch
        %1845 = sbr.rel (%p1843) target = $region48
      $region47: #{downsample_layer.5} parent=39 // pred_region
        _
      $region48: #{downsample_layer.5} parent=39 // pred_fallthru
        _
      // Predicated region
      $region49: #{downsample_layer.5} parent=39 // pred_check
        %p1846 = pneg %p214
      $region50: #{downsample_layer.5} parent=39 // pred_check_branch
        %1848 = sbr.rel (%p1846) target = $region52
      $region51: #{downsample_layer.5} parent=39 // pred_region
        _
      $region52: #{downsample_layer.5} parent=39 // pred_fallthru
        _
    $region40: #{downsample_layer.5} parent=5 // pred_fallthru
      _
    %p1849 = scmp.le.s32.totalorder 2, %s14
    // Predicated region
    $region53: #{downsample_layer.5} parent=5 // pred_check
      %p1850 = pneg %p1849
    $region54: #{downsample_layer.5} parent=5 // pred_check_branch
      %1852 = sbr.rel (%p1850) target = $region56
    $region55: #{downsample_layer.5} parent=5 // pred_region
      %s1853 = ssub.s32 %s14, 2
      // Predicated region
      $region57: #{downsample_layer.5} parent=55 // pred_check
        %p1854 = pneg %p168
      $region58: #{downsample_layer.5} parent=55 // pred_check_branch
        %1856 = sbr.rel (%p1854) target = $region60
      $region59: #{downsample_layer.5} parent=55 // pred_region
        %s1857 = smul.u32 8, %s20
        %p1858 = scmp.lt.s32.totalorder %s1857, 15
        %s1859 = scalar_select %p1858, %s1857, 15
        %s1860 = smul.addr %s1859, 4
        %s1861 = scalar_lea.vmem %s5, %s1860
      $region60: #{downsample_layer.5} parent=55 // pred_fallthru
        _
      // Predicated region
      $region61: #{downsample_layer.5} parent=55 // pred_check
        %p1862 = pneg %p194
      $region62: #{downsample_layer.5} parent=55 // pred_check_branch
        %1864 = sbr.rel (%p1862) target = $region64
      $region63: #{downsample_layer.5} parent=55 // pred_region
        %p1865 = scmp.lt.s32.totalorder %s20, 1
        %s1866 = scalar_select %p1865, %s20, 1
        %s1867 = smul.addr %s1866, 8
        %s1868 = scalar_lea.vmem %s6, %s1867
      $region64: #{downsample_layer.5} parent=55 // pred_fallthru
        _
      // Predicated region
      $region65: #{downsample_layer.5} parent=55 // pred_check
        %p1869 = pneg %p220
      $region66: #{downsample_layer.5} parent=55 // pred_check_branch
        %1871 = sbr.rel (%p1869) target = $region68
      $region67: #{downsample_layer.5} parent=55 // pred_region
        %p1872 = scmp.lt.s32.totalorder %s20, 1
        %s1873 = scalar_select %p1872, %s20, 1
        %s1874 = smul.addr %s1873, 8
        %s1875 = scalar_lea.vmem %s7, %s1874
      $region68: #{downsample_layer.5} parent=55 // pred_fallthru
        _
    $region56: #{downsample_layer.5} parent=5 // pred_fallthru
      _
  $region6: #{downsample_layer.5} parent=0 // loop_footer
    %s18 = sadd.s32 1, %s14
  $region7: #{downsample_layer.5} parent=0 // loop_footer_branch
    %13 = sbr.rel target = $region3
  $region8: #{downsample_layer.5} parent=0 // loop_exit
    _

// kernel: downsample_layer.4
$region0: #{downsample_layer.4}
  #allocation0 [shape = 'u32[]', space=smem, size = 0x4, offset = 0x4, fixed_abs, tag = 'smem constant byte address 0x4 - core index']
  #allocation1 [shape = 'u32[144,128]{1,0:T(1,128)}', space=vmem, size = 0x12000, scoped, tag = 'internal scratch']
  %s0 = inlined_call_operand.vmem [shape: bf16[2,18,18,8], index: 0, kind: input, shape index: {}]
  %s1 = inlined_call_operand.vmem [shape: bf16[9,8,128], index: 1, kind: input, shape index: {}]
  %s2 = inlined_call_operand.vmem [shape: bf16[512,128], index: 2, kind: output, shape index: {0}]
  %s3 = inlined_call_operand.vmem [shape: f32[16,128], index: 3, kind: output, shape index: {1}]
  %s4 = inlined_call_operand.vmem [shape: f32[16,128], index: 4, kind: output, shape index: {2}]
  %5 = xla_tuple %s2, %s3, %s4
  %s6 = sld [smem:[#allocation0]]
  $region57: #{downsample_layer.4} parent=0
    _
  %s8 = ssub.s32 1, %s6
  %s9 = scalar_select 0, %s8, %s6
  loop: start=0, step=1, limit=4
  $region2: #{downsample_layer.4} parent=0 // loop_pre_header
    _
  $region3: #{downsample_layer.4} parent=0 // loop_header
    %s11 = sphi 0, %s15
    %p12 = scmp.ge.s32.totalorder %s11, 4
    %s21 = sphi 0, %s23
    %s24 = sphi 0, %s21
    %s25 = sphi 0, %s24
    %s41 = sphi 0, %s25
    %s45 = sphi 0, %s45
    %s47 = sphi 0, %s45
    %s48 = sphi 0, %s47
    %s62 = sphi 0, %s48
    %s68 = sphi 0, %s70
    %s71 = sphi 0, %s68
    %s72 = sphi 0, %s71
    %s88 = sphi 0, %s72
    %s94 = sphi 0, %s96
    %s97 = sphi 0, %s94
    %s98 = sphi 0, %s97
    %s114 = sphi 0, %s98
    %s120 = sphi 0, %s122
    %s123 = sphi 0, %s120
    %s124 = sphi 0, %s123
    %s140 = sphi 0, %s124
  $region4: #{downsample_layer.4} parent=0 // loop_header_branch
    %14 = sbr.rel (%p12) target = $region8
  $region5: #{downsample_layer.4} parent=0 // loop_body
    %s16 = ssub.s32 %s11, 1
    %s17 = ssub.s32 %s11, 2
    %s18 = sadd.s32 %s11, 1
    %s19 = ssub.s32 %s11, %s18
    %p20 = scmp.eq.s32.totalorder %s19, 0
    %s22 = sadd.s32 %s21, 1
    %s23 = scalar_select %p20, %s21, %s22
    %p26 = pneg %p20
    %p27 = scmp.eq.s32.totalorder %s11, 1
    %p28 = por %p26, %p27
    %p29 = scmp.ne.s32.totalorder %s21, %s24
    %p30 = scmp.eq.s32.totalorder %s11, 0
    %p31 = por %p29, %p30
    %p32 = scmp.ne.s32.totalorder %s21, %s24
    %p33 = scmp.eq.s32.totalorder %s16, 1
    %p34 = por %p32, %p33
    %p35 = scmp.ne.s32.totalorder %s24, %s25
    %p36 = scmp.eq.s32.totalorder %s16, 0
    %p37 = por %p35, %p36
    %p38 = scmp.ne.s32.totalorder %s24, %s25
    %p39 = scmp.eq.s32.totalorder %s17, 1
    %p40 = por %p38, %p39
    %p42 = scmp.ne.s32.totalorder %s25, %s41
    %p43 = scmp.eq.s32.totalorder %s17, 0
    %p44 = por %p42, %p43
    %s46 = sadd.s32 %s45, 1
    %p49 = scmp.eq.s32.totalorder %s11, 1
    %p50 = scmp.ne.s32.totalorder %s45, %s47
    %p51 = scmp.eq.s32.totalorder %s11, 0
    %p52 = por %p50, %p51
    %p53 = scmp.ne.s32.totalorder %s45, %s47
    %p54 = scmp.eq.s32.totalorder %s16, 1
    %p55 = por %p53, %p54
    %p56 = scmp.ne.s32.totalorder %s47, %s48
    %p57 = scmp.eq.s32.totalorder %s16, 0
    %p58 = por %p56, %p57
    %p59 = scmp.ne.s32.totalorder %s47, %s48
    %p60 = scmp.eq.s32.totalorder %s17, 1
    %p61 = por %p59, %p60
    %p63 = scmp.ne.s32.totalorder %s48, %s62
    %p64 = scmp.eq.s32.totalorder %s17, 0
    %p65 = por %p63, %p64
    %s66 = ssub.s32 %s11, %s18
    %p67 = scmp.eq.s32.totalorder %s66, 0
    %s69 = sadd.s32 %s68, 1
    %s70 = scalar_select %p67, %s68, %s69
    %p73 = pneg %p67
    %p74 = scmp.eq.s32.totalorder %s11, 1
    %p75 = por %p73, %p74
    %p76 = scmp.ne.s32.totalorder %s68, %s71
    %p77 = scmp.eq.s32.totalorder %s11, 0
    %p78 = por %p76, %p77
    %p79 = scmp.ne.s32.totalorder %s68, %s71
    %p80 = scmp.eq.s32.totalorder %s16, 1
    %p81 = por %p79, %p80
    %p82 = scmp.ne.s32.totalorder %s71, %s72
    %p83 = scmp.eq.s32.totalorder %s16, 0
    %p84 = por %p82, %p83
    %p85 = scmp.ne.s32.totalorder %s71, %s72
    %p86 = scmp.eq.s32.totalorder %s17, 1
    %p87 = por %p85, %p86
    %p89 = scmp.ne.s32.totalorder %s72, %s88
    %p90 = scmp.eq.s32.totalorder %s17, 0
    %p91 = por %p89, %p90
    %s92 = ssub.s32 %s11, %s18
    %p93 = scmp.eq.s32.totalorder %s92, 0
    %s95 = sadd.s32 %s94, 1
    %s96 = scalar_select %p93, %s94, %s95
    %p99 = pneg %p93
    %p100 = scmp.eq.s32.totalorder %s11, 1
    %p101 = por %p99, %p100
    %p102 = scmp.ne.s32.totalorder %s94, %s97
    %p103 = scmp.eq.s32.totalorder %s11, 0
    %p104 = por %p102, %p103
    %p105 = scmp.ne.s32.totalorder %s94, %s97
    %p106 = scmp.eq.s32.totalorder %s16, 1
    %p107 = por %p105, %p106
    %p108 = scmp.ne.s32.totalorder %s97, %s98
    %p109 = scmp.eq.s32.totalorder %s16, 0
    %p110 = por %p108, %p109
    %p111 = scmp.ne.s32.totalorder %s97, %s98
    %p112 = scmp.eq.s32.totalorder %s17, 1
    %p113 = por %p111, %p112
    %p115 = scmp.ne.s32.totalorder %s98, %s114
    %p116 = scmp.eq.s32.totalorder %s17, 0
    %p117 = por %p115, %p116
    %s118 = ssub.s32 %s11, %s18
    %p119 = scmp.eq.s32.totalorder %s118, 0
    %s121 = sadd.s32 %s120, 1
    %s122 = scalar_select %p119, %s120, %s121
    %p125 = pneg %p119
    %p126 = scmp.eq.s32.totalorder %s11, 1
    %p127 = por %p125, %p126
    %p128 = scmp.ne.s32.totalorder %s120, %s123
    %p129 = scmp.eq.s32.totalorder %s11, 0
    %p130 = por %p128, %p129
    %p131 = scmp.ne.s32.totalorder %s120, %s123
    %p132 = scmp.eq.s32.totalorder %s16, 1
    %p133 = por %p131, %p132
    %p134 = scmp.ne.s32.totalorder %s123, %s124
    %p135 = scmp.eq.s32.totalorder %s16, 0
    %p136 = por %p134, %p135
    %p137 = scmp.ne.s32.totalorder %s123, %s124
    %p138 = scmp.eq.s32.totalorder %s17, 1
    %p139 = por %p137, %p138
    %p141 = scmp.ne.s32.totalorder %s124, %s140
    %p142 = scmp.eq.s32.totalorder %s17, 0
    %p143 = por %p141, %p142
    %p144 = scmp.le.s32.totalorder 1, %s11
    %p145 = scmp.lt.s32.totalorder %s11, 3
    %p146 = pnand %p144, %p145
    %p147 = pneg %p146
    // Predicated region
    $region9: #{downsample_layer.4} parent=5 // pred_check
      _
    $region10: #{downsample_layer.4} parent=5 // pred_check_branch
      %149 = sbr.rel (%p146) target = $region12
    $region11: #{downsample_layer.4} parent=5 // pred_region
      %s150 = ssub.s32 %s11, 1
      // Predicated region
      $region13: #{downsample_layer.4} parent=11 // pred_check
        %p151 = pneg %p58
      $region14: #{downsample_layer.4} parent=11 // pred_check_branch
        %153 = sbr.rel (%p151) target = $region16
      $region15: #{downsample_layer.4} parent=11 // pred_region
        _
      $region16: #{downsample_layer.4} parent=11 // pred_fallthru
        _
    $region12: #{downsample_layer.4} parent=5 // pred_fallthru
      _
    %p154 = scmp.lt.s32.totalorder %s11, 2
    // Predicated region
    $region17: #{downsample_layer.4} parent=5 // pred_check
      %p155 = pneg %p154
    $region18: #{downsample_layer.4} parent=5 // pred_check_branch
      %157 = sbr.rel (%p155) target = $region20
    $region19: #{downsample_layer.4} parent=5 // pred_region
      // Predicated region
      $region21: #{downsample_layer.4} parent=19 // pred_check
        %p158 = pneg %p31
      $region22: #{downsample_layer.4} parent=19 // pred_check_branch
        %160 = sbr.rel (%p158) target = $region24
      $region23: #{downsample_layer.4} parent=19 // pred_region
        %p161 = scmp.lt.s32.totalorder %s11, 1
        %s162 = scalar_select %p161, %s11, 1
        %s163 = smul.addr %s162, 54
        %s164 = smul.addr %s163, 4
        %s165 = scalar_lea.vmem %s0, %s164
      $region24: #{downsample_layer.4} parent=19 // pred_fallthru
        _
    $region20: #{downsample_layer.4} parent=5 // pred_fallthru
      _
    %p166 = scmp.le.s32.totalorder 1, %s11
    %p167 = scmp.lt.s32.totalorder %s11, 3
    %p168 = pnand %p166, %p167
    %p169 = pneg %p168
    // Predicated region
    $region25: #{downsample_layer.4} parent=5 // pred_check
      _
    $region26: #{downsample_layer.4} parent=5 // pred_check_branch
      %171 = sbr.rel (%p168) target = $region28
    $region27: #{downsample_layer.4} parent=5 // pred_region
      %s172 = ssub.s32 %s11, 1
      %p173 = scmp.lt.s32.totalorder %s16, 1
      %s174 = scalar_select %p173, %s16, 1
      %s175 = smul.addr %s174, 54
      %s176 = smul.addr %s175, 4
      %s177 = scalar_lea.vmem %s0, %s176
      %p178 = pneg %p37
      %p179 = pneg %p34
      %p180 = pneg %p58
      %p181 = pneg %p55
      %p182 = pneg %p84
      %p183 = pneg %p81
      %s184 = smul.u32 32, %s16
      %p185 = scmp.lt.s32.totalorder %s184, 63
      %s186 = scalar_select %p185, %s184, 63
      %s187 = smul.addr %s186, 4
      %s188 = scalar_lea.vmem %s2, %s187
      %p189 = pneg %p110
      %p190 = pneg %p107
      %p191 = scmp.lt.s32.totalorder %s16, 1
      %s192 = scalar_select %p191, %s16, 1
      %s193 = smul.addr %s192, 8
      %s194 = scalar_lea.vmem %s3, %s193
      %p195 = pneg %p136
      %p196 = pneg %p133
      %p197 = scmp.lt.s32.totalorder %s16, 1
      %s198 = scalar_select %p197, %s16, 1
      %s199 = smul.addr %s198, 8
      %s200 = scalar_lea.vmem %s4, %s199
      %p201 = scmp.lt.s32.totalorder %s16, 1
      %s202 = scalar_select %p201, %s16, 1
      %s203 = smul.addr %s202, 54
      %s204 = smul.addr %s203, 4
      %s205 = scalar_lea.vmem %s0, %s204
      %s206 = smul.u32 32, %s16
      %p207 = scmp.lt.s32.totalorder %s206, 63
      %s208 = scalar_select %p207, %s206, 63
      %s209 = smul.addr %s208, 4
      %s210 = scalar_lea.vmem %s2, %s209
      %s211 = smul.u32 32, %s16
      %p212 = scmp.lt.s32.totalorder %s16, 1
      %s213 = scalar_select %p212, %s16, 1
      %s214 = smul.addr %s213, 8
      %s215 = scalar_lea.vmem %s3, %s214
      %p216 = scmp.lt.s32.totalorder %s16, 1
      %s217 = scalar_select %p216, %s16, 1
      %s218 = smul.addr %s217, 8
      %s219 = scalar_lea.vmem %s4, %s218
      %v221 = vld [vmem:[%s205] sm:$0xf]
      %v222 = vld [vmem:[%s205 + $0x4] sm:$0xf]
      %v223 = vld [vmem:[%s205 + $0xc] sm:$0xf]
      %v224 = vld [vmem:[%s205 + $0x10] sm:$0xf]
      %v225 = vld [vmem:[%s205 + $0x18] sm:$0xf]
      %v226 = vld [vmem:[%s205 + $0x1c] sm:$0xf]
      %v227 = vld [vmem:[%s205 + $0x24] sm:$0xf]
      %v228 = vld [vmem:[%s205 + $0x28] sm:$0xf]
      %v229 = vld [vmem:[%s205 + $0x30] sm:$0xf]
      %v230 = vld [vmem:[%s205 + $0x34] sm:$0xf]
      %v231 = vld [vmem:[%s205 + $0x3c] sm:$0xf]
      %v232 = vld [vmem:[%s205 + $0x40] sm:$0xf]
      %v233 = vld [vmem:[%s205 + $0x48] sm:$0xf]
      %v234 = vld [vmem:[%s205 + $0x4c] sm:$0xf]
      %v235 = vld [vmem:[%s205 + $0x54] sm:$0xf]
      %v236 = vld [vmem:[%s205 + $0x58] sm:$0xf]
      %v237 = vld [vmem:[%s205 + $0x60] sm:$0xf]
      %v238 = vld [vmem:[%s205 + $0x64] sm:$0xf]
      %v239 = vld [vmem:[%s205 + $0x6c] sm:$0xf]
      %v240 = vld [vmem:[%s205 + $0x70] sm:$0xf]
      %v241 = vld [vmem:[%s205 + $0x78] sm:$0xf]
      %v242 = vld [vmem:[%s205 + $0x7c] sm:$0xf]
      %v243 = vld [vmem:[%s205 + $0x84] sm:$0xf]
      %v244 = vld [vmem:[%s205 + $0x88] sm:$0xf]
      %v245 = vld [vmem:[%s205 + $0x90] sm:$0xf]
      %v246 = vld [vmem:[%s205 + $0x94] sm:$0xf]
      %v247 = vld [vmem:[%s205 + $0x9c] sm:$0xf]
      %v248 = vld [vmem:[%s205 + $0xa0] sm:$0xf]
      %v249 = vld [vmem:[%s205 + $0xa8] sm:$0xf]
      %v250 = vld [vmem:[%s205 + $0xac] sm:$0xf]
      %v251 = vld [vmem:[%s205 + $0xb4] sm:$0xf]
      %v252 = vld [vmem:[%s205 + $0xb8] sm:$0xf]
      %v253 = vld [vmem:[%s1] sm:$0xf]
      %v254 = vld [vmem:[%s205 + $0x8] sm:$0x1]
      %v255 = vld [vmem:[%s205 + $0x14] sm:$0x1]
      %v256 = vld [vmem:[%s205 + $0x20] sm:$0x1]
      %v257 = vld [vmem:[%s205 + $0x2c] sm:$0x1]
      %v258 = vld [vmem:[%s205 + $0x38] sm:$0x1]
      %v259 = vld [vmem:[%s205 + $0x44] sm:$0x1]
      %v260 = vld [vmem:[%s205 + $0x50] sm:$0x1]
      %v261 = vld [vmem:[%s205 + $0x5c] sm:$0x1]
      %v262 = vld [vmem:[%s205 + $0x68] sm:$0x1]
      %v263 = vld [vmem:[%s205 + $0x74] sm:$0x1]
      %v264 = vld [vmem:[%s205 + $0x80] sm:$0x1]
      %v265 = vld [vmem:[%s205 + $0x8c] sm:$0x1]
      %v266 = vld [vmem:[%s205 + $0x98] sm:$0x1]
      %v267 = vld [vmem:[%s205 + $0xa4] sm:$0x1]
      %v268 = vld [vmem:[%s205 + $0xb0] sm:$0x1]
      %v269 = vld [vmem:[%s205 + $0xbc] sm:$0x1]
      %vm270 = vsmask.f32 3328
      %vm271 = vsmask.f32 7440
      %vm272 = vmor %vm270, %vm271
      %v274 = vshrl.u32 %v221, 16
      %v276 = vrot.slane %v274, 4
      %v277 = vshll.u32 %v221, 16
      %v279 = vrot.slane %v277, 5
      %v280 = vor.u32 %v276, %v279
      %v281 = vrot.slane %v280, 4
      %v283 = vshll.u32 %v222, 16
      %v285 = vrot.slane %v283, 5
      %v286 = vsel %vm272, %v281, %v285
      %v287 = vshrl.u32 %v222, 16
      %v289 = vrot.slane %v287, 4
      %v290 = vor.u32 %v289, %v285
      %v291 = vrot.slane %v290, 4
      %v293 = vshll.u32 %v254, 16
      %v295 = vrot.slane %v293, 5
      %v296 = vsel %vm272, %v291, %v295
      %v298 = vshrl.u32 %v223, 16
      %v300 = vrot.slane %v298, 4
      %v301 = vshll.u32 %v223, 16
      %v303 = vrot.slane %v301, 5
      %v304 = vor.u32 %v300, %v303
      %v305 = vrot.slane %v304, 4
      %v307 = vshll.u32 %v224, 16
      %v309 = vrot.slane %v307, 5
      %v310 = vsel %vm272, %v305, %v309
      %v311 = vshrl.u32 %v224, 16
      %v313 = vrot.slane %v311, 4
      %v314 = vor.u32 %v313, %v309
      %v315 = vrot.slane %v314, 4
      %v317 = vshll.u32 %v255, 16
      %v319 = vrot.slane %v317, 5
      %v320 = vsel %vm272, %v315, %v319
      %v322 = vshrl.u32 %v225, 16
      %v324 = vrot.slane %v322, 4
      %v325 = vshll.u32 %v225, 16
      %v327 = vrot.slane %v325, 5
      %v328 = vor.u32 %v324, %v327
      %v329 = vrot.slane %v328, 4
      %v331 = vshll.u32 %v226, 16
      %v333 = vrot.slane %v331, 5
      %v334 = vsel %vm272, %v329, %v333
      %v335 = vshrl.u32 %v226, 16
      %v337 = vrot.slane %v335, 4
      %v338 = vor.u32 %v337, %v333
      %v339 = vrot.slane %v338, 4
      %v341 = vshll.u32 %v256, 16
      %v343 = vrot.slane %v341, 5
      %v344 = vsel %vm272, %v339, %v343
      %v346 = vshrl.u32 %v227, 16
      %v348 = vrot.slane %v346, 4
      %v349 = vshll.u32 %v227, 16
      %v351 = vrot.slane %v349, 5
      %v352 = vor.u32 %v348, %v351
      %v353 = vrot.slane %v352, 4
      %v355 = vshll.u32 %v228, 16
      %v357 = vrot.slane %v355, 5
      %v358 = vsel %vm272, %v353, %v357
      %v359 = vshrl.u32 %v228, 16
      %v361 = vrot.slane %v359, 4
      %v362 = vor.u32 %v361, %v357
      %v363 = vrot.slane %v362, 4
      %v365 = vshll.u32 %v257, 16
      %v367 = vrot.slane %v365, 5
      %v368 = vsel %vm272, %v363, %v367
      %v370 = vshrl.u32 %v229, 16
      %v372 = vrot.slane %v370, 4
      %v373 = vshll.u32 %v229, 16
      %v375 = vrot.slane %v373, 5
      %v376 = vor.u32 %v372, %v375
      %v377 = vrot.slane %v376, 4
      %v379 = vshll.u32 %v230, 16
      %v381 = vrot.slane %v379, 5
      %v382 = vsel %vm272, %v377, %v381
      %v383 = vshrl.u32 %v230, 16
      %v385 = vrot.slane %v383, 4
      %v386 = vor.u32 %v385, %v381
      %v387 = vrot.slane %v386, 4
      %v389 = vshll.u32 %v258, 16
      %v391 = vrot.slane %v389, 5
      %v392 = vsel %vm272, %v387, %v391
      %v394 = vshrl.u32 %v231, 16
      %v396 = vrot.slane %v394, 4
      %v397 = vshll.u32 %v231, 16
      %v399 = vrot.slane %v397, 5
      %v400 = vor.u32 %v396, %v399
      %v401 = vrot.slane %v400, 4
      %v403 = vshll.u32 %v232, 16
      %v405 = vrot.slane %v403, 5
      %v406 = vsel %vm272, %v401, %v405
      %v407 = vshrl.u32 %v232, 16
      %v409 = vrot.slane %v407, 4
      %v410 = vor.u32 %v409, %v405
      %v411 = vrot.slane %v410, 4
      %v413 = vshll.u32 %v259, 16
      %v415 = vrot.slane %v413, 5
      %v416 = vsel %vm272, %v411, %v415
      %v418 = vshrl.u32 %v233, 16
      %v420 = vrot.slane %v418, 4
      %v421 = vshll.u32 %v233, 16
      %v423 = vrot.slane %v421, 5
      %v424 = vor.u32 %v420, %v423
      %v425 = vrot.slane %v424, 4
      %v427 = vshll.u32 %v234, 16
      %v429 = vrot.slane %v427, 5
      %v430 = vsel %vm272, %v425, %v429
      %v431 = vshrl.u32 %v234, 16
      %v433 = vrot.slane %v431, 4
      %v434 = vor.u32 %v433, %v429
      %v435 = vrot.slane %v434, 4
      %v437 = vshll.u32 %v260, 16
      %v439 = vrot.slane %v437, 5
      %v440 = vsel %vm272, %v435, %v439
      %v442 = vshrl.u32 %v235, 16
      %v444 = vrot.slane %v442, 4
      %v445 = vshll.u32 %v235, 16
      %v447 = vrot.slane %v445, 5
      %v448 = vor.u32 %v444, %v447
      %v449 = vrot.slane %v448, 4
      %v451 = vshll.u32 %v236, 16
      %v453 = vrot.slane %v451, 5
      %v454 = vsel %vm272, %v449, %v453
      %v455 = vshrl.u32 %v236, 16
      %v457 = vrot.slane %v455, 4
      %v458 = vor.u32 %v457, %v453
      %v459 = vrot.slane %v458, 4
      %v461 = vshll.u32 %v261, 16
      %v463 = vrot.slane %v461, 5
      %v464 = vsel %vm272, %v459, %v463
      %v466 = vshrl.u32 %v237, 16
      %v468 = vrot.slane %v466, 4
      %v469 = vshll.u32 %v237, 16
      %v471 = vrot.slane %v469, 5
      %v472 = vor.u32 %v468, %v471
      %v473 = vrot.slane %v472, 4
      %v475 = vshll.u32 %v238, 16
      %v477 = vrot.slane %v475, 5
      %v478 = vsel %vm272, %v473, %v477
      %v479 = vshrl.u32 %v238, 16
      %v481 = vrot.slane %v479, 4
      %v482 = vor.u32 %v481, %v477
      %v483 = vrot.slane %v482, 4
      %v485 = vshll.u32 %v262, 16
      %v487 = vrot.slane %v485, 5
      %v488 = vsel %vm272, %v483, %v487
      %v490 = vshrl.u32 %v239, 16
      %v492 = vrot.slane %v490, 4
      %v493 = vshll.u32 %v239, 16
      %v495 = vrot.slane %v493, 5
      %v496 = vor.u32 %v492, %v495
      %v497 = vrot.slane %v496, 4
      %v499 = vshll.u32 %v240, 16
      %v501 = vrot.slane %v499, 5
      %v502 = vsel %vm272, %v497, %v501
      %v503 = vshrl.u32 %v240, 16
      %v505 = vrot.slane %v503, 4
      %v506 = vor.u32 %v505, %v501
      %v507 = vrot.slane %v506, 4
      %v509 = vshll.u32 %v263, 16
      %v511 = vrot.slane %v509, 5
      %v512 = vsel %vm272, %v507, %v511
      %v514 = vshrl.u32 %v241, 16
      %v516 = vrot.slane %v514, 4
      %v517 = vshll.u32 %v241, 16
      %v519 = vrot.slane %v517, 5
      %v520 = vor.u32 %v516, %v519
      %v521 = vrot.slane %v520, 4
      %v523 = vshll.u32 %v242, 16
      %v525 = vrot.slane %v523, 5
      %v526 = vsel %vm272, %v521, %v525
      %v527 = vshrl.u32 %v242, 16
      %v529 = vrot.slane %v527, 4
      %v530 = vor.u32 %v529, %v525
      %v531 = vrot.slane %v530, 4
      %v533 = vshll.u32 %v264, 16
      %v535 = vrot.slane %v533, 5
      %v536 = vsel %vm272, %v531, %v535
      %v538 = vshrl.u32 %v243, 16
      %v540 = vrot.slane %v538, 4
      %v541 = vshll.u32 %v243, 16
      %v543 = vrot.slane %v541, 5
      %v544 = vor.u32 %v540, %v543
      %v545 = vrot.slane %v544, 4
      %v547 = vshll.u32 %v244, 16
      %v549 = vrot.slane %v547, 5
      %v550 = vsel %vm272, %v545, %v549
      %v551 = vshrl.u32 %v244, 16
      %v553 = vrot.slane %v551, 4
      %v554 = vor.u32 %v553, %v549
      %v555 = vrot.slane %v554, 4
      %v557 = vshll.u32 %v265, 16
      %v559 = vrot.slane %v557, 5
      %v560 = vsel %vm272, %v555, %v559
      %v562 = vshrl.u32 %v245, 16
      %v564 = vrot.slane %v562, 4
      %v565 = vshll.u32 %v245, 16
      %v567 = vrot.slane %v565, 5
      %v568 = vor.u32 %v564, %v567
      %v569 = vrot.slane %v568, 4
      %v571 = vshll.u32 %v246, 16
      %v573 = vrot.slane %v571, 5
      %v574 = vsel %vm272, %v569, %v573
      %v575 = vshrl.u32 %v246, 16
      %v577 = vrot.slane %v575, 4
      %v578 = vor.u32 %v577, %v573
      %v579 = vrot.slane %v578, 4
      %v581 = vshll.u32 %v266, 16
      %v583 = vrot.slane %v581, 5
      %v584 = vsel %vm272, %v579, %v583
      %v586 = vshrl.u32 %v247, 16
      %v588 = vrot.slane %v586, 4
      %v589 = vshll.u32 %v247, 16
      %v591 = vrot.slane %v589, 5
      %v592 = vor.u32 %v588, %v591
      %v593 = vrot.slane %v592, 4
      %v595 = vshll.u32 %v248, 16
      %v597 = vrot.slane %v595, 5
      %v598 = vsel %vm272, %v593, %v597
      %v599 = vshrl.u32 %v248, 16
      %v601 = vrot.slane %v599, 4
      %v602 = vor.u32 %v601, %v597
      %v603 = vrot.slane %v602, 4
      %v605 = vshll.u32 %v267, 16
      %v607 = vrot.slane %v605, 5
      %v608 = vsel %vm272, %v603, %v607
      %v610 = vshrl.u32 %v249, 16
      %v612 = vrot.slane %v610, 4
      %v613 = vshll.u32 %v249, 16
      %v615 = vrot.slane %v613, 5
      %v616 = vor.u32 %v612, %v615
      %v617 = vrot.slane %v616, 4
      %v619 = vshll.u32 %v250, 16
      %v621 = vrot.slane %v619, 5
      %v622 = vsel %vm272, %v617, %v621
      %v623 = vshrl.u32 %v250, 16
      %v625 = vrot.slane %v623, 4
      %v626 = vor.u32 %v625, %v621
      %v627 = vrot.slane %v626, 4
      %v629 = vshll.u32 %v268, 16
      %v631 = vrot.slane %v629, 5
      %v632 = vsel %vm272, %v627, %v631
      %v634 = vshrl.u32 %v251, 16
      %v636 = vrot.slane %v634, 4
      %v637 = vshll.u32 %v251, 16
      %v639 = vrot.slane %v637, 5
      %v640 = vor.u32 %v636, %v639
      %v641 = vrot.slane %v640, 4
      %v643 = vshll.u32 %v252, 16
      %v645 = vrot.slane %v643, 5
      %v646 = vsel %vm272, %v641, %v645
      %v647 = vshrl.u32 %v252, 16
      %v649 = vrot.slane %v647, 4
      %v650 = vor.u32 %v649, %v645
      %v651 = vrot.slane %v650, 4
      %v653 = vshll.u32 %v269, 16
      %v655 = vrot.slane %v653, 5
      %v656 = vsel %vm272, %v651, %v655
      %s657 = scalar_lea.vmem %s1, 4
      %v658 = vld [vmem:[%s657] sm:$0xf]
      %v659 = vunpack.c.l.b16 %v286
      %v660 = vunpack.c.l.b16 %v296
      %v661 = vunpack.c.l.b16 %v310
      %v662 = vunpack.c.l.b16 %v320
      %v663 = vunpack.c.l.b16 %v334
      %v664 = vunpack.c.l.b16 %v344
      %v665 = vunpack.c.l.b16 %v358
      %v666 = vunpack.c.l.b16 %v368
      %v667 = vunpack.c.l.b16 %v382
      %v668 = vunpack.c.l.b16 %v392
      %v669 = vunpack.c.l.b16 %v406
      %v670 = vunpack.c.l.b16 %v416
      %v671 = vunpack.c.l.b16 %v430
      %v672 = vunpack.c.l.b16 %v440
      %v673 = vunpack.c.l.b16 %v454
      %v674 = vunpack.c.l.b16 %v464
      %v675 = vunpack.c.l.b16 %v478
      %v676 = vunpack.c.l.b16 %v488
      %v677 = vunpack.c.l.b16 %v502
      %v678 = vunpack.c.l.b16 %v512
      %v679 = vunpack.c.l.b16 %v526
      %v680 = vunpack.c.l.b16 %v536
      %v681 = vunpack.c.l.b16 %v550
      %v682 = vunpack.c.l.b16 %v560
      %v683 = vunpack.c.l.b16 %v574
      %v684 = vunpack.c.l.b16 %v584
      %v685 = vunpack.c.l.b16 %v598
      %v686 = vunpack.c.l.b16 %v608
      %v687 = vunpack.c.l.b16 %v622
      %v688 = vunpack.c.l.b16 %v632
      %v689 = vunpack.c.l.b16 %v646
      %v690 = vunpack.c.l.b16 %v656
      %v691 = vpack.c.b16 %v660, %v659
      %v692 = vpack.c.b16 %v662, %v661
      %v693 = vpack.c.b16 %v664, %v663
      %v694 = vpack.c.b16 %v666, %v665
      %v695 = vpack.c.b16 %v668, %v667
      %v696 = vpack.c.b16 %v670, %v669
      %v697 = vpack.c.b16 %v672, %v671
      %v698 = vpack.c.b16 %v674, %v673
      %v699 = vpack.c.b16 %v676, %v675
      %v700 = vpack.c.b16 %v678, %v677
      %v701 = vpack.c.b16 %v680, %v679
      %v702 = vpack.c.b16 %v682, %v681
      %v703 = vpack.c.b16 %v684, %v683
      %v704 = vpack.c.b16 %v686, %v685
      %v705 = vpack.c.b16 %v688, %v687
      %v706 = vpack.c.b16 %v690, %v689
      %vm707 = vcmask 64512
      %v709 = vsel %vm707, %v691, 0
      %v712 = vsel %vm707, %v692, 0
      %v715 = vsel %vm707, %v693, 0
      %v718 = vsel %vm707, %v694, 0
      %v721 = vsel %vm707, %v695, 0
      %v724 = vsel %vm707, %v696, 0
      %v727 = vsel %vm707, %v697, 0
      %v730 = vsel %vm707, %v698, 0
      %v733 = vsel %vm707, %v699, 0
      %v736 = vsel %vm707, %v700, 0
      %v739 = vsel %vm707, %v701, 0
      %v742 = vsel %vm707, %v702, 0
      %v745 = vsel %vm707, %v703, 0
      %v748 = vsel %vm707, %v704, 0
      %v751 = vsel %vm707, %v705, 0
      %v754 = vsel %vm707, %v706, 0
      %vm756 = vcmask 1043456
      %v758 = vsel %vm756, %v658, 0
      %760 = vmatprep.subr.bf16.mxu0 0
      %761 = vmatpush1.bf16.msra.mxu0 %v758
      %762 = vmatprep.subr.bf16.mxu0 0
      %763 = vmatpush1.bf16.msra.mxu0 0
      %764 = vmatprep.subr.bf16.mxu0 0
      %765 = vmatpush1.bf16.msra.mxu0 0
      %766 = vmatprep.subr.bf16.mxu0 0
      %767 = vmatpush1.bf16.msra.mxu0 0
      %768 = vmatprep.subr.bf16.mxu0 0
      %769 = vmatpush1.bf16.msra.mxu0 0
      %770 = vmatprep.subr.bf16.mxu0 0
      %771 = vmatpush1.bf16.msra.mxu0 0
      %772 = vmatprep.subr.bf16.mxu0 0
      %773 = vmatpush1.bf16.msra.mxu0 0
      %774 = vmatprep.subr.bf16.mxu0 0
      %775 = vmatpush1.bf16.msra.mxu0 0
      %776 = vmatprep.subr.bf16.mxu0 0
      %777 = vmatpush1.bf16.msra.mxu0 0
      %778 = vmatprep.subr.bf16.mxu0 0
      %779 = vmatpush1.bf16.msra.mxu0 0
      %780 = vmatprep.subr.bf16.mxu0 0
      %781 = vmatpush1.bf16.msra.mxu0 0
      %782 = vmatprep.subr.bf16.mxu0 0
      %783 = vmatpush1.bf16.msra.mxu0 0
      %784 = vmatprep.subr.bf16.mxu0 0
      %785 = vmatpush1.bf16.msra.mxu0 0
      %786 = vmatprep.subr.bf16.mxu0 0
      %787 = vmatpush1.bf16.msra.mxu0 0
      %788 = vmatprep.subr.bf16.mxu0 0
      %789 = vmatpush1.bf16.msra.mxu0 0
      %790 = vmatprep.subr.bf16.mxu0 0
      %791 = vmatpush1.bf16.msra.mxu0 0
      %792 = vmatprep.mubr.bf16.mxu0 0
      %793 = vmatmul.mubr.bf16.gmra.mrb[0].mxu0 %v709
      %v794 = vpop.f32.mrb[0].mxu0
      %v795 = vadd.f32 0.0, %v794
      %v796 = vpop.f32.mrb[0].mxu0
      %v797 = vpop.f32.mrb[0].mxu0
      %v798 = vadd.f32 0.0, %v797
      %v799 = vpop.f32.mrb[0].mxu0
      %800 = vmatprep.mubr.bf16.mxu0 0
      %801 = vmatmul.mubr.bf16.gmra.mrb[0].mxu0 %v712
      %v802 = vpop.f32.mrb[0].mxu0
      %v803 = vadd.f32 0.0, %v802
      %v804 = vpop.f32.mrb[0].mxu0
      %v805 = vpop.f32.mrb[0].mxu0
      %v806 = vadd.f32 0.0, %v805
      %v807 = vpop.f32.mrb[0].mxu0
      %808 = vmatprep.mubr.bf16.mxu0 0
      %809 = vmatmul.mubr.bf16.gmra.mrb[0].mxu0 %v715
      %v810 = vpop.f32.mrb[0].mxu0
      %v811 = vadd.f32 0.0, %v810
      %v812 = vpop.f32.mrb[0].mxu0
      %v813 = vpop.f32.mrb[0].mxu0
      %v814 = vadd.f32 0.0, %v813
      %v815 = vpop.f32.mrb[0].mxu0
      %816 = vmatprep.mubr.bf16.mxu0 0
      %817 = vmatmul.mubr.bf16.gmra.mrb[0].mxu0 %v718
      %v818 = vpop.f32.mrb[0].mxu0
      %v819 = vadd.f32 0.0, %v818
      %v820 = vpop.f32.mrb[0].mxu0
      %v821 = vpop.f32.mrb[0].mxu0
      %v822 = vadd.f32 0.0, %v821
      %v823 = vpop.f32.mrb[0].mxu0
      %824 = vmatprep.mubr.bf16.mxu0 0
      %825 = vmatmul.mubr.bf16.gmra.mrb[0].mxu0 %v721
      %v826 = vpop.f32.mrb[0].mxu0
      %v827 = vadd.f32 0.0, %v826
      %v828 = vpop.f32.mrb[0].mxu0
      %v829 = vpop.f32.mrb[0].mxu0
      %v830 = vadd.f32 0.0, %v829
      %v831 = vpop.f32.mrb[0].mxu0
      %832 = vmatprep.mubr.bf16.mxu0 0
      %833 = vmatmul.mubr.bf16.gmra.mrb[0].mxu0 %v724
      %v834 = vpop.f32.mrb[0].mxu0
      %v835 = vadd.f32 0.0, %v834
      %v836 = vpop.f32.mrb[0].mxu0
      %v837 = vpop.f32.mrb[0].mxu0
      %v838 = vadd.f32 0.0, %v837
      %v839 = vpop.f32.mrb[0].mxu0
      %840 = vmatprep.mubr.bf16.mxu0 0
      %841 = vmatmul.mubr.bf16.gmra.mrb[0].mxu0 %v727
      %v842 = vpop.f32.mrb[0].mxu0
      %v843 = vadd.f32 0.0, %v842
      %v844 = vpop.f32.mrb[0].mxu0
      %v845 = vpop.f32.mrb[0].mxu0
      %v846 = vadd.f32 0.0, %v845
      %v847 = vpop.f32.mrb[0].mxu0
      %848 = vmatprep.mubr.bf16.mxu0 0
      %849 = vmatmul.mubr.bf16.gmra.mrb[0].mxu0 %v730
      %v850 = vpop.f32.mrb[0].mxu0
      %v851 = vadd.f32 0.0, %v850
      %v852 = vpop.f32.mrb[0].mxu0
      %v853 = vpop.f32.mrb[0].mxu0
      %v854 = vadd.f32 0.0, %v853
      %v855 = vpop.f32.mrb[0].mxu0
      %856 = vmatprep.mubr.bf16.mxu0 0
      %857 = vmatmul.mubr.bf16.gmra.mrb[0].mxu0 %v733
      %v858 = vpop.f32.mrb[0].mxu0
      %v859 = vadd.f32 0.0, %v858
      %v860 = vpop.f32.mrb[0].mxu0
      %v861 = vpop.f32.mrb[0].mxu0
      %v862 = vadd.f32 0.0, %v861
      %v863 = vpop.f32.mrb[0].mxu0
      %864 = vmatprep.mubr.bf16.mxu0 0
      %865 = vmatmul.mubr.bf16.gmra.mrb[0].mxu0 %v736
      %v866 = vpop.f32.mrb[0].mxu0
      %v867 = vadd.f32 0.0, %v866
      %v868 = vpop.f32.mrb[0].mxu0
      %v869 = vpop.f32.mrb[0].mxu0
      %v870 = vadd.f32 0.0, %v869
      %v871 = vpop.f32.mrb[0].mxu0
      %872 = vmatprep.mubr.bf16.mxu0 0
      %873 = vmatmul.mubr.bf16.gmra.mrb[0].mxu0 %v739
      %v874 = vpop.f32.mrb[0].mxu0
      %v875 = vadd.f32 0.0, %v874
      %v876 = vpop.f32.mrb[0].mxu0
      %v877 = vpop.f32.mrb[0].mxu0
      %v878 = vadd.f32 0.0, %v877
      %v879 = vpop.f32.mrb[0].mxu0
      %880 = vmatprep.mubr.bf16.mxu0 0
      %881 = vmatmul.mubr.bf16.gmra.mrb[0].mxu0 %v742
      %v882 = vpop.f32.mrb[0].mxu0
      %v883 = vadd.f32 0.0, %v882
      %v884 = vpop.f32.mrb[0].mxu0
      %v885 = vpop.f32.mrb[0].mxu0
      %v886 = vadd.f32 0.0, %v885
      %v887 = vpop.f32.mrb[0].mxu0
      %888 = vmatprep.mubr.bf16.mxu0 0
      %889 = vmatmul.mubr.bf16.gmra.mrb[0].mxu0 %v745
      %v890 = vpop.f32.mrb[0].mxu0
      %v891 = vadd.f32 0.0, %v890
      %v892 = vpop.f32.mrb[0].mxu0
      %v893 = vpop.f32.mrb[0].mxu0
      %v894 = vadd.f32 0.0, %v893
      %v895 = vpop.f32.mrb[0].mxu0
      %896 = vmatprep.mubr.bf16.mxu0 0
      %897 = vmatmul.mubr.bf16.gmra.mrb[0].mxu0 %v748
      %v898 = vpop.f32.mrb[0].mxu0
      %v899 = vadd.f32 0.0, %v898
      %v900 = vpop.f32.mrb[0].mxu0
      %v901 = vpop.f32.mrb[0].mxu0
      %v902 = vadd.f32 0.0, %v901
      %v903 = vpop.f32.mrb[0].mxu0
      %904 = vmatprep.mubr.bf16.mxu0 0
      %905 = vmatmul.mubr.bf16.gmra.mrb[0].mxu0 %v751
      %v906 = vpop.f32.mrb[0].mxu0
      %v907 = vadd.f32 0.0, %v906
      %v908 = vpop.f32.mrb[0].mxu0
      %v909 = vpop.f32.mrb[0].mxu0
      %v910 = vadd.f32 0.0, %v909
      %v911 = vpop.f32.mrb[0].mxu0
      %912 = vmatprep.mubr.bf16.mxu0 0
      %913 = vmatmul.mubr.bf16.gmra.mrb[0].mxu0 %v754
      %v914 = vpop.f32.mrb[0].mxu0
      %v915 = vadd.f32 0.0, %v914
      %v916 = vpop.f32.mrb[0].mxu0
      %v917 = vpop.f32.mrb[0].mxu0
      %v918 = vadd.f32 0.0, %v917
      %v919 = vpop.f32.mrb[0].mxu0
      %920 = vdwg.mxu0
      %v953 = vunpack.c.l.b16 %v221
      %v954 = vunpack.c.l.b16 %v222
      %v955 = vunpack.c.l.b16 %v223
      %v956 = vunpack.c.l.b16 %v224
      %v957 = vunpack.c.l.b16 %v225
      %v958 = vunpack.c.l.b16 %v226
      %v959 = vunpack.c.l.b16 %v227
      %v960 = vunpack.c.l.b16 %v228
      %v961 = vunpack.c.l.b16 %v229
      %v962 = vunpack.c.l.b16 %v230
      %v963 = vunpack.c.l.b16 %v231
      %v964 = vunpack.c.l.b16 %v232
      %v965 = vunpack.c.l.b16 %v233
      %v966 = vunpack.c.l.b16 %v234
      %v967 = vunpack.c.l.b16 %v235
      %v968 = vunpack.c.l.b16 %v236
      %v969 = vunpack.c.l.b16 %v237
      %v970 = vunpack.c.l.b16 %v238
      %v971 = vunpack.c.l.b16 %v239
      %v972 = vunpack.c.l.b16 %v240
      %v973 = vunpack.c.l.b16 %v241
      %v974 = vunpack.c.l.b16 %v242
      %v975 = vunpack.c.l.b16 %v243
      %v976 = vunpack.c.l.b16 %v244
      %v977 = vunpack.c.l.b16 %v245
      %v978 = vunpack.c.l.b16 %v246
      %v979 = vunpack.c.l.b16 %v247
      %v980 = vunpack.c.l.b16 %v248
      %v981 = vunpack.c.l.b16 %v249
      %v982 = vunpack.c.l.b16 %v250
      %v983 = vunpack.c.l.b16 %v251
      %v984 = vunpack.c.l.b16 %v252
      %v985 = vpack.c.b16 %v954, %v953
      %v986 = vpack.c.b16 %v956, %v955
      %v987 = vpack.c.b16 %v958, %v957
      %v988 = vpack.c.b16 %v960, %v959
      %v989 = vpack.c.b16 %v962, %v961
      %v990 = vpack.c.b16 %v964, %v963
      %v991 = vpack.c.b16 %v966, %v965
      %v992 = vpack.c.b16 %v968, %v967
      %v993 = vpack.c.b16 %v970, %v969
      %v994 = vpack.c.b16 %v972, %v971
      %v995 = vpack.c.b16 %v974, %v973
      %v996 = vpack.c.b16 %v976, %v975
      %v997 = vpack.c.b16 %v978, %v977
      %v998 = vpack.c.b16 %v980, %v979
      %v999 = vpack.c.b16 %v982, %v981
      %v1000 = vpack.c.b16 %v984, %v983
      %v1002 = vsel %vm707, %v985, 0
      %v1005 = vsel %vm707, %v986, 0
      %v1008 = vsel %vm707, %v987, 0
      %v1011 = vsel %vm707, %v988, 0
      %v1014 = vsel %vm707, %v989, 0
      %v1017 = vsel %vm707, %v990, 0
      %v1020 = vsel %vm707, %v991, 0
      %v1023 = vsel %vm707, %v992, 0
      %v1026 = vsel %vm707, %v993, 0
      %v1029 = vsel %vm707, %v994, 0
      %v1032 = vsel %vm707, %v995, 0
      %v1035 = vsel %vm707, %v996, 0
      %v1038 = vsel %vm707, %v997, 0
      %v1041 = vsel %vm707, %v998, 0
      %v1044 = vsel %vm707, %v999, 0
      %v1047 = vsel %vm707, %v1000, 0
      %v1050 = vsel %vm756, %v253, 0
      %1052 = vmatprep.subr.bf16.mxu0 0
      %1053 = vmatpush1.bf16.msra.mxu0 %v1050
      %1054 = vmatprep.subr.bf16.mxu0 0
      %1055 = vmatpush1.bf16.msra.mxu0 0
      %1056 = vmatprep.subr.bf16.mxu0 0
      %1057 = vmatpush1.bf16.msra.mxu0 0
      %1058 = vmatprep.subr.bf16.mxu0 0
      %1059 = vmatpush1.bf16.msra.mxu0 0
      %1060 = vmatprep.subr.bf16.mxu0 0
      %1061 = vmatpush1.bf16.msra.mxu0 0
      %1062 = vmatprep.subr.bf16.mxu0 0
      %1063 = vmatpush1.bf16.msra.mxu0 0
      %1064 = vmatprep.subr.bf16.mxu0 0
      %1065 = vmatpush1.bf16.msra.mxu0 0
      %1066 = vmatprep.subr.bf16.mxu0 0
      %1067 = vmatpush1.bf16.msra.mxu0 0
      %1068 = vmatprep.subr.bf16.mxu0 0
      %1069 = vmatpush1.bf16.msra.mxu0 0
      %1070 = vmatprep.subr.bf16.mxu0 0
      %1071 = vmatpush1.bf16.msra.mxu0 0
      %1072 = vmatprep.subr.bf16.mxu0 0
      %1073 = vmatpush1.bf16.msra.mxu0 0
      %1074 = vmatprep.subr.bf16.mxu0 0
      %1075 = vmatpush1.bf16.msra.mxu0 0
      %1076 = vmatprep.subr.bf16.mxu0 0
      %1077 = vmatpush1.bf16.msra.mxu0 0
      %1078 = vmatprep.subr.bf16.mxu0 0
      %1079 = vmatpush1.bf16.msra.mxu0 0
      %1080 = vmatprep.subr.bf16.mxu0 0
      %1081 = vmatpush1.bf16.msra.mxu0 0
      %1082 = vmatprep.subr.bf16.mxu0 0
      %1083 = vmatpush1.bf16.msra.mxu0 0
      %1084 = vmatprep.mubr.bf16.mxu0 0
      %1085 = vmatmul.mubr.bf16.gmra.mrb[0].mxu0 %v1002
      %v1086 = vpop.f32.mrb[0].mxu0
      %v1087 = vadd.f32 %v795, %v1086
      %v1088 = vpop.f32.mrb[0].mxu0
      %v1089 = vpop.f32.mrb[0].mxu0
      %v1090 = vadd.f32 %v798, %v1089
      %v1091 = vpop.f32.mrb[0].mxu0
      %1092 = vmatprep.mubr.bf16.mxu0 0
      %1093 = vmatmul.mubr.bf16.gmra.mrb[0].mxu0 %v1005
      %v1094 = vpop.f32.mrb[0].mxu0
      %v1095 = vadd.f32 %v803, %v1094
      %v1096 = vpop.f32.mrb[0].mxu0
      %v1097 = vpop.f32.mrb[0].mxu0
      %v1098 = vadd.f32 %v806, %v1097
      %v1099 = vpop.f32.mrb[0].mxu0
      %1100 = vmatprep.mubr.bf16.mxu0 0
      %1101 = vmatmul.mubr.bf16.gmra.mrb[0].mxu0 %v1008
      %v1102 = vpop.f32.mrb[0].mxu0
      %v1103 = vadd.f32 %v811, %v1102
      %v1104 = vpop.f32.mrb[0].mxu0
      %v1105 = vpop.f32.mrb[0].mxu0
      %v1106 = vadd.f32 %v814, %v1105
      %v1107 = vpop.f32.mrb[0].mxu0
      %1108 = vmatprep.mubr.bf16.mxu0 0
      %1109 = vmatmul.mubr.bf16.gmra.mrb[0].mxu0 %v1011
      %v1110 = vpop.f32.mrb[0].mxu0
      %v1111 = vadd.f32 %v819, %v1110
      %v1112 = vpop.f32.mrb[0].mxu0
      %v1113 = vpop.f32.mrb[0].mxu0
      %v1114 = vadd.f32 %v822, %v1113
      %v1115 = vpop.f32.mrb[0].mxu0
      %1116 = vmatprep.mubr.bf16.mxu0 0
      %1117 = vmatmul.mubr.bf16.gmra.mrb[0].mxu0 %v1014
      %v1118 = vpop.f32.mrb[0].mxu0
      %v1119 = vadd.f32 %v827, %v1118
      %v1120 = vpop.f32.mrb[0].mxu0
      %v1121 = vpop.f32.mrb[0].mxu0
      %v1122 = vadd.f32 %v830, %v1121
      %v1123 = vpop.f32.mrb[0].mxu0
      %1124 = vmatprep.mubr.bf16.mxu0 0
      %1125 = vmatmul.mubr.bf16.gmra.mrb[0].mxu0 %v1017
      %v1126 = vpop.f32.mrb[0].mxu0
      %v1127 = vadd.f32 %v835, %v1126
      %v1128 = vpop.f32.mrb[0].mxu0
      %v1129 = vpop.f32.mrb[0].mxu0
      %v1130 = vadd.f32 %v838, %v1129
      %v1131 = vpop.f32.mrb[0].mxu0
      %1132 = vmatprep.mubr.bf16.mxu0 0
      %1133 = vmatmul.mubr.bf16.gmra.mrb[0].mxu0 %v1020
      %v1134 = vpop.f32.mrb[0].mxu0
      %v1135 = vadd.f32 %v843, %v1134
      %v1136 = vpop.f32.mrb[0].mxu0
      %v1137 = vpop.f32.mrb[0].mxu0
      %v1138 = vadd.f32 %v846, %v1137
      %v1139 = vpop.f32.mrb[0].mxu0
      %1140 = vmatprep.mubr.bf16.mxu0 0
      %1141 = vmatmul.mubr.bf16.gmra.mrb[0].mxu0 %v1023
      %v1142 = vpop.f32.mrb[0].mxu0
      %v1143 = vadd.f32 %v851, %v1142
      %v1144 = vpop.f32.mrb[0].mxu0
      %v1145 = vpop.f32.mrb[0].mxu0
      %v1146 = vadd.f32 %v854, %v1145
      %v1147 = vpop.f32.mrb[0].mxu0
      %1148 = vmatprep.mubr.bf16.mxu0 0
      %1149 = vmatmul.mubr.bf16.gmra.mrb[0].mxu0 %v1026
      %v1150 = vpop.f32.mrb[0].mxu0
      %v1151 = vadd.f32 %v859, %v1150
      %v1152 = vpop.f32.mrb[0].mxu0
      %v1153 = vpop.f32.mrb[0].mxu0
      %v1154 = vadd.f32 %v862, %v1153
      %v1155 = vpop.f32.mrb[0].mxu0
      %1156 = vmatprep.mubr.bf16.mxu0 0
      %1157 = vmatmul.mubr.bf16.gmra.mrb[0].mxu0 %v1029
      %v1158 = vpop.f32.mrb[0].mxu0
      %v1159 = vadd.f32 %v867, %v1158
      %v1160 = vpop.f32.mrb[0].mxu0
      %v1161 = vpop.f32.mrb[0].mxu0
      %v1162 = vadd.f32 %v870, %v1161
      %v1163 = vpop.f32.mrb[0].mxu0
      %1164 = vmatprep.mubr.bf16.mxu0 0
      %1165 = vmatmul.mubr.bf16.gmra.mrb[0].mxu0 %v1032
      %v1166 = vpop.f32.mrb[0].mxu0
      %v1167 = vadd.f32 %v875, %v1166
      %v1168 = vpop.f32.mrb[0].mxu0
      %v1169 = vpop.f32.mrb[0].mxu0
      %v1170 = vadd.f32 %v878, %v1169
      %v1171 = vpop.f32.mrb[0].mxu0
      %1172 = vmatprep.mubr.bf16.mxu0 0
      %1173 = vmatmul.mubr.bf16.gmra.mrb[0].mxu0 %v1035
      %v1174 = vpop.f32.mrb[0].mxu0
      %v1175 = vadd.f32 %v883, %v1174
      %v1176 = vpop.f32.mrb[0].mxu0
      %v1177 = vpop.f32.mrb[0].mxu0
      %v1178 = vadd.f32 %v886, %v1177
      %v1179 = vpop.f32.mrb[0].mxu0
      %1180 = vmatprep.mubr.bf16.mxu0 0
      %1181 = vmatmul.mubr.bf16.gmra.mrb[0].mxu0 %v1038
      %v1182 = vpop.f32.mrb[0].mxu0
      %v1183 = vadd.f32 %v891, %v1182
      %v1184 = vpop.f32.mrb[0].mxu0
      %v1185 = vpop.f32.mrb[0].mxu0
      %v1186 = vadd.f32 %v894, %v1185
      %v1187 = vpop.f32.mrb[0].mxu0
      %1188 = vmatprep.mubr.bf16.mxu0 0
      %1189 = vmatmul.mubr.bf16.gmra.mrb[0].mxu0 %v1041
      %v1190 = vpop.f32.mrb[0].mxu0
      %v1191 = vadd.f32 %v899, %v1190
      %v1192 = vpop.f32.mrb[0].mxu0
      %v1193 = vpop.f32.mrb[0].mxu0
      %v1194 = vadd.f32 %v902, %v1193
      %v1195 = vpop.f32.mrb[0].mxu0
      %1196 = vmatprep.mubr.bf16.mxu0 0
      %1197 = vmatmul.mubr.bf16.gmra.mrb[0].mxu0 %v1044
      %v1198 = vpop.f32.mrb[0].mxu0
      %v1199 = vadd.f32 %v907, %v1198
      %v1200 = vpop.f32.mrb[0].mxu0
      %v1201 = vpop.f32.mrb[0].mxu0
      %v1202 = vadd.f32 %v910, %v1201
      %v1203 = vpop.f32.mrb[0].mxu0
      %1204 = vmatprep.mubr.bf16.mxu0 0
      %1205 = vmatmul.mubr.bf16.gmra.mrb[0].mxu0 %v1047
      %v1206 = vpop.f32.mrb[0].mxu0
      %v1207 = vadd.f32 %v915, %v1206
      %v1208 = vpop.f32.mrb[0].mxu0
      %v1209 = vpop.f32.mrb[0].mxu0
      %v1210 = vadd.f32 %v918, %v1209
      %v1211 = vpop.f32.mrb[0].mxu0
      %1212 = vdwg.mxu0
      %v1213 = vld [vmem:[%s205] sm:$0xe]
      %v1214 = vld [vmem:[%s205 + $0xc] sm:$0xe]
      %v1215 = vld [vmem:[%s205 + $0x18] sm:$0xe]
      %v1216 = vld [vmem:[%s205 + $0x24] sm:$0xe]
      %v1217 = vld [vmem:[%s205 + $0x30] sm:$0xe]
      %v1218 = vld [vmem:[%s205 + $0x3c] sm:$0xe]
      %v1219 = vld [vmem:[%s205 + $0x48] sm:$0xe]
      %v1220 = vld [vmem:[%s205 + $0x54] sm:$0xe]
      %v1221 = vld [vmem:[%s205 + $0x60] sm:$0xe]
      %v1222 = vld [vmem:[%s205 + $0x6c] sm:$0xe]
      %v1223 = vld [vmem:[%s205 + $0x78] sm:$0xe]
      %v1224 = vld [vmem:[%s205 + $0x84] sm:$0xe]
      %v1225 = vld [vmem:[%s205 + $0x90] sm:$0xe]
      %v1226 = vld [vmem:[%s205 + $0x9c] sm:$0xe]
      %v1227 = vld [vmem:[%s205 + $0xa8] sm:$0xe]
      %v1228 = vld [vmem:[%s205 + $0xb4] sm:$0xe]
      %vm1261 = vcmask 1042432
      %vm1262 = vcmask 1046532
      %vm1263 = vmor %vm1261, %vm1262
      %v1264 = vrot.slane %v1213, 5
      %v1265 = vrot.slane %v1264, 4
      %v1266 = vrot.slane %v222, 5
      %v1267 = vsel %vm1263, %v1265, %v1266
      %v1268 = vrot.slane %v1266, 4
      %v1269 = vrot.slane %v254, 5
      %v1270 = vsel %vm1263, %v1268, %v1269
      %v1271 = vrot.slane %v1214, 5
      %v1272 = vrot.slane %v1271, 4
      %v1273 = vrot.slane %v224, 5
      %v1274 = vsel %vm1263, %v1272, %v1273
      %v1275 = vrot.slane %v1273, 4
      %v1276 = vrot.slane %v255, 5
      %v1277 = vsel %vm1263, %v1275, %v1276
      %v1278 = vrot.slane %v1215, 5
      %v1279 = vrot.slane %v1278, 4
      %v1280 = vrot.slane %v226, 5
      %v1281 = vsel %vm1263, %v1279, %v1280
      %v1282 = vrot.slane %v1280, 4
      %v1283 = vrot.slane %v256, 5
      %v1284 = vsel %vm1263, %v1282, %v1283
      %v1285 = vrot.slane %v1216, 5
      %v1286 = vrot.slane %v1285, 4
      %v1287 = vrot.slane %v228, 5
      %v1288 = vsel %vm1263, %v1286, %v1287
      %v1289 = vrot.slane %v1287, 4
      %v1290 = vrot.slane %v257, 5
      %v1291 = vsel %vm1263, %v1289, %v1290
      %v1292 = vrot.slane %v1217, 5
      %v1293 = vrot.slane %v1292, 4
      %v1294 = vrot.slane %v230, 5
      %v1295 = vsel %vm1263, %v1293, %v1294
      %v1296 = vrot.slane %v1294, 4
      %v1297 = vrot.slane %v258, 5
      %v1298 = vsel %vm1263, %v1296, %v1297
      %v1299 = vrot.slane %v1218, 5
      %v1300 = vrot.slane %v1299, 4
      %v1301 = vrot.slane %v232, 5
      %v1302 = vsel %vm1263, %v1300, %v1301
      %v1303 = vrot.slane %v1301, 4
      %v1304 = vrot.slane %v259, 5
      %v1305 = vsel %vm1263, %v1303, %v1304
      %v1306 = vrot.slane %v1219, 5
      %v1307 = vrot.slane %v1306, 4
      %v1308 = vrot.slane %v234, 5
      %v1309 = vsel %vm1263, %v1307, %v1308
      %v1310 = vrot.slane %v1308, 4
      %v1311 = vrot.slane %v260, 5
      %v1312 = vsel %vm1263, %v1310, %v1311
      %v1313 = vrot.slane %v1220, 5
      %v1314 = vrot.slane %v1313, 4
      %v1315 = vrot.slane %v236, 5
      %v1316 = vsel %vm1263, %v1314, %v1315
      %v1317 = vrot.slane %v1315, 4
      %v1318 = vrot.slane %v261, 5
      %v1319 = vsel %vm1263, %v1317, %v1318
      %v1320 = vrot.slane %v1221, 5
      %v1321 = vrot.slane %v1320, 4
      %v1322 = vrot.slane %v238, 5
      %v1323 = vsel %vm1263, %v1321, %v1322
      %v1324 = vrot.slane %v1322, 4
      %v1325 = vrot.slane %v262, 5
      %v1326 = vsel %vm1263, %v1324, %v1325
      %v1327 = vrot.slane %v1222, 5
      %v1328 = vrot.slane %v1327, 4
      %v1329 = vrot.slane %v240, 5
      %v1330 = vsel %vm1263, %v1328, %v1329
      %v1331 = vrot.slane %v1329, 4
      %v1332 = vrot.slane %v263, 5
      %v1333 = vsel %vm1263, %v1331, %v1332
      %v1334 = vrot.slane %v1223, 5
      %v1335 = vrot.slane %v1334, 4
      %v1336 = vrot.slane %v242, 5
      %v1337 = vsel %vm1263, %v1335, %v1336
      %v1338 = vrot.slane %v1336, 4
      %v1339 = vrot.slane %v264, 5
      %v1340 = vsel %vm1263, %v1338, %v1339
      %v1341 = vrot.slane %v1224, 5
      %v1342 = vrot.slane %v1341, 4
      %v1343 = vrot.slane %v244, 5
      %v1344 = vsel %vm1263, %v1342, %v1343
      %v1345 = vrot.slane %v1343, 4
      %v1346 = vrot.slane %v265, 5
      %v1347 = vsel %vm1263, %v1345, %v1346
      %v1348 = vrot.slane %v1225, 5
      %v1349 = vrot.slane %v1348, 4
      %v1350 = vrot.slane %v246, 5
      %v1351 = vsel %vm1263, %v1349, %v1350
      %v1352 = vrot.slane %v1350, 4
      %v1353 = vrot.slane %v266, 5
      %v1354 = vsel %vm1263, %v1352, %v1353
      %v1355 = vrot.slane %v1226, 5
      %v1356 = vrot.slane %v1355, 4
      %v1357 = vrot.slane %v248, 5
      %v1358 = vsel %vm1263, %v1356, %v1357
      %v1359 = vrot.slane %v1357, 4
      %v1360 = vrot.slane %v267, 5
      %v1361 = vsel %vm1263, %v1359, %v1360
      %v1362 = vrot.slane %v1227, 5
      %v1363 = vrot.slane %v1362, 4
      %v1364 = vrot.slane %v250, 5
      %v1365 = vsel %vm1263, %v1363, %v1364
      %v1366 = vrot.slane %v1364, 4
      %v1367 = vrot.slane %v268, 5
      %v1368 = vsel %vm1263, %v1366, %v1367
      %v1369 = vrot.slane %v1228, 5
      %v1370 = vrot.slane %v1369, 4
      %v1371 = vrot.slane %v252, 5
      %v1372 = vsel %vm1263, %v1370, %v1371
      %v1373 = vrot.slane %v1371, 4
      %v1374 = vrot.slane %v269, 5
      %v1375 = vsel %vm1263, %v1373, %v1374
      %s1376 = scalar_lea.vmem %s1, 8
      %v1377 = vld [vmem:[%s1376] sm:$0xf]
      %v1378 = vunpack.c.l.b16 %v1267
      %v1379 = vunpack.c.l.b16 %v1270
      %v1380 = vunpack.c.l.b16 %v1274
      %v1381 = vunpack.c.l.b16 %v1277
      %v1382 = vunpack.c.l.b16 %v1281
      %v1383 = vunpack.c.l.b16 %v1284
      %v1384 = vunpack.c.l.b16 %v1288
      %v1385 = vunpack.c.l.b16 %v1291
      %v1386 = vunpack.c.l.b16 %v1295
      %v1387 = vunpack.c.l.b16 %v1298
      %v1388 = vunpack.c.l.b16 %v1302
      %v1389 = vunpack.c.l.b16 %v1305
      %v1390 = vunpack.c.l.b16 %v1309
      %v1391 = vunpack.c.l.b16 %v1312
      %v1392 = vunpack.c.l.b16 %v1316
      %v1393 = vunpack.c.l.b16 %v1319
      %v1394 = vunpack.c.l.b16 %v1323
      %v1395 = vunpack.c.l.b16 %v1326
      %v1396 = vunpack.c.l.b16 %v1330
      %v1397 = vunpack.c.l.b16 %v1333
      %v1398 = vunpack.c.l.b16 %v1337
      %v1399 = vunpack.c.l.b16 %v1340
      %v1400 = vunpack.c.l.b16 %v1344
      %v1401 = vunpack.c.l.b16 %v1347
      %v1402 = vunpack.c.l.b16 %v1351
      %v1403 = vunpack.c.l.b16 %v1354
      %v1404 = vunpack.c.l.b16 %v1358
      %v1405 = vunpack.c.l.b16 %v1361
      %v1406 = vunpack.c.l.b16 %v1365
      %v1407 = vunpack.c.l.b16 %v1368
      %v1408 = vunpack.c.l.b16 %v1372
      %v1409 = vunpack.c.l.b16 %v1375
      %v1410 = vpack.c.b16 %v1379, %v1378
      %v1411 = vpack.c.b16 %v1381, %v1380
      %v1412 = vpack.c.b16 %v1383, %v1382
      %v1413 = vpack.c.b16 %v1385, %v1384
      %v1414 = vpack.c.b16 %v1387, %v1386
      %v1415 = vpack.c.b16 %v1389, %v1388
      %v1416 = vpack.c.b16 %v1391, %v1390
      %v1417 = vpack.c.b16 %v1393, %v1392
      %v1418 = vpack.c.b16 %v1395, %v1394
      %v1419 = vpack.c.b16 %v1397, %v1396
      %v1420 = vpack.c.b16 %v1399, %v1398
      %v1421 = vpack.c.b16 %v1401, %v1400
      %v1422 = vpack.c.b16 %v1403, %v1402
      %v1423 = vpack.c.b16 %v1405, %v1404
      %v1424 = vpack.c.b16 %v1407, %v1406
      %v1425 = vpack.c.b16 %v1409, %v1408
      %v1427 = vsel %vm707, %v1410, 0
      %v1430 = vsel %vm707, %v1411, 0
      %v1433 = vsel %vm707, %v1412, 0
      %v1436 = vsel %vm707, %v1413, 0
      %v1439 = vsel %vm707, %v1414, 0
      %v1442 = vsel %vm707, %v1415, 0
      %v1445 = vsel %vm707, %v1416, 0
      %v1448 = vsel %vm707, %v1417, 0
      %v1451 = vsel %vm707, %v1418, 0
      %v1454 = vsel %vm707, %v1419, 0
      %v1457 = vsel %vm707, %v1420, 0
      %v1460 = vsel %vm707, %v1421, 0
      %v1463 = vsel %vm707, %v1422, 0
      %v1466 = vsel %vm707, %v1423, 0
      %v1469 = vsel %vm707, %v1424, 0
      %v1472 = vsel %vm707, %v1425, 0
      %v1475 = vsel %vm756, %v1377, 0
      %1477 = vmatprep.subr.bf16.mxu0 0
      %1478 = vmatpush1.bf16.msra.mxu0 %v1475
      %1479 = vmatprep.subr.bf16.mxu0 0
      %1480 = vmatpush1.bf16.msra.mxu0 0
      %1481 = vmatprep.subr.bf16.mxu0 0
      %1482 = vmatpush1.bf16.msra.mxu0 0
      %1483 = vmatprep.subr.bf16.mxu0 0
      %1484 = vmatpush1.bf16.msra.mxu0 0
      %1485 = vmatprep.subr.bf16.mxu0 0
      %1486 = vmatpush1.bf16.msra.mxu0 0
      %1487 = vmatprep.subr.bf16.mxu0 0
      %1488 = vmatpush1.bf16.msra.mxu0 0
      %1489 = vmatprep.subr.bf16.mxu0 0
      %1490 = vmatpush1.bf16.msra.mxu0 0
      %1491 = vmatprep.subr.bf16.mxu0 0
      %1492 = vmatpush1.bf16.msra.mxu0 0
      %1493 = vmatprep.subr.bf16.mxu0 0
      %1494 = vmatpush1.bf16.msra.mxu0 0
      %1495 = vmatprep.subr.bf16.mxu0 0
      %1496 = vmatpush1.bf16.msra.mxu0 0
      %1497 = vmatprep.subr.bf16.mxu0 0
      %1498 = vmatpush1.bf16.msra.mxu0 0
      %1499 = vmatprep.subr.bf16.mxu0 0
      %1500 = vmatpush1.bf16.msra.mxu0 0
      %1501 = vmatprep.subr.bf16.mxu0 0
      %1502 = vmatpush1.bf16.msra.mxu0 0
      %1503 = vmatprep.subr.bf16.mxu0 0
      %1504 = vmatpush1.bf16.msra.mxu0 0
      %1505 = vmatprep.subr.bf16.mxu0 0
      %1506 = vmatpush1.bf16.msra.mxu0 0
      %1507 = vmatprep.subr.bf16.mxu0 0
      %1508 = vmatpush1.bf16.msra.mxu0 0
      %1509 = vmatprep.mubr.bf16.mxu0 0
      %1510 = vmatmul.mubr.bf16.gmra.mrb[0].mxu0 %v1427
      %v1511 = vpop.f32.mrb[0].mxu0
      %v1512 = vadd.f32 0.0, %v1511
      %v1513 = vpop.f32.mrb[0].mxu0
      %v1514 = vpop.f32.mrb[0].mxu0
      %v1515 = vadd.f32 0.0, %v1514
      %v1516 = vpop.f32.mrb[0].mxu0
      %1517 = vmatprep.mubr.bf16.mxu0 0
      %1518 = vmatmul.mubr.bf16.gmra.mrb[0].mxu0 %v1430
      %v1519 = vpop.f32.mrb[0].mxu0
      %v1520 = vadd.f32 0.0, %v1519
      %v1521 = vpop.f32.mrb[0].mxu0
      %v1522 = vpop.f32.mrb[0].mxu0
      %v1523 = vadd.f32 0.0, %v1522
      %v1524 = vpop.f32.mrb[0].mxu0
      %1525 = vmatprep.mubr.bf16.mxu0 0
      %1526 = vmatmul.mubr.bf16.gmra.mrb[0].mxu0 %v1433
      %v1527 = vpop.f32.mrb[0].mxu0
      %v1528 = vadd.f32 0.0, %v1527
      %v1529 = vpop.f32.mrb[0].mxu0
      %v1530 = vpop.f32.mrb[0].mxu0
      %v1531 = vadd.f32 0.0, %v1530
      %v1532 = vpop.f32.mrb[0].mxu0
      %1533 = vmatprep.mubr.bf16.mxu0 0
      %1534 = vmatmul.mubr.bf16.gmra.mrb[0].mxu0 %v1436
      %v1535 = vpop.f32.mrb[0].mxu0
      %v1536 = vadd.f32 0.0, %v1535
      %v1537 = vpop.f32.mrb[0].mxu0
      %v1538 = vpop.f32.mrb[0].mxu0
      %v1539 = vadd.f32 0.0, %v1538
      %v1540 = vpop.f32.mrb[0].mxu0
      %1541 = vmatprep.mubr.bf16.mxu0 0
      %1542 = vmatmul.mubr.bf16.gmra.mrb[0].mxu0 %v1439
      %v1543 = vpop.f32.mrb[0].mxu0
      %v1544 = vadd.f32 0.0, %v1543
      %v1545 = vpop.f32.mrb[0].mxu0
      %v1546 = vpop.f32.mrb[0].mxu0
      %v1547 = vadd.f32 0.0, %v1546
      %v1548 = vpop.f32.mrb[0].mxu0
      %1549 = vmatprep.mubr.bf16.mxu0 0
      %1550 = vmatmul.mubr.bf16.gmra.mrb[0].mxu0 %v1442
      %v1551 = vpop.f32.mrb[0].mxu0
      %v1552 = vadd.f32 0.0, %v1551
      %v1553 = vpop.f32.mrb[0].mxu0
      %v1554 = vpop.f32.mrb[0].mxu0
      %v1555 = vadd.f32 0.0, %v1554
      %v1556 = vpop.f32.mrb[0].mxu0
      %1557 = vmatprep.mubr.bf16.mxu0 0
      %1558 = vmatmul.mubr.bf16.gmra.mrb[0].mxu0 %v1445
      %v1559 = vpop.f32.mrb[0].mxu0
      %v1560 = vadd.f32 0.0, %v1559
      %v1561 = vpop.f32.mrb[0].mxu0
      %v1562 = vpop.f32.mrb[0].mxu0
      %v1563 = vadd.f32 0.0, %v1562
      %v1564 = vpop.f32.mrb[0].mxu0
      %1565 = vmatprep.mubr.bf16.mxu0 0
      %1566 = vmatmul.mubr.bf16.gmra.mrb[0].mxu0 %v1448
      %v1567 = vpop.f32.mrb[0].mxu0
      %v1568 = vadd.f32 0.0, %v1567
      %v1569 = vpop.f32.mrb[0].mxu0
      %v1570 = vpop.f32.mrb[0].mxu0
      %v1571 = vadd.f32 0.0, %v1570
      %v1572 = vpop.f32.mrb[0].mxu0
      %1573 = vmatprep.mubr.bf16.mxu0 0
      %1574 = vmatmul.mubr.bf16.gmra.mrb[0].mxu0 %v1451
      %v1575 = vpop.f32.mrb[0].mxu0
      %v1576 = vadd.f32 0.0, %v1575
      %v1577 = vpop.f32.mrb[0].mxu0
      %v1578 = vpop.f32.mrb[0].mxu0
      %v1579 = vadd.f32 0.0, %v1578
      %v1580 = vpop.f32.mrb[0].mxu0
      %1581 = vmatprep.mubr.bf16.mxu0 0
      %1582 = vmatmul.mubr.bf16.gmra.mrb[0].mxu0 %v1454
      %v1583 = vpop.f32.mrb[0].mxu0
      %v1584 = vadd.f32 0.0, %v1583
      %v1585 = vpop.f32.mrb[0].mxu0
      %v1586 = vpop.f32.mrb[0].mxu0
      %v1587 = vadd.f32 0.0, %v1586
      %v1588 = vpop.f32.mrb[0].mxu0
      %1589 = vmatprep.mubr.bf16.mxu0 0
      %1590 = vmatmul.mubr.bf16.gmra.mrb[0].mxu0 %v1457
      %v1591 = vpop.f32.mrb[0].mxu0
      %v1592 = vadd.f32 0.0, %v1591
      %v1593 = vpop.f32.mrb[0].mxu0
      %v1594 = vpop.f32.mrb[0].mxu0
      %v1595 = vadd.f32 0.0, %v1594
      %v1596 = vpop.f32.mrb[0].mxu0
      %1597 = vmatprep.mubr.bf16.mxu0 0
      %1598 = vmatmul.mubr.bf16.gmra.mrb[0].mxu0 %v1460
      %v1599 = vpop.f32.mrb[0].mxu0
      %v1600 = vadd.f32 0.0, %v1599
      %v1601 = vpop.f32.mrb[0].mxu0
      %v1602 = vpop.f32.mrb[0].mxu0
      %v1603 = vadd.f32 0.0, %v1602
      %v1604 = vpop.f32.mrb[0].mxu0
      %1605 = vmatprep.mubr.bf16.mxu0 0
      %1606 = vmatmul.mubr.bf16.gmra.mrb[0].mxu0 %v1463
      %v1607 = vpop.f32.mrb[0].mxu0
      %v1608 = vadd.f32 0.0, %v1607
      %v1609 = vpop.f32.mrb[0].mxu0
      %v1610 = vpop.f32.mrb[0].mxu0
      %v1611 = vadd.f32 0.0, %v1610
      %v1612 = vpop.f32.mrb[0].mxu0
      %1613 = vmatprep.mubr.bf16.mxu0 0
      %1614 = vmatmul.mubr.bf16.gmra.mrb[0].mxu0 %v1466
      %v1615 = vpop.f32.mrb[0].mxu0
      %v1616 = vadd.f32 0.0, %v1615
      %v1617 = vpop.f32.mrb[0].mxu0
      %v1618 = vpop.f32.mrb[0].mxu0
      %v1619 = vadd.f32 0.0, %v1618
      %v1620 = vpop.f32.mrb[0].mxu0
      %1621 = vmatprep.mubr.bf16.mxu0 0
      %1622 = vmatmul.mubr.bf16.gmra.mrb[0].mxu0 %v1469
      %v1623 = vpop.f32.mrb[0].mxu0
      %v1624 = vadd.f32 0.0, %v1623
      %v1625 = vpop.f32.mrb[0].mxu0
      %v1626 = vpop.f32.mrb[0].mxu0
      %v1627 = vadd.f32 0.0, %v1626
      %v1628 = vpop.f32.mrb[0].mxu0
      %1629 = vmatprep.mubr.bf16.mxu0 0
      %1630 = vmatmul.mubr.bf16.gmra.mrb[0].mxu0 %v1472
      %v1631 = vpop.f32.mrb[0].mxu0
      %v1632 = vadd.f32 0.0, %v1631
      %v1633 = vpop.f32.mrb[0].mxu0
      %v1634 = vpop.f32.mrb[0].mxu0
      %v1635 = vadd.f32 0.0, %v1634
      %v1636 = vpop.f32.mrb[0].mxu0
      %1637 = vdwg.mxu0
      %v1638 = vadd.f32 %v1087, %v1512
      %v1639 = vadd.f32 %v1090, %v1515
      %v1640 = vadd.f32 %v1095, %v1520
      %v1641 = vadd.f32 %v1098, %v1523
      %v1642 = vadd.f32 %v1103, %v1528
      %v1643 = vadd.f32 %v1106, %v1531
      %v1644 = vadd.f32 %v1111, %v1536
      %v1645 = vadd.f32 %v1114, %v1539
      %v1646 = vadd.f32 %v1119, %v1544
      %v1647 = vadd.f32 %v1122, %v1547
      %v1648 = vadd.f32 %v1127, %v1552
      %v1649 = vadd.f32 %v1130, %v1555
      %v1650 = vadd.f32 %v1135, %v1560
      %v1651 = vadd.f32 %v1138, %v1563
      %v1652 = vadd.f32 %v1143, %v1568
      %v1653 = vadd.f32 %v1146, %v1571
      %v1654 = vadd.f32 %v1151, %v1576
      %v1655 = vadd.f32 %v1154, %v1579
      %v1656 = vadd.f32 %v1159, %v1584
      %v1657 = vadd.f32 %v1162, %v1587
      %v1658 = vadd.f32 %v1167, %v1592
      %v1659 = vadd.f32 %v1170, %v1595
      %v1660 = vadd.f32 %v1175, %v1600
      %v1661 = vadd.f32 %v1178, %v1603
      %v1662 = vadd.f32 %v1183, %v1608
      %v1663 = vadd.f32 %v1186, %v1611
      %v1664 = vadd.f32 %v1191, %v1616
      %v1665 = vadd.f32 %v1194, %v1619
      %v1666 = vadd.f32 %v1199, %v1624
      %v1667 = vadd.f32 %v1202, %v1627
      %v1668 = vadd.f32 %v1207, %v1632
      %v1669 = vadd.f32 %v1210, %v1635
      %s1670 = scalar_lea.vmem %s205, 12
      %v1671 = vld [vmem:[%s1670] sm:$0xf]
      %v1672 = vld [vmem:[%s1670 + $0x4] sm:$0xf]
      %v1673 = vld [vmem:[%s1670 + $0xc] sm:$0xf]
      %v1674 = vld [vmem:[%s1670 + $0x10] sm:$0xf]
      %v1675 = vld [vmem:[%s1670 + $0x18] sm:$0xf]
      %v1676 = vld [vmem:[%s1670 + $0x1c] sm:$0xf]
      %v1677 = vld [vmem:[%s1670 + $0x24] sm:$0xf]
      %v1678 = vld [vmem:[%s1670 + $0x28] sm:$0xf]
      %v1679 = vld [vmem:[%s1670 + $0x30] sm:$0xf]
      %v1680 = vld [vmem:[%s1670 + $0x34] sm:$0xf]
      %v1681 = vld [vmem:[%s1670 + $0x3c] sm:$0xf]
      %v1682 = vld [vmem:[%s1670 + $0x40] sm:$0xf]
      %v1683 = vld [vmem:[%s1670 + $0x48] sm:$0xf]
      %v1684 = vld [vmem:[%s1670 + $0x4c] sm:$0xf]
      %v1685 = vld [vmem:[%s1670 + $0x54] sm:$0xf]
      %v1686 = vld [vmem:[%s1670 + $0x58] sm:$0xf]
      %v1687 = vld [vmem:[%s1670 + $0x60] sm:$0xf]
      %v1688 = vld [vmem:[%s1670 + $0x64] sm:$0xf]
      %v1689 = vld [vmem:[%s1670 + $0x6c] sm:$0xf]
      %v1690 = vld [vmem:[%s1670 + $0x70] sm:$0xf]
      %v1691 = vld [vmem:[%s1670 + $0x78] sm:$0xf]
      %v1692 = vld [vmem:[%s1670 + $0x7c] sm:$0xf]
      %v1693 = vld [vmem:[%s1670 + $0x84] sm:$0xf]
      %v1694 = vld [vmem:[%s1670 + $0x88] sm:$0xf]
      %v1695 = vld [vmem:[%s1670 + $0x90] sm:$0xf]
      %v1696 = vld [vmem:[%s1670 + $0x94] sm:$0xf]
      %v1697 = vld [vmem:[%s1670 + $0x9c] sm:$0xf]
      %v1698 = vld [vmem:[%s1670 + $0xa0] sm:$0xf]
      %v1699 = vld [vmem:[%s1670 + $0xa8] sm:$0xf]
      %v1700 = vld [vmem:[%s1670 + $0xac] sm:$0xf]
      %v1701 = vld [vmem:[%s1670 + $0xb4] sm:$0xf]
      %v1702 = vld [vmem:[%s1670 + $0xb8] sm:$0xf]
      %s1703 = scalar_lea.vmem %s1, 12
      %v1704 = vld [vmem:[%s1703] sm:$0xf]
      %v1737 = vunpack.c.l.b16 %v1671
      %v1738 = vunpack.c.l.b16 %v1672
      %v1739 = vunpack.c.l.b16 %v1673
      %v1740 = vunpack.c.l.b16 %v1674
      %v1741 = vunpack.c.l.b16 %v1675
      %v1742 = vunpack.c.l.b16 %v1676
      %v1743 = vunpack.c.l.b16 %v1677
      %v1744 = vunpack.c.l.b16 %v1678
      %v1745 = vunpack.c.l.b16 %v1679
      %v1746 = vunpack.c.l.b16 %v1680
      %v1747 = vunpack.c.l.b16 %v1681
      %v1748 = vunpack.c.l.b16 %v1682
      %v1749 = vunpack.c.l.b16 %v1683
      %v1750 = vunpack.c.l.b16 %v1684
      %v1751 = vunpack.c.l.b16 %v1685
      %v1752 = vunpack.c.l.b16 %v1686
      %v1753 = vunpack.c.l.b16 %v1687
      %v1754 = vunpack.c.l.b16 %v1688
      %v1755 = vunpack.c.l.b16 %v1689
      %v1756 = vunpack.c.l.b16 %v1690
      %v1757 = vunpack.c.l.b16 %v1691
      %v1758 = vunpack.c.l.b16 %v1692
      %v1759 = vunpack.c.l.b16 %v1693
      %v1760 = vunpack.c.l.b16 %v1694
      %v1761 = vunpack.c.l.b16 %v1695
      %v1762 = vunpack.c.l.b16 %v1696
      %v1763 = vunpack.c.l.b16 %v1697
      %v1764 = vunpack.c.l.b16 %v1698
      %v1765 = vunpack.c.l.b16 %v1699
      %v1766 = vunpack.c.l.b16 %v1700
      %v1767 = vunpack.c.l.b16 %v1701
      %v1768 = vunpack.c.l.b16 %v1702
      %v1769 = vpack.c.b16 %v1738, %v1737
      %v1770 = vpack.c.b16 %v1740, %v1739
      %v1771 = vpack.c.b16 %v1742, %v1741
      %v1772 = vpack.c.b16 %v1744, %v1743
      %v1773 = vpack.c.b16 %v1746, %v1745
      %v1774 = vpack.c.b16 %v1748, %v1747
      %v1775 = vpack.c.b16 %v1750, %v1749
      %v1776 = vpack.c.b16 %v1752, %v1751
      %v1777 = vpack.c.b16 %v1754, %v1753
      %v1778 = vpack.c.b16 %v1756, %v1755
      %v1779 = vpack.c.b16 %v1758, %v1757
      %v1780 = vpack.c.b16 %v1760, %v1759
      %v1781 = vpack.c.b16 %v1762, %v1761
      %v1782 = vpack.c.b16 %v1764, %v1763
      %v1783 = vpack.c.b16 %v1766, %v1765
      %v1784 = vpack.c.b16 %v1768, %v1767
      %v1786 = vsel %vm707, %v1769, 0
      %v1789 = vsel %vm707, %v1770, 0
      %v1792 = vsel %vm707, %v1771, 0
      %v1795 = vsel %vm707, %v1772, 0
      %v1798 = vsel %vm707, %v1773, 0
      %v1801 = vsel %vm707, %v1774, 0
      %v1804 = vsel %vm707, %v1775, 0
      %v1807 = vsel %vm707, %v1776, 0
      %v1810 = vsel %vm707, %v1777, 0
      %v1813 = vsel %vm707, %v1778, 0
      %v1816 = vsel %vm707, %v1779, 0
      %v1819 = vsel %vm707, %v1780, 0
      %v1822 = vsel %vm707, %v1781, 0
      %v1825 = vsel %vm707, %v1782, 0
      %v1828 = vsel %vm707, %v1783, 0
      %v1831 = vsel %vm707, %v1784, 0
      %v1834 = vsel %vm756, %v1704, 0
      %1836 = vmatprep.subr.bf16.mxu0 0
      %1837 = vmatpush1.bf16.msra.mxu0 %v1834
      %1838 = vmatprep.subr.bf16.mxu0 0
      %1839 = vmatpush1.bf16.msra.mxu0 0
      %1840 = vmatprep.subr.bf16.mxu0 0
      %1841 = vmatpush1.bf16.msra.mxu0 0
      %1842 = vmatprep.subr.bf16.mxu0 0
      %1843 = vmatpush1.bf16.msra.mxu0 0
      %1844 = vmatprep.subr.bf16.mxu0 0
      %1845 = vmatpush1.bf16.msra.mxu0 0
      %1846 = vmatprep.subr.bf16.mxu0 0
      %1847 = vmatpush1.bf16.msra.mxu0 0
      %1848 = vmatprep.subr.bf16.mxu0 0
      %1849 = vmatpush1.bf16.msra.mxu0 0
      %1850 = vmatprep.subr.bf16.mxu0 0
      %1851 = vmatpush1.bf16.msra.mxu0 0
      %1852 = vmatprep.subr.bf16.mxu0 0
      %1853 = vmatpush1.bf16.msra.mxu0 0
      %1854 = vmatprep.subr.bf16.mxu0 0
      %1855 = vmatpush1.bf16.msra.mxu0 0
      %1856 = vmatprep.subr.bf16.mxu0 0
      %1857 = vmatpush1.bf16.msra.mxu0 0
      %1858 = vmatprep.subr.bf16.mxu0 0
      %1859 = vmatpush1.bf16.msra.mxu0 0
      %1860 = vmatprep.subr.bf16.mxu0 0
      %1861 = vmatpush1.bf16.msra.mxu0 0
      %1862 = vmatprep.subr.bf16.mxu0 0
      %1863 = vmatpush1.bf16.msra.mxu0 0
      %1864 = vmatprep.subr.bf16.mxu0 0
      %1865 = vmatpush1.bf16.msra.mxu0 0
      %1866 = vmatprep.subr.bf16.mxu0 0
      %1867 = vmatpush1.bf16.msra.mxu0 0
      %1868 = vmatprep.mubr.bf16.mxu0 0
      %1869 = vmatmul.mubr.bf16.gmra.mrb[0].mxu0 %v1786
      %v1870 = vpop.f32.mrb[0].mxu0
      %v1871 = vadd.f32 0.0, %v1870
      %v1872 = vpop.f32.mrb[0].mxu0
      %v1873 = vpop.f32.mrb[0].mxu0
      %v1874 = vadd.f32 0.0, %v1873
      %v1875 = vpop.f32.mrb[0].mxu0
      %1876 = vmatprep.mubr.bf16.mxu0 0
      %1877 = vmatmul.mubr.bf16.gmra.mrb[0].mxu0 %v1789
      %v1878 = vpop.f32.mrb[0].mxu0
      %v1879 = vadd.f32 0.0, %v1878
      %v1880 = vpop.f32.mrb[0].mxu0
      %v1881 = vpop.f32.mrb[0].mxu0
      %v1882 = vadd.f32 0.0, %v1881
      %v1883 = vpop.f32.mrb[0].mxu0
      %1884 = vmatprep.mubr.bf16.mxu0 0
      %1885 = vmatmul.mubr.bf16.gmra.mrb[0].mxu0 %v1792
      %v1886 = vpop.f32.mrb[0].mxu0
      %v1887 = vadd.f32 0.0, %v1886
      %v1888 = vpop.f32.mrb[0].mxu0
      %v1889 = vpop.f32.mrb[0].mxu0
      %v1890 = vadd.f32 0.0, %v1889
      %v1891 = vpop.f32.mrb[0].mxu0
      %1892 = vmatprep.mubr.bf16.mxu0 0
      %1893 = vmatmul.mubr.bf16.gmra.mrb[0].mxu0 %v1795
      %v1894 = vpop.f32.mrb[0].mxu0
      %v1895 = vadd.f32 0.0, %v1894
      %v1896 = vpop.f32.mrb[0].mxu0
      %v1897 = vpop.f32.mrb[0].mxu0
      %v1898 = vadd.f32 0.0, %v1897
      %v1899 = vpop.f32.mrb[0].mxu0
      %1900 = vmatprep.mubr.bf16.mxu0 0
      %1901 = vmatmul.mubr.bf16.gmra.mrb[0].mxu0 %v1798
      %v1902 = vpop.f32.mrb[0].mxu0
      %v1903 = vadd.f32 0.0, %v1902
      %v1904 = vpop.f32.mrb[0].mxu0
      %v1905 = vpop.f32.mrb[0].mxu0
      %v1906 = vadd.f32 0.0, %v1905
      %v1907 = vpop.f32.mrb[0].mxu0
      %1908 = vmatprep.mubr.bf16.mxu0 0
      %1909 = vmatmul.mubr.bf16.gmra.mrb[0].mxu0 %v1801
      %v1910 = vpop.f32.mrb[0].mxu0
      %v1911 = vadd.f32 0.0, %v1910
      %v1912 = vpop.f32.mrb[0].mxu0
      %v1913 = vpop.f32.mrb[0].mxu0
      %v1914 = vadd.f32 0.0, %v1913
      %v1915 = vpop.f32.mrb[0].mxu0
      %1916 = vmatprep.mubr.bf16.mxu0 0
      %1917 = vmatmul.mubr.bf16.gmra.mrb[0].mxu0 %v1804
      %v1918 = vpop.f32.mrb[0].mxu0
      %v1919 = vadd.f32 0.0, %v1918
      %v1920 = vpop.f32.mrb[0].mxu0
      %v1921 = vpop.f32.mrb[0].mxu0
      %v1922 = vadd.f32 0.0, %v1921
      %v1923 = vpop.f32.mrb[0].mxu0
      %1924 = vmatprep.mubr.bf16.mxu0 0
      %1925 = vmatmul.mubr.bf16.gmra.mrb[0].mxu0 %v1807
      %v1926 = vpop.f32.mrb[0].mxu0
      %v1927 = vadd.f32 0.0, %v1926
      %v1928 = vpop.f32.mrb[0].mxu0
      %v1929 = vpop.f32.mrb[0].mxu0
      %v1930 = vadd.f32 0.0, %v1929
      %v1931 = vpop.f32.mrb[0].mxu0
      %1932 = vmatprep.mubr.bf16.mxu0 0
      %1933 = vmatmul.mubr.bf16.gmra.mrb[0].mxu0 %v1810
      %v1934 = vpop.f32.mrb[0].mxu0
      %v1935 = vadd.f32 0.0, %v1934
      %v1936 = vpop.f32.mrb[0].mxu0
      %v1937 = vpop.f32.mrb[0].mxu0
      %v1938 = vadd.f32 0.0, %v1937
      %v1939 = vpop.f32.mrb[0].mxu0
      %1940 = vmatprep.mubr.bf16.mxu0 0
      %1941 = vmatmul.mubr.bf16.gmra.mrb[0].mxu0 %v1813
      %v1942 = vpop.f32.mrb[0].mxu0
      %v1943 = vadd.f32 0.0, %v1942
      %v1944 = vpop.f32.mrb[0].mxu0
      %v1945 = vpop.f32.mrb[0].mxu0
      %v1946 = vadd.f32 0.0, %v1945
      %v1947 = vpop.f32.mrb[0].mxu0
      %1948 = vmatprep.mubr.bf16.mxu0 0
      %1949 = vmatmul.mubr.bf16.gmra.mrb[0].mxu0 %v1816
      %v1950 = vpop.f32.mrb[0].mxu0
      %v1951 = vadd.f32 0.0, %v1950
      %v1952 = vpop.f32.mrb[0].mxu0
      %v1953 = vpop.f32.mrb[0].mxu0
      %v1954 = vadd.f32 0.0, %v1953
      %v1955 = vpop.f32.mrb[0].mxu0
      %1956 = vmatprep.mubr.bf16.mxu0 0
      %1957 = vmatmul.mubr.bf16.gmra.mrb[0].mxu0 %v1819
      %v1958 = vpop.f32.mrb[0].mxu0
      %v1959 = vadd.f32 0.0, %v1958
      %v1960 = vpop.f32.mrb[0].mxu0
      %v1961 = vpop.f32.mrb[0].mxu0
      %v1962 = vadd.f32 0.0, %v1961
      %v1963 = vpop.f32.mrb[0].mxu0
      %1964 = vmatprep.mubr.bf16.mxu0 0
      %1965 = vmatmul.mubr.bf16.gmra.mrb[0].mxu0 %v1822
      %v1966 = vpop.f32.mrb[0].mxu0
      %v1967 = vadd.f32 0.0, %v1966
      %v1968 = vpop.f32.mrb[0].mxu0
      %v1969 = vpop.f32.mrb[0].mxu0
      %v1970 = vadd.f32 0.0, %v1969
      %v1971 = vpop.f32.mrb[0].mxu0
      %1972 = vmatprep.mubr.bf16.mxu0 0
      %1973 = vmatmul.mubr.bf16.gmra.mrb[0].mxu0 %v1825
      %v1974 = vpop.f32.mrb[0].mxu0
      %v1975 = vadd.f32 0.0, %v1974
      %v1976 = vpop.f32.mrb[0].mxu0
      %v1977 = vpop.f32.mrb[0].mxu0
      %v1978 = vadd.f32 0.0, %v1977
      %v1979 = vpop.f32.mrb[0].mxu0
      %1980 = vmatprep.mubr.bf16.mxu0 0
      %1981 = vmatmul.mubr.bf16.gmra.mrb[0].mxu0 %v1828
      %v1982 = vpop.f32.mrb[0].mxu0
      %v1983 = vadd.f32 0.0, %v1982
      %v1984 = vpop.f32.mrb[0].mxu0
      %v1985 = vpop.f32.mrb[0].mxu0
      %v1986 = vadd.f32 0.0, %v1985
      %v1987 = vpop.f32.mrb[0].mxu0
      %1988 = vmatprep.mubr.bf16.mxu0 0
      %1989 = vmatmul.mubr.bf16.gmra.mrb[0].mxu0 %v1831
      %v1990 = vpop.f32.mrb[0].mxu0
      %v1991 = vadd.f32 0.0, %v1990
      %v1992 = vpop.f32.mrb[0].mxu0
      %v1993 = vpop.f32.mrb[0].mxu0
      %v1994 = vadd.f32 0.0, %v1993
      %v1995 = vpop.f32.mrb[0].mxu0
      %1996 = vdwg.mxu0
      %v1997 = vadd.f32 %v1638, %v1871
      %v1998 = vadd.f32 %v1639, %v1874
      %v1999 = vadd.f32 %v1640, %v1879
      %v2000 = vadd.f32 %v1641, %v1882
      %v2001 = vadd.f32 %v1642, %v1887
      %v2002 = vadd.f32 %v1643, %v1890
      %v2003 = vadd.f32 %v1644, %v1895
      %v2004 = vadd.f32 %v1645, %v1898
      %v2005 = vadd.f32 %v1646, %v1903
      %v2006 = vadd.f32 %v1647, %v1906
      %v2007 = vadd.f32 %v1648, %v1911
      %v2008 = vadd.f32 %v1649, %v1914
      %v2009 = vadd.f32 %v1650, %v1919
      %v2010 = vadd.f32 %v1651, %v1922
      %v2011 = vadd.f32 %v1652, %v1927
      %v2012 = vadd.f32 %v1653, %v1930
      %v2013 = vadd.f32 %v1654, %v1935
      %v2014 = vadd.f32 %v1655, %v1938
      %v2015 = vadd.f32 %v1656, %v1943
      %v2016 = vadd.f32 %v1657, %v1946
      %v2017 = vadd.f32 %v1658, %v1951
      %v2018 = vadd.f32 %v1659, %v1954
      %v2019 = vadd.f32 %v1660, %v1959
      %v2020 = vadd.f32 %v1661, %v1962
      %v2021 = vadd.f32 %v1662, %v1967
      %v2022 = vadd.f32 %v1663, %v1970
      %v2023 = vadd.f32 %v1664, %v1975
      %v2024 = vadd.f32 %v1665, %v1978
      %v2025 = vadd.f32 %v1666, %v1983
      %v2026 = vadd.f32 %v1667, %v1986
      %v2027 = vadd.f32 %v1668, %v1991
      %v2028 = vadd.f32 %v1669, %v1994
      %v2029 = vld [vmem:[%s1670] sm:$0xf]
      %v2030 = vld [vmem:[%s1670 + $0x4] sm:$0xf]
      %v2031 = vld [vmem:[%s1670 + $0x8] sm:$0x1]
      %v2032 = vld [vmem:[%s1670 + $0xc] sm:$0xf]
      %v2033 = vld [vmem:[%s1670 + $0x10] sm:$0xf]
      %v2034 = vld [vmem:[%s1670 + $0x14] sm:$0x1]
      %v2035 = vld [vmem:[%s1670 + $0x18] sm:$0xf]
      %v2036 = vld [vmem:[%s1670 + $0x1c] sm:$0xf]
      %v2037 = vld [vmem:[%s1670 + $0x20] sm:$0x1]
      %v2038 = vld [vmem:[%s1670 + $0x24] sm:$0xf]
      %v2039 = vld [vmem:[%s1670 + $0x28] sm:$0xf]
      %v2040 = vld [vmem:[%s1670 + $0x2c] sm:$0x1]
      %v2041 = vld [vmem:[%s1670 + $0x30] sm:$0xf]
      %v2042 = vld [vmem:[%s1670 + $0x34] sm:$0xf]
      %v2043 = vld [vmem:[%s1670 + $0x38] sm:$0x1]
      %v2044 = vld [vmem:[%s1670 + $0x3c] sm:$0xf]
      %v2045 = vld [vmem:[%s1670 + $0x40] sm:$0xf]
      %v2046 = vld [vmem:[%s1670 + $0x44] sm:$0x1]
      %v2047 = vld [vmem:[%s1670 + $0x48] sm:$0xf]
      %v2048 = vld [vmem:[%s1670 + $0x4c] sm:$0xf]
      %v2049 = vld [vmem:[%s1670 + $0x50] sm:$0x1]
      %v2050 = vld [vmem:[%s1670 + $0x54] sm:$0xf]
      %v2051 = vld [vmem:[%s1670 + $0x58] sm:$0xf]
      %v2052 = vld [vmem:[%s1670 + $0x5c] sm:$0x1]
      %v2053 = vld [vmem:[%s1670 + $0x60] sm:$0xf]
      %v2054 = vld [vmem:[%s1670 + $0x64] sm:$0xf]
      %v2055 = vld [vmem:[%s1670 + $0x68] sm:$0x1]
      %v2056 = vld [vmem:[%s1670 + $0x6c] sm:$0xf]
      %v2057 = vld [vmem:[%s1670 + $0x70] sm:$0xf]
      %v2058 = vld [vmem:[%s1670 + $0x74] sm:$0x1]
      %v2059 = vld [vmem:[%s1670 + $0x78] sm:$0xf]
      %v2060 = vld [vmem:[%s1670 + $0x7c] sm:$0xf]
      %v2061 = vld [vmem:[%s1670 + $0x80] sm:$0x1]
      %v2062 = vld [vmem:[%s1670 + $0x84] sm:$0xf]
      %v2063 = vld [vmem:[%s1670 + $0x88] sm:$0xf]
      %v2064 = vld [vmem:[%s1670 + $0x8c] sm:$0x1]
      %v2065 = vld [vmem:[%s1670 + $0x90] sm:$0xf]
      %v2066 = vld [vmem:[%s1670 + $0x94] sm:$0xf]
      %v2067 = vld [vmem:[%s1670 + $0x98] sm:$0x1]
      %v2068 = vld [vmem:[%s1670 + $0x9c] sm:$0xf]
      %v2069 = vld [vmem:[%s1670 + $0xa0] sm:$0xf]
      %v2070 = vld [vmem:[%s1670 + $0xa4] sm:$0x1]
      %v2071 = vld [vmem:[%s1670 + $0xa8] sm:$0xf]
      %v2072 = vld [vmem:[%s1670 + $0xac] sm:$0xf]
      %v2073 = vld [vmem:[%s1670 + $0xb0] sm:$0x1]
      %v2074 = vld [vmem:[%s1670 + $0xb4] sm:$0xf]
      %v2075 = vld [vmem:[%s1670 + $0xb8] sm:$0xf]
      %v2076 = vld [vmem:[%s1670 + $0xbc] sm:$0x1]
      %v2078 = vshrl.u32 %v2029, 16
      %v2080 = vrot.slane %v2078, 4
      %v2081 = vshll.u32 %v2029, 16
      %v2083 = vrot.slane %v2081, 5
      %v2084 = vor.u32 %v2080, %v2083
      %v2085 = vrot.slane %v2084, 4
      %v2087 = vshll.u32 %v2030, 16
      %v2089 = vrot.slane %v2087, 5
      %v2090 = vsel %vm272, %v2085, %v2089
      %v2091 = vshrl.u32 %v2030, 16
      %v2093 = vrot.slane %v2091, 4
      %v2094 = vor.u32 %v2093, %v2089
      %v2095 = vrot.slane %v2094, 4
      %v2097 = vshll.u32 %v2031, 16
      %v2099 = vrot.slane %v2097, 5
      %v2100 = vsel %vm272, %v2095, %v2099
      %v2102 = vshrl.u32 %v2032, 16
      %v2104 = vrot.slane %v2102, 4
      %v2105 = vshll.u32 %v2032, 16
      %v2107 = vrot.slane %v2105, 5
      %v2108 = vor.u32 %v2104, %v2107
      %v2109 = vrot.slane %v2108, 4
      %v2111 = vshll.u32 %v2033, 16
      %v2113 = vrot.slane %v2111, 5
      %v2114 = vsel %vm272, %v2109, %v2113
      %v2115 = vshrl.u32 %v2033, 16
      %v2117 = vrot.slane %v2115, 4
      %v2118 = vor.u32 %v2117, %v2113
      %v2119 = vrot.slane %v2118, 4
      %v2121 = vshll.u32 %v2034, 16
      %v2123 = vrot.slane %v2121, 5
      %v2124 = vsel %vm272, %v2119, %v2123
      %v2126 = vshrl.u32 %v2035, 16
      %v2128 = vrot.slane %v2126, 4
      %v2129 = vshll.u32 %v2035, 16
      %v2131 = vrot.slane %v2129, 5
      %v2132 = vor.u32 %v2128, %v2131
      %v2133 = vrot.slane %v2132, 4
      %v2135 = vshll.u32 %v2036, 16
      %v2137 = vrot.slane %v2135, 5
      %v2138 = vsel %vm272, %v2133, %v2137
      %v2139 = vshrl.u32 %v2036, 16
      %v2141 = vrot.slane %v2139, 4
      %v2142 = vor.u32 %v2141, %v2137
      %v2143 = vrot.slane %v2142, 4
      %v2145 = vshll.u32 %v2037, 16
      %v2147 = vrot.slane %v2145, 5
      %v2148 = vsel %vm272, %v2143, %v2147
      %v2150 = vshrl.u32 %v2038, 16
      %v2152 = vrot.slane %v2150, 4
      %v2153 = vshll.u32 %v2038, 16
      %v2155 = vrot.slane %v2153, 5
      %v2156 = vor.u32 %v2152, %v2155
      %v2157 = vrot.slane %v2156, 4
      %v2159 = vshll.u32 %v2039, 16
      %v2161 = vrot.slane %v2159, 5
      %v2162 = vsel %vm272, %v2157, %v2161
      %v2163 = vshrl.u32 %v2039, 16
      %v2165 = vrot.slane %v2163, 4
      %v2166 = vor.u32 %v2165, %v2161
      %v2167 = vrot.slane %v2166, 4
      %v2169 = vshll.u32 %v2040, 16
      %v2171 = vrot.slane %v2169, 5
      %v2172 = vsel %vm272, %v2167, %v2171
      %v2174 = vshrl.u32 %v2041, 16
      %v2176 = vrot.slane %v2174, 4
      %v2177 = vshll.u32 %v2041, 16
      %v2179 = vrot.slane %v2177, 5
      %v2180 = vor.u32 %v2176, %v2179
      %v2181 = vrot.slane %v2180, 4
      %v2183 = vshll.u32 %v2042, 16
      %v2185 = vrot.slane %v2183, 5
      %v2186 = vsel %vm272, %v2181, %v2185
      %v2187 = vshrl.u32 %v2042, 16
      %v2189 = vrot.slane %v2187, 4
      %v2190 = vor.u32 %v2189, %v2185
      %v2191 = vrot.slane %v2190, 4
      %v2193 = vshll.u32 %v2043, 16
      %v2195 = vrot.slane %v2193, 5
      %v2196 = vsel %vm272, %v2191, %v2195
      %v2198 = vshrl.u32 %v2044, 16
      %v2200 = vrot.slane %v2198, 4
      %v2201 = vshll.u32 %v2044, 16
      %v2203 = vrot.slane %v2201, 5
      %v2204 = vor.u32 %v2200, %v2203
      %v2205 = vrot.slane %v2204, 4
      %v2207 = vshll.u32 %v2045, 16
      %v2209 = vrot.slane %v2207, 5
      %v2210 = vsel %vm272, %v2205, %v2209
      %v2211 = vshrl.u32 %v2045, 16
      %v2213 = vrot.slane %v2211, 4
      %v2214 = vor.u32 %v2213, %v2209
      %v2215 = vrot.slane %v2214, 4
      %v2217 = vshll.u32 %v2046, 16
      %v2219 = vrot.slane %v2217, 5
      %v2220 = vsel %vm272, %v2215, %v2219
      %v2222 = vshrl.u32 %v2047, 16
      %v2224 = vrot.slane %v2222, 4
      %v2225 = vshll.u32 %v2047, 16
      %v2227 = vrot.slane %v2225, 5
      %v2228 = vor.u32 %v2224, %v2227
      %v2229 = vrot.slane %v2228, 4
      %v2231 = vshll.u32 %v2048, 16
      %v2233 = vrot.slane %v2231, 5
      %v2234 = vsel %vm272, %v2229, %v2233
      %v2235 = vshrl.u32 %v2048, 16
      %v2237 = vrot.slane %v2235, 4
      %v2238 = vor.u32 %v2237, %v2233
      %v2239 = vrot.slane %v2238, 4
      %v2241 = vshll.u32 %v2049, 16
      %v2243 = vrot.slane %v2241, 5
      %v2244 = vsel %vm272, %v2239, %v2243
      %v2246 = vshrl.u32 %v2050, 16
      %v2248 = vrot.slane %v2246, 4
      %v2249 = vshll.u32 %v2050, 16
      %v2251 = vrot.slane %v2249, 5
      %v2252 = vor.u32 %v2248, %v2251
      %v2253 = vrot.slane %v2252, 4
      %v2255 = vshll.u32 %v2051, 16
      %v2257 = vrot.slane %v2255, 5
      %v2258 = vsel %vm272, %v2253, %v2257
      %v2259 = vshrl.u32 %v2051, 16
      %v2261 = vrot.slane %v2259, 4
      %v2262 = vor.u32 %v2261, %v2257
      %v2263 = vrot.slane %v2262, 4
      %v2265 = vshll.u32 %v2052, 16
      %v2267 = vrot.slane %v2265, 5
      %v2268 = vsel %vm272, %v2263, %v2267
      %v2270 = vshrl.u32 %v2053, 16
      %v2272 = vrot.slane %v2270, 4
      %v2273 = vshll.u32 %v2053, 16
      %v2275 = vrot.slane %v2273, 5
      %v2276 = vor.u32 %v2272, %v2275
      %v2277 = vrot.slane %v2276, 4
      %v2279 = vshll.u32 %v2054, 16
      %v2281 = vrot.slane %v2279, 5
      %v2282 = vsel %vm272, %v2277, %v2281
      %v2283 = vshrl.u32 %v2054, 16
      %v2285 = vrot.slane %v2283, 4
      %v2286 = vor.u32 %v2285, %v2281
      %v2287 = vrot.slane %v2286, 4
      %v2289 = vshll.u32 %v2055, 16
      %v2291 = vrot.slane %v2289, 5
      %v2292 = vsel %vm272, %v2287, %v2291
      %v2294 = vshrl.u32 %v2056, 16
      %v2296 = vrot.slane %v2294, 4
      %v2297 = vshll.u32 %v2056, 16
      %v2299 = vrot.slane %v2297, 5
      %v2300 = vor.u32 %v2296, %v2299
      %v2301 = vrot.slane %v2300, 4
      %v2303 = vshll.u32 %v2057, 16
      %v2305 = vrot.slane %v2303, 5
      %v2306 = vsel %vm272, %v2301, %v2305
      %v2307 = vshrl.u32 %v2057, 16
      %v2309 = vrot.slane %v2307, 4
      %v2310 = vor.u32 %v2309, %v2305
      %v2311 = vrot.slane %v2310, 4
      %v2313 = vshll.u32 %v2058, 16
      %v2315 = vrot.slane %v2313, 5
      %v2316 = vsel %vm272, %v2311, %v2315
      %v2318 = vshrl.u32 %v2059, 16
      %v2320 = vrot.slane %v2318, 4
      %v2321 = vshll.u32 %v2059, 16
      %v2323 = vrot.slane %v2321, 5
      %v2324 = vor.u32 %v2320, %v2323
      %v2325 = vrot.slane %v2324, 4
      %v2327 = vshll.u32 %v2060, 16
      %v2329 = vrot.slane %v2327, 5
      %v2330 = vsel %vm272, %v2325, %v2329
      %v2331 = vshrl.u32 %v2060, 16
      %v2333 = vrot.slane %v2331, 4
      %v2334 = vor.u32 %v2333, %v2329
      %v2335 = vrot.slane %v2334, 4
      %v2337 = vshll.u32 %v2061, 16
      %v2339 = vrot.slane %v2337, 5
      %v2340 = vsel %vm272, %v2335, %v2339
      %v2342 = vshrl.u32 %v2062, 16
      %v2344 = vrot.slane %v2342, 4
      %v2345 = vshll.u32 %v2062, 16
      %v2347 = vrot.slane %v2345, 5
      %v2348 = vor.u32 %v2344, %v2347
      %v2349 = vrot.slane %v2348, 4
      %v2351 = vshll.u32 %v2063, 16
      %v2353 = vrot.slane %v2351, 5
      %v2354 = vsel %vm272, %v2349, %v2353
      %v2355 = vshrl.u32 %v2063, 16
      %v2357 = vrot.slane %v2355, 4
      %v2358 = vor.u32 %v2357, %v2353
      %v2359 = vrot.slane %v2358, 4
      %v2361 = vshll.u32 %v2064, 16
      %v2363 = vrot.slane %v2361, 5
      %v2364 = vsel %vm272, %v2359, %v2363
      %v2366 = vshrl.u32 %v2065, 16
      %v2368 = vrot.slane %v2366, 4
      %v2369 = vshll.u32 %v2065, 16
      %v2371 = vrot.slane %v2369, 5
      %v2372 = vor.u32 %v2368, %v2371
      %v2373 = vrot.slane %v2372, 4
      %v2375 = vshll.u32 %v2066, 16
      %v2377 = vrot.slane %v2375, 5
      %v2378 = vsel %vm272, %v2373, %v2377
      %v2379 = vshrl.u32 %v2066, 16
      %v2381 = vrot.slane %v2379, 4
      %v2382 = vor.u32 %v2381, %v2377
      %v2383 = vrot.slane %v2382, 4
      %v2385 = vshll.u32 %v2067, 16
      %v2387 = vrot.slane %v2385, 5
      %v2388 = vsel %vm272, %v2383, %v2387
      %v2390 = vshrl.u32 %v2068, 16
      %v2392 = vrot.slane %v2390, 4
      %v2393 = vshll.u32 %v2068, 16
      %v2395 = vrot.slane %v2393, 5
      %v2396 = vor.u32 %v2392, %v2395
      %v2397 = vrot.slane %v2396, 4
      %v2399 = vshll.u32 %v2069, 16
      %v2401 = vrot.slane %v2399, 5
      %v2402 = vsel %vm272, %v2397, %v2401
      %v2403 = vshrl.u32 %v2069, 16
      %v2405 = vrot.slane %v2403, 4
      %v2406 = vor.u32 %v2405, %v2401
      %v2407 = vrot.slane %v2406, 4
      %v2409 = vshll.u32 %v2070, 16
      %v2411 = vrot.slane %v2409, 5
      %v2412 = vsel %vm272, %v2407, %v2411
      %v2414 = vshrl.u32 %v2071, 16
      %v2416 = vrot.slane %v2414, 4
      %v2417 = vshll.u32 %v2071, 16
      %v2419 = vrot.slane %v2417, 5
      %v2420 = vor.u32 %v2416, %v2419
      %v2421 = vrot.slane %v2420, 4
      %v2423 = vshll.u32 %v2072, 16
      %v2425 = vrot.slane %v2423, 5
      %v2426 = vsel %vm272, %v2421, %v2425
      %v2427 = vshrl.u32 %v2072, 16
      %v2429 = vrot.slane %v2427, 4
      %v2430 = vor.u32 %v2429, %v2425
      %v2431 = vrot.slane %v2430, 4
      %v2433 = vshll.u32 %v2073, 16
      %v2435 = vrot.slane %v2433, 5
      %v2436 = vsel %vm272, %v2431, %v2435
      %v2438 = vshrl.u32 %v2074, 16
      %v2440 = vrot.slane %v2438, 4
      %v2441 = vshll.u32 %v2074, 16
      %v2443 = vrot.slane %v2441, 5
      %v2444 = vor.u32 %v2440, %v2443
      %v2445 = vrot.slane %v2444, 4
      %v2447 = vshll.u32 %v2075, 16
      %v2449 = vrot.slane %v2447, 5
      %v2450 = vsel %vm272, %v2445, %v2449
      %v2451 = vshrl.u32 %v2075, 16
      %v2453 = vrot.slane %v2451, 4
      %v2454 = vor.u32 %v2453, %v2449
      %v2455 = vrot.slane %v2454, 4
      %v2457 = vshll.u32 %v2076, 16
      %v2459 = vrot.slane %v2457, 5
      %v2460 = vsel %vm272, %v2455, %v2459
      %s2461 = scalar_lea.vmem %s1, 16
      %v2462 = vld [vmem:[%s2461] sm:$0xf]
      %v2463 = vunpack.c.l.b16 %v2090
      %v2464 = vunpack.c.l.b16 %v2100
      %v2465 = vunpack.c.l.b16 %v2114
      %v2466 = vunpack.c.l.b16 %v2124
      %v2467 = vunpack.c.l.b16 %v2138
      %v2468 = vunpack.c.l.b16 %v2148
      %v2469 = vunpack.c.l.b16 %v2162
      %v2470 = vunpack.c.l.b16 %v2172
      %v2471 = vunpack.c.l.b16 %v2186
      %v2472 = vunpack.c.l.b16 %v2196
      %v2473 = vunpack.c.l.b16 %v2210
      %v2474 = vunpack.c.l.b16 %v2220
      %v2475 = vunpack.c.l.b16 %v2234
      %v2476 = vunpack.c.l.b16 %v2244
      %v2477 = vunpack.c.l.b16 %v2258
      %v2478 = vunpack.c.l.b16 %v2268
      %v2479 = vunpack.c.l.b16 %v2282
      %v2480 = vunpack.c.l.b16 %v2292
      %v2481 = vunpack.c.l.b16 %v2306
      %v2482 = vunpack.c.l.b16 %v2316
      %v2483 = vunpack.c.l.b16 %v2330
      %v2484 = vunpack.c.l.b16 %v2340
      %v2485 = vunpack.c.l.b16 %v2354
      %v2486 = vunpack.c.l.b16 %v2364
      %v2487 = vunpack.c.l.b16 %v2378
      %v2488 = vunpack.c.l.b16 %v2388
      %v2489 = vunpack.c.l.b16 %v2402
      %v2490 = vunpack.c.l.b16 %v2412
      %v2491 = vunpack.c.l.b16 %v2426
      %v2492 = vunpack.c.l.b16 %v2436
      %v2493 = vunpack.c.l.b16 %v2450
      %v2494 = vunpack.c.l.b16 %v2460
      %v2495 = vpack.c.b16 %v2464, %v2463
      %v2496 = vpack.c.b16 %v2466, %v2465
      %v2497 = vpack.c.b16 %v2468, %v2467
      %v2498 = vpack.c.b16 %v2470, %v2469
      %v2499 = vpack.c.b16 %v2472, %v2471
      %v2500 = vpack.c.b16 %v2474, %v2473
      %v2501 = vpack.c.b16 %v2476, %v2475
      %v2502 = vpack.c.b16 %v2478, %v2477
      %v2503 = vpack.c.b16 %v2480, %v2479
      %v2504 = vpack.c.b16 %v2482, %v2481
      %v2505 = vpack.c.b16 %v2484, %v2483
      %v2506 = vpack.c.b16 %v2486, %v2485
      %v2507 = vpack.c.b16 %v2488, %v2487
      %v2508 = vpack.c.b16 %v2490, %v2489
      %v2509 = vpack.c.b16 %v2492, %v2491
      %v2510 = vpack.c.b16 %v2494, %v2493
      %v2512 = vsel %vm707, %v2495, 0
      %v2515 = vsel %vm707, %v2496, 0
      %v2518 = vsel %vm707, %v2497, 0
      %v2521 = vsel %vm707, %v2498, 0
      %v2524 = vsel %vm707, %v2499, 0
      %v2527 = vsel %vm707, %v2500, 0
      %v2530 = vsel %vm707, %v2501, 0
      %v2533 = vsel %vm707, %v2502, 0
      %v2536 = vsel %vm707, %v2503, 0
      %v2539 = vsel %vm707, %v2504, 0
      %v2542 = vsel %vm707, %v2505, 0
      %v2545 = vsel %vm707, %v2506, 0
      %v2548 = vsel %vm707, %v2507, 0
      %v2551 = vsel %vm707, %v2508, 0
      %v2554 = vsel %vm707, %v2509, 0
      %v2557 = vsel %vm707, %v2510, 0
      %v2560 = vsel %vm756, %v2462, 0
      %2562 = vmatprep.subr.bf16.mxu0 0
      %2563 = vmatpush1.bf16.msra.mxu0 %v2560
      %2564 = vmatprep.subr.bf16.mxu0 0
      %2565 = vmatpush1.bf16.msra.mxu0 0
      %2566 = vmatprep.subr.bf16.mxu0 0
      %2567 = vmatpush1.bf16.msra.mxu0 0
      %2568 = vmatprep.subr.bf16.mxu0 0
      %2569 = vmatpush1.bf16.msra.mxu0 0
      %2570 = vmatprep.subr.bf16.mxu0 0
      %2571 = vmatpush1.bf16.msra.mxu0 0
      %2572 = vmatprep.subr.bf16.mxu0 0
      %2573 = vmatpush1.bf16.msra.mxu0 0
      %2574 = vmatprep.subr.bf16.mxu0 0
      %2575 = vmatpush1.bf16.msra.mxu0 0
      %2576 = vmatprep.subr.bf16.mxu0 0
      %2577 = vmatpush1.bf16.msra.mxu0 0
      %2578 = vmatprep.subr.bf16.mxu0 0
      %2579 = vmatpush1.bf16.msra.mxu0 0
      %2580 = vmatprep.subr.bf16.mxu0 0
      %2581 = vmatpush1.bf16.msra.mxu0 0
      %2582 = vmatprep.subr.bf16.mxu0 0
      %2583 = vmatpush1.bf16.msra.mxu0 0
      %2584 = vmatprep.subr.bf16.mxu0 0
      %2585 = vmatpush1.bf16.msra.mxu0 0
      %2586 = vmatprep.subr.bf16.mxu0 0
      %2587 = vmatpush1.bf16.msra.mxu0 0
      %2588 = vmatprep.subr.bf16.mxu0 0
      %2589 = vmatpush1.bf16.msra.mxu0 0
      %2590 = vmatprep.subr.bf16.mxu0 0
      %2591 = vmatpush1.bf16.msra.mxu0 0
      %2592 = vmatprep.subr.bf16.mxu0 0
      %2593 = vmatpush1.bf16.msra.mxu0 0
      %2594 = vmatprep.mubr.bf16.mxu0 0
      %2595 = vmatmul.mubr.bf16.gmra.mrb[0].mxu0 %v2512
      %v2596 = vpop.f32.mrb[0].mxu0
      %v2597 = vadd.f32 0.0, %v2596
      %v2598 = vpop.f32.mrb[0].mxu0
      %v2599 = vpop.f32.mrb[0].mxu0
      %v2600 = vadd.f32 0.0, %v2599
      %v2601 = vpop.f32.mrb[0].mxu0
      %2602 = vmatprep.mubr.bf16.mxu0 0
      %2603 = vmatmul.mubr.bf16.gmra.mrb[0].mxu0 %v2515
      %v2604 = vpop.f32.mrb[0].mxu0
      %v2605 = vadd.f32 0.0, %v2604
      %v2606 = vpop.f32.mrb[0].mxu0
      %v2607 = vpop.f32.mrb[0].mxu0
      %v2608 = vadd.f32 0.0, %v2607
      %v2609 = vpop.f32.mrb[0].mxu0
      %2610 = vmatprep.mubr.bf16.mxu0 0
      %2611 = vmatmul.mubr.bf16.gmra.mrb[0].mxu0 %v2518
      %v2612 = vpop.f32.mrb[0].mxu0
      %v2613 = vadd.f32 0.0, %v2612
      %v2614 = vpop.f32.mrb[0].mxu0
      %v2615 = vpop.f32.mrb[0].mxu0
      %v2616 = vadd.f32 0.0, %v2615
      %v2617 = vpop.f32.mrb[0].mxu0
      %2618 = vmatprep.mubr.bf16.mxu0 0
      %2619 = vmatmul.mubr.bf16.gmra.mrb[0].mxu0 %v2521
      %v2620 = vpop.f32.mrb[0].mxu0
      %v2621 = vadd.f32 0.0, %v2620
      %v2622 = vpop.f32.mrb[0].mxu0
      %v2623 = vpop.f32.mrb[0].mxu0
      %v2624 = vadd.f32 0.0, %v2623
      %v2625 = vpop.f32.mrb[0].mxu0
      %2626 = vmatprep.mubr.bf16.mxu0 0
      %2627 = vmatmul.mubr.bf16.gmra.mrb[0].mxu0 %v2524
      %v2628 = vpop.f32.mrb[0].mxu0
      %v2629 = vadd.f32 0.0, %v2628
      %v2630 = vpop.f32.mrb[0].mxu0
      %v2631 = vpop.f32.mrb[0].mxu0
      %v2632 = vadd.f32 0.0, %v2631
      %v2633 = vpop.f32.mrb[0].mxu0
      %2634 = vmatprep.mubr.bf16.mxu0 0
      %2635 = vmatmul.mubr.bf16.gmra.mrb[0].mxu0 %v2527
      %v2636 = vpop.f32.mrb[0].mxu0
      %v2637 = vadd.f32 0.0, %v2636
      %v2638 = vpop.f32.mrb[0].mxu0
      %v2639 = vpop.f32.mrb[0].mxu0
      %v2640 = vadd.f32 0.0, %v2639
      %v2641 = vpop.f32.mrb[0].mxu0
      %2642 = vmatprep.mubr.bf16.mxu0 0
      %2643 = vmatmul.mubr.bf16.gmra.mrb[0].mxu0 %v2530
      %v2644 = vpop.f32.mrb[0].mxu0
      %v2645 = vadd.f32 0.0, %v2644
      %v2646 = vpop.f32.mrb[0].mxu0
      %v2647 = vpop.f32.mrb[0].mxu0
      %v2648 = vadd.f32 0.0, %v2647
      %v2649 = vpop.f32.mrb[0].mxu0
      %2650 = vmatprep.mubr.bf16.mxu0 0
      %2651 = vmatmul.mubr.bf16.gmra.mrb[0].mxu0 %v2533
      %v2652 = vpop.f32.mrb[0].mxu0
      %v2653 = vadd.f32 0.0, %v2652
      %v2654 = vpop.f32.mrb[0].mxu0
      %v2655 = vpop.f32.mrb[0].mxu0
      %v2656 = vadd.f32 0.0, %v2655
      %v2657 = vpop.f32.mrb[0].mxu0
      %2658 = vmatprep.mubr.bf16.mxu0 0
      %2659 = vmatmul.mubr.bf16.gmra.mrb[0].mxu0 %v2536
      %v2660 = vpop.f32.mrb[0].mxu0
      %v2661 = vadd.f32 0.0, %v2660
      %v2662 = vpop.f32.mrb[0].mxu0
      %v2663 = vpop.f32.mrb[0].mxu0
      %v2664 = vadd.f32 0.0, %v2663
      %v2665 = vpop.f32.mrb[0].mxu0
      %2666 = vmatprep.mubr.bf16.mxu0 0
      %2667 = vmatmul.mubr.bf16.gmra.mrb[0].mxu0 %v2539
      %v2668 = vpop.f32.mrb[0].mxu0
      %v2669 = vadd.f32 0.0, %v2668
      %v2670 = vpop.f32.mrb[0].mxu0
      %v2671 = vpop.f32.mrb[0].mxu0
      %v2672 = vadd.f32 0.0, %v2671
      %v2673 = vpop.f32.mrb[0].mxu0
      %2674 = vmatprep.mubr.bf16.mxu0 0
      %2675 = vmatmul.mubr.bf16.gmra.mrb[0].mxu0 %v2542
      %v2676 = vpop.f32.mrb[0].mxu0
      %v2677 = vadd.f32 0.0, %v2676
      %v2678 = vpop.f32.mrb[0].mxu0
      %v2679 = vpop.f32.mrb[0].mxu0
      %v2680 = vadd.f32 0.0, %v2679
      %v2681 = vpop.f32.mrb[0].mxu0
      %2682 = vmatprep.mubr.bf16.mxu0 0
      %2683 = vmatmul.mubr.bf16.gmra.mrb[0].mxu0 %v2545
      %v2684 = vpop.f32.mrb[0].mxu0
      %v2685 = vadd.f32 0.0, %v2684
      %v2686 = vpop.f32.mrb[0].mxu0
      %v2687 = vpop.f32.mrb[0].mxu0
      %v2688 = vadd.f32 0.0, %v2687
      %v2689 = vpop.f32.mrb[0].mxu0
      %2690 = vmatprep.mubr.bf16.mxu0 0
      %2691 = vmatmul.mubr.bf16.gmra.mrb[0].mxu0 %v2548
      %v2692 = vpop.f32.mrb[0].mxu0
      %v2693 = vadd.f32 0.0, %v2692
      %v2694 = vpop.f32.mrb[0].mxu0
      %v2695 = vpop.f32.mrb[0].mxu0
      %v2696 = vadd.f32 0.0, %v2695
      %v2697 = vpop.f32.mrb[0].mxu0
      %2698 = vmatprep.mubr.bf16.mxu0 0
      %2699 = vmatmul.mubr.bf16.gmra.mrb[0].mxu0 %v2551
      %v2700 = vpop.f32.mrb[0].mxu0
      %v2701 = vadd.f32 0.0, %v2700
      %v2702 = vpop.f32.mrb[0].mxu0
      %v2703 = vpop.f32.mrb[0].mxu0
      %v2704 = vadd.f32 0.0, %v2703
      %v2705 = vpop.f32.mrb[0].mxu0
      %2706 = vmatprep.mubr.bf16.mxu0 0
      %2707 = vmatmul.mubr.bf16.gmra.mrb[0].mxu0 %v2554
      %v2708 = vpop.f32.mrb[0].mxu0
      %v2709 = vadd.f32 0.0, %v2708
      %v2710 = vpop.f32.mrb[0].mxu0
      %v2711 = vpop.f32.mrb[0].mxu0
      %v2712 = vadd.f32 0.0, %v2711
      %v2713 = vpop.f32.mrb[0].mxu0
      %2714 = vmatprep.mubr.bf16.mxu0 0
      %2715 = vmatmul.mubr.bf16.gmra.mrb[0].mxu0 %v2557
      %v2716 = vpop.f32.mrb[0].mxu0
      %v2717 = vadd.f32 0.0, %v2716
      %v2718 = vpop.f32.mrb[0].mxu0
      %v2719 = vpop.f32.mrb[0].mxu0
      %v2720 = vadd.f32 0.0, %v2719
      %v2721 = vpop.f32.mrb[0].mxu0
      %2722 = vdwg.mxu0
      %v2723 = vadd.f32 %v1997, %v2597
      %v2724 = vadd.f32 %v1998, %v2600
      %v2725 = vadd.f32 %v1999, %v2605
      %v2726 = vadd.f32 %v2000, %v2608
      %v2727 = vadd.f32 %v2001, %v2613
      %v2728 = vadd.f32 %v2002, %v2616
      %v2729 = vadd.f32 %v2003, %v2621
      %v2730 = vadd.f32 %v2004, %v2624
      %v2731 = vadd.f32 %v2005, %v2629
      %v2732 = vadd.f32 %v2006, %v2632
      %v2733 = vadd.f32 %v2007, %v2637
      %v2734 = vadd.f32 %v2008, %v2640
      %v2735 = vadd.f32 %v2009, %v2645
      %v2736 = vadd.f32 %v2010, %v2648
      %v2737 = vadd.f32 %v2011, %v2653
      %v2738 = vadd.f32 %v2012, %v2656
      %v2739 = vadd.f32 %v2013, %v2661
      %v2740 = vadd.f32 %v2014, %v2664
      %v2741 = vadd.f32 %v2015, %v2669
      %v2742 = vadd.f32 %v2016, %v2672
      %v2743 = vadd.f32 %v2017, %v2677
      %v2744 = vadd.f32 %v2018, %v2680
      %v2745 = vadd.f32 %v2019, %v2685
      %v2746 = vadd.f32 %v2020, %v2688
      %v2747 = vadd.f32 %v2021, %v2693
      %v2748 = vadd.f32 %v2022, %v2696
      %v2749 = vadd.f32 %v2023, %v2701
      %v2750 = vadd.f32 %v2024, %v2704
      %v2751 = vadd.f32 %v2025, %v2709
      %v2752 = vadd.f32 %v2026, %v2712
      %v2753 = vadd.f32 %v2027, %v2717
      %v2754 = vadd.f32 %v2028, %v2720
      %v2755 = vld [vmem:[%s1670] sm:$0xe]
      %v2756 = vld [vmem:[%s1670 + $0xc] sm:$0xe]
      %v2757 = vld [vmem:[%s1670 + $0x18] sm:$0xe]
      %v2758 = vld [vmem:[%s1670 + $0x24] sm:$0xe]
      %v2759 = vld [vmem:[%s1670 + $0x30] sm:$0xe]
      %v2760 = vld [vmem:[%s1670 + $0x3c] sm:$0xe]
      %v2761 = vld [vmem:[%s1670 + $0x48] sm:$0xe]
      %v2762 = vld [vmem:[%s1670 + $0x54] sm:$0xe]
      %v2763 = vld [vmem:[%s1670 + $0x60] sm:$0xe]
      %v2764 = vld [vmem:[%s1670 + $0x6c] sm:$0xe]
      %v2765 = vld [vmem:[%s1670 + $0x78] sm:$0xe]
      %v2766 = vld [vmem:[%s1670 + $0x84] sm:$0xe]
      %v2767 = vld [vmem:[%s1670 + $0x90] sm:$0xe]
      %v2768 = vld [vmem:[%s1670 + $0x9c] sm:$0xe]
      %v2769 = vld [vmem:[%s1670 + $0xa8] sm:$0xe]
      %v2770 = vld [vmem:[%s1670 + $0xb4] sm:$0xe]
      %v2819 = vrot.slane %v2755, 5
      %v2820 = vrot.slane %v2819, 4
      %v2821 = vrot.slane %v2030, 5
      %v2822 = vsel %vm1263, %v2820, %v2821
      %v2823 = vrot.slane %v2821, 4
      %v2824 = vrot.slane %v2031, 5
      %v2825 = vsel %vm1263, %v2823, %v2824
      %v2826 = vrot.slane %v2756, 5
      %v2827 = vrot.slane %v2826, 4
      %v2828 = vrot.slane %v2033, 5
      %v2829 = vsel %vm1263, %v2827, %v2828
      %v2830 = vrot.slane %v2828, 4
      %v2831 = vrot.slane %v2034, 5
      %v2832 = vsel %vm1263, %v2830, %v2831
      %v2833 = vrot.slane %v2757, 5
      %v2834 = vrot.slane %v2833, 4
      %v2835 = vrot.slane %v2036, 5
      %v2836 = vsel %vm1263, %v2834, %v2835
      %v2837 = vrot.slane %v2835, 4
      %v2838 = vrot.slane %v2037, 5
      %v2839 = vsel %vm1263, %v2837, %v2838
      %v2840 = vrot.slane %v2758, 5
      %v2841 = vrot.slane %v2840, 4
      %v2842 = vrot.slane %v2039, 5
      %v2843 = vsel %vm1263, %v2841, %v2842
      %v2844 = vrot.slane %v2842, 4
      %v2845 = vrot.slane %v2040, 5
      %v2846 = vsel %vm1263, %v2844, %v2845
      %v2847 = vrot.slane %v2759, 5
      %v2848 = vrot.slane %v2847, 4
      %v2849 = vrot.slane %v2042, 5
      %v2850 = vsel %vm1263, %v2848, %v2849
      %v2851 = vrot.slane %v2849, 4
      %v2852 = vrot.slane %v2043, 5
      %v2853 = vsel %vm1263, %v2851, %v2852
      %v2854 = vrot.slane %v2760, 5
      %v2855 = vrot.slane %v2854, 4
      %v2856 = vrot.slane %v2045, 5
      %v2857 = vsel %vm1263, %v2855, %v2856
      %v2858 = vrot.slane %v2856, 4
      %v2859 = vrot.slane %v2046, 5
      %v2860 = vsel %vm1263, %v2858, %v2859
      %v2861 = vrot.slane %v2761, 5
      %v2862 = vrot.slane %v2861, 4
      %v2863 = vrot.slane %v2048, 5
      %v2864 = vsel %vm1263, %v2862, %v2863
      %v2865 = vrot.slane %v2863, 4
      %v2866 = vrot.slane %v2049, 5
      %v2867 = vsel %vm1263, %v2865, %v2866
      %v2868 = vrot.slane %v2762, 5
      %v2869 = vrot.slane %v2868, 4
      %v2870 = vrot.slane %v2051, 5
      %v2871 = vsel %vm1263, %v2869, %v2870
      %v2872 = vrot.slane %v2870, 4
      %v2873 = vrot.slane %v2052, 5
      %v2874 = vsel %vm1263, %v2872, %v2873
      %v2875 = vrot.slane %v2763, 5
      %v2876 = vrot.slane %v2875, 4
      %v2877 = vrot.slane %v2054, 5
      %v2878 = vsel %vm1263, %v2876, %v2877
      %v2879 = vrot.slane %v2877, 4
      %v2880 = vrot.slane %v2055, 5
      %v2881 = vsel %vm1263, %v2879, %v2880
      %v2882 = vrot.slane %v2764, 5
      %v2883 = vrot.slane %v2882, 4
      %v2884 = vrot.slane %v2057, 5
      %v2885 = vsel %vm1263, %v2883, %v2884
      %v2886 = vrot.slane %v2884, 4
      %v2887 = vrot.slane %v2058, 5
      %v2888 = vsel %vm1263, %v2886, %v2887
      %v2889 = vrot.slane %v2765, 5
      %v2890 = vrot.slane %v2889, 4
      %v2891 = vrot.slane %v2060, 5
      %v2892 = vsel %vm1263, %v2890, %v2891
      %v2893 = vrot.slane %v2891, 4
      %v2894 = vrot.slane %v2061, 5
      %v2895 = vsel %vm1263, %v2893, %v2894
      %v2896 = vrot.slane %v2766, 5
      %v2897 = vrot.slane %v2896, 4
      %v2898 = vrot.slane %v2063, 5
      %v2899 = vsel %vm1263, %v2897, %v2898
      %v2900 = vrot.slane %v2898, 4
      %v2901 = vrot.slane %v2064, 5
      %v2902 = vsel %vm1263, %v2900, %v2901
      %v2903 = vrot.slane %v2767, 5
      %v2904 = vrot.slane %v2903, 4
      %v2905 = vrot.slane %v2066, 5
      %v2906 = vsel %vm1263, %v2904, %v2905
      %v2907 = vrot.slane %v2905, 4
      %v2908 = vrot.slane %v2067, 5
      %v2909 = vsel %vm1263, %v2907, %v2908
      %v2910 = vrot.slane %v2768, 5
      %v2911 = vrot.slane %v2910, 4
      %v2912 = vrot.slane %v2069, 5
      %v2913 = vsel %vm1263, %v2911, %v2912
      %v2914 = vrot.slane %v2912, 4
      %v2915 = vrot.slane %v2070, 5
      %v2916 = vsel %vm1263, %v2914, %v2915
      %v2917 = vrot.slane %v2769, 5
      %v2918 = vrot.slane %v2917, 4
      %v2919 = vrot.slane %v2072, 5
      %v2920 = vsel %vm1263, %v2918, %v2919
      %v2921 = vrot.slane %v2919, 4
      %v2922 = vrot.slane %v2073, 5
      %v2923 = vsel %vm1263, %v2921, %v2922
      %v2924 = vrot.slane %v2770, 5
      %v2925 = vrot.slane %v2924, 4
      %v2926 = vrot.slane %v2075, 5
      %v2927 = vsel %vm1263, %v2925, %v2926
      %v2928 = vrot.slane %v2926, 4
      %v2929 = vrot.slane %v2076, 5
      %v2930 = vsel %vm1263, %v2928, %v2929
      %s2931 = scalar_lea.vmem %s1, 20
      %v2932 = vld [vmem:[%s2931] sm:$0xf]
      %v2933 = vunpack.c.l.b16 %v2822
      %v2934 = vunpack.c.l.b16 %v2825
      %v2935 = vunpack.c.l.b16 %v2829
      %v2936 = vunpack.c.l.b16 %v2832
      %v2937 = vunpack.c.l.b16 %v2836
      %v2938 = vunpack.c.l.b16 %v2839
      %v2939 = vunpack.c.l.b16 %v2843
      %v2940 = vunpack.c.l.b16 %v2846
      %v2941 = vunpack.c.l.b16 %v2850
      %v2942 = vunpack.c.l.b16 %v2853
      %v2943 = vunpack.c.l.b16 %v2857
      %v2944 = vunpack.c.l.b16 %v2860
      %v2945 = vunpack.c.l.b16 %v2864
      %v2946 = vunpack.c.l.b16 %v2867
      %v2947 = vunpack.c.l.b16 %v2871
      %v2948 = vunpack.c.l.b16 %v2874
      %v2949 = vunpack.c.l.b16 %v2878
      %v2950 = vunpack.c.l.b16 %v2881
      %v2951 = vunpack.c.l.b16 %v2885
      %v2952 = vunpack.c.l.b16 %v2888
      %v2953 = vunpack.c.l.b16 %v2892
      %v2954 = vunpack.c.l.b16 %v2895
      %v2955 = vunpack.c.l.b16 %v2899
      %v2956 = vunpack.c.l.b16 %v2902
      %v2957 = vunpack.c.l.b16 %v2906
      %v2958 = vunpack.c.l.b16 %v2909
      %v2959 = vunpack.c.l.b16 %v2913
      %v2960 = vunpack.c.l.b16 %v2916
      %v2961 = vunpack.c.l.b16 %v2920
      %v2962 = vunpack.c.l.b16 %v2923
      %v2963 = vunpack.c.l.b16 %v2927
      %v2964 = vunpack.c.l.b16 %v2930
      %v2965 = vpack.c.b16 %v2934, %v2933
      %v2966 = vpack.c.b16 %v2936, %v2935
      %v2967 = vpack.c.b16 %v2938, %v2937
      %v2968 = vpack.c.b16 %v2940, %v2939
      %v2969 = vpack.c.b16 %v2942, %v2941
      %v2970 = vpack.c.b16 %v2944, %v2943
      %v2971 = vpack.c.b16 %v2946, %v2945
      %v2972 = vpack.c.b16 %v2948, %v2947
      %v2973 = vpack.c.b16 %v2950, %v2949
      %v2974 = vpack.c.b16 %v2952, %v2951
      %v2975 = vpack.c.b16 %v2954, %v2953
      %v2976 = vpack.c.b16 %v2956, %v2955
      %v2977 = vpack.c.b16 %v2958, %v2957
      %v2978 = vpack.c.b16 %v2960, %v2959
      %v2979 = vpack.c.b16 %v2962, %v2961
      %v2980 = vpack.c.b16 %v2964, %v2963
      %v2982 = vsel %vm707, %v2965, 0
      %v2985 = vsel %vm707, %v2966, 0
      %v2988 = vsel %vm707, %v2967, 0
      %v2991 = vsel %vm707, %v2968, 0
      %v2994 = vsel %vm707, %v2969, 0
      %v2997 = vsel %vm707, %v2970, 0
      %v3000 = vsel %vm707, %v2971, 0
      %v3003 = vsel %vm707, %v2972, 0
      %v3006 = vsel %vm707, %v2973, 0
      %v3009 = vsel %vm707, %v2974, 0
      %v3012 = vsel %vm707, %v2975, 0
      %v3015 = vsel %vm707, %v2976, 0
      %v3018 = vsel %vm707, %v2977, 0
      %v3021 = vsel %vm707, %v2978, 0
      %v3024 = vsel %vm707, %v2979, 0
      %v3027 = vsel %vm707, %v2980, 0
      %v3030 = vsel %vm756, %v2932, 0
      %3032 = vmatprep.subr.bf16.mxu0 0
      %3033 = vmatpush1.bf16.msra.mxu0 %v3030
      %3034 = vmatprep.subr.bf16.mxu0 0
      %3035 = vmatpush1.bf16.msra.mxu0 0
      %3036 = vmatprep.subr.bf16.mxu0 0
      %3037 = vmatpush1.bf16.msra.mxu0 0
      %3038 = vmatprep.subr.bf16.mxu0 0
      %3039 = vmatpush1.bf16.msra.mxu0 0
      %3040 = vmatprep.subr.bf16.mxu0 0
      %3041 = vmatpush1.bf16.msra.mxu0 0
      %3042 = vmatprep.subr.bf16.mxu0 0
      %3043 = vmatpush1.bf16.msra.mxu0 0
      %3044 = vmatprep.subr.bf16.mxu0 0
      %3045 = vmatpush1.bf16.msra.mxu0 0
      %3046 = vmatprep.subr.bf16.mxu0 0
      %3047 = vmatpush1.bf16.msra.mxu0 0
      %3048 = vmatprep.subr.bf16.mxu0 0
      %3049 = vmatpush1.bf16.msra.mxu0 0
      %3050 = vmatprep.subr.bf16.mxu0 0
      %3051 = vmatpush1.bf16.msra.mxu0 0
      %3052 = vmatprep.subr.bf16.mxu0 0
      %3053 = vmatpush1.bf16.msra.mxu0 0
      %3054 = vmatprep.subr.bf16.mxu0 0
      %3055 = vmatpush1.bf16.msra.mxu0 0
      %3056 = vmatprep.subr.bf16.mxu0 0
      %3057 = vmatpush1.bf16.msra.mxu0 0
      %3058 = vmatprep.subr.bf16.mxu0 0
      %3059 = vmatpush1.bf16.msra.mxu0 0
      %3060 = vmatprep.subr.bf16.mxu0 0
      %3061 = vmatpush1.bf16.msra.mxu0 0
      %3062 = vmatprep.subr.bf16.mxu0 0
      %3063 = vmatpush1.bf16.msra.mxu0 0
      %3064 = vmatprep.mubr.bf16.mxu0 0
      %3065 = vmatmul.mubr.bf16.gmra.mrb[0].mxu0 %v2982
      %v3066 = vpop.f32.mrb[0].mxu0
      %v3067 = vadd.f32 0.0, %v3066
      %v3068 = vpop.f32.mrb[0].mxu0
      %v3069 = vpop.f32.mrb[0].mxu0
      %v3070 = vadd.f32 0.0, %v3069
      %v3071 = vpop.f32.mrb[0].mxu0
      %3072 = vmatprep.mubr.bf16.mxu0 0
      %3073 = vmatmul.mubr.bf16.gmra.mrb[0].mxu0 %v2985
      %v3074 = vpop.f32.mrb[0].mxu0
      %v3075 = vadd.f32 0.0, %v3074
      %v3076 = vpop.f32.mrb[0].mxu0
      %v3077 = vpop.f32.mrb[0].mxu0
      %v3078 = vadd.f32 0.0, %v3077
      %v3079 = vpop.f32.mrb[0].mxu0
      %3080 = vmatprep.mubr.bf16.mxu0 0
      %3081 = vmatmul.mubr.bf16.gmra.mrb[0].mxu0 %v2988
      %v3082 = vpop.f32.mrb[0].mxu0
      %v3083 = vadd.f32 0.0, %v3082
      %v3084 = vpop.f32.mrb[0].mxu0
      %v3085 = vpop.f32.mrb[0].mxu0
      %v3086 = vadd.f32 0.0, %v3085
      %v3087 = vpop.f32.mrb[0].mxu0
      %3088 = vmatprep.mubr.bf16.mxu0 0
      %3089 = vmatmul.mubr.bf16.gmra.mrb[0].mxu0 %v2991
      %v3090 = vpop.f32.mrb[0].mxu0
      %v3091 = vadd.f32 0.0, %v3090
      %v3092 = vpop.f32.mrb[0].mxu0
      %v3093 = vpop.f32.mrb[0].mxu0
      %v3094 = vadd.f32 0.0, %v3093
      %v3095 = vpop.f32.mrb[0].mxu0
      %3096 = vmatprep.mubr.bf16.mxu0 0
      %3097 = vmatmul.mubr.bf16.gmra.mrb[0].mxu0 %v2994
      %v3098 = vpop.f32.mrb[0].mxu0
      %v3099 = vadd.f32 0.0, %v3098
      %v3100 = vpop.f32.mrb[0].mxu0
      %v3101 = vpop.f32.mrb[0].mxu0
      %v3102 = vadd.f32 0.0, %v3101
      %v3103 = vpop.f32.mrb[0].mxu0
      %3104 = vmatprep.mubr.bf16.mxu0 0
      %3105 = vmatmul.mubr.bf16.gmra.mrb[0].mxu0 %v2997
      %v3106 = vpop.f32.mrb[0].mxu0
      %v3107 = vadd.f32 0.0, %v3106
      %v3108 = vpop.f32.mrb[0].mxu0
      %v3109 = vpop.f32.mrb[0].mxu0
      %v3110 = vadd.f32 0.0, %v3109
      %v3111 = vpop.f32.mrb[0].mxu0
      %3112 = vmatprep.mubr.bf16.mxu0 0
      %3113 = vmatmul.mubr.bf16.gmra.mrb[0].mxu0 %v3000
      %v3114 = vpop.f32.mrb[0].mxu0
      %v3115 = vadd.f32 0.0, %v3114
      %v3116 = vpop.f32.mrb[0].mxu0
      %v3117 = vpop.f32.mrb[0].mxu0
      %v3118 = vadd.f32 0.0, %v3117
      %v3119 = vpop.f32.mrb[0].mxu0
      %3120 = vmatprep.mubr.bf16.mxu0 0
      %3121 = vmatmul.mubr.bf16.gmra.mrb[0].mxu0 %v3003
      %v3122 = vpop.f32.mrb[0].mxu0
      %v3123 = vadd.f32 0.0, %v3122
      %v3124 = vpop.f32.mrb[0].mxu0
      %v3125 = vpop.f32.mrb[0].mxu0
      %v3126 = vadd.f32 0.0, %v3125
      %v3127 = vpop.f32.mrb[0].mxu0
      %3128 = vmatprep.mubr.bf16.mxu0 0
      %3129 = vmatmul.mubr.bf16.gmra.mrb[0].mxu0 %v3006
      %v3130 = vpop.f32.mrb[0].mxu0
      %v3131 = vadd.f32 0.0, %v3130
      %v3132 = vpop.f32.mrb[0].mxu0
      %v3133 = vpop.f32.mrb[0].mxu0
      %v3134 = vadd.f32 0.0, %v3133
      %v3135 = vpop.f32.mrb[0].mxu0
      %3136 = vmatprep.mubr.bf16.mxu0 0
      %3137 = vmatmul.mubr.bf16.gmra.mrb[0].mxu0 %v3009
      %v3138 = vpop.f32.mrb[0].mxu0
      %v3139 = vadd.f32 0.0, %v3138
      %v3140 = vpop.f32.mrb[0].mxu0
      %v3141 = vpop.f32.mrb[0].mxu0
      %v3142 = vadd.f32 0.0, %v3141
      %v3143 = vpop.f32.mrb[0].mxu0
      %3144 = vmatprep.mubr.bf16.mxu0 0
      %3145 = vmatmul.mubr.bf16.gmra.mrb[0].mxu0 %v3012
      %v3146 = vpop.f32.mrb[0].mxu0
      %v3147 = vadd.f32 0.0, %v3146
      %v3148 = vpop.f32.mrb[0].mxu0
      %v3149 = vpop.f32.mrb[0].mxu0
      %v3150 = vadd.f32 0.0, %v3149
      %v3151 = vpop.f32.mrb[0].mxu0
      %3152 = vmatprep.mubr.bf16.mxu0 0
      %3153 = vmatmul.mubr.bf16.gmra.mrb[0].mxu0 %v3015
      %v3154 = vpop.f32.mrb[0].mxu0
      %v3155 = vadd.f32 0.0, %v3154
      %v3156 = vpop.f32.mrb[0].mxu0
      %v3157 = vpop.f32.mrb[0].mxu0
      %v3158 = vadd.f32 0.0, %v3157
      %v3159 = vpop.f32.mrb[0].mxu0
      %3160 = vmatprep.mubr.bf16.mxu0 0
      %3161 = vmatmul.mubr.bf16.gmra.mrb[0].mxu0 %v3018
      %v3162 = vpop.f32.mrb[0].mxu0
      %v3163 = vadd.f32 0.0, %v3162
      %v3164 = vpop.f32.mrb[0].mxu0
      %v3165 = vpop.f32.mrb[0].mxu0
      %v3166 = vadd.f32 0.0, %v3165
      %v3167 = vpop.f32.mrb[0].mxu0
      %3168 = vmatprep.mubr.bf16.mxu0 0
      %3169 = vmatmul.mubr.bf16.gmra.mrb[0].mxu0 %v3021
      %v3170 = vpop.f32.mrb[0].mxu0
      %v3171 = vadd.f32 0.0, %v3170
      %v3172 = vpop.f32.mrb[0].mxu0
      %v3173 = vpop.f32.mrb[0].mxu0
      %v3174 = vadd.f32 0.0, %v3173
      %v3175 = vpop.f32.mrb[0].mxu0
      %3176 = vmatprep.mubr.bf16.mxu0 0
      %3177 = vmatmul.mubr.bf16.gmra.mrb[0].mxu0 %v3024
      %v3178 = vpop.f32.mrb[0].mxu0
      %v3179 = vadd.f32 0.0, %v3178
      %v3180 = vpop.f32.mrb[0].mxu0
      %v3181 = vpop.f32.mrb[0].mxu0
      %v3182 = vadd.f32 0.0, %v3181
      %v3183 = vpop.f32.mrb[0].mxu0
      %3184 = vmatprep.mubr.bf16.mxu0 0
      %3185 = vmatmul.mubr.bf16.gmra.mrb[0].mxu0 %v3027
      %v3186 = vpop.f32.mrb[0].mxu0
      %v3187 = vadd.f32 0.0, %v3186
      %v3188 = vpop.f32.mrb[0].mxu0
      %v3189 = vpop.f32.mrb[0].mxu0
      %v3190 = vadd.f32 0.0, %v3189
      %v3191 = vpop.f32.mrb[0].mxu0
      %3192 = vdwg.mxu0
      %v3193 = vadd.f32 %v2723, %v3067
      %v3194 = vadd.f32 %v2724, %v3070
      %v3195 = vadd.f32 %v2725, %v3075
      %v3196 = vadd.f32 %v2726, %v3078
      %v3197 = vadd.f32 %v2727, %v3083
      %v3198 = vadd.f32 %v2728, %v3086
      %v3199 = vadd.f32 %v2729, %v3091
      %v3200 = vadd.f32 %v2730, %v3094
      %v3201 = vadd.f32 %v2731, %v3099
      %v3202 = vadd.f32 %v2732, %v3102
      %v3203 = vadd.f32 %v2733, %v3107
      %v3204 = vadd.f32 %v2734, %v3110
      %v3205 = vadd.f32 %v2735, %v3115
      %v3206 = vadd.f32 %v2736, %v3118
      %v3207 = vadd.f32 %v2737, %v3123
      %v3208 = vadd.f32 %v2738, %v3126
      %v3209 = vadd.f32 %v2739, %v3131
      %v3210 = vadd.f32 %v2740, %v3134
      %v3211 = vadd.f32 %v2741, %v3139
      %v3212 = vadd.f32 %v2742, %v3142
      %v3213 = vadd.f32 %v2743, %v3147
      %v3214 = vadd.f32 %v2744, %v3150
      %v3215 = vadd.f32 %v2745, %v3155
      %v3216 = vadd.f32 %v2746, %v3158
      %v3217 = vadd.f32 %v2747, %v3163
      %v3218 = vadd.f32 %v2748, %v3166
      %v3219 = vadd.f32 %v2749, %v3171
      %v3220 = vadd.f32 %v2750, %v3174
      %v3221 = vadd.f32 %v2751, %v3179
      %v3222 = vadd.f32 %v2752, %v3182
      %v3223 = vadd.f32 %v2753, %v3187
      %v3224 = vadd.f32 %v2754, %v3190
      %s3225 = scalar_lea.vmem %s205, 24
      %v3226 = vld [vmem:[%s3225] sm:$0xf]
      %v3227 = vld [vmem:[%s3225 + $0x4] sm:$0xf]
      %v3228 = vld [vmem:[%s3225 + $0xc] sm:$0xf]
      %v3229 = vld [vmem:[%s3225 + $0x10] sm:$0xf]
      %v3230 = vld [vmem:[%s3225 + $0x18] sm:$0xf]
      %v3231 = vld [vmem:[%s3225 + $0x1c] sm:$0xf]
      %v3232 = vld [vmem:[%s3225 + $0x24] sm:$0xf]
      %v3233 = vld [vmem:[%s3225 + $0x28] sm:$0xf]
      %v3234 = vld [vmem:[%s3225 + $0x30] sm:$0xf]
      %v3235 = vld [vmem:[%s3225 + $0x34] sm:$0xf]
      %v3236 = vld [vmem:[%s3225 + $0x3c] sm:$0xf]
      %v3237 = vld [vmem:[%s3225 + $0x40] sm:$0xf]
      %v3238 = vld [vmem:[%s3225 + $0x48] sm:$0xf]
      %v3239 = vld [vmem:[%s3225 + $0x4c] sm:$0xf]
      %v3240 = vld [vmem:[%s3225 + $0x54] sm:$0xf]
      %v3241 = vld [vmem:[%s3225 + $0x58] sm:$0xf]
      %v3242 = vld [vmem:[%s3225 + $0x60] sm:$0xf]
      %v3243 = vld [vmem:[%s3225 + $0x64] sm:$0xf]
      %v3244 = vld [vmem:[%s3225 + $0x6c] sm:$0xf]
      %v3245 = vld [vmem:[%s3225 + $0x70] sm:$0xf]
      %v3246 = vld [vmem:[%s3225 + $0x78] sm:$0xf]
      %v3247 = vld [vmem:[%s3225 + $0x7c] sm:$0xf]
      %v3248 = vld [vmem:[%s3225 + $0x84] sm:$0xf]
      %v3249 = vld [vmem:[%s3225 + $0x88] sm:$0xf]
      %v3250 = vld [vmem:[%s3225 + $0x90] sm:$0xf]
      %v3251 = vld [vmem:[%s3225 + $0x94] sm:$0xf]
      %v3252 = vld [vmem:[%s3225 + $0x9c] sm:$0xf]
      %v3253 = vld [vmem:[%s3225 + $0xa0] sm:$0xf]
      %v3254 = vld [vmem:[%s3225 + $0xa8] sm:$0xf]
      %v3255 = vld [vmem:[%s3225 + $0xac] sm:$0xf]
      %v3256 = vld [vmem:[%s3225 + $0xb4] sm:$0xf]
      %v3257 = vld [vmem:[%s3225 + $0xb8] sm:$0xf]
      %s3258 = scalar_lea.vmem %s1, 24
      %v3259 = vld [vmem:[%s3258] sm:$0xf]
      %v3292 = vunpack.c.l.b16 %v3226
      %v3293 = vunpack.c.l.b16 %v3227
      %v3294 = vunpack.c.l.b16 %v3228
      %v3295 = vunpack.c.l.b16 %v3229
      %v3296 = vunpack.c.l.b16 %v3230
      %v3297 = vunpack.c.l.b16 %v3231
      %v3298 = vunpack.c.l.b16 %v3232
      %v3299 = vunpack.c.l.b16 %v3233
      %v3300 = vunpack.c.l.b16 %v3234
      %v3301 = vunpack.c.l.b16 %v3235
      %v3302 = vunpack.c.l.b16 %v3236
      %v3303 = vunpack.c.l.b16 %v3237
      %v3304 = vunpack.c.l.b16 %v3238
      %v3305 = vunpack.c.l.b16 %v3239
      %v3306 = vunpack.c.l.b16 %v3240
      %v3307 = vunpack.c.l.b16 %v3241
      %v3308 = vunpack.c.l.b16 %v3242
      %v3309 = vunpack.c.l.b16 %v3243
      %v3310 = vunpack.c.l.b16 %v3244
      %v3311 = vunpack.c.l.b16 %v3245
      %v3312 = vunpack.c.l.b16 %v3246
      %v3313 = vunpack.c.l.b16 %v3247
      %v3314 = vunpack.c.l.b16 %v3248
      %v3315 = vunpack.c.l.b16 %v3249
      %v3316 = vunpack.c.l.b16 %v3250
      %v3317 = vunpack.c.l.b16 %v3251
      %v3318 = vunpack.c.l.b16 %v3252
      %v3319 = vunpack.c.l.b16 %v3253
      %v3320 = vunpack.c.l.b16 %v3254
      %v3321 = vunpack.c.l.b16 %v3255
      %v3322 = vunpack.c.l.b16 %v3256
      %v3323 = vunpack.c.l.b16 %v3257
      %v3324 = vpack.c.b16 %v3293, %v3292
      %v3325 = vpack.c.b16 %v3295, %v3294
      %v3326 = vpack.c.b16 %v3297, %v3296
      %v3327 = vpack.c.b16 %v3299, %v3298
      %v3328 = vpack.c.b16 %v3301, %v3300
      %v3329 = vpack.c.b16 %v3303, %v3302
      %v3330 = vpack.c.b16 %v3305, %v3304
      %v3331 = vpack.c.b16 %v3307, %v3306
      %v3332 = vpack.c.b16 %v3309, %v3308
      %v3333 = vpack.c.b16 %v3311, %v3310
      %v3334 = vpack.c.b16 %v3313, %v3312
      %v3335 = vpack.c.b16 %v3315, %v3314
      %v3336 = vpack.c.b16 %v3317, %v3316
      %v3337 = vpack.c.b16 %v3319, %v3318
      %v3338 = vpack.c.b16 %v3321, %v3320
      %v3339 = vpack.c.b16 %v3323, %v3322
      %v3341 = vsel %vm707, %v3324, 0
      %v3344 = vsel %vm707, %v3325, 0
      %v3347 = vsel %vm707, %v3326, 0
      %v3350 = vsel %vm707, %v3327, 0
      %v3353 = vsel %vm707, %v3328, 0
      %v3356 = vsel %vm707, %v3329, 0
      %v3359 = vsel %vm707, %v3330, 0
      %v3362 = vsel %vm707, %v3331, 0
      %v3365 = vsel %vm707, %v3332, 0
      %v3368 = vsel %vm707, %v3333, 0
      %v3371 = vsel %vm707, %v3334, 0
      %v3374 = vsel %vm707, %v3335, 0
      %v3377 = vsel %vm707, %v3336, 0
      %v3380 = vsel %vm707, %v3337, 0
      %v3383 = vsel %vm707, %v3338, 0
      %v3386 = vsel %vm707, %v3339, 0
      %v3389 = vsel %vm756, %v3259, 0
      %3391 = vmatprep.subr.bf16.mxu0 0
      %3392 = vmatpush1.bf16.msra.mxu0 %v3389
      %3393 = vmatprep.subr.bf16.mxu0 0
      %3394 = vmatpush1.bf16.msra.mxu0 0
      %3395 = vmatprep.subr.bf16.mxu0 0
      %3396 = vmatpush1.bf16.msra.mxu0 0
      %3397 = vmatprep.subr.bf16.mxu0 0
      %3398 = vmatpush1.bf16.msra.mxu0 0
      %3399 = vmatprep.subr.bf16.mxu0 0
      %3400 = vmatpush1.bf16.msra.mxu0 0
      %3401 = vmatprep.subr.bf16.mxu0 0
      %3402 = vmatpush1.bf16.msra.mxu0 0
      %3403 = vmatprep.subr.bf16.mxu0 0
      %3404 = vmatpush1.bf16.msra.mxu0 0
      %3405 = vmatprep.subr.bf16.mxu0 0
      %3406 = vmatpush1.bf16.msra.mxu0 0
      %3407 = vmatprep.subr.bf16.mxu0 0
      %3408 = vmatpush1.bf16.msra.mxu0 0
      %3409 = vmatprep.subr.bf16.mxu0 0
      %3410 = vmatpush1.bf16.msra.mxu0 0
      %3411 = vmatprep.subr.bf16.mxu0 0
      %3412 = vmatpush1.bf16.msra.mxu0 0
      %3413 = vmatprep.subr.bf16.mxu0 0
      %3414 = vmatpush1.bf16.msra.mxu0 0
      %3415 = vmatprep.subr.bf16.mxu0 0
      %3416 = vmatpush1.bf16.msra.mxu0 0
      %3417 = vmatprep.subr.bf16.mxu0 0
      %3418 = vmatpush1.bf16.msra.mxu0 0
      %3419 = vmatprep.subr.bf16.mxu0 0
      %3420 = vmatpush1.bf16.msra.mxu0 0
      %3421 = vmatprep.subr.bf16.mxu0 0
      %3422 = vmatpush1.bf16.msra.mxu0 0
      %3423 = vmatprep.mubr.bf16.mxu0 0
      %3424 = vmatmul.mubr.bf16.gmra.mrb[0].mxu0 %v3341
      %v3425 = vpop.f32.mrb[0].mxu0
      %v3426 = vadd.f32 0.0, %v3425
      %v3427 = vpop.f32.mrb[0].mxu0
      %v3428 = vpop.f32.mrb[0].mxu0
      %v3429 = vadd.f32 0.0, %v3428
      %v3430 = vpop.f32.mrb[0].mxu0
      %3431 = vmatprep.mubr.bf16.mxu0 0
      %3432 = vmatmul.mubr.bf16.gmra.mrb[0].mxu0 %v3344
      %v3433 = vpop.f32.mrb[0].mxu0
      %v3434 = vadd.f32 0.0, %v3433
      %v3435 = vpop.f32.mrb[0].mxu0
      %v3436 = vpop.f32.mrb[0].mxu0
      %v3437 = vadd.f32 0.0, %v3436
      %v3438 = vpop.f32.mrb[0].mxu0
      %3439 = vmatprep.mubr.bf16.mxu0 0
      %3440 = vmatmul.mubr.bf16.gmra.mrb[0].mxu0 %v3347
      %v3441 = vpop.f32.mrb[0].mxu0
      %v3442 = vadd.f32 0.0, %v3441
      %v3443 = vpop.f32.mrb[0].mxu0
      %v3444 = vpop.f32.mrb[0].mxu0
      %v3445 = vadd.f32 0.0, %v3444
      %v3446 = vpop.f32.mrb[0].mxu0
      %3447 = vmatprep.mubr.bf16.mxu0 0
      %3448 = vmatmul.mubr.bf16.gmra.mrb[0].mxu0 %v3350
      %v3449 = vpop.f32.mrb[0].mxu0
      %v3450 = vadd.f32 0.0, %v3449
      %v3451 = vpop.f32.mrb[0].mxu0
      %v3452 = vpop.f32.mrb[0].mxu0
      %v3453 = vadd.f32 0.0, %v3452
      %v3454 = vpop.f32.mrb[0].mxu0
      %3455 = vmatprep.mubr.bf16.mxu0 0
      %3456 = vmatmul.mubr.bf16.gmra.mrb[0].mxu0 %v3353
      %v3457 = vpop.f32.mrb[0].mxu0
      %v3458 = vadd.f32 0.0, %v3457
      %v3459 = vpop.f32.mrb[0].mxu0
      %v3460 = vpop.f32.mrb[0].mxu0
      %v3461 = vadd.f32 0.0, %v3460
      %v3462 = vpop.f32.mrb[0].mxu0
      %3463 = vmatprep.mubr.bf16.mxu0 0
      %3464 = vmatmul.mubr.bf16.gmra.mrb[0].mxu0 %v3356
      %v3465 = vpop.f32.mrb[0].mxu0
      %v3466 = vadd.f32 0.0, %v3465
      %v3467 = vpop.f32.mrb[0].mxu0
      %v3468 = vpop.f32.mrb[0].mxu0
      %v3469 = vadd.f32 0.0, %v3468
      %v3470 = vpop.f32.mrb[0].mxu0
      %3471 = vmatprep.mubr.bf16.mxu0 0
      %3472 = vmatmul.mubr.bf16.gmra.mrb[0].mxu0 %v3359
      %v3473 = vpop.f32.mrb[0].mxu0
      %v3474 = vadd.f32 0.0, %v3473
      %v3475 = vpop.f32.mrb[0].mxu0
      %v3476 = vpop.f32.mrb[0].mxu0
      %v3477 = vadd.f32 0.0, %v3476
      %v3478 = vpop.f32.mrb[0].mxu0
      %3479 = vmatprep.mubr.bf16.mxu0 0
      %3480 = vmatmul.mubr.bf16.gmra.mrb[0].mxu0 %v3362
      %v3481 = vpop.f32.mrb[0].mxu0
      %v3482 = vadd.f32 0.0, %v3481
      %v3483 = vpop.f32.mrb[0].mxu0
      %v3484 = vpop.f32.mrb[0].mxu0
      %v3485 = vadd.f32 0.0, %v3484
      %v3486 = vpop.f32.mrb[0].mxu0
      %3487 = vmatprep.mubr.bf16.mxu0 0
      %3488 = vmatmul.mubr.bf16.gmra.mrb[0].mxu0 %v3365
      %v3489 = vpop.f32.mrb[0].mxu0
      %v3490 = vadd.f32 0.0, %v3489
      %v3491 = vpop.f32.mrb[0].mxu0
      %v3492 = vpop.f32.mrb[0].mxu0
      %v3493 = vadd.f32 0.0, %v3492
      %v3494 = vpop.f32.mrb[0].mxu0
      %3495 = vmatprep.mubr.bf16.mxu0 0
      %3496 = vmatmul.mubr.bf16.gmra.mrb[0].mxu0 %v3368
      %v3497 = vpop.f32.mrb[0].mxu0
      %v3498 = vadd.f32 0.0, %v3497
      %v3499 = vpop.f32.mrb[0].mxu0
      %v3500 = vpop.f32.mrb[0].mxu0
      %v3501 = vadd.f32 0.0, %v3500
      %v3502 = vpop.f32.mrb[0].mxu0
      %3503 = vmatprep.mubr.bf16.mxu0 0
      %3504 = vmatmul.mubr.bf16.gmra.mrb[0].mxu0 %v3371
      %v3505 = vpop.f32.mrb[0].mxu0
      %v3506 = vadd.f32 0.0, %v3505
      %v3507 = vpop.f32.mrb[0].mxu0
      %v3508 = vpop.f32.mrb[0].mxu0
      %v3509 = vadd.f32 0.0, %v3508
      %v3510 = vpop.f32.mrb[0].mxu0
      %3511 = vmatprep.mubr.bf16.mxu0 0
      %3512 = vmatmul.mubr.bf16.gmra.mrb[0].mxu0 %v3374
      %v3513 = vpop.f32.mrb[0].mxu0
      %v3514 = vadd.f32 0.0, %v3513
      %v3515 = vpop.f32.mrb[0].mxu0
      %v3516 = vpop.f32.mrb[0].mxu0
      %v3517 = vadd.f32 0.0, %v3516
      %v3518 = vpop.f32.mrb[0].mxu0
      %3519 = vmatprep.mubr.bf16.mxu0 0
      %3520 = vmatmul.mubr.bf16.gmra.mrb[0].mxu0 %v3377
      %v3521 = vpop.f32.mrb[0].mxu0
      %v3522 = vadd.f32 0.0, %v3521
      %v3523 = vpop.f32.mrb[0].mxu0
      %v3524 = vpop.f32.mrb[0].mxu0
      %v3525 = vadd.f32 0.0, %v3524
      %v3526 = vpop.f32.mrb[0].mxu0
      %3527 = vmatprep.mubr.bf16.mxu0 0
      %3528 = vmatmul.mubr.bf16.gmra.mrb[0].mxu0 %v3380
      %v3529 = vpop.f32.mrb[0].mxu0
      %v3530 = vadd.f32 0.0, %v3529
      %v3531 = vpop.f32.mrb[0].mxu0
      %v3532 = vpop.f32.mrb[0].mxu0
      %v3533 = vadd.f32 0.0, %v3532
      %v3534 = vpop.f32.mrb[0].mxu0
      %3535 = vmatprep.mubr.bf16.mxu0 0
      %3536 = vmatmul.mubr.bf16.gmra.mrb[0].mxu0 %v3383
      %v3537 = vpop.f32.mrb[0].mxu0
      %v3538 = vadd.f32 0.0, %v3537
      %v3539 = vpop.f32.mrb[0].mxu0
      %v3540 = vpop.f32.mrb[0].mxu0
      %v3541 = vadd.f32 0.0, %v3540
      %v3542 = vpop.f32.mrb[0].mxu0
      %3543 = vmatprep.mubr.bf16.mxu0 0
      %3544 = vmatmul.mubr.bf16.gmra.mrb[0].mxu0 %v3386
      %v3545 = vpop.f32.mrb[0].mxu0
      %v3546 = vadd.f32 0.0, %v3545
      %v3547 = vpop.f32.mrb[0].mxu0
      %v3548 = vpop.f32.mrb[0].mxu0
      %v3549 = vadd.f32 0.0, %v3548
      %v3550 = vpop.f32.mrb[0].mxu0
      %3551 = vdwg.mxu0
      %v3552 = vadd.f32 %v3193, %v3426
      %v3553 = vadd.f32 %v3194, %v3429
      %v3554 = vadd.f32 %v3195, %v3434
      %v3555 = vadd.f32 %v3196, %v3437
      %v3556 = vadd.f32 %v3197, %v3442
      %v3557 = vadd.f32 %v3198, %v3445
      %v3558 = vadd.f32 %v3199, %v3450
      %v3559 = vadd.f32 %v3200, %v3453
      %v3560 = vadd.f32 %v3201, %v3458
      %v3561 = vadd.f32 %v3202, %v3461
      %v3562 = vadd.f32 %v3203, %v3466
      %v3563 = vadd.f32 %v3204, %v3469
      %v3564 = vadd.f32 %v3205, %v3474
      %v3565 = vadd.f32 %v3206, %v3477
      %v3566 = vadd.f32 %v3207, %v3482
      %v3567 = vadd.f32 %v3208, %v3485
      %v3568 = vadd.f32 %v3209, %v3490
      %v3569 = vadd.f32 %v3210, %v3493
      %v3570 = vadd.f32 %v3211, %v3498
      %v3571 = vadd.f32 %v3212, %v3501
      %v3572 = vadd.f32 %v3213, %v3506
      %v3573 = vadd.f32 %v3214, %v3509
      %v3574 = vadd.f32 %v3215, %v3514
      %v3575 = vadd.f32 %v3216, %v3517
      %v3576 = vadd.f32 %v3217, %v3522
      %v3577 = vadd.f32 %v3218, %v3525
      %v3578 = vadd.f32 %v3219, %v3530
      %v3579 = vadd.f32 %v3220, %v3533
      %v3580 = vadd.f32 %v3221, %v3538
      %v3581 = vadd.f32 %v3222, %v3541
      %v3582 = vadd.f32 %v3223, %v3546
      %v3583 = vadd.f32 %v3224, %v3549
      %v3584 = vld [vmem:[%s3225] sm:$0xf]
      %v3585 = vld [vmem:[%s3225 + $0x4] sm:$0xf]
      %v3586 = vld [vmem:[%s3225 + $0x8] sm:$0x1]
      %v3587 = vld [vmem:[%s3225 + $0xc] sm:$0xf]
      %v3588 = vld [vmem:[%s3225 + $0x10] sm:$0xf]
      %v3589 = vld [vmem:[%s3225 + $0x14] sm:$0x1]
      %v3590 = vld [vmem:[%s3225 + $0x18] sm:$0xf]
      %v3591 = vld [vmem:[%s3225 + $0x1c] sm:$0xf]
      %v3592 = vld [vmem:[%s3225 + $0x20] sm:$0x1]
      %v3593 = vld [vmem:[%s3225 + $0x24] sm:$0xf]
      %v3594 = vld [vmem:[%s3225 + $0x28] sm:$0xf]
      %v3595 = vld [vmem:[%s3225 + $0x2c] sm:$0x1]
      %v3596 = vld [vmem:[%s3225 + $0x30] sm:$0xf]
      %v3597 = vld [vmem:[%s3225 + $0x34] sm:$0xf]
      %v3598 = vld [vmem:[%s3225 + $0x38] sm:$0x1]
      %v3599 = vld [vmem:[%s3225 + $0x3c] sm:$0xf]
      %v3600 = vld [vmem:[%s3225 + $0x40] sm:$0xf]
      %v3601 = vld [vmem:[%s3225 + $0x44] sm:$0x1]
      %v3602 = vld [vmem:[%s3225 + $0x48] sm:$0xf]
      %v3603 = vld [vmem:[%s3225 + $0x4c] sm:$0xf]
      %v3604 = vld [vmem:[%s3225 + $0x50] sm:$0x1]
      %v3605 = vld [vmem:[%s3225 + $0x54] sm:$0xf]
      %v3606 = vld [vmem:[%s3225 + $0x58] sm:$0xf]
      %v3607 = vld [vmem:[%s3225 + $0x5c] sm:$0x1]
      %v3608 = vld [vmem:[%s3225 + $0x60] sm:$0xf]
      %v3609 = vld [vmem:[%s3225 + $0x64] sm:$0xf]
      %v3610 = vld [vmem:[%s3225 + $0x68] sm:$0x1]
      %v3611 = vld [vmem:[%s3225 + $0x6c] sm:$0xf]
      %v3612 = vld [vmem:[%s3225 + $0x70] sm:$0xf]
      %v3613 = vld [vmem:[%s3225 + $0x74] sm:$0x1]
      %v3614 = vld [vmem:[%s3225 + $0x78] sm:$0xf]
      %v3615 = vld [vmem:[%s3225 + $0x7c] sm:$0xf]
      %v3616 = vld [vmem:[%s3225 + $0x80] sm:$0x1]
      %v3617 = vld [vmem:[%s3225 + $0x84] sm:$0xf]
      %v3618 = vld [vmem:[%s3225 + $0x88] sm:$0xf]
      %v3619 = vld [vmem:[%s3225 + $0x8c] sm:$0x1]
      %v3620 = vld [vmem:[%s3225 + $0x90] sm:$0xf]
      %v3621 = vld [vmem:[%s3225 + $0x94] sm:$0xf]
      %v3622 = vld [vmem:[%s3225 + $0x98] sm:$0x1]
      %v3623 = vld [vmem:[%s3225 + $0x9c] sm:$0xf]
      %v3624 = vld [vmem:[%s3225 + $0xa0] sm:$0xf]
      %v3625 = vld [vmem:[%s3225 + $0xa4] sm:$0x1]
      %v3626 = vld [vmem:[%s3225 + $0xa8] sm:$0xf]
      %v3627 = vld [vmem:[%s3225 + $0xac] sm:$0xf]
      %v3628 = vld [vmem:[%s3225 + $0xb0] sm:$0x1]
      %v3629 = vld [vmem:[%s3225 + $0xb4] sm:$0xf]
      %v3630 = vld [vmem:[%s3225 + $0xb8] sm:$0xf]
      %v3631 = vld [vmem:[%s3225 + $0xbc] sm:$0x1]
      %v3633 = vshrl.u32 %v3584, 16
      %v3635 = vrot.slane %v3633, 4
      %v3636 = vshll.u32 %v3584, 16
      %v3638 = vrot.slane %v3636, 5
      %v3639 = vor.u32 %v3635, %v3638
      %v3640 = vrot.slane %v3639, 4
      %v3642 = vshll.u32 %v3585, 16
      %v3644 = vrot.slane %v3642, 5
      %v3645 = vsel %vm272, %v3640, %v3644
      %v3646 = vshrl.u32 %v3585, 16
      %v3648 = vrot.slane %v3646, 4
      %v3649 = vor.u32 %v3648, %v3644
      %v3650 = vrot.slane %v3649, 4
      %v3652 = vshll.u32 %v3586, 16
      %v3654 = vrot.slane %v3652, 5
      %v3655 = vsel %vm272, %v3650, %v3654
      %v3657 = vshrl.u32 %v3587, 16
      %v3659 = vrot.slane %v3657, 4
      %v3660 = vshll.u32 %v3587, 16
      %v3662 = vrot.slane %v3660, 5
      %v3663 = vor.u32 %v3659, %v3662
      %v3664 = vrot.slane %v3663, 4
      %v3666 = vshll.u32 %v3588, 16
      %v3668 = vrot.slane %v3666, 5
      %v3669 = vsel %vm272, %v3664, %v3668
      %v3670 = vshrl.u32 %v3588, 16
      %v3672 = vrot.slane %v3670, 4
      %v3673 = vor.u32 %v3672, %v3668
      %v3674 = vrot.slane %v3673, 4
      %v3676 = vshll.u32 %v3589, 16
      %v3678 = vrot.slane %v3676, 5
      %v3679 = vsel %vm272, %v3674, %v3678
      %v3681 = vshrl.u32 %v3590, 16
      %v3683 = vrot.slane %v3681, 4
      %v3684 = vshll.u32 %v3590, 16
      %v3686 = vrot.slane %v3684, 5
      %v3687 = vor.u32 %v3683, %v3686
      %v3688 = vrot.slane %v3687, 4
      %v3690 = vshll.u32 %v3591, 16
      %v3692 = vrot.slane %v3690, 5
      %v3693 = vsel %vm272, %v3688, %v3692
      %v3694 = vshrl.u32 %v3591, 16
      %v3696 = vrot.slane %v3694, 4
      %v3697 = vor.u32 %v3696, %v3692
      %v3698 = vrot.slane %v3697, 4
      %v3700 = vshll.u32 %v3592, 16
      %v3702 = vrot.slane %v3700, 5
      %v3703 = vsel %vm272, %v3698, %v3702
      %v3705 = vshrl.u32 %v3593, 16
      %v3707 = vrot.slane %v3705, 4
      %v3708 = vshll.u32 %v3593, 16
      %v3710 = vrot.slane %v3708, 5
      %v3711 = vor.u32 %v3707, %v3710
      %v3712 = vrot.slane %v3711, 4
      %v3714 = vshll.u32 %v3594, 16
      %v3716 = vrot.slane %v3714, 5
      %v3717 = vsel %vm272, %v3712, %v3716
      %v3718 = vshrl.u32 %v3594, 16
      %v3720 = vrot.slane %v3718, 4
      %v3721 = vor.u32 %v3720, %v3716
      %v3722 = vrot.slane %v3721, 4
      %v3724 = vshll.u32 %v3595, 16
      %v3726 = vrot.slane %v3724, 5
      %v3727 = vsel %vm272, %v3722, %v3726
      %v3729 = vshrl.u32 %v3596, 16
      %v3731 = vrot.slane %v3729, 4
      %v3732 = vshll.u32 %v3596, 16
      %v3734 = vrot.slane %v3732, 5
      %v3735 = vor.u32 %v3731, %v3734
      %v3736 = vrot.slane %v3735, 4
      %v3738 = vshll.u32 %v3597, 16
      %v3740 = vrot.slane %v3738, 5
      %v3741 = vsel %vm272, %v3736, %v3740
      %v3742 = vshrl.u32 %v3597, 16
      %v3744 = vrot.slane %v3742, 4
      %v3745 = vor.u32 %v3744, %v3740
      %v3746 = vrot.slane %v3745, 4
      %v3748 = vshll.u32 %v3598, 16
      %v3750 = vrot.slane %v3748, 5
      %v3751 = vsel %vm272, %v3746, %v3750
      %v3753 = vshrl.u32 %v3599, 16
      %v3755 = vrot.slane %v3753, 4
      %v3756 = vshll.u32 %v3599, 16
      %v3758 = vrot.slane %v3756, 5
      %v3759 = vor.u32 %v3755, %v3758
      %v3760 = vrot.slane %v3759, 4
      %v3762 = vshll.u32 %v3600, 16
      %v3764 = vrot.slane %v3762, 5
      %v3765 = vsel %vm272, %v3760, %v3764
      %v3766 = vshrl.u32 %v3600, 16
      %v3768 = vrot.slane %v3766, 4
      %v3769 = vor.u32 %v3768, %v3764
      %v3770 = vrot.slane %v3769, 4
      %v3772 = vshll.u32 %v3601, 16
      %v3774 = vrot.slane %v3772, 5
      %v3775 = vsel %vm272, %v3770, %v3774
      %v3777 = vshrl.u32 %v3602, 16
      %v3779 = vrot.slane %v3777, 4
      %v3780 = vshll.u32 %v3602, 16
      %v3782 = vrot.slane %v3780, 5
      %v3783 = vor.u32 %v3779, %v3782
      %v3784 = vrot.slane %v3783, 4
      %v3786 = vshll.u32 %v3603, 16
      %v3788 = vrot.slane %v3786, 5
      %v3789 = vsel %vm272, %v3784, %v3788
      %v3790 = vshrl.u32 %v3603, 16
      %v3792 = vrot.slane %v3790, 4
      %v3793 = vor.u32 %v3792, %v3788
      %v3794 = vrot.slane %v3793, 4
      %v3796 = vshll.u32 %v3604, 16
      %v3798 = vrot.slane %v3796, 5
      %v3799 = vsel %vm272, %v3794, %v3798
      %v3801 = vshrl.u32 %v3605, 16
      %v3803 = vrot.slane %v3801, 4
      %v3804 = vshll.u32 %v3605, 16
      %v3806 = vrot.slane %v3804, 5
      %v3807 = vor.u32 %v3803, %v3806
      %v3808 = vrot.slane %v3807, 4
      %v3810 = vshll.u32 %v3606, 16
      %v3812 = vrot.slane %v3810, 5
      %v3813 = vsel %vm272, %v3808, %v3812
      %v3814 = vshrl.u32 %v3606, 16
      %v3816 = vrot.slane %v3814, 4
      %v3817 = vor.u32 %v3816, %v3812
      %v3818 = vrot.slane %v3817, 4
      %v3820 = vshll.u32 %v3607, 16
      %v3822 = vrot.slane %v3820, 5
      %v3823 = vsel %vm272, %v3818, %v3822
      %v3825 = vshrl.u32 %v3608, 16
      %v3827 = vrot.slane %v3825, 4
      %v3828 = vshll.u32 %v3608, 16
      %v3830 = vrot.slane %v3828, 5
      %v3831 = vor.u32 %v3827, %v3830
      %v3832 = vrot.slane %v3831, 4
      %v3834 = vshll.u32 %v3609, 16
      %v3836 = vrot.slane %v3834, 5
      %v3837 = vsel %vm272, %v3832, %v3836
      %v3838 = vshrl.u32 %v3609, 16
      %v3840 = vrot.slane %v3838, 4
      %v3841 = vor.u32 %v3840, %v3836
      %v3842 = vrot.slane %v3841, 4
      %v3844 = vshll.u32 %v3610, 16
      %v3846 = vrot.slane %v3844, 5
      %v3847 = vsel %vm272, %v3842, %v3846
      %v3849 = vshrl.u32 %v3611, 16
      %v3851 = vrot.slane %v3849, 4
      %v3852 = vshll.u32 %v3611, 16
      %v3854 = vrot.slane %v3852, 5
      %v3855 = vor.u32 %v3851, %v3854
      %v3856 = vrot.slane %v3855, 4
      %v3858 = vshll.u32 %v3612, 16
      %v3860 = vrot.slane %v3858, 5
      %v3861 = vsel %vm272, %v3856, %v3860
      %v3862 = vshrl.u32 %v3612, 16
      %v3864 = vrot.slane %v3862, 4
      %v3865 = vor.u32 %v3864, %v3860
      %v3866 = vrot.slane %v3865, 4
      %v3868 = vshll.u32 %v3613, 16
      %v3870 = vrot.slane %v3868, 5
      %v3871 = vsel %vm272, %v3866, %v3870
      %v3873 = vshrl.u32 %v3614, 16
      %v3875 = vrot.slane %v3873, 4
      %v3876 = vshll.u32 %v3614, 16
      %v3878 = vrot.slane %v3876, 5
      %v3879 = vor.u32 %v3875, %v3878
      %v3880 = vrot.slane %v3879, 4
      %v3882 = vshll.u32 %v3615, 16
      %v3884 = vrot.slane %v3882, 5
      %v3885 = vsel %vm272, %v3880, %v3884
      %v3886 = vshrl.u32 %v3615, 16
      %v3888 = vrot.slane %v3886, 4
      %v3889 = vor.u32 %v3888, %v3884
      %v3890 = vrot.slane %v3889, 4
      %v3892 = vshll.u32 %v3616, 16
      %v3894 = vrot.slane %v3892, 5
      %v3895 = vsel %vm272, %v3890, %v3894
      %v3897 = vshrl.u32 %v3617, 16
      %v3899 = vrot.slane %v3897, 4
      %v3900 = vshll.u32 %v3617, 16
      %v3902 = vrot.slane %v3900, 5
      %v3903 = vor.u32 %v3899, %v3902
      %v3904 = vrot.slane %v3903, 4
      %v3906 = vshll.u32 %v3618, 16
      %v3908 = vrot.slane %v3906, 5
      %v3909 = vsel %vm272, %v3904, %v3908
      %v3910 = vshrl.u32 %v3618, 16
      %v3912 = vrot.slane %v3910, 4
      %v3913 = vor.u32 %v3912, %v3908
      %v3914 = vrot.slane %v3913, 4
      %v3916 = vshll.u32 %v3619, 16
      %v3918 = vrot.slane %v3916, 5
      %v3919 = vsel %vm272, %v3914, %v3918
      %v3921 = vshrl.u32 %v3620, 16
      %v3923 = vrot.slane %v3921, 4
      %v3924 = vshll.u32 %v3620, 16
      %v3926 = vrot.slane %v3924, 5
      %v3927 = vor.u32 %v3923, %v3926
      %v3928 = vrot.slane %v3927, 4
      %v3930 = vshll.u32 %v3621, 16
      %v3932 = vrot.slane %v3930, 5
      %v3933 = vsel %vm272, %v3928, %v3932
      %v3934 = vshrl.u32 %v3621, 16
      %v3936 = vrot.slane %v3934, 4
      %v3937 = vor.u32 %v3936, %v3932
      %v3938 = vrot.slane %v3937, 4
      %v3940 = vshll.u32 %v3622, 16
      %v3942 = vrot.slane %v3940, 5
      %v3943 = vsel %vm272, %v3938, %v3942
      %v3945 = vshrl.u32 %v3623, 16
      %v3947 = vrot.slane %v3945, 4
      %v3948 = vshll.u32 %v3623, 16
      %v3950 = vrot.slane %v3948, 5
      %v3951 = vor.u32 %v3947, %v3950
      %v3952 = vrot.slane %v3951, 4
      %v3954 = vshll.u32 %v3624, 16
      %v3956 = vrot.slane %v3954, 5
      %v3957 = vsel %vm272, %v3952, %v3956
      %v3958 = vshrl.u32 %v3624, 16
      %v3960 = vrot.slane %v3958, 4
      %v3961 = vor.u32 %v3960, %v3956
      %v3962 = vrot.slane %v3961, 4
      %v3964 = vshll.u32 %v3625, 16
      %v3966 = vrot.slane %v3964, 5
      %v3967 = vsel %vm272, %v3962, %v3966
      %v3969 = vshrl.u32 %v3626, 16
      %v3971 = vrot.slane %v3969, 4
      %v3972 = vshll.u32 %v3626, 16
      %v3974 = vrot.slane %v3972, 5
      %v3975 = vor.u32 %v3971, %v3974
      %v3976 = vrot.slane %v3975, 4
      %v3978 = vshll.u32 %v3627, 16
      %v3980 = vrot.slane %v3978, 5
      %v3981 = vsel %vm272, %v3976, %v3980
      %v3982 = vshrl.u32 %v3627, 16
      %v3984 = vrot.slane %v3982, 4
      %v3985 = vor.u32 %v3984, %v3980
      %v3986 = vrot.slane %v3985, 4
      %v3988 = vshll.u32 %v3628, 16
      %v3990 = vrot.slane %v3988, 5
      %v3991 = vsel %vm272, %v3986, %v3990
      %v3993 = vshrl.u32 %v3629, 16
      %v3995 = vrot.slane %v3993, 4
      %v3996 = vshll.u32 %v3629, 16
      %v3998 = vrot.slane %v3996, 5
      %v3999 = vor.u32 %v3995, %v3998
      %v4000 = vrot.slane %v3999, 4
      %v4002 = vshll.u32 %v3630, 16
      %v4004 = vrot.slane %v4002, 5
      %v4005 = vsel %vm272, %v4000, %v4004
      %v4006 = vshrl.u32 %v3630, 16
      %v4008 = vrot.slane %v4006, 4
      %v4009 = vor.u32 %v4008, %v4004
      %v4010 = vrot.slane %v4009, 4
      %v4012 = vshll.u32 %v3631, 16
      %v4014 = vrot.slane %v4012, 5
      %v4015 = vsel %vm272, %v4010, %v4014
      %s4016 = scalar_lea.vmem %s1, 28
      %v4017 = vld [vmem:[%s4016] sm:$0xf]
      %v4018 = vunpack.c.l.b16 %v3645
      %v4019 = vunpack.c.l.b16 %v3655
      %v4020 = vunpack.c.l.b16 %v3669
      %v4021 = vunpack.c.l.b16 %v3679
      %v4022 = vunpack.c.l.b16 %v3693
      %v4023 = vunpack.c.l.b16 %v3703
      %v4024 = vunpack.c.l.b16 %v3717
      %v4025 = vunpack.c.l.b16 %v3727
      %v4026 = vunpack.c.l.b16 %v3741
      %v4027 = vunpack.c.l.b16 %v3751
      %v4028 = vunpack.c.l.b16 %v3765
      %v4029 = vunpack.c.l.b16 %v3775
      %v4030 = vunpack.c.l.b16 %v3789
      %v4031 = vunpack.c.l.b16 %v3799
      %v4032 = vunpack.c.l.b16 %v3813
      %v4033 = vunpack.c.l.b16 %v3823
      %v4034 = vunpack.c.l.b16 %v3837
      %v4035 = vunpack.c.l.b16 %v3847
      %v4036 = vunpack.c.l.b16 %v3861
      %v4037 = vunpack.c.l.b16 %v3871
      %v4038 = vunpack.c.l.b16 %v3885
      %v4039 = vunpack.c.l.b16 %v3895
      %v4040 = vunpack.c.l.b16 %v3909
      %v4041 = vunpack.c.l.b16 %v3919
      %v4042 = vunpack.c.l.b16 %v3933
      %v4043 = vunpack.c.l.b16 %v3943
      %v4044 = vunpack.c.l.b16 %v3957
      %v4045 = vunpack.c.l.b16 %v3967
      %v4046 = vunpack.c.l.b16 %v3981
      %v4047 = vunpack.c.l.b16 %v3991
      %v4048 = vunpack.c.l.b16 %v4005
      %v4049 = vunpack.c.l.b16 %v4015
      %v4050 = vpack.c.b16 %v4019, %v4018
      %v4051 = vpack.c.b16 %v4021, %v4020
      %v4052 = vpack.c.b16 %v4023, %v4022
      %v4053 = vpack.c.b16 %v4025, %v4024
      %v4054 = vpack.c.b16 %v4027, %v4026
      %v4055 = vpack.c.b16 %v4029, %v4028
      %v4056 = vpack.c.b16 %v4031, %v4030
      %v4057 = vpack.c.b16 %v4033, %v4032
      %v4058 = vpack.c.b16 %v4035, %v4034
      %v4059 = vpack.c.b16 %v4037, %v4036
      %v4060 = vpack.c.b16 %v4039, %v4038
      %v4061 = vpack.c.b16 %v4041, %v4040
      %v4062 = vpack.c.b16 %v4043, %v4042
      %v4063 = vpack.c.b16 %v4045, %v4044
      %v4064 = vpack.c.b16 %v4047, %v4046
      %v4065 = vpack.c.b16 %v4049, %v4048
      %v4067 = vsel %vm707, %v4050, 0
      %v4070 = vsel %vm707, %v4051, 0
      %v4073 = vsel %vm707, %v4052, 0
      %v4076 = vsel %vm707, %v4053, 0
      %v4079 = vsel %vm707, %v4054, 0
      %v4082 = vsel %vm707, %v4055, 0
      %v4085 = vsel %vm707, %v4056, 0
      %v4088 = vsel %vm707, %v4057, 0
      %v4091 = vsel %vm707, %v4058, 0
      %v4094 = vsel %vm707, %v4059, 0
      %v4097 = vsel %vm707, %v4060, 0
      %v4100 = vsel %vm707, %v4061, 0
      %v4103 = vsel %vm707, %v4062, 0
      %v4106 = vsel %vm707, %v4063, 0
      %v4109 = vsel %vm707, %v4064, 0
      %v4112 = vsel %vm707, %v4065, 0
      %v4115 = vsel %vm756, %v4017, 0
      %4117 = vmatprep.subr.bf16.mxu0 0
      %4118 = vmatpush1.bf16.msra.mxu0 %v4115
      %4119 = vmatprep.subr.bf16.mxu0 0
      %4120 = vmatpush1.bf16.msra.mxu0 0
      %4121 = vmatprep.subr.bf16.mxu0 0
      %4122 = vmatpush1.bf16.msra.mxu0 0
      %4123 = vmatprep.subr.bf16.mxu0 0
      %4124 = vmatpush1.bf16.msra.mxu0 0
      %4125 = vmatprep.subr.bf16.mxu0 0
      %4126 = vmatpush1.bf16.msra.mxu0 0
      %4127 = vmatprep.subr.bf16.mxu0 0
      %4128 = vmatpush1.bf16.msra.mxu0 0
      %4129 = vmatprep.subr.bf16.mxu0 0
      %4130 = vmatpush1.bf16.msra.mxu0 0
      %4131 = vmatprep.subr.bf16.mxu0 0
      %4132 = vmatpush1.bf16.msra.mxu0 0
      %4133 = vmatprep.subr.bf16.mxu0 0
      %4134 = vmatpush1.bf16.msra.mxu0 0
      %4135 = vmatprep.subr.bf16.mxu0 0
      %4136 = vmatpush1.bf16.msra.mxu0 0
      %4137 = vmatprep.subr.bf16.mxu0 0
      %4138 = vmatpush1.bf16.msra.mxu0 0
      %4139 = vmatprep.subr.bf16.mxu0 0
      %4140 = vmatpush1.bf16.msra.mxu0 0
      %4141 = vmatprep.subr.bf16.mxu0 0
      %4142 = vmatpush1.bf16.msra.mxu0 0
      %4143 = vmatprep.subr.bf16.mxu0 0
      %4144 = vmatpush1.bf16.msra.mxu0 0
      %4145 = vmatprep.subr.bf16.mxu0 0
      %4146 = vmatpush1.bf16.msra.mxu0 0
      %4147 = vmatprep.subr.bf16.mxu0 0
      %4148 = vmatpush1.bf16.msra.mxu0 0
      %4149 = vmatprep.mubr.bf16.mxu0 0
      %4150 = vmatmul.mubr.bf16.gmra.mrb[0].mxu0 %v4067
      %v4151 = vpop.f32.mrb[0].mxu0
      %v4152 = vadd.f32 0.0, %v4151
      %v4153 = vpop.f32.mrb[0].mxu0
      %v4154 = vpop.f32.mrb[0].mxu0
      %v4155 = vadd.f32 0.0, %v4154
      %v4156 = vpop.f32.mrb[0].mxu0
      %4157 = vmatprep.mubr.bf16.mxu0 0
      %4158 = vmatmul.mubr.bf16.gmra.mrb[0].mxu0 %v4070
      %v4159 = vpop.f32.mrb[0].mxu0
      %v4160 = vadd.f32 0.0, %v4159
      %v4161 = vpop.f32.mrb[0].mxu0
      %v4162 = vpop.f32.mrb[0].mxu0
      %v4163 = vadd.f32 0.0, %v4162
      %v4164 = vpop.f32.mrb[0].mxu0
      %4165 = vmatprep.mubr.bf16.mxu0 0
      %4166 = vmatmul.mubr.bf16.gmra.mrb[0].mxu0 %v4073
      %v4167 = vpop.f32.mrb[0].mxu0
      %v4168 = vadd.f32 0.0, %v4167
      %v4169 = vpop.f32.mrb[0].mxu0
      %v4170 = vpop.f32.mrb[0].mxu0
      %v4171 = vadd.f32 0.0, %v4170
      %v4172 = vpop.f32.mrb[0].mxu0
      %4173 = vmatprep.mubr.bf16.mxu0 0
      %4174 = vmatmul.mubr.bf16.gmra.mrb[0].mxu0 %v4076
      %v4175 = vpop.f32.mrb[0].mxu0
      %v4176 = vadd.f32 0.0, %v4175
      %v4177 = vpop.f32.mrb[0].mxu0
      %v4178 = vpop.f32.mrb[0].mxu0
      %v4179 = vadd.f32 0.0, %v4178
      %v4180 = vpop.f32.mrb[0].mxu0
      %4181 = vmatprep.mubr.bf16.mxu0 0
      %4182 = vmatmul.mubr.bf16.gmra.mrb[0].mxu0 %v4079
      %v4183 = vpop.f32.mrb[0].mxu0
      %v4184 = vadd.f32 0.0, %v4183
      %v4185 = vpop.f32.mrb[0].mxu0
      %v4186 = vpop.f32.mrb[0].mxu0
      %v4187 = vadd.f32 0.0, %v4186
      %v4188 = vpop.f32.mrb[0].mxu0
      %4189 = vmatprep.mubr.bf16.mxu0 0
      %4190 = vmatmul.mubr.bf16.gmra.mrb[0].mxu0 %v4082
      %v4191 = vpop.f32.mrb[0].mxu0
      %v4192 = vadd.f32 0.0, %v4191
      %v4193 = vpop.f32.mrb[0].mxu0
      %v4194 = vpop.f32.mrb[0].mxu0
      %v4195 = vadd.f32 0.0, %v4194
      %v4196 = vpop.f32.mrb[0].mxu0
      %4197 = vmatprep.mubr.bf16.mxu0 0
      %4198 = vmatmul.mubr.bf16.gmra.mrb[0].mxu0 %v4085
      %v4199 = vpop.f32.mrb[0].mxu0
      %v4200 = vadd.f32 0.0, %v4199
      %v4201 = vpop.f32.mrb[0].mxu0
      %v4202 = vpop.f32.mrb[0].mxu0
      %v4203 = vadd.f32 0.0, %v4202
      %v4204 = vpop.f32.mrb[0].mxu0
      %4205 = vmatprep.mubr.bf16.mxu0 0
      %4206 = vmatmul.mubr.bf16.gmra.mrb[0].mxu0 %v4088
      %v4207 = vpop.f32.mrb[0].mxu0
      %v4208 = vadd.f32 0.0, %v4207
      %v4209 = vpop.f32.mrb[0].mxu0
      %v4210 = vpop.f32.mrb[0].mxu0
      %v4211 = vadd.f32 0.0, %v4210
      %v4212 = vpop.f32.mrb[0].mxu0
      %4213 = vmatprep.mubr.bf16.mxu0 0
      %4214 = vmatmul.mubr.bf16.gmra.mrb[0].mxu0 %v4091
      %v4215 = vpop.f32.mrb[0].mxu0
      %v4216 = vadd.f32 0.0, %v4215
      %v4217 = vpop.f32.mrb[0].mxu0
      %v4218 = vpop.f32.mrb[0].mxu0
      %v4219 = vadd.f32 0.0, %v4218
      %v4220 = vpop.f32.mrb[0].mxu0
      %4221 = vmatprep.mubr.bf16.mxu0 0
      %4222 = vmatmul.mubr.bf16.gmra.mrb[0].mxu0 %v4094
      %v4223 = vpop.f32.mrb[0].mxu0
      %v4224 = vadd.f32 0.0, %v4223
      %v4225 = vpop.f32.mrb[0].mxu0
      %v4226 = vpop.f32.mrb[0].mxu0
      %v4227 = vadd.f32 0.0, %v4226
      %v4228 = vpop.f32.mrb[0].mxu0
      %4229 = vmatprep.mubr.bf16.mxu0 0
      %4230 = vmatmul.mubr.bf16.gmra.mrb[0].mxu0 %v4097
      %v4231 = vpop.f32.mrb[0].mxu0
      %v4232 = vadd.f32 0.0, %v4231
      %v4233 = vpop.f32.mrb[0].mxu0
      %v4234 = vpop.f32.mrb[0].mxu0
      %v4235 = vadd.f32 0.0, %v4234
      %v4236 = vpop.f32.mrb[0].mxu0
      %4237 = vmatprep.mubr.bf16.mxu0 0
      %4238 = vmatmul.mubr.bf16.gmra.mrb[0].mxu0 %v4100
      %v4239 = vpop.f32.mrb[0].mxu0
      %v4240 = vadd.f32 0.0, %v4239
      %v4241 = vpop.f32.mrb[0].mxu0
      %v4242 = vpop.f32.mrb[0].mxu0
      %v4243 = vadd.f32 0.0, %v4242
      %v4244 = vpop.f32.mrb[0].mxu0
      %4245 = vmatprep.mubr.bf16.mxu0 0
      %4246 = vmatmul.mubr.bf16.gmra.mrb[0].mxu0 %v4103
      %v4247 = vpop.f32.mrb[0].mxu0
      %v4248 = vadd.f32 0.0, %v4247
      %v4249 = vpop.f32.mrb[0].mxu0
      %v4250 = vpop.f32.mrb[0].mxu0
      %v4251 = vadd.f32 0.0, %v4250
      %v4252 = vpop.f32.mrb[0].mxu0
      %4253 = vmatprep.mubr.bf16.mxu0 0
      %4254 = vmatmul.mubr.bf16.gmra.mrb[0].mxu0 %v4106
      %v4255 = vpop.f32.mrb[0].mxu0
      %v4256 = vadd.f32 0.0, %v4255
      %v4257 = vpop.f32.mrb[0].mxu0
      %v4258 = vpop.f32.mrb[0].mxu0
      %v4259 = vadd.f32 0.0, %v4258
      %v4260 = vpop.f32.mrb[0].mxu0
      %4261 = vmatprep.mubr.bf16.mxu0 0
      %4262 = vmatmul.mubr.bf16.gmra.mrb[0].mxu0 %v4109
      %v4263 = vpop.f32.mrb[0].mxu0
      %v4264 = vadd.f32 0.0, %v4263
      %v4265 = vpop.f32.mrb[0].mxu0
      %v4266 = vpop.f32.mrb[0].mxu0
      %v4267 = vadd.f32 0.0, %v4266
      %v4268 = vpop.f32.mrb[0].mxu0
      %4269 = vmatprep.mubr.bf16.mxu0 0
      %4270 = vmatmul.mubr.bf16.gmra.mrb[0].mxu0 %v4112
      %v4271 = vpop.f32.mrb[0].mxu0
      %v4272 = vadd.f32 0.0, %v4271
      %v4273 = vpop.f32.mrb[0].mxu0
      %v4274 = vpop.f32.mrb[0].mxu0
      %v4275 = vadd.f32 0.0, %v4274
      %v4276 = vpop.f32.mrb[0].mxu0
      %4277 = vdwg.mxu0
      %v4278 = vadd.f32 %v3552, %v4152
      %v4279 = vadd.f32 %v3553, %v4155
      %v4280 = vadd.f32 %v3554, %v4160
      %v4281 = vadd.f32 %v3555, %v4163
      %v4282 = vadd.f32 %v3556, %v4168
      %v4283 = vadd.f32 %v3557, %v4171
      %v4284 = vadd.f32 %v3558, %v4176
      %v4285 = vadd.f32 %v3559, %v4179
      %v4286 = vadd.f32 %v3560, %v4184
      %v4287 = vadd.f32 %v3561, %v4187
      %v4288 = vadd.f32 %v3562, %v4192
      %v4289 = vadd.f32 %v3563, %v4195
      %v4290 = vadd.f32 %v3564, %v4200
      %v4291 = vadd.f32 %v3565, %v4203
      %v4292 = vadd.f32 %v3566, %v4208
      %v4293 = vadd.f32 %v3567, %v4211
      %v4294 = vadd.f32 %v3568, %v4216
      %v4295 = vadd.f32 %v3569, %v4219
      %v4296 = vadd.f32 %v3570, %v4224
      %v4297 = vadd.f32 %v3571, %v4227
      %v4298 = vadd.f32 %v3572, %v4232
      %v4299 = vadd.f32 %v3573, %v4235
      %v4300 = vadd.f32 %v3574, %v4240
      %v4301 = vadd.f32 %v3575, %v4243
      %v4302 = vadd.f32 %v3576, %v4248
      %v4303 = vadd.f32 %v3577, %v4251
      %v4304 = vadd.f32 %v3578, %v4256
      %v4305 = vadd.f32 %v3579, %v4259
      %v4306 = vadd.f32 %v3580, %v4264
      %v4307 = vadd.f32 %v3581, %v4267
      %v4308 = vadd.f32 %v3582, %v4272
      %v4309 = vadd.f32 %v3583, %v4275
      %v4310 = vld [vmem:[%s3225] sm:$0xe]
      %v4311 = vld [vmem:[%s3225 + $0xc] sm:$0xe]
      %v4312 = vld [vmem:[%s3225 + $0x18] sm:$0xe]
      %v4313 = vld [vmem:[%s3225 + $0x24] sm:$0xe]
      %v4314 = vld [vmem:[%s3225 + $0x30] sm:$0xe]
      %v4315 = vld [vmem:[%s3225 + $0x3c] sm:$0xe]
      %v4316 = vld [vmem:[%s3225 + $0x48] sm:$0xe]
      %v4317 = vld [vmem:[%s3225 + $0x54] sm:$0xe]
      %v4318 = vld [vmem:[%s3225 + $0x60] sm:$0xe]
      %v4319 = vld [vmem:[%s3225 + $0x6c] sm:$0xe]
      %v4320 = vld [vmem:[%s3225 + $0x78] sm:$0xe]
      %v4321 = vld [vmem:[%s3225 + $0x84] sm:$0xe]
      %v4322 = vld [vmem:[%s3225 + $0x90] sm:$0xe]
      %v4323 = vld [vmem:[%s3225 + $0x9c] sm:$0xe]
      %v4324 = vld [vmem:[%s3225 + $0xa8] sm:$0xe]
      %v4325 = vld [vmem:[%s3225 + $0xb4] sm:$0xe]
      %v4374 = vrot.slane %v4310, 5
      %v4375 = vrot.slane %v4374, 4
      %v4376 = vrot.slane %v3585, 5
      %v4377 = vsel %vm1263, %v4375, %v4376
      %v4378 = vrot.slane %v4376, 4
      %v4379 = vrot.slane %v3586, 5
      %v4380 = vsel %vm1263, %v4378, %v4379
      %v4381 = vrot.slane %v4311, 5
      %v4382 = vrot.slane %v4381, 4
      %v4383 = vrot.slane %v3588, 5
      %v4384 = vsel %vm1263, %v4382, %v4383
      %v4385 = vrot.slane %v4383, 4
      %v4386 = vrot.slane %v3589, 5
      %v4387 = vsel %vm1263, %v4385, %v4386
      %v4388 = vrot.slane %v4312, 5
      %v4389 = vrot.slane %v4388, 4
      %v4390 = vrot.slane %v3591, 5
      %v4391 = vsel %vm1263, %v4389, %v4390
      %v4392 = vrot.slane %v4390, 4
      %v4393 = vrot.slane %v3592, 5
      %v4394 = vsel %vm1263, %v4392, %v4393
      %v4395 = vrot.slane %v4313, 5
      %v4396 = vrot.slane %v4395, 4
      %v4397 = vrot.slane %v3594, 5
      %v4398 = vsel %vm1263, %v4396, %v4397
      %v4399 = vrot.slane %v4397, 4
      %v4400 = vrot.slane %v3595, 5
      %v4401 = vsel %vm1263, %v4399, %v4400
      %v4402 = vrot.slane %v4314, 5
      %v4403 = vrot.slane %v4402, 4
      %v4404 = vrot.slane %v3597, 5
      %v4405 = vsel %vm1263, %v4403, %v4404
      %v4406 = vrot.slane %v4404, 4
      %v4407 = vrot.slane %v3598, 5
      %v4408 = vsel %vm1263, %v4406, %v4407
      %v4409 = vrot.slane %v4315, 5
      %v4410 = vrot.slane %v4409, 4
      %v4411 = vrot.slane %v3600, 5
      %v4412 = vsel %vm1263, %v4410, %v4411
      %v4413 = vrot.slane %v4411, 4
      %v4414 = vrot.slane %v3601, 5
      %v4415 = vsel %vm1263, %v4413, %v4414
      %v4416 = vrot.slane %v4316, 5
      %v4417 = vrot.slane %v4416, 4
      %v4418 = vrot.slane %v3603, 5
      %v4419 = vsel %vm1263, %v4417, %v4418
      %v4420 = vrot.slane %v4418, 4
      %v4421 = vrot.slane %v3604, 5
      %v4422 = vsel %vm1263, %v4420, %v4421
      %v4423 = vrot.slane %v4317, 5
      %v4424 = vrot.slane %v4423, 4
      %v4425 = vrot.slane %v3606, 5
      %v4426 = vsel %vm1263, %v4424, %v4425
      %v4427 = vrot.slane %v4425, 4
      %v4428 = vrot.slane %v3607, 5
      %v4429 = vsel %vm1263, %v4427, %v4428
      %v4430 = vrot.slane %v4318, 5
      %v4431 = vrot.slane %v4430, 4
      %v4432 = vrot.slane %v3609, 5
      %v4433 = vsel %vm1263, %v4431, %v4432
      %v4434 = vrot.slane %v4432, 4
      %v4435 = vrot.slane %v3610, 5
      %v4436 = vsel %vm1263, %v4434, %v4435
      %v4437 = vrot.slane %v4319, 5
      %v4438 = vrot.slane %v4437, 4
      %v4439 = vrot.slane %v3612, 5
      %v4440 = vsel %vm1263, %v4438, %v4439
      %v4441 = vrot.slane %v4439, 4
      %v4442 = vrot.slane %v3613, 5
      %v4443 = vsel %vm1263, %v4441, %v4442
      %v4444 = vrot.slane %v4320, 5
      %v4445 = vrot.slane %v4444, 4
      %v4446 = vrot.slane %v3615, 5
      %v4447 = vsel %vm1263, %v4445, %v4446
      %v4448 = vrot.slane %v4446, 4
      %v4449 = vrot.slane %v3616, 5
      %v4450 = vsel %vm1263, %v4448, %v4449
      %v4451 = vrot.slane %v4321, 5
      %v4452 = vrot.slane %v4451, 4
      %v4453 = vrot.slane %v3618, 5
      %v4454 = vsel %vm1263, %v4452, %v4453
      %v4455 = vrot.slane %v4453, 4
      %v4456 = vrot.slane %v3619, 5
      %v4457 = vsel %vm1263, %v4455, %v4456
      %v4458 = vrot.slane %v4322, 5
      %v4459 = vrot.slane %v4458, 4
      %v4460 = vrot.slane %v3621, 5
      %v4461 = vsel %vm1263, %v4459, %v4460
      %v4462 = vrot.slane %v4460, 4
      %v4463 = vrot.slane %v3622, 5
      %v4464 = vsel %vm1263, %v4462, %v4463
      %v4465 = vrot.slane %v4323, 5
      %v4466 = vrot.slane %v4465, 4
      %v4467 = vrot.slane %v3624, 5
      %v4468 = vsel %vm1263, %v4466, %v4467
      %v4469 = vrot.slane %v4467, 4
      %v4470 = vrot.slane %v3625, 5
      %v4471 = vsel %vm1263, %v4469, %v4470
      %v4472 = vrot.slane %v4324, 5
      %v4473 = vrot.slane %v4472, 4
      %v4474 = vrot.slane %v3627, 5
      %v4475 = vsel %vm1263, %v4473, %v4474
      %v4476 = vrot.slane %v4474, 4
      %v4477 = vrot.slane %v3628, 5
      %v4478 = vsel %vm1263, %v4476, %v4477
      %v4479 = vrot.slane %v4325, 5
      %v4480 = vrot.slane %v4479, 4
      %v4481 = vrot.slane %v3630, 5
      %v4482 = vsel %vm1263, %v4480, %v4481
      %v4483 = vrot.slane %v4481, 4
      %v4484 = vrot.slane %v3631, 5
      %v4485 = vsel %vm1263, %v4483, %v4484
      %s4486 = scalar_lea.vmem %s1, 32
      %v4487 = vld [vmem:[%s4486] sm:$0xf]
      %v4488 = vunpack.c.l.b16 %v4377
      %v4489 = vunpack.c.l.b16 %v4380
      %v4490 = vunpack.c.l.b16 %v4384
      %v4491 = vunpack.c.l.b16 %v4387
      %v4492 = vunpack.c.l.b16 %v4391
      %v4493 = vunpack.c.l.b16 %v4394
      %v4494 = vunpack.c.l.b16 %v4398
      %v4495 = vunpack.c.l.b16 %v4401
      %v4496 = vunpack.c.l.b16 %v4405
      %v4497 = vunpack.c.l.b16 %v4408
      %v4498 = vunpack.c.l.b16 %v4412
      %v4499 = vunpack.c.l.b16 %v4415
      %v4500 = vunpack.c.l.b16 %v4419
      %v4501 = vunpack.c.l.b16 %v4422
      %v4502 = vunpack.c.l.b16 %v4426
      %v4503 = vunpack.c.l.b16 %v4429
      %v4504 = vunpack.c.l.b16 %v4433
      %v4505 = vunpack.c.l.b16 %v4436
      %v4506 = vunpack.c.l.b16 %v4440
      %v4507 = vunpack.c.l.b16 %v4443
      %v4508 = vunpack.c.l.b16 %v4447
      %v4509 = vunpack.c.l.b16 %v4450
      %v4510 = vunpack.c.l.b16 %v4454
      %v4511 = vunpack.c.l.b16 %v4457
      %v4512 = vunpack.c.l.b16 %v4461
      %v4513 = vunpack.c.l.b16 %v4464
      %v4514 = vunpack.c.l.b16 %v4468
      %v4515 = vunpack.c.l.b16 %v4471
      %v4516 = vunpack.c.l.b16 %v4475
      %v4517 = vunpack.c.l.b16 %v4478
      %v4518 = vunpack.c.l.b16 %v4482
      %v4519 = vunpack.c.l.b16 %v4485
      %v4520 = vpack.c.b16 %v4489, %v4488
      %v4521 = vpack.c.b16 %v4491, %v4490
      %v4522 = vpack.c.b16 %v4493, %v4492
      %v4523 = vpack.c.b16 %v4495, %v4494
      %v4524 = vpack.c.b16 %v4497, %v4496
      %v4525 = vpack.c.b16 %v4499, %v4498
      %v4526 = vpack.c.b16 %v4501, %v4500
      %v4527 = vpack.c.b16 %v4503, %v4502
      %v4528 = vpack.c.b16 %v4505, %v4504
      %v4529 = vpack.c.b16 %v4507, %v4506
      %v4530 = vpack.c.b16 %v4509, %v4508
      %v4531 = vpack.c.b16 %v4511, %v4510
      %v4532 = vpack.c.b16 %v4513, %v4512
      %v4533 = vpack.c.b16 %v4515, %v4514
      %v4534 = vpack.c.b16 %v4517, %v4516
      %v4535 = vpack.c.b16 %v4519, %v4518
      %v4537 = vsel %vm707, %v4520, 0
      %v4540 = vsel %vm707, %v4521, 0
      %v4543 = vsel %vm707, %v4522, 0
      %v4546 = vsel %vm707, %v4523, 0
      %v4549 = vsel %vm707, %v4524, 0
      %v4552 = vsel %vm707, %v4525, 0
      %v4555 = vsel %vm707, %v4526, 0
      %v4558 = vsel %vm707, %v4527, 0
      %v4561 = vsel %vm707, %v4528, 0
      %v4564 = vsel %vm707, %v4529, 0
      %v4567 = vsel %vm707, %v4530, 0
      %v4570 = vsel %vm707, %v4531, 0
      %v4573 = vsel %vm707, %v4532, 0
      %v4576 = vsel %vm707, %v4533, 0
      %v4579 = vsel %vm707, %v4534, 0
      %v4582 = vsel %vm707, %v4535, 0
      %v4585 = vsel %vm756, %v4487, 0
      %4587 = vmatprep.subr.bf16.mxu0 0
      %4588 = vmatpush1.bf16.msra.mxu0 %v4585
      %4589 = vmatprep.subr.bf16.mxu0 0
      %4590 = vmatpush1.bf16.msra.mxu0 0
      %4591 = vmatprep.subr.bf16.mxu0 0
      %4592 = vmatpush1.bf16.msra.mxu0 0
      %4593 = vmatprep.subr.bf16.mxu0 0
      %4594 = vmatpush1.bf16.msra.mxu0 0
      %4595 = vmatprep.subr.bf16.mxu0 0
      %4596 = vmatpush1.bf16.msra.mxu0 0
      %4597 = vmatprep.subr.bf16.mxu0 0
      %4598 = vmatpush1.bf16.msra.mxu0 0
      %4599 = vmatprep.subr.bf16.mxu0 0
      %4600 = vmatpush1.bf16.msra.mxu0 0
      %4601 = vmatprep.subr.bf16.mxu0 0
      %4602 = vmatpush1.bf16.msra.mxu0 0
      %4603 = vmatprep.subr.bf16.mxu0 0
      %4604 = vmatpush1.bf16.msra.mxu0 0
      %4605 = vmatprep.subr.bf16.mxu0 0
      %4606 = vmatpush1.bf16.msra.mxu0 0
      %4607 = vmatprep.subr.bf16.mxu0 0
      %4608 = vmatpush1.bf16.msra.mxu0 0
      %4609 = vmatprep.subr.bf16.mxu0 0
      %4610 = vmatpush1.bf16.msra.mxu0 0
      %4611 = vmatprep.subr.bf16.mxu0 0
      %4612 = vmatpush1.bf16.msra.mxu0 0
      %4613 = vmatprep.subr.bf16.mxu0 0
      %4614 = vmatpush1.bf16.msra.mxu0 0
      %4615 = vmatprep.subr.bf16.mxu0 0
      %4616 = vmatpush1.bf16.msra.mxu0 0
      %4617 = vmatprep.subr.bf16.mxu0 0
      %4618 = vmatpush1.bf16.msra.mxu0 0
      %4619 = vmatprep.mubr.bf16.mxu0 0
      %4620 = vmatmul.mubr.bf16.gmra.mrb[0].mxu0 %v4537
      %v4621 = vpop.f32.mrb[0].mxu0
      %v4622 = vadd.f32 0.0, %v4621
      %v4623 = vpop.f32.mrb[0].mxu0
      %v4624 = vpop.f32.mrb[0].mxu0
      %v4625 = vadd.f32 0.0, %v4624
      %v4626 = vpop.f32.mrb[0].mxu0
      %4627 = vmatprep.mubr.bf16.mxu0 0
      %4628 = vmatmul.mubr.bf16.gmra.mrb[0].mxu0 %v4540
      %v4629 = vpop.f32.mrb[0].mxu0
      %v4630 = vadd.f32 0.0, %v4629
      %v4631 = vpop.f32.mrb[0].mxu0
      %v4632 = vpop.f32.mrb[0].mxu0
      %v4633 = vadd.f32 0.0, %v4632
      %v4634 = vpop.f32.mrb[0].mxu0
      %4635 = vmatprep.mubr.bf16.mxu0 0
      %4636 = vmatmul.mubr.bf16.gmra.mrb[0].mxu0 %v4543
      %v4637 = vpop.f32.mrb[0].mxu0
      %v4638 = vadd.f32 0.0, %v4637
      %v4639 = vpop.f32.mrb[0].mxu0
      %v4640 = vpop.f32.mrb[0].mxu0
      %v4641 = vadd.f32 0.0, %v4640
      %v4642 = vpop.f32.mrb[0].mxu0
      %4643 = vmatprep.mubr.bf16.mxu0 0
      %4644 = vmatmul.mubr.bf16.gmra.mrb[0].mxu0 %v4546
      %v4645 = vpop.f32.mrb[0].mxu0
      %v4646 = vadd.f32 0.0, %v4645
      %v4647 = vpop.f32.mrb[0].mxu0
      %v4648 = vpop.f32.mrb[0].mxu0
      %v4649 = vadd.f32 0.0, %v4648
      %v4650 = vpop.f32.mrb[0].mxu0
      %4651 = vmatprep.mubr.bf16.mxu0 0
      %4652 = vmatmul.mubr.bf16.gmra.mrb[0].mxu0 %v4549
      %v4653 = vpop.f32.mrb[0].mxu0
      %v4654 = vadd.f32 0.0, %v4653
      %v4655 = vpop.f32.mrb[0].mxu0
      %v4656 = vpop.f32.mrb[0].mxu0
      %v4657 = vadd.f32 0.0, %v4656
      %v4658 = vpop.f32.mrb[0].mxu0
      %4659 = vmatprep.mubr.bf16.mxu0 0
      %4660 = vmatmul.mubr.bf16.gmra.mrb[0].mxu0 %v4552
      %v4661 = vpop.f32.mrb[0].mxu0
      %v4662 = vadd.f32 0.0, %v4661
      %v4663 = vpop.f32.mrb[0].mxu0
      %v4664 = vpop.f32.mrb[0].mxu0
      %v4665 = vadd.f32 0.0, %v4664
      %v4666 = vpop.f32.mrb[0].mxu0
      %4667 = vmatprep.mubr.bf16.mxu0 0
      %4668 = vmatmul.mubr.bf16.gmra.mrb[0].mxu0 %v4555
      %v4669 = vpop.f32.mrb[0].mxu0
      %v4670 = vadd.f32 0.0, %v4669
      %v4671 = vpop.f32.mrb[0].mxu0
      %v4672 = vpop.f32.mrb[0].mxu0
      %v4673 = vadd.f32 0.0, %v4672
      %v4674 = vpop.f32.mrb[0].mxu0
      %4675 = vmatprep.mubr.bf16.mxu0 0
      %4676 = vmatmul.mubr.bf16.gmra.mrb[0].mxu0 %v4558
      %v4677 = vpop.f32.mrb[0].mxu0
      %v4678 = vadd.f32 0.0, %v4677
      %v4679 = vpop.f32.mrb[0].mxu0
      %v4680 = vpop.f32.mrb[0].mxu0
      %v4681 = vadd.f32 0.0, %v4680
      %v4682 = vpop.f32.mrb[0].mxu0
      %4683 = vmatprep.mubr.bf16.mxu0 0
      %4684 = vmatmul.mubr.bf16.gmra.mrb[0].mxu0 %v4561
      %v4685 = vpop.f32.mrb[0].mxu0
      %v4686 = vadd.f32 0.0, %v4685
      %v4687 = vpop.f32.mrb[0].mxu0
      %v4688 = vpop.f32.mrb[0].mxu0
      %v4689 = vadd.f32 0.0, %v4688
      %v4690 = vpop.f32.mrb[0].mxu0
      %4691 = vmatprep.mubr.bf16.mxu0 0
      %4692 = vmatmul.mubr.bf16.gmra.mrb[0].mxu0 %v4564
      %v4693 = vpop.f32.mrb[0].mxu0
      %v4694 = vadd.f32 0.0, %v4693
      %v4695 = vpop.f32.mrb[0].mxu0
      %v4696 = vpop.f32.mrb[0].mxu0
      %v4697 = vadd.f32 0.0, %v4696
      %v4698 = vpop.f32.mrb[0].mxu0
      %4699 = vmatprep.mubr.bf16.mxu0 0
      %4700 = vmatmul.mubr.bf16.gmra.mrb[0].mxu0 %v4567
      %v4701 = vpop.f32.mrb[0].mxu0
      %v4702 = vadd.f32 0.0, %v4701
      %v4703 = vpop.f32.mrb[0].mxu0
      %v4704 = vpop.f32.mrb[0].mxu0
      %v4705 = vadd.f32 0.0, %v4704
      %v4706 = vpop.f32.mrb[0].mxu0
      %4707 = vmatprep.mubr.bf16.mxu0 0
      %4708 = vmatmul.mubr.bf16.gmra.mrb[0].mxu0 %v4570
      %v4709 = vpop.f32.mrb[0].mxu0
      %v4710 = vadd.f32 0.0, %v4709
      %v4711 = vpop.f32.mrb[0].mxu0
      %v4712 = vpop.f32.mrb[0].mxu0
      %v4713 = vadd.f32 0.0, %v4712
      %v4714 = vpop.f32.mrb[0].mxu0
      %4715 = vmatprep.mubr.bf16.mxu0 0
      %4716 = vmatmul.mubr.bf16.gmra.mrb[0].mxu0 %v4573
      %v4717 = vpop.f32.mrb[0].mxu0
      %v4718 = vadd.f32 0.0, %v4717
      %v4719 = vpop.f32.mrb[0].mxu0
      %v4720 = vpop.f32.mrb[0].mxu0
      %v4721 = vadd.f32 0.0, %v4720
      %v4722 = vpop.f32.mrb[0].mxu0
      %4723 = vmatprep.mubr.bf16.mxu0 0
      %4724 = vmatmul.mubr.bf16.gmra.mrb[0].mxu0 %v4576
      %v4725 = vpop.f32.mrb[0].mxu0
      %v4726 = vadd.f32 0.0, %v4725
      %v4727 = vpop.f32.mrb[0].mxu0
      %v4728 = vpop.f32.mrb[0].mxu0
      %v4729 = vadd.f32 0.0, %v4728
      %v4730 = vpop.f32.mrb[0].mxu0
      %4731 = vmatprep.mubr.bf16.mxu0 0
      %4732 = vmatmul.mubr.bf16.gmra.mrb[0].mxu0 %v4579
      %v4733 = vpop.f32.mrb[0].mxu0
      %v4734 = vadd.f32 0.0, %v4733
      %v4735 = vpop.f32.mrb[0].mxu0
      %v4736 = vpop.f32.mrb[0].mxu0
      %v4737 = vadd.f32 0.0, %v4736
      %v4738 = vpop.f32.mrb[0].mxu0
      %4739 = vmatprep.mubr.bf16.mxu0 0
      %4740 = vmatmul.mubr.bf16.gmra.mrb[0].mxu0 %v4582
      %v4741 = vpop.f32.mrb[0].mxu0
      %v4742 = vadd.f32 0.0, %v4741
      %v4743 = vpop.f32.mrb[0].mxu0
      %v4744 = vpop.f32.mrb[0].mxu0
      %v4745 = vadd.f32 0.0, %v4744
      %v4746 = vpop.f32.mrb[0].mxu0
      %4747 = vdwg.mxu0
      %v4748 = vadd.f32 %v4278, %v4622
      %v4749 = vadd.f32 %v4279, %v4625
      %v4750 = vadd.f32 %v4280, %v4630
      %v4751 = vadd.f32 %v4281, %v4633
      %v4752 = vadd.f32 %v4282, %v4638
      %v4753 = vadd.f32 %v4283, %v4641
      %v4754 = vadd.f32 %v4284, %v4646
      %v4755 = vadd.f32 %v4285, %v4649
      %v4756 = vadd.f32 %v4286, %v4654
      %v4757 = vadd.f32 %v4287, %v4657
      %v4758 = vadd.f32 %v4288, %v4662
      %v4759 = vadd.f32 %v4289, %v4665
      %v4760 = vadd.f32 %v4290, %v4670
      %v4761 = vadd.f32 %v4291, %v4673
      %v4762 = vadd.f32 %v4292, %v4678
      %v4763 = vadd.f32 %v4293, %v4681
      %v4764 = vadd.f32 %v4294, %v4686
      %v4765 = vadd.f32 %v4295, %v4689
      %v4766 = vadd.f32 %v4296, %v4694
      %v4767 = vadd.f32 %v4297, %v4697
      %v4768 = vadd.f32 %v4298, %v4702
      %v4769 = vadd.f32 %v4299, %v4705
      %v4770 = vadd.f32 %v4300, %v4710
      %v4771 = vadd.f32 %v4301, %v4713
      %v4772 = vadd.f32 %v4302, %v4718
      %v4773 = vadd.f32 %v4303, %v4721
      %v4774 = vadd.f32 %v4304, %v4726
      %v4775 = vadd.f32 %v4305, %v4729
      %v4776 = vadd.f32 %v4306, %v4734
      %v4777 = vadd.f32 %v4307, %v4737
      %v4778 = vadd.f32 %v4308, %v4742
      %v4779 = vadd.f32 %v4309, %v4745
      %v4780 = vpack.c.bf16 %v4749, %v4748
      %v4781 = vpack.c.bf16 %v4751, %v4750
      %v4782 = vpack.c.bf16 %v4753, %v4752
      %v4783 = vpack.c.bf16 %v4755, %v4754
      %v4784 = vpack.c.bf16 %v4757, %v4756
      %v4785 = vpack.c.bf16 %v4759, %v4758
      %v4786 = vpack.c.bf16 %v4761, %v4760
      %v4787 = vpack.c.bf16 %v4763, %v4762
      %v4788 = vpack.c.bf16 %v4765, %v4764
      %v4789 = vpack.c.bf16 %v4767, %v4766
      %v4790 = vpack.c.bf16 %v4769, %v4768
      %v4791 = vpack.c.bf16 %v4771, %v4770
      %v4792 = vpack.c.bf16 %v4773, %v4772
      %v4793 = vpack.c.bf16 %v4775, %v4774
      %v4794 = vpack.c.bf16 %v4777, %v4776
      %v4795 = vpack.c.bf16 %v4779, %v4778
      %v4812 = vunpack.c.l.b16 %v4780
      %v4813 = vunpack.c.h.b16 %v4780
      %v4814 = vunpack.c.l.b16 %v4781
      %v4815 = vunpack.c.h.b16 %v4781
      %v4816 = vunpack.c.l.b16 %v4782
      %v4817 = vunpack.c.h.b16 %v4782
      %v4818 = vunpack.c.l.b16 %v4783
      %v4819 = vunpack.c.h.b16 %v4783
      %v4820 = vunpack.c.l.b16 %v4784
      %v4821 = vunpack.c.h.b16 %v4784
      %v4822 = vunpack.c.l.b16 %v4785
      %v4823 = vunpack.c.h.b16 %v4785
      %v4824 = vunpack.c.l.b16 %v4786
      %v4825 = vunpack.c.h.b16 %v4786
      %v4826 = vunpack.c.l.b16 %v4787
      %v4827 = vunpack.c.h.b16 %v4787
      %v4828 = vunpack.c.l.b16 %v4788
      %v4829 = vunpack.c.h.b16 %v4788
      %v4830 = vunpack.c.l.b16 %v4789
      %v4831 = vunpack.c.h.b16 %v4789
      %v4832 = vunpack.c.l.b16 %v4790
      %v4833 = vunpack.c.h.b16 %v4790
      %v4834 = vunpack.c.l.b16 %v4791
      %v4835 = vunpack.c.h.b16 %v4791
      %v4836 = vunpack.c.l.b16 %v4792
      %v4837 = vunpack.c.h.b16 %v4792
      %v4838 = vunpack.c.l.b16 %v4793
      %v4839 = vunpack.c.h.b16 %v4793
      %v4840 = vunpack.c.l.b16 %v4794
      %v4841 = vunpack.c.h.b16 %v4794
      %v4842 = vunpack.c.l.b16 %v4795
      %v4843 = vunpack.c.h.b16 %v4795
      %v4844 = vpack.c.b16 %v4812, %v4812
      %v4845 = vpack.c.b16 %v4813, %v4813
      %v4846 = vpack.c.b16 %v4814, %v4814
      %v4847 = vpack.c.b16 %v4815, %v4815
      %v4848 = vpack.c.b16 %v4816, %v4816
      %v4849 = vpack.c.b16 %v4817, %v4817
      %v4850 = vpack.c.b16 %v4818, %v4818
      %v4851 = vpack.c.b16 %v4819, %v4819
      %v4852 = vpack.c.b16 %v4820, %v4820
      %v4853 = vpack.c.b16 %v4821, %v4821
      %v4854 = vpack.c.b16 %v4822, %v4822
      %v4855 = vpack.c.b16 %v4823, %v4823
      %v4856 = vpack.c.b16 %v4824, %v4824
      %v4857 = vpack.c.b16 %v4825, %v4825
      %v4858 = vpack.c.b16 %v4826, %v4826
      %v4859 = vpack.c.b16 %v4827, %v4827
      %v4860 = vpack.c.b16 %v4828, %v4828
      %v4861 = vpack.c.b16 %v4829, %v4829
      %v4862 = vpack.c.b16 %v4830, %v4830
      %v4863 = vpack.c.b16 %v4831, %v4831
      %v4864 = vpack.c.b16 %v4832, %v4832
      %v4865 = vpack.c.b16 %v4833, %v4833
      %v4866 = vpack.c.b16 %v4834, %v4834
      %v4867 = vpack.c.b16 %v4835, %v4835
      %v4868 = vpack.c.b16 %v4836, %v4836
      %v4869 = vpack.c.b16 %v4837, %v4837
      %v4870 = vpack.c.b16 %v4838, %v4838
      %v4871 = vpack.c.b16 %v4839, %v4839
      %v4872 = vpack.c.b16 %v4840, %v4840
      %v4873 = vpack.c.b16 %v4841, %v4841
      %v4874 = vpack.c.b16 %v4842, %v4842
      %v4875 = vpack.c.b16 %v4843, %v4843
      %4908 = vst [vmem:[%s210] sm:$0xf] %v4844
      %4909 = vst [vmem:[%s210 + $0x4] sm:$0xf] %v4845
      %4910 = vst [vmem:[%s210 + $0x8] sm:$0xf] %v4846
      %4911 = vst [vmem:[%s210 + $0xc] sm:$0xf] %v4847
      %4912 = vst [vmem:[%s210 + $0x10] sm:$0xf] %v4848
      %4913 = vst [vmem:[%s210 + $0x14] sm:$0xf] %v4849
      %4914 = vst [vmem:[%s210 + $0x18] sm:$0xf] %v4850
      %4915 = vst [vmem:[%s210 + $0x1c] sm:$0xf] %v4851
      %4916 = vst [vmem:[%s210 + $0x20] sm:$0xf] %v4852
      %4917 = vst [vmem:[%s210 + $0x24] sm:$0xf] %v4853
      %4918 = vst [vmem:[%s210 + $0x28] sm:$0xf] %v4854
      %4919 = vst [vmem:[%s210 + $0x2c] sm:$0xf] %v4855
      %4920 = vst [vmem:[%s210 + $0x30] sm:$0xf] %v4856
      %4921 = vst [vmem:[%s210 + $0x34] sm:$0xf] %v4857
      %4922 = vst [vmem:[%s210 + $0x38] sm:$0xf] %v4858
      %4923 = vst [vmem:[%s210 + $0x3c] sm:$0xf] %v4859
      %4924 = vst [vmem:[%s210 + $0x40] sm:$0xf] %v4860
      %4925 = vst [vmem:[%s210 + $0x44] sm:$0xf] %v4861
      %4926 = vst [vmem:[%s210 + $0x48] sm:$0xf] %v4862
      %4927 = vst [vmem:[%s210 + $0x4c] sm:$0xf] %v4863
      %4928 = vst [vmem:[%s210 + $0x50] sm:$0xf] %v4864
      %4929 = vst [vmem:[%s210 + $0x54] sm:$0xf] %v4865
      %4930 = vst [vmem:[%s210 + $0x58] sm:$0xf] %v4866
      %4931 = vst [vmem:[%s210 + $0x5c] sm:$0xf] %v4867
      %4932 = vst [vmem:[%s210 + $0x60] sm:$0xf] %v4868
      %4933 = vst [vmem:[%s210 + $0x64] sm:$0xf] %v4869
      %4934 = vst [vmem:[%s210 + $0x68] sm:$0xf] %v4870
      %4935 = vst [vmem:[%s210 + $0x6c] sm:$0xf] %v4871
      %4936 = vst [vmem:[%s210 + $0x70] sm:$0xf] %v4872
      %4937 = vst [vmem:[%s210 + $0x74] sm:$0xf] %v4873
      %4938 = vst [vmem:[%s210 + $0x78] sm:$0xf] %v4874
      %4939 = vst [vmem:[%s210 + $0x7c] sm:$0xf] %v4875
      %v4940 = vadd.f32 %v4748, %v4749
      %v4941 = vadd.f32 %v4940, %v4750
      %v4942 = vadd.f32 %v4941, %v4751
      %v4943 = vadd.f32 %v4942, %v4752
      %v4944 = vadd.f32 %v4943, %v4753
      %v4945 = vadd.f32 %v4944, %v4754
      %v4946 = vadd.f32 %v4945, %v4755
      %v4947 = vadd.f32 %v4946, %v4756
      %v4948 = vadd.f32 %v4947, %v4757
      %v4949 = vadd.f32 %v4948, %v4758
      %v4950 = vadd.f32 %v4949, %v4759
      %v4951 = vadd.f32 %v4950, %v4760
      %v4952 = vadd.f32 %v4951, %v4761
      %v4953 = vadd.f32 %v4952, %v4762
      %v4954 = vadd.f32 %v4953, %v4763
      %v4955 = vadd.f32 %v4954, %v4764
      %v4956 = vadd.f32 %v4955, %v4765
      %v4957 = vadd.f32 %v4956, %v4766
      %v4958 = vadd.f32 %v4957, %v4767
      %v4959 = vadd.f32 %v4958, %v4768
      %v4960 = vadd.f32 %v4959, %v4769
      %v4961 = vadd.f32 %v4960, %v4770
      %v4962 = vadd.f32 %v4961, %v4771
      %v4963 = vadd.f32 %v4962, %v4772
      %v4964 = vadd.f32 %v4963, %v4773
      %v4965 = vadd.f32 %v4964, %v4774
      %v4966 = vadd.f32 %v4965, %v4775
      %v4967 = vadd.f32 %v4966, %v4776
      %v4968 = vadd.f32 %v4967, %v4777
      %v4969 = vadd.f32 %v4968, %v4778
      %v4970 = vadd.f32 %v4969, %v4779
      %v4971 = vrot.slane %v4970, 4
      %v4972 = vadd.f32 %v4970, %v4971
      %v4973 = vrot.slane %v4972, 2
      %v4974 = vadd.f32 %v4972, %v4973
      %v4975 = vrot.slane %v4974, 1
      %v4976 = vadd.f32 %v4974, %v4975
      %v4977 = vmul.f32 %v4748, %v4748
      %v4978 = vmul.f32 %v4749, %v4749
      %v4979 = vmul.f32 %v4750, %v4750
      %v4980 = vmul.f32 %v4751, %v4751
      %v4981 = vmul.f32 %v4752, %v4752
      %v4982 = vmul.f32 %v4753, %v4753
      %v4983 = vmul.f32 %v4754, %v4754
      %v4984 = vmul.f32 %v4755, %v4755
      %v4985 = vmul.f32 %v4756, %v4756
      %v4986 = vmul.f32 %v4757, %v4757
      %v4987 = vmul.f32 %v4758, %v4758
      %v4988 = vmul.f32 %v4759, %v4759
      %v4989 = vmul.f32 %v4760, %v4760
      %v4990 = vmul.f32 %v4761, %v4761
      %v4991 = vmul.f32 %v4762, %v4762
      %v4992 = vmul.f32 %v4763, %v4763
      %v4993 = vmul.f32 %v4764, %v4764
      %v4994 = vmul.f32 %v4765, %v4765
      %v4995 = vmul.f32 %v4766, %v4766
      %v4996 = vmul.f32 %v4767, %v4767
      %v4997 = vmul.f32 %v4768, %v4768
      %v4998 = vmul.f32 %v4769, %v4769
      %v4999 = vmul.f32 %v4770, %v4770
      %v5000 = vmul.f32 %v4771, %v4771
      %v5001 = vmul.f32 %v4772, %v4772
      %v5002 = vmul.f32 %v4773, %v4773
      %v5003 = vmul.f32 %v4774, %v4774
      %v5004 = vmul.f32 %v4775, %v4775
      %v5005 = vmul.f32 %v4776, %v4776
      %v5006 = vmul.f32 %v4777, %v4777
      %v5007 = vmul.f32 %v4778, %v4778
      %v5008 = vmul.f32 %v4779, %v4779
      %v5009 = vadd.f32 %v4977, %v4978
      %v5010 = vadd.f32 %v5009, %v4979
      %v5011 = vadd.f32 %v5010, %v4980
      %v5012 = vadd.f32 %v5011, %v4981
      %v5013 = vadd.f32 %v5012, %v4982
      %v5014 = vadd.f32 %v5013, %v4983
      %v5015 = vadd.f32 %v5014, %v4984
      %v5016 = vadd.f32 %v5015, %v4985
      %v5017 = vadd.f32 %v5016, %v4986
      %v5018 = vadd.f32 %v5017, %v4987
      %v5019 = vadd.f32 %v5018, %v4988
      %v5020 = vadd.f32 %v5019, %v4989
      %v5021 = vadd.f32 %v5020, %v4990
      %v5022 = vadd.f32 %v5021, %v4991
      %v5023 = vadd.f32 %v5022, %v4992
      %v5024 = vadd.f32 %v5023, %v4993
      %v5025 = vadd.f32 %v5024, %v4994
      %v5026 = vadd.f32 %v5025, %v4995
      %v5027 = vadd.f32 %v5026, %v4996
      %v5028 = vadd.f32 %v5027, %v4997
      %v5029 = vadd.f32 %v5028, %v4998
      %v5030 = vadd.f32 %v5029, %v4999
      %v5031 = vadd.f32 %v5030, %v5000
      %v5032 = vadd.f32 %v5031, %v5001
      %v5033 = vadd.f32 %v5032, %v5002
      %v5034 = vadd.f32 %v5033, %v5003
      %v5035 = vadd.f32 %v5034, %v5004
      %v5036 = vadd.f32 %v5035, %v5005
      %v5037 = vadd.f32 %v5036, %v5006
      %v5038 = vadd.f32 %v5037, %v5007
      %v5039 = vadd.f32 %v5038, %v5008
      %v5040 = vrot.slane %v5039, 4
      %v5041 = vadd.f32 %v5039, %v5040
      %v5042 = vrot.slane %v5041, 2
      %v5043 = vadd.f32 %v5041, %v5042
      %v5044 = vrot.slane %v5043, 1
      %v5045 = vadd.f32 %v5043, %v5044
      %5046 = vst [vmem:[%s215] sm:$0xff] %v4976
      %5047 = vst [vmem:[%s219] sm:$0xff] %v5045
      %s5048 = smul.u32 32, %s16
      %p5049 = scmp.lt.s32.totalorder %s5048, 63
      %s5050 = scalar_select %p5049, %s5048, 63
      %s5051 = smul.addr %s5050, 4
      %s5052 = scalar_lea.vmem %s2, %s5051
      %p5053 = scmp.lt.s32.totalorder %s16, 1
      %s5054 = scalar_select %p5053, %s16, 1
      %s5055 = smul.addr %s5054, 8
      %s5056 = scalar_lea.vmem %s3, %s5055
      %p5057 = scmp.lt.s32.totalorder %s16, 1
      %s5058 = scalar_select %p5057, %s16, 1
      %s5059 = smul.addr %s5058, 8
      %s5060 = scalar_lea.vmem %s4, %s5059
      // Predicated region
      $region29: #{downsample_layer.4} parent=27 // pred_check
        %p5061 = pneg %p81
      $region30: #{downsample_layer.4} parent=27 // pred_check_branch
        %5063 = sbr.rel (%p5061) target = $region32
      $region31: #{downsample_layer.4} parent=27 // pred_region
        %s5064 = smul.u32 32, %s16
      $region32: #{downsample_layer.4} parent=27 // pred_fallthru
        _
      // Predicated region
      $region33: #{downsample_layer.4} parent=27 // pred_check
        %p5065 = pneg %p107
      $region34: #{downsample_layer.4} parent=27 // pred_check_branch
        %5067 = sbr.rel (%p5065) target = $region36
      $region35: #{downsample_layer.4} parent=27 // pred_region
        _
      $region36: #{downsample_layer.4} parent=27 // pred_fallthru
        _
      // Predicated region
      $region37: #{downsample_layer.4} parent=27 // pred_check
        %p5068 = pneg %p133
      $region38: #{downsample_layer.4} parent=27 // pred_check_branch
        %5070 = sbr.rel (%p5068) target = $region40
      $region39: #{downsample_layer.4} parent=27 // pred_region
        _
      $region40: #{downsample_layer.4} parent=27 // pred_fallthru
        _
    $region28: #{downsample_layer.4} parent=5 // pred_fallthru
      _
    %p5071 = scmp.le.s32.totalorder 2, %s11
    // Predicated region
    $region41: #{downsample_layer.4} parent=5 // pred_check
      %p5072 = pneg %p5071
    $region42: #{downsample_layer.4} parent=5 // pred_check_branch
      %5074 = sbr.rel (%p5072) target = $region44
    $region43: #{downsample_layer.4} parent=5 // pred_region
      %s5075 = ssub.s32 %s11, 2
      // Predicated region
      $region45: #{downsample_layer.4} parent=43 // pred_check
        %p5076 = pneg %p87
      $region46: #{downsample_layer.4} parent=43 // pred_check_branch
        %5078 = sbr.rel (%p5076) target = $region48
      $region47: #{downsample_layer.4} parent=43 // pred_region
        %s5079 = smul.u32 32, %s17
        %p5080 = scmp.lt.s32.totalorder %s5079, 63
        %s5081 = scalar_select %p5080, %s5079, 63
        %s5082 = smul.addr %s5081, 4
        %s5083 = scalar_lea.vmem %s2, %s5082
      $region48: #{downsample_layer.4} parent=43 // pred_fallthru
        _
      // Predicated region
      $region49: #{downsample_layer.4} parent=43 // pred_check
        %p5084 = pneg %p113
      $region50: #{downsample_layer.4} parent=43 // pred_check_branch
        %5086 = sbr.rel (%p5084) target = $region52
      $region51: #{downsample_layer.4} parent=43 // pred_region
        %p5087 = scmp.lt.s32.totalorder %s17, 1
        %s5088 = scalar_select %p5087, %s17, 1
        %s5089 = smul.addr %s5088, 8
        %s5090 = scalar_lea.vmem %s3, %s5089
      $region52: #{downsample_layer.4} parent=43 // pred_fallthru
        _
      // Predicated region
      $region53: #{downsample_layer.4} parent=43 // pred_check
        %p5091 = pneg %p139
      $region54: #{downsample_layer.4} parent=43 // pred_check_branch
        %5093 = sbr.rel (%p5091) target = $region56
      $region55: #{downsample_layer.4} parent=43 // pred_region
        %p5094 = scmp.lt.s32.totalorder %s17, 1
        %s5095 = scalar_select %p5094, %s17, 1
        %s5096 = smul.addr %s5095, 8
        %s5097 = scalar_lea.vmem %s4, %s5096
      $region56: #{downsample_layer.4} parent=43 // pred_fallthru
        _
    $region44: #{downsample_layer.4} parent=5 // pred_fallthru
      _
  $region6: #{downsample_layer.4} parent=0 // loop_footer
    %s15 = sadd.s32 1, %s11
  $region7: #{downsample_layer.4} parent=0 // loop_footer_branch
    %10 = sbr.rel target = $region3
  $region8: #{downsample_layer.4} parent=0 // loop_exit
    _

// kernel: downsample_layer.3
$region0: #{downsample_layer.3}
  #allocation0 [shape = 'u32[]', space=smem, size = 0x4, offset = 0x4, fixed_abs, tag = 'smem constant byte address 0x4 - core index']
  #allocation1 [shape = 'u32[144,128]{1,0:T(1,128)}', space=vmem, size = 0x12000, scoped, tag = 'internal scratch']
  %s0 = inlined_call_operand.vmem [shape: bf16[2,18,18,4], index: 0, kind: input, shape index: {}]
  %s1 = inlined_call_operand.vmem [shape: bf16[9,4,128], index: 1, kind: input, shape index: {}]
  %s2 = inlined_call_operand.vmem [shape: bf16[512,128], index: 2, kind: output, shape index: {0}]
  %s3 = inlined_call_operand.vmem [shape: f32[16,128], index: 3, kind: output, shape index: {1}]
  %s4 = inlined_call_operand.vmem [shape: f32[16,128], index: 4, kind: output, shape index: {2}]
  %5 = xla_tuple %s2, %s3, %s4
  %s6 = sld [smem:[#allocation0]]
  $region57: #{downsample_layer.3} parent=0
    _
  %s8 = ssub.s32 1, %s6
  %s9 = scalar_select 0, %s8, %s6
  loop: start=0, step=1, limit=4
  $region2: #{downsample_layer.3} parent=0 // loop_pre_header
    _
  $region3: #{downsample_layer.3} parent=0 // loop_header
    %s11 = sphi 0, %s15
    %p12 = scmp.ge.s32.totalorder %s11, 4
    %s21 = sphi 0, %s23
    %s24 = sphi 0, %s21
    %s25 = sphi 0, %s24
    %s41 = sphi 0, %s25
    %s45 = sphi 0, %s45
    %s47 = sphi 0, %s45
    %s48 = sphi 0, %s47
    %s62 = sphi 0, %s48
    %s68 = sphi 0, %s70
    %s71 = sphi 0, %s68
    %s72 = sphi 0, %s71
    %s88 = sphi 0, %s72
    %s94 = sphi 0, %s96
    %s97 = sphi 0, %s94
    %s98 = sphi 0, %s97
    %s114 = sphi 0, %s98
    %s120 = sphi 0, %s122
    %s123 = sphi 0, %s120
    %s124 = sphi 0, %s123
    %s140 = sphi 0, %s124
  $region4: #{downsample_layer.3} parent=0 // loop_header_branch
    %14 = sbr.rel (%p12) target = $region8
  $region5: #{downsample_layer.3} parent=0 // loop_body
    %s16 = ssub.s32 %s11, 1
    %s17 = ssub.s32 %s11, 2
    %s18 = sadd.s32 %s11, 1
    %s19 = ssub.s32 %s11, %s18
    %p20 = scmp.eq.s32.totalorder %s19, 0
    %s22 = sadd.s32 %s21, 1
    %s23 = scalar_select %p20, %s21, %s22
    %p26 = pneg %p20
    %p27 = scmp.eq.s32.totalorder %s11, 1
    %p28 = por %p26, %p27
    %p29 = scmp.ne.s32.totalorder %s21, %s24
    %p30 = scmp.eq.s32.totalorder %s11, 0
    %p31 = por %p29, %p30
    %p32 = scmp.ne.s32.totalorder %s21, %s24
    %p33 = scmp.eq.s32.totalorder %s16, 1
    %p34 = por %p32, %p33
    %p35 = scmp.ne.s32.totalorder %s24, %s25
    %p36 = scmp.eq.s32.totalorder %s16, 0
    %p37 = por %p35, %p36
    %p38 = scmp.ne.s32.totalorder %s24, %s25
    %p39 = scmp.eq.s32.totalorder %s17, 1
    %p40 = por %p38, %p39
    %p42 = scmp.ne.s32.totalorder %s25, %s41
    %p43 = scmp.eq.s32.totalorder %s17, 0
    %p44 = por %p42, %p43
    %s46 = sadd.s32 %s45, 1
    %p49 = scmp.eq.s32.totalorder %s11, 1
    %p50 = scmp.ne.s32.totalorder %s45, %s47
    %p51 = scmp.eq.s32.totalorder %s11, 0
    %p52 = por %p50, %p51
    %p53 = scmp.ne.s32.totalorder %s45, %s47
    %p54 = scmp.eq.s32.totalorder %s16, 1
    %p55 = por %p53, %p54
    %p56 = scmp.ne.s32.totalorder %s47, %s48
    %p57 = scmp.eq.s32.totalorder %s16, 0
    %p58 = por %p56, %p57
    %p59 = scmp.ne.s32.totalorder %s47, %s48
    %p60 = scmp.eq.s32.totalorder %s17, 1
    %p61 = por %p59, %p60
    %p63 = scmp.ne.s32.totalorder %s48, %s62
    %p64 = scmp.eq.s32.totalorder %s17, 0
    %p65 = por %p63, %p64
    %s66 = ssub.s32 %s11, %s18
    %p67 = scmp.eq.s32.totalorder %s66, 0
    %s69 = sadd.s32 %s68, 1
    %s70 = scalar_select %p67, %s68, %s69
    %p73 = pneg %p67
    %p74 = scmp.eq.s32.totalorder %s11, 1
    %p75 = por %p73, %p74
    %p76 = scmp.ne.s32.totalorder %s68, %s71
    %p77 = scmp.eq.s32.totalorder %s11, 0
    %p78 = por %p76, %p77
    %p79 = scmp.ne.s32.totalorder %s68, %s71
    %p80 = scmp.eq.s32.totalorder %s16, 1
    %p81 = por %p79, %p80
    %p82 = scmp.ne.s32.totalorder %s71, %s72
    %p83 = scmp.eq.s32.totalorder %s16, 0
    %p84 = por %p82, %p83
    %p85 = scmp.ne.s32.totalorder %s71, %s72
    %p86 = scmp.eq.s32.totalorder %s17, 1
    %p87 = por %p85, %p86
    %p89 = scmp.ne.s32.totalorder %s72, %s88
    %p90 = scmp.eq.s32.totalorder %s17, 0
    %p91 = por %p89, %p90
    %s92 = ssub.s32 %s11, %s18
    %p93 = scmp.eq.s32.totalorder %s92, 0
    %s95 = sadd.s32 %s94, 1
    %s96 = scalar_select %p93, %s94, %s95
    %p99 = pneg %p93
    %p100 = scmp.eq.s32.totalorder %s11, 1
    %p101 = por %p99, %p100
    %p102 = scmp.ne.s32.totalorder %s94, %s97
    %p103 = scmp.eq.s32.totalorder %s11, 0
    %p104 = por %p102, %p103
    %p105 = scmp.ne.s32.totalorder %s94, %s97
    %p106 = scmp.eq.s32.totalorder %s16, 1
    %p107 = por %p105, %p106
    %p108 = scmp.ne.s32.totalorder %s97, %s98
    %p109 = scmp.eq.s32.totalorder %s16, 0
    %p110 = por %p108, %p109
    %p111 = scmp.ne.s32.totalorder %s97, %s98
    %p112 = scmp.eq.s32.totalorder %s17, 1
    %p113 = por %p111, %p112
    %p115 = scmp.ne.s32.totalorder %s98, %s114
    %p116 = scmp.eq.s32.totalorder %s17, 0
    %p117 = por %p115, %p116
    %s118 = ssub.s32 %s11, %s18
    %p119 = scmp.eq.s32.totalorder %s118, 0
    %s121 = sadd.s32 %s120, 1
    %s122 = scalar_select %p119, %s120, %s121
    %p125 = pneg %p119
    %p126 = scmp.eq.s32.totalorder %s11, 1
    %p127 = por %p125, %p126
    %p128 = scmp.ne.s32.totalorder %s120, %s123
    %p129 = scmp.eq.s32.totalorder %s11, 0
    %p130 = por %p128, %p129
    %p131 = scmp.ne.s32.totalorder %s120, %s123
    %p132 = scmp.eq.s32.totalorder %s16, 1
    %p133 = por %p131, %p132
    %p134 = scmp.ne.s32.totalorder %s123, %s124
    %p135 = scmp.eq.s32.totalorder %s16, 0
    %p136 = por %p134, %p135
    %p137 = scmp.ne.s32.totalorder %s123, %s124
    %p138 = scmp.eq.s32.totalorder %s17, 1
    %p139 = por %p137, %p138
    %p141 = scmp.ne.s32.totalorder %s124, %s140
    %p142 = scmp.eq.s32.totalorder %s17, 0
    %p143 = por %p141, %p142
    %p144 = scmp.le.s32.totalorder 1, %s11
    %p145 = scmp.lt.s32.totalorder %s11, 3
    %p146 = pnand %p144, %p145
    %p147 = pneg %p146
    // Predicated region
    $region9: #{downsample_layer.3} parent=5 // pred_check
      _
    $region10: #{downsample_layer.3} parent=5 // pred_check_branch
      %149 = sbr.rel (%p146) target = $region12
    $region11: #{downsample_layer.3} parent=5 // pred_region
      %s150 = ssub.s32 %s11, 1
      // Predicated region
      $region13: #{downsample_layer.3} parent=11 // pred_check
        %p151 = pneg %p58
      $region14: #{downsample_layer.3} parent=11 // pred_check_branch
        %153 = sbr.rel (%p151) target = $region16
      $region15: #{downsample_layer.3} parent=11 // pred_region
        _
      $region16: #{downsample_layer.3} parent=11 // pred_fallthru
        _
    $region12: #{downsample_layer.3} parent=5 // pred_fallthru
      _
    %p154 = scmp.lt.s32.totalorder %s11, 2
    // Predicated region
    $region17: #{downsample_layer.3} parent=5 // pred_check
      %p155 = pneg %p154
    $region18: #{downsample_layer.3} parent=5 // pred_check_branch
      %157 = sbr.rel (%p155) target = $region20
    $region19: #{downsample_layer.3} parent=5 // pred_region
      // Predicated region
      $region21: #{downsample_layer.3} parent=19 // pred_check
        %p158 = pneg %p31
      $region22: #{downsample_layer.3} parent=19 // pred_check_branch
        %160 = sbr.rel (%p158) target = $region24
      $region23: #{downsample_layer.3} parent=19 // pred_region
        %p161 = scmp.lt.s32.totalorder %s11, 1
        %s162 = scalar_select %p161, %s11, 1
        %s163 = smul.addr %s162, 54
        %s164 = smul.addr %s163, 4
        %s165 = scalar_lea.vmem %s0, %s164
      $region24: #{downsample_layer.3} parent=19 // pred_fallthru
        _
    $region20: #{downsample_layer.3} parent=5 // pred_fallthru
      _
    %p166 = scmp.le.s32.totalorder 1, %s11
    %p167 = scmp.lt.s32.totalorder %s11, 3
    %p168 = pnand %p166, %p167
    %p169 = pneg %p168
    // Predicated region
    $region25: #{downsample_layer.3} parent=5 // pred_check
      _
    $region26: #{downsample_layer.3} parent=5 // pred_check_branch
      %171 = sbr.rel (%p168) target = $region28
    $region27: #{downsample_layer.3} parent=5 // pred_region
      %s172 = ssub.s32 %s11, 1
      %p173 = scmp.lt.s32.totalorder %s16, 1
      %s174 = scalar_select %p173, %s16, 1
      %s175 = smul.addr %s174, 54
      %s176 = smul.addr %s175, 4
      %s177 = scalar_lea.vmem %s0, %s176
      %p178 = pneg %p37
      %p179 = pneg %p34
      %p180 = pneg %p58
      %p181 = pneg %p55
      %p182 = pneg %p84
      %p183 = pneg %p81
      %s184 = smul.u32 32, %s16
      %p185 = scmp.lt.s32.totalorder %s184, 63
      %s186 = scalar_select %p185, %s184, 63
      %s187 = smul.addr %s186, 4
      %s188 = scalar_lea.vmem %s2, %s187
      %p189 = pneg %p110
      %p190 = pneg %p107
      %p191 = scmp.lt.s32.totalorder %s16, 1
      %s192 = scalar_select %p191, %s16, 1
      %s193 = smul.addr %s192, 8
      %s194 = scalar_lea.vmem %s3, %s193
      %p195 = pneg %p136
      %p196 = pneg %p133
      %p197 = scmp.lt.s32.totalorder %s16, 1
      %s198 = scalar_select %p197, %s16, 1
      %s199 = smul.addr %s198, 8
      %s200 = scalar_lea.vmem %s4, %s199
      %p201 = scmp.lt.s32.totalorder %s16, 1
      %s202 = scalar_select %p201, %s16, 1
      %s203 = smul.addr %s202, 54
      %s204 = smul.addr %s203, 4
      %s205 = scalar_lea.vmem %s0, %s204
      %s206 = smul.u32 32, %s16
      %p207 = scmp.lt.s32.totalorder %s206, 63
      %s208 = scalar_select %p207, %s206, 63
      %s209 = smul.addr %s208, 4
      %s210 = scalar_lea.vmem %s2, %s209
      %s211 = smul.u32 32, %s16
      %p212 = scmp.lt.s32.totalorder %s16, 1
      %s213 = scalar_select %p212, %s16, 1
      %s214 = smul.addr %s213, 8
      %s215 = scalar_lea.vmem %s3, %s214
      %p216 = scmp.lt.s32.totalorder %s16, 1
      %s217 = scalar_select %p216, %s16, 1
      %s218 = smul.addr %s217, 8
      %s219 = scalar_lea.vmem %s4, %s218
      %v221 = vld [vmem:[%s205] sm:$0xf]
      %v222 = vld [vmem:[%s205 + $0x4] sm:$0xf]
      %v223 = vld [vmem:[%s205 + $0xc] sm:$0xf]
      %v224 = vld [vmem:[%s205 + $0x10] sm:$0xf]
      %v225 = vld [vmem:[%s205 + $0x18] sm:$0xf]
      %v226 = vld [vmem:[%s205 + $0x1c] sm:$0xf]
      %v227 = vld [vmem:[%s205 + $0x24] sm:$0xf]
      %v228 = vld [vmem:[%s205 + $0x28] sm:$0xf]
      %v229 = vld [vmem:[%s205 + $0x30] sm:$0xf]
      %v230 = vld [vmem:[%s205 + $0x34] sm:$0xf]
      %v231 = vld [vmem:[%s205 + $0x3c] sm:$0xf]
      %v232 = vld [vmem:[%s205 + $0x40] sm:$0xf]
      %v233 = vld [vmem:[%s205 + $0x48] sm:$0xf]
      %v234 = vld [vmem:[%s205 + $0x4c] sm:$0xf]
      %v235 = vld [vmem:[%s205 + $0x54] sm:$0xf]
      %v236 = vld [vmem:[%s205 + $0x58] sm:$0xf]
      %v237 = vld [vmem:[%s205 + $0x60] sm:$0xf]
      %v238 = vld [vmem:[%s205 + $0x64] sm:$0xf]
      %v239 = vld [vmem:[%s205 + $0x6c] sm:$0xf]
      %v240 = vld [vmem:[%s205 + $0x70] sm:$0xf]
      %v241 = vld [vmem:[%s205 + $0x78] sm:$0xf]
      %v242 = vld [vmem:[%s205 + $0x7c] sm:$0xf]
      %v243 = vld [vmem:[%s205 + $0x84] sm:$0xf]
      %v244 = vld [vmem:[%s205 + $0x88] sm:$0xf]
      %v245 = vld [vmem:[%s205 + $0x90] sm:$0xf]
      %v246 = vld [vmem:[%s205 + $0x94] sm:$0xf]
      %v247 = vld [vmem:[%s205 + $0x9c] sm:$0xf]
      %v248 = vld [vmem:[%s205 + $0xa0] sm:$0xf]
      %v249 = vld [vmem:[%s205 + $0xa8] sm:$0xf]
      %v250 = vld [vmem:[%s205 + $0xac] sm:$0xf]
      %v251 = vld [vmem:[%s205 + $0xb4] sm:$0xf]
      %v252 = vld [vmem:[%s205 + $0xb8] sm:$0xf]
      %v253 = vld [vmem:[%s1] sm:$0x3]
      %v254 = vld [vmem:[%s205 + $0x8] sm:$0x1]
      %v255 = vld [vmem:[%s205 + $0x14] sm:$0x1]
      %v256 = vld [vmem:[%s205 + $0x20] sm:$0x1]
      %v257 = vld [vmem:[%s205 + $0x2c] sm:$0x1]
      %v258 = vld [vmem:[%s205 + $0x38] sm:$0x1]
      %v259 = vld [vmem:[%s205 + $0x44] sm:$0x1]
      %v260 = vld [vmem:[%s205 + $0x50] sm:$0x1]
      %v261 = vld [vmem:[%s205 + $0x5c] sm:$0x1]
      %v262 = vld [vmem:[%s205 + $0x68] sm:$0x1]
      %v263 = vld [vmem:[%s205 + $0x74] sm:$0x1]
      %v264 = vld [vmem:[%s205 + $0x80] sm:$0x1]
      %v265 = vld [vmem:[%s205 + $0x8c] sm:$0x1]
      %v266 = vld [vmem:[%s205 + $0x98] sm:$0x1]
      %v267 = vld [vmem:[%s205 + $0xa4] sm:$0x1]
      %v268 = vld [vmem:[%s205 + $0xb0] sm:$0x1]
      %v269 = vld [vmem:[%s205 + $0xbc] sm:$0x1]
      %vm270 = vsmask.f32 3328
      %vm271 = vsmask.f32 7440
      %vm272 = vmor %vm270, %vm271
      %v274 = vshrl.u32 %v221, 16
      %v276 = vrot.slane %v274, 4
      %v277 = vshll.u32 %v221, 16
      %v279 = vrot.slane %v277, 5
      %v280 = vor.u32 %v276, %v279
      %v281 = vrot.slane %v280, 4
      %v283 = vshll.u32 %v222, 16
      %v285 = vrot.slane %v283, 5
      %v286 = vsel %vm272, %v281, %v285
      %v287 = vshrl.u32 %v222, 16
      %v289 = vrot.slane %v287, 4
      %v290 = vor.u32 %v289, %v285
      %v291 = vrot.slane %v290, 4
      %v293 = vshll.u32 %v254, 16
      %v295 = vrot.slane %v293, 5
      %v296 = vsel %vm272, %v291, %v295
      %v298 = vshrl.u32 %v223, 16
      %v300 = vrot.slane %v298, 4
      %v301 = vshll.u32 %v223, 16
      %v303 = vrot.slane %v301, 5
      %v304 = vor.u32 %v300, %v303
      %v305 = vrot.slane %v304, 4
      %v307 = vshll.u32 %v224, 16
      %v309 = vrot.slane %v307, 5
      %v310 = vsel %vm272, %v305, %v309
      %v311 = vshrl.u32 %v224, 16
      %v313 = vrot.slane %v311, 4
      %v314 = vor.u32 %v313, %v309
      %v315 = vrot.slane %v314, 4
      %v317 = vshll.u32 %v255, 16
      %v319 = vrot.slane %v317, 5
      %v320 = vsel %vm272, %v315, %v319
      %v322 = vshrl.u32 %v225, 16
      %v324 = vrot.slane %v322, 4
      %v325 = vshll.u32 %v225, 16
      %v327 = vrot.slane %v325, 5
      %v328 = vor.u32 %v324, %v327
      %v329 = vrot.slane %v328, 4
      %v331 = vshll.u32 %v226, 16
      %v333 = vrot.slane %v331, 5
      %v334 = vsel %vm272, %v329, %v333
      %v335 = vshrl.u32 %v226, 16
      %v337 = vrot.slane %v335, 4
      %v338 = vor.u32 %v337, %v333
      %v339 = vrot.slane %v338, 4
      %v341 = vshll.u32 %v256, 16
      %v343 = vrot.slane %v341, 5
      %v344 = vsel %vm272, %v339, %v343
      %v346 = vshrl.u32 %v227, 16
      %v348 = vrot.slane %v346, 4
      %v349 = vshll.u32 %v227, 16
      %v351 = vrot.slane %v349, 5
      %v352 = vor.u32 %v348, %v351
      %v353 = vrot.slane %v352, 4
      %v355 = vshll.u32 %v228, 16
      %v357 = vrot.slane %v355, 5
      %v358 = vsel %vm272, %v353, %v357
      %v359 = vshrl.u32 %v228, 16
      %v361 = vrot.slane %v359, 4
      %v362 = vor.u32 %v361, %v357
      %v363 = vrot.slane %v362, 4
      %v365 = vshll.u32 %v257, 16
      %v367 = vrot.slane %v365, 5
      %v368 = vsel %vm272, %v363, %v367
      %v370 = vshrl.u32 %v229, 16
      %v372 = vrot.slane %v370, 4
      %v373 = vshll.u32 %v229, 16
      %v375 = vrot.slane %v373, 5
      %v376 = vor.u32 %v372, %v375
      %v377 = vrot.slane %v376, 4
      %v379 = vshll.u32 %v230, 16
      %v381 = vrot.slane %v379, 5
      %v382 = vsel %vm272, %v377, %v381
      %v383 = vshrl.u32 %v230, 16
      %v385 = vrot.slane %v383, 4
      %v386 = vor.u32 %v385, %v381
      %v387 = vrot.slane %v386, 4
      %v389 = vshll.u32 %v258, 16
      %v391 = vrot.slane %v389, 5
      %v392 = vsel %vm272, %v387, %v391
      %v394 = vshrl.u32 %v231, 16
      %v396 = vrot.slane %v394, 4
      %v397 = vshll.u32 %v231, 16
      %v399 = vrot.slane %v397, 5
      %v400 = vor.u32 %v396, %v399
      %v401 = vrot.slane %v400, 4
      %v403 = vshll.u32 %v232, 16
      %v405 = vrot.slane %v403, 5
      %v406 = vsel %vm272, %v401, %v405
      %v407 = vshrl.u32 %v232, 16
      %v409 = vrot.slane %v407, 4
      %v410 = vor.u32 %v409, %v405
      %v411 = vrot.slane %v410, 4
      %v413 = vshll.u32 %v259, 16
      %v415 = vrot.slane %v413, 5
      %v416 = vsel %vm272, %v411, %v415
      %v418 = vshrl.u32 %v233, 16
      %v420 = vrot.slane %v418, 4
      %v421 = vshll.u32 %v233, 16
      %v423 = vrot.slane %v421, 5
      %v424 = vor.u32 %v420, %v423
      %v425 = vrot.slane %v424, 4
      %v427 = vshll.u32 %v234, 16
      %v429 = vrot.slane %v427, 5
      %v430 = vsel %vm272, %v425, %v429
      %v431 = vshrl.u32 %v234, 16
      %v433 = vrot.slane %v431, 4
      %v434 = vor.u32 %v433, %v429
      %v435 = vrot.slane %v434, 4
      %v437 = vshll.u32 %v260, 16
      %v439 = vrot.slane %v437, 5
      %v440 = vsel %vm272, %v435, %v439
      %v442 = vshrl.u32 %v235, 16
      %v444 = vrot.slane %v442, 4
      %v445 = vshll.u32 %v235, 16
      %v447 = vrot.slane %v445, 5
      %v448 = vor.u32 %v444, %v447
      %v449 = vrot.slane %v448, 4
      %v451 = vshll.u32 %v236, 16
      %v453 = vrot.slane %v451, 5
      %v454 = vsel %vm272, %v449, %v453
      %v455 = vshrl.u32 %v236, 16
      %v457 = vrot.slane %v455, 4
      %v458 = vor.u32 %v457, %v453
      %v459 = vrot.slane %v458, 4
      %v461 = vshll.u32 %v261, 16
      %v463 = vrot.slane %v461, 5
      %v464 = vsel %vm272, %v459, %v463
      %v466 = vshrl.u32 %v237, 16
      %v468 = vrot.slane %v466, 4
      %v469 = vshll.u32 %v237, 16
      %v471 = vrot.slane %v469, 5
      %v472 = vor.u32 %v468, %v471
      %v473 = vrot.slane %v472, 4
      %v475 = vshll.u32 %v238, 16
      %v477 = vrot.slane %v475, 5
      %v478 = vsel %vm272, %v473, %v477
      %v479 = vshrl.u32 %v238, 16
      %v481 = vrot.slane %v479, 4
      %v482 = vor.u32 %v481, %v477
      %v483 = vrot.slane %v482, 4
      %v485 = vshll.u32 %v262, 16
      %v487 = vrot.slane %v485, 5
      %v488 = vsel %vm272, %v483, %v487
      %v490 = vshrl.u32 %v239, 16
      %v492 = vrot.slane %v490, 4
      %v493 = vshll.u32 %v239, 16
      %v495 = vrot.slane %v493, 5
      %v496 = vor.u32 %v492, %v495
      %v497 = vrot.slane %v496, 4
      %v499 = vshll.u32 %v240, 16
      %v501 = vrot.slane %v499, 5
      %v502 = vsel %vm272, %v497, %v501
      %v503 = vshrl.u32 %v240, 16
      %v505 = vrot.slane %v503, 4
      %v506 = vor.u32 %v505, %v501
      %v507 = vrot.slane %v506, 4
      %v509 = vshll.u32 %v263, 16
      %v511 = vrot.slane %v509, 5
      %v512 = vsel %vm272, %v507, %v511
      %v514 = vshrl.u32 %v241, 16
      %v516 = vrot.slane %v514, 4
      %v517 = vshll.u32 %v241, 16
      %v519 = vrot.slane %v517, 5
      %v520 = vor.u32 %v516, %v519
      %v521 = vrot.slane %v520, 4
      %v523 = vshll.u32 %v242, 16
      %v525 = vrot.slane %v523, 5
      %v526 = vsel %vm272, %v521, %v525
      %v527 = vshrl.u32 %v242, 16
      %v529 = vrot.slane %v527, 4
      %v530 = vor.u32 %v529, %v525
      %v531 = vrot.slane %v530, 4
      %v533 = vshll.u32 %v264, 16
      %v535 = vrot.slane %v533, 5
      %v536 = vsel %vm272, %v531, %v535
      %v538 = vshrl.u32 %v243, 16
      %v540 = vrot.slane %v538, 4
      %v541 = vshll.u32 %v243, 16
      %v543 = vrot.slane %v541, 5
      %v544 = vor.u32 %v540, %v543
      %v545 = vrot.slane %v544, 4
      %v547 = vshll.u32 %v244, 16
      %v549 = vrot.slane %v547, 5
      %v550 = vsel %vm272, %v545, %v549
      %v551 = vshrl.u32 %v244, 16
      %v553 = vrot.slane %v551, 4
      %v554 = vor.u32 %v553, %v549
      %v555 = vrot.slane %v554, 4
      %v557 = vshll.u32 %v265, 16
      %v559 = vrot.slane %v557, 5
      %v560 = vsel %vm272, %v555, %v559
      %v562 = vshrl.u32 %v245, 16
      %v564 = vrot.slane %v562, 4
      %v565 = vshll.u32 %v245, 16
      %v567 = vrot.slane %v565, 5
      %v568 = vor.u32 %v564, %v567
      %v569 = vrot.slane %v568, 4
      %v571 = vshll.u32 %v246, 16
      %v573 = vrot.slane %v571, 5
      %v574 = vsel %vm272, %v569, %v573
      %v575 = vshrl.u32 %v246, 16
      %v577 = vrot.slane %v575, 4
      %v578 = vor.u32 %v577, %v573
      %v579 = vrot.slane %v578, 4
      %v581 = vshll.u32 %v266, 16
      %v583 = vrot.slane %v581, 5
      %v584 = vsel %vm272, %v579, %v583
      %v586 = vshrl.u32 %v247, 16
      %v588 = vrot.slane %v586, 4
      %v589 = vshll.u32 %v247, 16
      %v591 = vrot.slane %v589, 5
      %v592 = vor.u32 %v588, %v591
      %v593 = vrot.slane %v592, 4
      %v595 = vshll.u32 %v248, 16
      %v597 = vrot.slane %v595, 5
      %v598 = vsel %vm272, %v593, %v597
      %v599 = vshrl.u32 %v248, 16
      %v601 = vrot.slane %v599, 4
      %v602 = vor.u32 %v601, %v597
      %v603 = vrot.slane %v602, 4
      %v605 = vshll.u32 %v267, 16
      %v607 = vrot.slane %v605, 5
      %v608 = vsel %vm272, %v603, %v607
      %v610 = vshrl.u32 %v249, 16
      %v612 = vrot.slane %v610, 4
      %v613 = vshll.u32 %v249, 16
      %v615 = vrot.slane %v613, 5
      %v616 = vor.u32 %v612, %v615
      %v617 = vrot.slane %v616, 4
      %v619 = vshll.u32 %v250, 16
      %v621 = vrot.slane %v619, 5
      %v622 = vsel %vm272, %v617, %v621
      %v623 = vshrl.u32 %v250, 16
      %v625 = vrot.slane %v623, 4
      %v626 = vor.u32 %v625, %v621
      %v627 = vrot.slane %v626, 4
      %v629 = vshll.u32 %v268, 16
      %v631 = vrot.slane %v629, 5
      %v632 = vsel %vm272, %v627, %v631
      %v634 = vshrl.u32 %v251, 16
      %v636 = vrot.slane %v634, 4
      %v637 = vshll.u32 %v251, 16
      %v639 = vrot.slane %v637, 5
      %v640 = vor.u32 %v636, %v639
      %v641 = vrot.slane %v640, 4
      %v643 = vshll.u32 %v252, 16
      %v645 = vrot.slane %v643, 5
      %v646 = vsel %vm272, %v641, %v645
      %v647 = vshrl.u32 %v252, 16
      %v649 = vrot.slane %v647, 4
      %v650 = vor.u32 %v649, %v645
      %v651 = vrot.slane %v650, 4
      %v653 = vshll.u32 %v269, 16
      %v655 = vrot.slane %v653, 5
      %v656 = vsel %vm272, %v651, %v655
      %s657 = scalar_lea.vmem %s1, 2
      %v658 = vld [vmem:[%s657] sm:$0x3]
      %v659 = vunpack.c.l.b16 %v286
      %v660 = vunpack.c.l.b16 %v296
      %v661 = vunpack.c.l.b16 %v310
      %v662 = vunpack.c.l.b16 %v320
      %v663 = vunpack.c.l.b16 %v334
      %v664 = vunpack.c.l.b16 %v344
      %v665 = vunpack.c.l.b16 %v358
      %v666 = vunpack.c.l.b16 %v368
      %v667 = vunpack.c.l.b16 %v382
      %v668 = vunpack.c.l.b16 %v392
      %v669 = vunpack.c.l.b16 %v406
      %v670 = vunpack.c.l.b16 %v416
      %v671 = vunpack.c.l.b16 %v430
      %v672 = vunpack.c.l.b16 %v440
      %v673 = vunpack.c.l.b16 %v454
      %v674 = vunpack.c.l.b16 %v464
      %v675 = vunpack.c.l.b16 %v478
      %v676 = vunpack.c.l.b16 %v488
      %v677 = vunpack.c.l.b16 %v502
      %v678 = vunpack.c.l.b16 %v512
      %v679 = vunpack.c.l.b16 %v526
      %v680 = vunpack.c.l.b16 %v536
      %v681 = vunpack.c.l.b16 %v550
      %v682 = vunpack.c.l.b16 %v560
      %v683 = vunpack.c.l.b16 %v574
      %v684 = vunpack.c.l.b16 %v584
      %v685 = vunpack.c.l.b16 %v598
      %v686 = vunpack.c.l.b16 %v608
      %v687 = vunpack.c.l.b16 %v622
      %v688 = vunpack.c.l.b16 %v632
      %v689 = vunpack.c.l.b16 %v646
      %v690 = vunpack.c.l.b16 %v656
      %v691 = vpack.c.b16 %v660, %v659
      %v692 = vpack.c.b16 %v662, %v661
      %v693 = vpack.c.b16 %v664, %v663
      %v694 = vpack.c.b16 %v666, %v665
      %v695 = vpack.c.b16 %v668, %v667
      %v696 = vpack.c.b16 %v670, %v669
      %v697 = vpack.c.b16 %v672, %v671
      %v698 = vpack.c.b16 %v674, %v673
      %v699 = vpack.c.b16 %v676, %v675
      %v700 = vpack.c.b16 %v678, %v677
      %v701 = vpack.c.b16 %v680, %v679
      %v702 = vpack.c.b16 %v682, %v681
      %v703 = vpack.c.b16 %v684, %v683
      %v704 = vpack.c.b16 %v686, %v685
      %v705 = vpack.c.b16 %v688, %v687
      %v706 = vpack.c.b16 %v690, %v689
      %vm707 = vcmask 31744
      %v709 = vsel %vm707, %v691, 0
      %v712 = vsel %vm707, %v692, 0
      %v715 = vsel %vm707, %v693, 0
      %v718 = vsel %vm707, %v694, 0
      %v721 = vsel %vm707, %v695, 0
      %v724 = vsel %vm707, %v696, 0
      %v727 = vsel %vm707, %v697, 0
      %v730 = vsel %vm707, %v698, 0
      %v733 = vsel %vm707, %v699, 0
      %v736 = vsel %vm707, %v700, 0
      %v739 = vsel %vm707, %v701, 0
      %v742 = vsel %vm707, %v702, 0
      %v745 = vsel %vm707, %v703, 0
      %v748 = vsel %vm707, %v704, 0
      %v751 = vsel %vm707, %v705, 0
      %v754 = vsel %vm707, %v706, 0
      %vm756 = vcmask 1041408
      %v758 = vsel %vm756, %v658, 0
      %760 = vmatprep.subr.bf16.mxu0 0
      %761 = vmatpush1.bf16.msra.mxu0 %v758
      %762 = vmatprep.subr.bf16.mxu0 0
      %763 = vmatpush1.bf16.msra.mxu0 0
      %764 = vmatprep.subr.bf16.mxu0 0
      %765 = vmatpush1.bf16.msra.mxu0 0
      %766 = vmatprep.subr.bf16.mxu0 0
      %767 = vmatpush1.bf16.msra.mxu0 0
      %768 = vmatprep.subr.bf16.mxu0 0
      %769 = vmatpush1.bf16.msra.mxu0 0
      %770 = vmatprep.subr.bf16.mxu0 0
      %771 = vmatpush1.bf16.msra.mxu0 0
      %772 = vmatprep.subr.bf16.mxu0 0
      %773 = vmatpush1.bf16.msra.mxu0 0
      %774 = vmatprep.subr.bf16.mxu0 0
      %775 = vmatpush1.bf16.msra.mxu0 0
      %776 = vmatprep.subr.bf16.mxu0 0
      %777 = vmatpush1.bf16.msra.mxu0 0
      %778 = vmatprep.subr.bf16.mxu0 0
      %779 = vmatpush1.bf16.msra.mxu0 0
      %780 = vmatprep.subr.bf16.mxu0 0
      %781 = vmatpush1.bf16.msra.mxu0 0
      %782 = vmatprep.subr.bf16.mxu0 0
      %783 = vmatpush1.bf16.msra.mxu0 0
      %784 = vmatprep.subr.bf16.mxu0 0
      %785 = vmatpush1.bf16.msra.mxu0 0
      %786 = vmatprep.subr.bf16.mxu0 0
      %787 = vmatpush1.bf16.msra.mxu0 0
      %788 = vmatprep.subr.bf16.mxu0 0
      %789 = vmatpush1.bf16.msra.mxu0 0
      %790 = vmatprep.subr.bf16.mxu0 0
      %791 = vmatpush1.bf16.msra.mxu0 0
      %792 = vmatprep.mubr.bf16.mxu0 0
      %793 = vmatmul.mubr.bf16.gmra.mrb[0].mxu0 %v709
      %v794 = vpop.f32.mrb[0].mxu0
      %v795 = vadd.f32 0.0, %v794
      %v796 = vpop.f32.mrb[0].mxu0
      %v797 = vpop.f32.mrb[0].mxu0
      %v798 = vadd.f32 0.0, %v797
      %v799 = vpop.f32.mrb[0].mxu0
      %800 = vmatprep.mubr.bf16.mxu0 0
      %801 = vmatmul.mubr.bf16.gmra.mrb[0].mxu0 %v712
      %v802 = vpop.f32.mrb[0].mxu0
      %v803 = vadd.f32 0.0, %v802
      %v804 = vpop.f32.mrb[0].mxu0
      %v805 = vpop.f32.mrb[0].mxu0
      %v806 = vadd.f32 0.0, %v805
      %v807 = vpop.f32.mrb[0].mxu0
      %808 = vmatprep.mubr.bf16.mxu0 0
      %809 = vmatmul.mubr.bf16.gmra.mrb[0].mxu0 %v715
      %v810 = vpop.f32.mrb[0].mxu0
      %v811 = vadd.f32 0.0, %v810
      %v812 = vpop.f32.mrb[0].mxu0
      %v813 = vpop.f32.mrb[0].mxu0
      %v814 = vadd.f32 0.0, %v813
      %v815 = vpop.f32.mrb[0].mxu0
      %816 = vmatprep.mubr.bf16.mxu0 0
      %817 = vmatmul.mubr.bf16.gmra.mrb[0].mxu0 %v718
      %v818 = vpop.f32.mrb[0].mxu0
      %v819 = vadd.f32 0.0, %v818
      %v820 = vpop.f32.mrb[0].mxu0
      %v821 = vpop.f32.mrb[0].mxu0
      %v822 = vadd.f32 0.0, %v821
      %v823 = vpop.f32.mrb[0].mxu0
      %824 = vmatprep.mubr.bf16.mxu0 0
      %825 = vmatmul.mubr.bf16.gmra.mrb[0].mxu0 %v721
      %v826 = vpop.f32.mrb[0].mxu0
      %v827 = vadd.f32 0.0, %v826
      %v828 = vpop.f32.mrb[0].mxu0
      %v829 = vpop.f32.mrb[0].mxu0
      %v830 = vadd.f32 0.0, %v829
      %v831 = vpop.f32.mrb[0].mxu0
      %832 = vmatprep.mubr.bf16.mxu0 0
      %833 = vmatmul.mubr.bf16.gmra.mrb[0].mxu0 %v724
      %v834 = vpop.f32.mrb[0].mxu0
      %v835 = vadd.f32 0.0, %v834
      %v836 = vpop.f32.mrb[0].mxu0
      %v837 = vpop.f32.mrb[0].mxu0
      %v838 = vadd.f32 0.0, %v837
      %v839 = vpop.f32.mrb[0].mxu0
      %840 = vmatprep.mubr.bf16.mxu0 0
      %841 = vmatmul.mubr.bf16.gmra.mrb[0].mxu0 %v727
      %v842 = vpop.f32.mrb[0].mxu0
      %v843 = vadd.f32 0.0, %v842
      %v844 = vpop.f32.mrb[0].mxu0
      %v845 = vpop.f32.mrb[0].mxu0
      %v846 = vadd.f32 0.0, %v845
      %v847 = vpop.f32.mrb[0].mxu0
      %848 = vmatprep.mubr.bf16.mxu0 0
      %849 = vmatmul.mubr.bf16.gmra.mrb[0].mxu0 %v730
      %v850 = vpop.f32.mrb[0].mxu0
      %v851 = vadd.f32 0.0, %v850
      %v852 = vpop.f32.mrb[0].mxu0
      %v853 = vpop.f32.mrb[0].mxu0
      %v854 = vadd.f32 0.0, %v853
      %v855 = vpop.f32.mrb[0].mxu0
      %856 = vmatprep.mubr.bf16.mxu0 0
      %857 = vmatmul.mubr.bf16.gmra.mrb[0].mxu0 %v733
      %v858 = vpop.f32.mrb[0].mxu0
      %v859 = vadd.f32 0.0, %v858
      %v860 = vpop.f32.mrb[0].mxu0
      %v861 = vpop.f32.mrb[0].mxu0
      %v862 = vadd.f32 0.0, %v861
      %v863 = vpop.f32.mrb[0].mxu0
      %864 = vmatprep.mubr.bf16.mxu0 0
      %865 = vmatmul.mubr.bf16.gmra.mrb[0].mxu0 %v736
      %v866 = vpop.f32.mrb[0].mxu0
      %v867 = vadd.f32 0.0, %v866
      %v868 = vpop.f32.mrb[0].mxu0
      %v869 = vpop.f32.mrb[0].mxu0
      %v870 = vadd.f32 0.0, %v869
      %v871 = vpop.f32.mrb[0].mxu0
      %872 = vmatprep.mubr.bf16.mxu0 0
      %873 = vmatmul.mubr.bf16.gmra.mrb[0].mxu0 %v739
      %v874 = vpop.f32.mrb[0].mxu0
      %v875 = vadd.f32 0.0, %v874
      %v876 = vpop.f32.mrb[0].mxu0
      %v877 = vpop.f32.mrb[0].mxu0
      %v878 = vadd.f32 0.0, %v877
      %v879 = vpop.f32.mrb[0].mxu0
      %880 = vmatprep.mubr.bf16.mxu0 0
      %881 = vmatmul.mubr.bf16.gmra.mrb[0].mxu0 %v742
      %v882 = vpop.f32.mrb[0].mxu0
      %v883 = vadd.f32 0.0, %v882
      %v884 = vpop.f32.mrb[0].mxu0
      %v885 = vpop.f32.mrb[0].mxu0
      %v886 = vadd.f32 0.0, %v885
      %v887 = vpop.f32.mrb[0].mxu0
      %888 = vmatprep.mubr.bf16.mxu0 0
      %889 = vmatmul.mubr.bf16.gmra.mrb[0].mxu0 %v745
      %v890 = vpop.f32.mrb[0].mxu0
      %v891 = vadd.f32 0.0, %v890
      %v892 = vpop.f32.mrb[0].mxu0
      %v893 = vpop.f32.mrb[0].mxu0
      %v894 = vadd.f32 0.0, %v893
      %v895 = vpop.f32.mrb[0].mxu0
      %896 = vmatprep.mubr.bf16.mxu0 0
      %897 = vmatmul.mubr.bf16.gmra.mrb[0].mxu0 %v748
      %v898 = vpop.f32.mrb[0].mxu0
      %v899 = vadd.f32 0.0, %v898
      %v900 = vpop.f32.mrb[0].mxu0
      %v901 = vpop.f32.mrb[0].mxu0
      %v902 = vadd.f32 0.0, %v901
      %v903 = vpop.f32.mrb[0].mxu0
      %904 = vmatprep.mubr.bf16.mxu0 0
      %905 = vmatmul.mubr.bf16.gmra.mrb[0].mxu0 %v751
      %v906 = vpop.f32.mrb[0].mxu0
      %v907 = vadd.f32 0.0, %v906
      %v908 = vpop.f32.mrb[0].mxu0
      %v909 = vpop.f32.mrb[0].mxu0
      %v910 = vadd.f32 0.0, %v909
      %v911 = vpop.f32.mrb[0].mxu0
      %912 = vmatprep.mubr.bf16.mxu0 0
      %913 = vmatmul.mubr.bf16.gmra.mrb[0].mxu0 %v754
      %v914 = vpop.f32.mrb[0].mxu0
      %v915 = vadd.f32 0.0, %v914
      %v916 = vpop.f32.mrb[0].mxu0
      %v917 = vpop.f32.mrb[0].mxu0
      %v918 = vadd.f32 0.0, %v917
      %v919 = vpop.f32.mrb[0].mxu0
      %920 = vdwg.mxu0
      %v953 = vunpack.c.l.b16 %v221
      %v954 = vunpack.c.l.b16 %v222
      %v955 = vunpack.c.l.b16 %v223
      %v956 = vunpack.c.l.b16 %v224
      %v957 = vunpack.c.l.b16 %v225
      %v958 = vunpack.c.l.b16 %v226
      %v959 = vunpack.c.l.b16 %v227
      %v960 = vunpack.c.l.b16 %v228
      %v961 = vunpack.c.l.b16 %v229
      %v962 = vunpack.c.l.b16 %v230
      %v963 = vunpack.c.l.b16 %v231
      %v964 = vunpack.c.l.b16 %v232
      %v965 = vunpack.c.l.b16 %v233
      %v966 = vunpack.c.l.b16 %v234
      %v967 = vunpack.c.l.b16 %v235
      %v968 = vunpack.c.l.b16 %v236
      %v969 = vunpack.c.l.b16 %v237
      %v970 = vunpack.c.l.b16 %v238
      %v971 = vunpack.c.l.b16 %v239
      %v972 = vunpack.c.l.b16 %v240
      %v973 = vunpack.c.l.b16 %v241
      %v974 = vunpack.c.l.b16 %v242
      %v975 = vunpack.c.l.b16 %v243
      %v976 = vunpack.c.l.b16 %v244
      %v977 = vunpack.c.l.b16 %v245
      %v978 = vunpack.c.l.b16 %v246
      %v979 = vunpack.c.l.b16 %v247
      %v980 = vunpack.c.l.b16 %v248
      %v981 = vunpack.c.l.b16 %v249
      %v982 = vunpack.c.l.b16 %v250
      %v983 = vunpack.c.l.b16 %v251
      %v984 = vunpack.c.l.b16 %v252
      %v985 = vpack.c.b16 %v954, %v953
      %v986 = vpack.c.b16 %v956, %v955
      %v987 = vpack.c.b16 %v958, %v957
      %v988 = vpack.c.b16 %v960, %v959
      %v989 = vpack.c.b16 %v962, %v961
      %v990 = vpack.c.b16 %v964, %v963
      %v991 = vpack.c.b16 %v966, %v965
      %v992 = vpack.c.b16 %v968, %v967
      %v993 = vpack.c.b16 %v970, %v969
      %v994 = vpack.c.b16 %v972, %v971
      %v995 = vpack.c.b16 %v974, %v973
      %v996 = vpack.c.b16 %v976, %v975
      %v997 = vpack.c.b16 %v978, %v977
      %v998 = vpack.c.b16 %v980, %v979
      %v999 = vpack.c.b16 %v982, %v981
      %v1000 = vpack.c.b16 %v984, %v983
      %v1002 = vsel %vm707, %v985, 0
      %v1005 = vsel %vm707, %v986, 0
      %v1008 = vsel %vm707, %v987, 0
      %v1011 = vsel %vm707, %v988, 0
      %v1014 = vsel %vm707, %v989, 0
      %v1017 = vsel %vm707, %v990, 0
      %v1020 = vsel %vm707, %v991, 0
      %v1023 = vsel %vm707, %v992, 0
      %v1026 = vsel %vm707, %v993, 0
      %v1029 = vsel %vm707, %v994, 0
      %v1032 = vsel %vm707, %v995, 0
      %v1035 = vsel %vm707, %v996, 0
      %v1038 = vsel %vm707, %v997, 0
      %v1041 = vsel %vm707, %v998, 0
      %v1044 = vsel %vm707, %v999, 0
      %v1047 = vsel %vm707, %v1000, 0
      %v1050 = vsel %vm756, %v253, 0
      %1052 = vmatprep.subr.bf16.mxu0 0
      %1053 = vmatpush1.bf16.msra.mxu0 %v1050
      %1054 = vmatprep.subr.bf16.mxu0 0
      %1055 = vmatpush1.bf16.msra.mxu0 0
      %1056 = vmatprep.subr.bf16.mxu0 0
      %1057 = vmatpush1.bf16.msra.mxu0 0
      %1058 = vmatprep.subr.bf16.mxu0 0
      %1059 = vmatpush1.bf16.msra.mxu0 0
      %1060 = vmatprep.subr.bf16.mxu0 0
      %1061 = vmatpush1.bf16.msra.mxu0 0
      %1062 = vmatprep.subr.bf16.mxu0 0
      %1063 = vmatpush1.bf16.msra.mxu0 0
      %1064 = vmatprep.subr.bf16.mxu0 0
      %1065 = vmatpush1.bf16.msra.mxu0 0
      %1066 = vmatprep.subr.bf16.mxu0 0
      %1067 = vmatpush1.bf16.msra.mxu0 0
      %1068 = vmatprep.subr.bf16.mxu0 0
      %1069 = vmatpush1.bf16.msra.mxu0 0
      %1070 = vmatprep.subr.bf16.mxu0 0
      %1071 = vmatpush1.bf16.msra.mxu0 0
      %1072 = vmatprep.subr.bf16.mxu0 0
      %1073 = vmatpush1.bf16.msra.mxu0 0
      %1074 = vmatprep.subr.bf16.mxu0 0
      %1075 = vmatpush1.bf16.msra.mxu0 0
      %1076 = vmatprep.subr.bf16.mxu0 0
      %1077 = vmatpush1.bf16.msra.mxu0 0
      %1078 = vmatprep.subr.bf16.mxu0 0
      %1079 = vmatpush1.bf16.msra.mxu0 0
      %1080 = vmatprep.subr.bf16.mxu0 0
      %1081 = vmatpush1.bf16.msra.mxu0 0
      %1082 = vmatprep.subr.bf16.mxu0 0
      %1083 = vmatpush1.bf16.msra.mxu0 0
      %1084 = vmatprep.mubr.bf16.mxu0 0
      %1085 = vmatmul.mubr.bf16.gmra.mrb[0].mxu0 %v1002
      %v1086 = vpop.f32.mrb[0].mxu0
      %v1087 = vadd.f32 %v795, %v1086
      %v1088 = vpop.f32.mrb[0].mxu0
      %v1089 = vpop.f32.mrb[0].mxu0
      %v1090 = vadd.f32 %v798, %v1089
      %v1091 = vpop.f32.mrb[0].mxu0
      %1092 = vmatprep.mubr.bf16.mxu0 0
      %1093 = vmatmul.mubr.bf16.gmra.mrb[0].mxu0 %v1005
      %v1094 = vpop.f32.mrb[0].mxu0
      %v1095 = vadd.f32 %v803, %v1094
      %v1096 = vpop.f32.mrb[0].mxu0
      %v1097 = vpop.f32.mrb[0].mxu0
      %v1098 = vadd.f32 %v806, %v1097
      %v1099 = vpop.f32.mrb[0].mxu0
      %1100 = vmatprep.mubr.bf16.mxu0 0
      %1101 = vmatmul.mubr.bf16.gmra.mrb[0].mxu0 %v1008
      %v1102 = vpop.f32.mrb[0].mxu0
      %v1103 = vadd.f32 %v811, %v1102
      %v1104 = vpop.f32.mrb[0].mxu0
      %v1105 = vpop.f32.mrb[0].mxu0
      %v1106 = vadd.f32 %v814, %v1105
      %v1107 = vpop.f32.mrb[0].mxu0
      %1108 = vmatprep.mubr.bf16.mxu0 0
      %1109 = vmatmul.mubr.bf16.gmra.mrb[0].mxu0 %v1011
      %v1110 = vpop.f32.mrb[0].mxu0
      %v1111 = vadd.f32 %v819, %v1110
      %v1112 = vpop.f32.mrb[0].mxu0
      %v1113 = vpop.f32.mrb[0].mxu0
      %v1114 = vadd.f32 %v822, %v1113
      %v1115 = vpop.f32.mrb[0].mxu0
      %1116 = vmatprep.mubr.bf16.mxu0 0
      %1117 = vmatmul.mubr.bf16.gmra.mrb[0].mxu0 %v1014
      %v1118 = vpop.f32.mrb[0].mxu0
      %v1119 = vadd.f32 %v827, %v1118
      %v1120 = vpop.f32.mrb[0].mxu0
      %v1121 = vpop.f32.mrb[0].mxu0
      %v1122 = vadd.f32 %v830, %v1121
      %v1123 = vpop.f32.mrb[0].mxu0
      %1124 = vmatprep.mubr.bf16.mxu0 0
      %1125 = vmatmul.mubr.bf16.gmra.mrb[0].mxu0 %v1017
      %v1126 = vpop.f32.mrb[0].mxu0
      %v1127 = vadd.f32 %v835, %v1126
      %v1128 = vpop.f32.mrb[0].mxu0
      %v1129 = vpop.f32.mrb[0].mxu0
      %v1130 = vadd.f32 %v838, %v1129
      %v1131 = vpop.f32.mrb[0].mxu0
      %1132 = vmatprep.mubr.bf16.mxu0 0
      %1133 = vmatmul.mubr.bf16.gmra.mrb[0].mxu0 %v1020
      %v1134 = vpop.f32.mrb[0].mxu0
      %v1135 = vadd.f32 %v843, %v1134
      %v1136 = vpop.f32.mrb[0].mxu0
      %v1137 = vpop.f32.mrb[0].mxu0
      %v1138 = vadd.f32 %v846, %v1137
      %v1139 = vpop.f32.mrb[0].mxu0
      %1140 = vmatprep.mubr.bf16.mxu0 0
      %1141 = vmatmul.mubr.bf16.gmra.mrb[0].mxu0 %v1023
      %v1142 = vpop.f32.mrb[0].mxu0
      %v1143 = vadd.f32 %v851, %v1142
      %v1144 = vpop.f32.mrb[0].mxu0
      %v1145 = vpop.f32.mrb[0].mxu0
      %v1146 = vadd.f32 %v854, %v1145
      %v1147 = vpop.f32.mrb[0].mxu0
      %1148 = vmatprep.mubr.bf16.mxu0 0
      %1149 = vmatmul.mubr.bf16.gmra.mrb[0].mxu0 %v1026
      %v1150 = vpop.f32.mrb[0].mxu0
      %v1151 = vadd.f32 %v859, %v1150
      %v1152 = vpop.f32.mrb[0].mxu0
      %v1153 = vpop.f32.mrb[0].mxu0
      %v1154 = vadd.f32 %v862, %v1153
      %v1155 = vpop.f32.mrb[0].mxu0
      %1156 = vmatprep.mubr.bf16.mxu0 0
      %1157 = vmatmul.mubr.bf16.gmra.mrb[0].mxu0 %v1029
      %v1158 = vpop.f32.mrb[0].mxu0
      %v1159 = vadd.f32 %v867, %v1158
      %v1160 = vpop.f32.mrb[0].mxu0
      %v1161 = vpop.f32.mrb[0].mxu0
      %v1162 = vadd.f32 %v870, %v1161
      %v1163 = vpop.f32.mrb[0].mxu0
      %1164 = vmatprep.mubr.bf16.mxu0 0
      %1165 = vmatmul.mubr.bf16.gmra.mrb[0].mxu0 %v1032
      %v1166 = vpop.f32.mrb[0].mxu0
      %v1167 = vadd.f32 %v875, %v1166
      %v1168 = vpop.f32.mrb[0].mxu0
      %v1169 = vpop.f32.mrb[0].mxu0
      %v1170 = vadd.f32 %v878, %v1169
      %v1171 = vpop.f32.mrb[0].mxu0
      %1172 = vmatprep.mubr.bf16.mxu0 0
      %1173 = vmatmul.mubr.bf16.gmra.mrb[0].mxu0 %v1035
      %v1174 = vpop.f32.mrb[0].mxu0
      %v1175 = vadd.f32 %v883, %v1174
      %v1176 = vpop.f32.mrb[0].mxu0
      %v1177 = vpop.f32.mrb[0].mxu0
      %v1178 = vadd.f32 %v886, %v1177
      %v1179 = vpop.f32.mrb[0].mxu0
      %1180 = vmatprep.mubr.bf16.mxu0 0
      %1181 = vmatmul.mubr.bf16.gmra.mrb[0].mxu0 %v1038
      %v1182 = vpop.f32.mrb[0].mxu0
      %v1183 = vadd.f32 %v891, %v1182
      %v1184 = vpop.f32.mrb[0].mxu0
      %v1185 = vpop.f32.mrb[0].mxu0
      %v1186 = vadd.f32 %v894, %v1185
      %v1187 = vpop.f32.mrb[0].mxu0
      %1188 = vmatprep.mubr.bf16.mxu0 0
      %1189 = vmatmul.mubr.bf16.gmra.mrb[0].mxu0 %v1041
      %v1190 = vpop.f32.mrb[0].mxu0
      %v1191 = vadd.f32 %v899, %v1190
      %v1192 = vpop.f32.mrb[0].mxu0
      %v1193 = vpop.f32.mrb[0].mxu0
      %v1194 = vadd.f32 %v902, %v1193
      %v1195 = vpop.f32.mrb[0].mxu0
      %1196 = vmatprep.mubr.bf16.mxu0 0
      %1197 = vmatmul.mubr.bf16.gmra.mrb[0].mxu0 %v1044
      %v1198 = vpop.f32.mrb[0].mxu0
      %v1199 = vadd.f32 %v907, %v1198
      %v1200 = vpop.f32.mrb[0].mxu0
      %v1201 = vpop.f32.mrb[0].mxu0
      %v1202 = vadd.f32 %v910, %v1201
      %v1203 = vpop.f32.mrb[0].mxu0
      %1204 = vmatprep.mubr.bf16.mxu0 0
      %1205 = vmatmul.mubr.bf16.gmra.mrb[0].mxu0 %v1047
      %v1206 = vpop.f32.mrb[0].mxu0
      %v1207 = vadd.f32 %v915, %v1206
      %v1208 = vpop.f32.mrb[0].mxu0
      %v1209 = vpop.f32.mrb[0].mxu0
      %v1210 = vadd.f32 %v918, %v1209
      %v1211 = vpop.f32.mrb[0].mxu0
      %1212 = vdwg.mxu0
      %v1213 = vld [vmem:[%s205] sm:$0xe]
      %v1214 = vld [vmem:[%s205 + $0xc] sm:$0xe]
      %v1215 = vld [vmem:[%s205 + $0x18] sm:$0xe]
      %v1216 = vld [vmem:[%s205 + $0x24] sm:$0xe]
      %v1217 = vld [vmem:[%s205 + $0x30] sm:$0xe]
      %v1218 = vld [vmem:[%s205 + $0x3c] sm:$0xe]
      %v1219 = vld [vmem:[%s205 + $0x48] sm:$0xe]
      %v1220 = vld [vmem:[%s205 + $0x54] sm:$0xe]
      %v1221 = vld [vmem:[%s205 + $0x60] sm:$0xe]
      %v1222 = vld [vmem:[%s205 + $0x6c] sm:$0xe]
      %v1223 = vld [vmem:[%s205 + $0x78] sm:$0xe]
      %v1224 = vld [vmem:[%s205 + $0x84] sm:$0xe]
      %v1225 = vld [vmem:[%s205 + $0x90] sm:$0xe]
      %v1226 = vld [vmem:[%s205 + $0x9c] sm:$0xe]
      %v1227 = vld [vmem:[%s205 + $0xa8] sm:$0xe]
      %v1228 = vld [vmem:[%s205 + $0xb4] sm:$0xe]
      %vm1261 = vcmask 1042432
      %vm1262 = vcmask 1046532
      %vm1263 = vmor %vm1261, %vm1262
      %v1264 = vrot.slane %v1213, 5
      %v1265 = vrot.slane %v1264, 4
      %v1266 = vrot.slane %v222, 5
      %v1267 = vsel %vm1263, %v1265, %v1266
      %v1268 = vrot.slane %v1266, 4
      %v1269 = vrot.slane %v254, 5
      %v1270 = vsel %vm1263, %v1268, %v1269
      %v1271 = vrot.slane %v1214, 5
      %v1272 = vrot.slane %v1271, 4
      %v1273 = vrot.slane %v224, 5
      %v1274 = vsel %vm1263, %v1272, %v1273
      %v1275 = vrot.slane %v1273, 4
      %v1276 = vrot.slane %v255, 5
      %v1277 = vsel %vm1263, %v1275, %v1276
      %v1278 = vrot.slane %v1215, 5
      %v1279 = vrot.slane %v1278, 4
      %v1280 = vrot.slane %v226, 5
      %v1281 = vsel %vm1263, %v1279, %v1280
      %v1282 = vrot.slane %v1280, 4
      %v1283 = vrot.slane %v256, 5
      %v1284 = vsel %vm1263, %v1282, %v1283
      %v1285 = vrot.slane %v1216, 5
      %v1286 = vrot.slane %v1285, 4
      %v1287 = vrot.slane %v228, 5
      %v1288 = vsel %vm1263, %v1286, %v1287
      %v1289 = vrot.slane %v1287, 4
      %v1290 = vrot.slane %v257, 5
      %v1291 = vsel %vm1263, %v1289, %v1290
      %v1292 = vrot.slane %v1217, 5
      %v1293 = vrot.slane %v1292, 4
      %v1294 = vrot.slane %v230, 5
      %v1295 = vsel %vm1263, %v1293, %v1294
      %v1296 = vrot.slane %v1294, 4
      %v1297 = vrot.slane %v258, 5
      %v1298 = vsel %vm1263, %v1296, %v1297
      %v1299 = vrot.slane %v1218, 5
      %v1300 = vrot.slane %v1299, 4
      %v1301 = vrot.slane %v232, 5
      %v1302 = vsel %vm1263, %v1300, %v1301
      %v1303 = vrot.slane %v1301, 4
      %v1304 = vrot.slane %v259, 5
      %v1305 = vsel %vm1263, %v1303, %v1304
      %v1306 = vrot.slane %v1219, 5
      %v1307 = vrot.slane %v1306, 4
      %v1308 = vrot.slane %v234, 5
      %v1309 = vsel %vm1263, %v1307, %v1308
      %v1310 = vrot.slane %v1308, 4
      %v1311 = vrot.slane %v260, 5
      %v1312 = vsel %vm1263, %v1310, %v1311
      %v1313 = vrot.slane %v1220, 5
      %v1314 = vrot.slane %v1313, 4
      %v1315 = vrot.slane %v236, 5
      %v1316 = vsel %vm1263, %v1314, %v1315
      %v1317 = vrot.slane %v1315, 4
      %v1318 = vrot.slane %v261, 5
      %v1319 = vsel %vm1263, %v1317, %v1318
      %v1320 = vrot.slane %v1221, 5
      %v1321 = vrot.slane %v1320, 4
      %v1322 = vrot.slane %v238, 5
      %v1323 = vsel %vm1263, %v1321, %v1322
      %v1324 = vrot.slane %v1322, 4
      %v1325 = vrot.slane %v262, 5
      %v1326 = vsel %vm1263, %v1324, %v1325
      %v1327 = vrot.slane %v1222, 5
      %v1328 = vrot.slane %v1327, 4
      %v1329 = vrot.slane %v240, 5
      %v1330 = vsel %vm1263, %v1328, %v1329
      %v1331 = vrot.slane %v1329, 4
      %v1332 = vrot.slane %v263, 5
      %v1333 = vsel %vm1263, %v1331, %v1332
      %v1334 = vrot.slane %v1223, 5
      %v1335 = vrot.slane %v1334, 4
      %v1336 = vrot.slane %v242, 5
      %v1337 = vsel %vm1263, %v1335, %v1336
      %v1338 = vrot.slane %v1336, 4
      %v1339 = vrot.slane %v264, 5
      %v1340 = vsel %vm1263, %v1338, %v1339
      %v1341 = vrot.slane %v1224, 5
      %v1342 = vrot.slane %v1341, 4
      %v1343 = vrot.slane %v244, 5
      %v1344 = vsel %vm1263, %v1342, %v1343
      %v1345 = vrot.slane %v1343, 4
      %v1346 = vrot.slane %v265, 5
      %v1347 = vsel %vm1263, %v1345, %v1346
      %v1348 = vrot.slane %v1225, 5
      %v1349 = vrot.slane %v1348, 4
      %v1350 = vrot.slane %v246, 5
      %v1351 = vsel %vm1263, %v1349, %v1350
      %v1352 = vrot.slane %v1350, 4
      %v1353 = vrot.slane %v266, 5
      %v1354 = vsel %vm1263, %v1352, %v1353
      %v1355 = vrot.slane %v1226, 5
      %v1356 = vrot.slane %v1355, 4
      %v1357 = vrot.slane %v248, 5
      %v1358 = vsel %vm1263, %v1356, %v1357
      %v1359 = vrot.slane %v1357, 4
      %v1360 = vrot.slane %v267, 5
      %v1361 = vsel %vm1263, %v1359, %v1360
      %v1362 = vrot.slane %v1227, 5
      %v1363 = vrot.slane %v1362, 4
      %v1364 = vrot.slane %v250, 5
      %v1365 = vsel %vm1263, %v1363, %v1364
      %v1366 = vrot.slane %v1364, 4
      %v1367 = vrot.slane %v268, 5
      %v1368 = vsel %vm1263, %v1366, %v1367
      %v1369 = vrot.slane %v1228, 5
      %v1370 = vrot.slane %v1369, 4
      %v1371 = vrot.slane %v252, 5
      %v1372 = vsel %vm1263, %v1370, %v1371
      %v1373 = vrot.slane %v1371, 4
      %v1374 = vrot.slane %v269, 5
      %v1375 = vsel %vm1263, %v1373, %v1374
      %s1376 = scalar_lea.vmem %s1, 4
      %v1377 = vld [vmem:[%s1376] sm:$0x3]
      %v1378 = vunpack.c.l.b16 %v1267
      %v1379 = vunpack.c.l.b16 %v1270
      %v1380 = vunpack.c.l.b16 %v1274
      %v1381 = vunpack.c.l.b16 %v1277
      %v1382 = vunpack.c.l.b16 %v1281
      %v1383 = vunpack.c.l.b16 %v1284
      %v1384 = vunpack.c.l.b16 %v1288
      %v1385 = vunpack.c.l.b16 %v1291
      %v1386 = vunpack.c.l.b16 %v1295
      %v1387 = vunpack.c.l.b16 %v1298
      %v1388 = vunpack.c.l.b16 %v1302
      %v1389 = vunpack.c.l.b16 %v1305
      %v1390 = vunpack.c.l.b16 %v1309
      %v1391 = vunpack.c.l.b16 %v1312
      %v1392 = vunpack.c.l.b16 %v1316
      %v1393 = vunpack.c.l.b16 %v1319
      %v1394 = vunpack.c.l.b16 %v1323
      %v1395 = vunpack.c.l.b16 %v1326
      %v1396 = vunpack.c.l.b16 %v1330
      %v1397 = vunpack.c.l.b16 %v1333
      %v1398 = vunpack.c.l.b16 %v1337
      %v1399 = vunpack.c.l.b16 %v1340
      %v1400 = vunpack.c.l.b16 %v1344
      %v1401 = vunpack.c.l.b16 %v1347
      %v1402 = vunpack.c.l.b16 %v1351
      %v1403 = vunpack.c.l.b16 %v1354
      %v1404 = vunpack.c.l.b16 %v1358
      %v1405 = vunpack.c.l.b16 %v1361
      %v1406 = vunpack.c.l.b16 %v1365
      %v1407 = vunpack.c.l.b16 %v1368
      %v1408 = vunpack.c.l.b16 %v1372
      %v1409 = vunpack.c.l.b16 %v1375
      %v1410 = vpack.c.b16 %v1379, %v1378
      %v1411 = vpack.c.b16 %v1381, %v1380
      %v1412 = vpack.c.b16 %v1383, %v1382
      %v1413 = vpack.c.b16 %v1385, %v1384
      %v1414 = vpack.c.b16 %v1387, %v1386
      %v1415 = vpack.c.b16 %v1389, %v1388
      %v1416 = vpack.c.b16 %v1391, %v1390
      %v1417 = vpack.c.b16 %v1393, %v1392
      %v1418 = vpack.c.b16 %v1395, %v1394
      %v1419 = vpack.c.b16 %v1397, %v1396
      %v1420 = vpack.c.b16 %v1399, %v1398
      %v1421 = vpack.c.b16 %v1401, %v1400
      %v1422 = vpack.c.b16 %v1403, %v1402
      %v1423 = vpack.c.b16 %v1405, %v1404
      %v1424 = vpack.c.b16 %v1407, %v1406
      %v1425 = vpack.c.b16 %v1409, %v1408
      %v1427 = vsel %vm707, %v1410, 0
      %v1430 = vsel %vm707, %v1411, 0
      %v1433 = vsel %vm707, %v1412, 0
      %v1436 = vsel %vm707, %v1413, 0
      %v1439 = vsel %vm707, %v1414, 0
      %v1442 = vsel %vm707, %v1415, 0
      %v1445 = vsel %vm707, %v1416, 0
      %v1448 = vsel %vm707, %v1417, 0
      %v1451 = vsel %vm707, %v1418, 0
      %v1454 = vsel %vm707, %v1419, 0
      %v1457 = vsel %vm707, %v1420, 0
      %v1460 = vsel %vm707, %v1421, 0
      %v1463 = vsel %vm707, %v1422, 0
      %v1466 = vsel %vm707, %v1423, 0
      %v1469 = vsel %vm707, %v1424, 0
      %v1472 = vsel %vm707, %v1425, 0
      %v1475 = vsel %vm756, %v1377, 0
      %1477 = vmatprep.subr.bf16.mxu0 0
      %1478 = vmatpush1.bf16.msra.mxu0 %v1475
      %1479 = vmatprep.subr.bf16.mxu0 0
      %1480 = vmatpush1.bf16.msra.mxu0 0
      %1481 = vmatprep.subr.bf16.mxu0 0
      %1482 = vmatpush1.bf16.msra.mxu0 0
      %1483 = vmatprep.subr.bf16.mxu0 0
      %1484 = vmatpush1.bf16.msra.mxu0 0
      %1485 = vmatprep.subr.bf16.mxu0 0
      %1486 = vmatpush1.bf16.msra.mxu0 0
      %1487 = vmatprep.subr.bf16.mxu0 0
      %1488 = vmatpush1.bf16.msra.mxu0 0
      %1489 = vmatprep.subr.bf16.mxu0 0
      %1490 = vmatpush1.bf16.msra.mxu0 0
      %1491 = vmatprep.subr.bf16.mxu0 0
      %1492 = vmatpush1.bf16.msra.mxu0 0
      %1493 = vmatprep.subr.bf16.mxu0 0
      %1494 = vmatpush1.bf16.msra.mxu0 0
      %1495 = vmatprep.subr.bf16.mxu0 0
      %1496 = vmatpush1.bf16.msra.mxu0 0
      %1497 = vmatprep.subr.bf16.mxu0 0
      %1498 = vmatpush1.bf16.msra.mxu0 0
      %1499 = vmatprep.subr.bf16.mxu0 0
      %1500 = vmatpush1.bf16.msra.mxu0 0
      %1501 = vmatprep.subr.bf16.mxu0 0
      %1502 = vmatpush1.bf16.msra.mxu0 0
      %1503 = vmatprep.subr.bf16.mxu0 0
      %1504 = vmatpush1.bf16.msra.mxu0 0
      %1505 = vmatprep.subr.bf16.mxu0 0
      %1506 = vmatpush1.bf16.msra.mxu0 0
      %1507 = vmatprep.subr.bf16.mxu0 0
      %1508 = vmatpush1.bf16.msra.mxu0 0
      %1509 = vmatprep.mubr.bf16.mxu0 0
      %1510 = vmatmul.mubr.bf16.gmra.mrb[0].mxu0 %v1427
      %v1511 = vpop.f32.mrb[0].mxu0
      %v1512 = vadd.f32 0.0, %v1511
      %v1513 = vpop.f32.mrb[0].mxu0
      %v1514 = vpop.f32.mrb[0].mxu0
      %v1515 = vadd.f32 0.0, %v1514
      %v1516 = vpop.f32.mrb[0].mxu0
      %1517 = vmatprep.mubr.bf16.mxu0 0
      %1518 = vmatmul.mubr.bf16.gmra.mrb[0].mxu0 %v1430
      %v1519 = vpop.f32.mrb[0].mxu0
      %v1520 = vadd.f32 0.0, %v1519
      %v1521 = vpop.f32.mrb[0].mxu0
      %v1522 = vpop.f32.mrb[0].mxu0
      %v1523 = vadd.f32 0.0, %v1522
      %v1524 = vpop.f32.mrb[0].mxu0
      %1525 = vmatprep.mubr.bf16.mxu0 0
      %1526 = vmatmul.mubr.bf16.gmra.mrb[0].mxu0 %v1433
      %v1527 = vpop.f32.mrb[0].mxu0
      %v1528 = vadd.f32 0.0, %v1527
      %v1529 = vpop.f32.mrb[0].mxu0
      %v1530 = vpop.f32.mrb[0].mxu0
      %v1531 = vadd.f32 0.0, %v1530
      %v1532 = vpop.f32.mrb[0].mxu0
      %1533 = vmatprep.mubr.bf16.mxu0 0
      %1534 = vmatmul.mubr.bf16.gmra.mrb[0].mxu0 %v1436
      %v1535 = vpop.f32.mrb[0].mxu0
      %v1536 = vadd.f32 0.0, %v1535
      %v1537 = vpop.f32.mrb[0].mxu0
      %v1538 = vpop.f32.mrb[0].mxu0
      %v1539 = vadd.f32 0.0, %v1538
      %v1540 = vpop.f32.mrb[0].mxu0
      %1541 = vmatprep.mubr.bf16.mxu0 0
      %1542 = vmatmul.mubr.bf16.gmra.mrb[0].mxu0 %v1439
      %v1543 = vpop.f32.mrb[0].mxu0
      %v1544 = vadd.f32 0.0, %v1543
      %v1545 = vpop.f32.mrb[0].mxu0
      %v1546 = vpop.f32.mrb[0].mxu0
      %v1547 = vadd.f32 0.0, %v1546
      %v1548 = vpop.f32.mrb[0].mxu0
      %1549 = vmatprep.mubr.bf16.mxu0 0
      %1550 = vmatmul.mubr.bf16.gmra.mrb[0].mxu0 %v1442
      %v1551 = vpop.f32.mrb[0].mxu0
      %v1552 = vadd.f32 0.0, %v1551
      %v1553 = vpop.f32.mrb[0].mxu0
      %v1554 = vpop.f32.mrb[0].mxu0
      %v1555 = vadd.f32 0.0, %v1554
      %v1556 = vpop.f32.mrb[0].mxu0
      %1557 = vmatprep.mubr.bf16.mxu0 0
      %1558 = vmatmul.mubr.bf16.gmra.mrb[0].mxu0 %v1445
      %v1559 = vpop.f32.mrb[0].mxu0
      %v1560 = vadd.f32 0.0, %v1559
      %v1561 = vpop.f32.mrb[0].mxu0
      %v1562 = vpop.f32.mrb[0].mxu0
      %v1563 = vadd.f32 0.0, %v1562
      %v1564 = vpop.f32.mrb[0].mxu0
      %1565 = vmatprep.mubr.bf16.mxu0 0
      %1566 = vmatmul.mubr.bf16.gmra.mrb[0].mxu0 %v1448
      %v1567 = vpop.f32.mrb[0].mxu0
      %v1568 = vadd.f32 0.0, %v1567
      %v1569 = vpop.f32.mrb[0].mxu0
      %v1570 = vpop.f32.mrb[0].mxu0
      %v1571 = vadd.f32 0.0, %v1570
      %v1572 = vpop.f32.mrb[0].mxu0
      %1573 = vmatprep.mubr.bf16.mxu0 0
      %1574 = vmatmul.mubr.bf16.gmra.mrb[0].mxu0 %v1451
      %v1575 = vpop.f32.mrb[0].mxu0
      %v1576 = vadd.f32 0.0, %v1575
      %v1577 = vpop.f32.mrb[0].mxu0
      %v1578 = vpop.f32.mrb[0].mxu0
      %v1579 = vadd.f32 0.0, %v1578
      %v1580 = vpop.f32.mrb[0].mxu0
      %1581 = vmatprep.mubr.bf16.mxu0 0
      %1582 = vmatmul.mubr.bf16.gmra.mrb[0].mxu0 %v1454
      %v1583 = vpop.f32.mrb[0].mxu0
      %v1584 = vadd.f32 0.0, %v1583
      %v1585 = vpop.f32.mrb[0].mxu0
      %v1586 = vpop.f32.mrb[0].mxu0
      %v1587 = vadd.f32 0.0, %v1586
      %v1588 = vpop.f32.mrb[0].mxu0
      %1589 = vmatprep.mubr.bf16.mxu0 0
      %1590 = vmatmul.mubr.bf16.gmra.mrb[0].mxu0 %v1457
      %v1591 = vpop.f32.mrb[0].mxu0
      %v1592 = vadd.f32 0.0, %v1591
      %v1593 = vpop.f32.mrb[0].mxu0
      %v1594 = vpop.f32.mrb[0].mxu0
      %v1595 = vadd.f32 0.0, %v1594
      %v1596 = vpop.f32.mrb[0].mxu0
      %1597 = vmatprep.mubr.bf16.mxu0 0
      %1598 = vmatmul.mubr.bf16.gmra.mrb[0].mxu0 %v1460
      %v1599 = vpop.f32.mrb[0].mxu0
      %v1600 = vadd.f32 0.0, %v1599
      %v1601 = vpop.f32.mrb[0].mxu0
      %v1602 = vpop.f32.mrb[0].mxu0
      %v1603 = vadd.f32 0.0, %v1602
      %v1604 = vpop.f32.mrb[0].mxu0
      %1605 = vmatprep.mubr.bf16.mxu0 0
      %1606 = vmatmul.mubr.bf16.gmra.mrb[0].mxu0 %v1463
      %v1607 = vpop.f32.mrb[0].mxu0
      %v1608 = vadd.f32 0.0, %v1607
      %v1609 = vpop.f32.mrb[0].mxu0
      %v1610 = vpop.f32.mrb[0].mxu0
      %v1611 = vadd.f32 0.0, %v1610
      %v1612 = vpop.f32.mrb[0].mxu0
      %1613 = vmatprep.mubr.bf16.mxu0 0
      %1614 = vmatmul.mubr.bf16.gmra.mrb[0].mxu0 %v1466
      %v1615 = vpop.f32.mrb[0].mxu0
      %v1616 = vadd.f32 0.0, %v1615
      %v1617 = vpop.f32.mrb[0].mxu0
      %v1618 = vpop.f32.mrb[0].mxu0
      %v1619 = vadd.f32 0.0, %v1618
      %v1620 = vpop.f32.mrb[0].mxu0
      %1621 = vmatprep.mubr.bf16.mxu0 0
      %1622 = vmatmul.mubr.bf16.gmra.mrb[0].mxu0 %v1469
      %v1623 = vpop.f32.mrb[0].mxu0
      %v1624 = vadd.f32 0.0, %v1623
      %v1625 = vpop.f32.mrb[0].mxu0
      %v1626 = vpop.f32.mrb[0].mxu0
      %v1627 = vadd.f32 0.0, %v1626
      %v1628 = vpop.f32.mrb[0].mxu0
      %1629 = vmatprep.mubr.bf16.mxu0 0
      %1630 = vmatmul.mubr.bf16.gmra.mrb[0].mxu0 %v1472
      %v1631 = vpop.f32.mrb[0].mxu0
      %v1632 = vadd.f32 0.0, %v1631
      %v1633 = vpop.f32.mrb[0].mxu0
      %v1634 = vpop.f32.mrb[0].mxu0
      %v1635 = vadd.f32 0.0, %v1634
      %v1636 = vpop.f32.mrb[0].mxu0
      %1637 = vdwg.mxu0
      %v1638 = vadd.f32 %v1087, %v1512
      %v1639 = vadd.f32 %v1090, %v1515
      %v1640 = vadd.f32 %v1095, %v1520
      %v1641 = vadd.f32 %v1098, %v1523
      %v1642 = vadd.f32 %v1103, %v1528
      %v1643 = vadd.f32 %v1106, %v1531
      %v1644 = vadd.f32 %v1111, %v1536
      %v1645 = vadd.f32 %v1114, %v1539
      %v1646 = vadd.f32 %v1119, %v1544
      %v1647 = vadd.f32 %v1122, %v1547
      %v1648 = vadd.f32 %v1127, %v1552
      %v1649 = vadd.f32 %v1130, %v1555
      %v1650 = vadd.f32 %v1135, %v1560
      %v1651 = vadd.f32 %v1138, %v1563
      %v1652 = vadd.f32 %v1143, %v1568
      %v1653 = vadd.f32 %v1146, %v1571
      %v1654 = vadd.f32 %v1151, %v1576
      %v1655 = vadd.f32 %v1154, %v1579
      %v1656 = vadd.f32 %v1159, %v1584
      %v1657 = vadd.f32 %v1162, %v1587
      %v1658 = vadd.f32 %v1167, %v1592
      %v1659 = vadd.f32 %v1170, %v1595
      %v1660 = vadd.f32 %v1175, %v1600
      %v1661 = vadd.f32 %v1178, %v1603
      %v1662 = vadd.f32 %v1183, %v1608
      %v1663 = vadd.f32 %v1186, %v1611
      %v1664 = vadd.f32 %v1191, %v1616
      %v1665 = vadd.f32 %v1194, %v1619
      %v1666 = vadd.f32 %v1199, %v1624
      %v1667 = vadd.f32 %v1202, %v1627
      %v1668 = vadd.f32 %v1207, %v1632
      %v1669 = vadd.f32 %v1210, %v1635
      %s1670 = scalar_lea.vmem %s205, 12
      %v1671 = vld [vmem:[%s1670] sm:$0xf]
      %v1672 = vld [vmem:[%s1670 + $0x4] sm:$0xf]
      %v1673 = vld [vmem:[%s1670 + $0xc] sm:$0xf]
      %v1674 = vld [vmem:[%s1670 + $0x10] sm:$0xf]
      %v1675 = vld [vmem:[%s1670 + $0x18] sm:$0xf]
      %v1676 = vld [vmem:[%s1670 + $0x1c] sm:$0xf]
      %v1677 = vld [vmem:[%s1670 + $0x24] sm:$0xf]
      %v1678 = vld [vmem:[%s1670 + $0x28] sm:$0xf]
      %v1679 = vld [vmem:[%s1670 + $0x30] sm:$0xf]
      %v1680 = vld [vmem:[%s1670 + $0x34] sm:$0xf]
      %v1681 = vld [vmem:[%s1670 + $0x3c] sm:$0xf]
      %v1682 = vld [vmem:[%s1670 + $0x40] sm:$0xf]
      %v1683 = vld [vmem:[%s1670 + $0x48] sm:$0xf]
      %v1684 = vld [vmem:[%s1670 + $0x4c] sm:$0xf]
      %v1685 = vld [vmem:[%s1670 + $0x54] sm:$0xf]
      %v1686 = vld [vmem:[%s1670 + $0x58] sm:$0xf]
      %v1687 = vld [vmem:[%s1670 + $0x60] sm:$0xf]
      %v1688 = vld [vmem:[%s1670 + $0x64] sm:$0xf]
      %v1689 = vld [vmem:[%s1670 + $0x6c] sm:$0xf]
      %v1690 = vld [vmem:[%s1670 + $0x70] sm:$0xf]
      %v1691 = vld [vmem:[%s1670 + $0x78] sm:$0xf]
      %v1692 = vld [vmem:[%s1670 + $0x7c] sm:$0xf]
      %v1693 = vld [vmem:[%s1670 + $0x84] sm:$0xf]
      %v1694 = vld [vmem:[%s1670 + $0x88] sm:$0xf]
      %v1695 = vld [vmem:[%s1670 + $0x90] sm:$0xf]
      %v1696 = vld [vmem:[%s1670 + $0x94] sm:$0xf]
      %v1697 = vld [vmem:[%s1670 + $0x9c] sm:$0xf]
      %v1698 = vld [vmem:[%s1670 + $0xa0] sm:$0xf]
      %v1699 = vld [vmem:[%s1670 + $0xa8] sm:$0xf]
      %v1700 = vld [vmem:[%s1670 + $0xac] sm:$0xf]
      %v1701 = vld [vmem:[%s1670 + $0xb4] sm:$0xf]
      %v1702 = vld [vmem:[%s1670 + $0xb8] sm:$0xf]
      %s1703 = scalar_lea.vmem %s1, 6
      %v1704 = vld [vmem:[%s1703] sm:$0x3]
      %v1737 = vunpack.c.l.b16 %v1671
      %v1738 = vunpack.c.l.b16 %v1672
      %v1739 = vunpack.c.l.b16 %v1673
      %v1740 = vunpack.c.l.b16 %v1674
      %v1741 = vunpack.c.l.b16 %v1675
      %v1742 = vunpack.c.l.b16 %v1676
      %v1743 = vunpack.c.l.b16 %v1677
      %v1744 = vunpack.c.l.b16 %v1678
      %v1745 = vunpack.c.l.b16 %v1679
      %v1746 = vunpack.c.l.b16 %v1680
      %v1747 = vunpack.c.l.b16 %v1681
      %v1748 = vunpack.c.l.b16 %v1682
      %v1749 = vunpack.c.l.b16 %v1683
      %v1750 = vunpack.c.l.b16 %v1684
      %v1751 = vunpack.c.l.b16 %v1685
      %v1752 = vunpack.c.l.b16 %v1686
      %v1753 = vunpack.c.l.b16 %v1687
      %v1754 = vunpack.c.l.b16 %v1688
      %v1755 = vunpack.c.l.b16 %v1689
      %v1756 = vunpack.c.l.b16 %v1690
      %v1757 = vunpack.c.l.b16 %v1691
      %v1758 = vunpack.c.l.b16 %v1692
      %v1759 = vunpack.c.l.b16 %v1693
      %v1760 = vunpack.c.l.b16 %v1694
      %v1761 = vunpack.c.l.b16 %v1695
      %v1762 = vunpack.c.l.b16 %v1696
      %v1763 = vunpack.c.l.b16 %v1697
      %v1764 = vunpack.c.l.b16 %v1698
      %v1765 = vunpack.c.l.b16 %v1699
      %v1766 = vunpack.c.l.b16 %v1700
      %v1767 = vunpack.c.l.b16 %v1701
      %v1768 = vunpack.c.l.b16 %v1702
      %v1769 = vpack.c.b16 %v1738, %v1737
      %v1770 = vpack.c.b16 %v1740, %v1739
      %v1771 = vpack.c.b16 %v1742, %v1741
      %v1772 = vpack.c.b16 %v1744, %v1743
      %v1773 = vpack.c.b16 %v1746, %v1745
      %v1774 = vpack.c.b16 %v1748, %v1747
      %v1775 = vpack.c.b16 %v1750, %v1749
      %v1776 = vpack.c.b16 %v1752, %v1751
      %v1777 = vpack.c.b16 %v1754, %v1753
      %v1778 = vpack.c.b16 %v1756, %v1755
      %v1779 = vpack.c.b16 %v1758, %v1757
      %v1780 = vpack.c.b16 %v1760, %v1759
      %v1781 = vpack.c.b16 %v1762, %v1761
      %v1782 = vpack.c.b16 %v1764, %v1763
      %v1783 = vpack.c.b16 %v1766, %v1765
      %v1784 = vpack.c.b16 %v1768, %v1767
      %v1786 = vsel %vm707, %v1769, 0
      %v1789 = vsel %vm707, %v1770, 0
      %v1792 = vsel %vm707, %v1771, 0
      %v1795 = vsel %vm707, %v1772, 0
      %v1798 = vsel %vm707, %v1773, 0
      %v1801 = vsel %vm707, %v1774, 0
      %v1804 = vsel %vm707, %v1775, 0
      %v1807 = vsel %vm707, %v1776, 0
      %v1810 = vsel %vm707, %v1777, 0
      %v1813 = vsel %vm707, %v1778, 0
      %v1816 = vsel %vm707, %v1779, 0
      %v1819 = vsel %vm707, %v1780, 0
      %v1822 = vsel %vm707, %v1781, 0
      %v1825 = vsel %vm707, %v1782, 0
      %v1828 = vsel %vm707, %v1783, 0
      %v1831 = vsel %vm707, %v1784, 0
      %v1834 = vsel %vm756, %v1704, 0
      %1836 = vmatprep.subr.bf16.mxu0 0
      %1837 = vmatpush1.bf16.msra.mxu0 %v1834
      %1838 = vmatprep.subr.bf16.mxu0 0
      %1839 = vmatpush1.bf16.msra.mxu0 0
      %1840 = vmatprep.subr.bf16.mxu0 0
      %1841 = vmatpush1.bf16.msra.mxu0 0
      %1842 = vmatprep.subr.bf16.mxu0 0
      %1843 = vmatpush1.bf16.msra.mxu0 0
      %1844 = vmatprep.subr.bf16.mxu0 0
      %1845 = vmatpush1.bf16.msra.mxu0 0
      %1846 = vmatprep.subr.bf16.mxu0 0
      %1847 = vmatpush1.bf16.msra.mxu0 0
      %1848 = vmatprep.subr.bf16.mxu0 0
      %1849 = vmatpush1.bf16.msra.mxu0 0
      %1850 = vmatprep.subr.bf16.mxu0 0
      %1851 = vmatpush1.bf16.msra.mxu0 0
      %1852 = vmatprep.subr.bf16.mxu0 0
      %1853 = vmatpush1.bf16.msra.mxu0 0
      %1854 = vmatprep.subr.bf16.mxu0 0
      %1855 = vmatpush1.bf16.msra.mxu0 0
      %1856 = vmatprep.subr.bf16.mxu0 0
      %1857 = vmatpush1.bf16.msra.mxu0 0
      %1858 = vmatprep.subr.bf16.mxu0 0
      %1859 = vmatpush1.bf16.msra.mxu0 0
      %1860 = vmatprep.subr.bf16.mxu0 0
      %1861 = vmatpush1.bf16.msra.mxu0 0
      %1862 = vmatprep.subr.bf16.mxu0 0
      %1863 = vmatpush1.bf16.msra.mxu0 0
      %1864 = vmatprep.subr.bf16.mxu0 0
      %1865 = vmatpush1.bf16.msra.mxu0 0
      %1866 = vmatprep.subr.bf16.mxu0 0
      %1867 = vmatpush1.bf16.msra.mxu0 0
      %1868 = vmatprep.mubr.bf16.mxu0 0
      %1869 = vmatmul.mubr.bf16.gmra.mrb[0].mxu0 %v1786
      %v1870 = vpop.f32.mrb[0].mxu0
      %v1871 = vadd.f32 0.0, %v1870
      %v1872 = vpop.f32.mrb[0].mxu0
      %v1873 = vpop.f32.mrb[0].mxu0
      %v1874 = vadd.f32 0.0, %v1873
      %v1875 = vpop.f32.mrb[0].mxu0
      %1876 = vmatprep.mubr.bf16.mxu0 0
      %1877 = vmatmul.mubr.bf16.gmra.mrb[0].mxu0 %v1789
      %v1878 = vpop.f32.mrb[0].mxu0
      %v1879 = vadd.f32 0.0, %v1878
      %v1880 = vpop.f32.mrb[0].mxu0
      %v1881 = vpop.f32.mrb[0].mxu0
      %v1882 = vadd.f32 0.0, %v1881
      %v1883 = vpop.f32.mrb[0].mxu0
      %1884 = vmatprep.mubr.bf16.mxu0 0
      %1885 = vmatmul.mubr.bf16.gmra.mrb[0].mxu0 %v1792
      %v1886 = vpop.f32.mrb[0].mxu0
      %v1887 = vadd.f32 0.0, %v1886
      %v1888 = vpop.f32.mrb[0].mxu0
      %v1889 = vpop.f32.mrb[0].mxu0
      %v1890 = vadd.f32 0.0, %v1889
      %v1891 = vpop.f32.mrb[0].mxu0
      %1892 = vmatprep.mubr.bf16.mxu0 0
      %1893 = vmatmul.mubr.bf16.gmra.mrb[0].mxu0 %v1795
      %v1894 = vpop.f32.mrb[0].mxu0
      %v1895 = vadd.f32 0.0, %v1894
      %v1896 = vpop.f32.mrb[0].mxu0
      %v1897 = vpop.f32.mrb[0].mxu0
      %v1898 = vadd.f32 0.0, %v1897
      %v1899 = vpop.f32.mrb[0].mxu0
      %1900 = vmatprep.mubr.bf16.mxu0 0
      %1901 = vmatmul.mubr.bf16.gmra.mrb[0].mxu0 %v1798
      %v1902 = vpop.f32.mrb[0].mxu0
      %v1903 = vadd.f32 0.0, %v1902
      %v1904 = vpop.f32.mrb[0].mxu0
      %v1905 = vpop.f32.mrb[0].mxu0
      %v1906 = vadd.f32 0.0, %v1905
      %v1907 = vpop.f32.mrb[0].mxu0
      %1908 = vmatprep.mubr.bf16.mxu0 0
      %1909 = vmatmul.mubr.bf16.gmra.mrb[0].mxu0 %v1801
      %v1910 = vpop.f32.mrb[0].mxu0
      %v1911 = vadd.f32 0.0, %v1910
      %v1912 = vpop.f32.mrb[0].mxu0
      %v1913 = vpop.f32.mrb[0].mxu0
      %v1914 = vadd.f32 0.0, %v1913
      %v1915 = vpop.f32.mrb[0].mxu0
      %1916 = vmatprep.mubr.bf16.mxu0 0
      %1917 = vmatmul.mubr.bf16.gmra.mrb[0].mxu0 %v1804
      %v1918 = vpop.f32.mrb[0].mxu0
      %v1919 = vadd.f32 0.0, %v1918
      %v1920 = vpop.f32.mrb[0].mxu0
      %v1921 = vpop.f32.mrb[0].mxu0
      %v1922 = vadd.f32 0.0, %v1921
      %v1923 = vpop.f32.mrb[0].mxu0
      %1924 = vmatprep.mubr.bf16.mxu0 0
      %1925 = vmatmul.mubr.bf16.gmra.mrb[0].mxu0 %v1807
      %v1926 = vpop.f32.mrb[0].mxu0
      %v1927 = vadd.f32 0.0, %v1926
      %v1928 = vpop.f32.mrb[0].mxu0
      %v1929 = vpop.f32.mrb[0].mxu0
      %v1930 = vadd.f32 0.0, %v1929
      %v1931 = vpop.f32.mrb[0].mxu0
      %1932 = vmatprep.mubr.bf16.mxu0 0
      %1933 = vmatmul.mubr.bf16.gmra.mrb[0].mxu0 %v1810
      %v1934 = vpop.f32.mrb[0].mxu0
      %v1935 = vadd.f32 0.0, %v1934
      %v1936 = vpop.f32.mrb[0].mxu0
      %v1937 = vpop.f32.mrb[0].mxu0
      %v1938 = vadd.f32 0.0, %v1937
      %v1939 = vpop.f32.mrb[0].mxu0
      %1940 = vmatprep.mubr.bf16.mxu0 0
      %1941 = vmatmul.mubr.bf16.gmra.mrb[0].mxu0 %v1813
      %v1942 = vpop.f32.mrb[0].mxu0
      %v1943 = vadd.f32 0.0, %v1942
      %v1944 = vpop.f32.mrb[0].mxu0
      %v1945 = vpop.f32.mrb[0].mxu0
      %v1946 = vadd.f32 0.0, %v1945
      %v1947 = vpop.f32.mrb[0].mxu0
      %1948 = vmatprep.mubr.bf16.mxu0 0
      %1949 = vmatmul.mubr.bf16.gmra.mrb[0].mxu0 %v1816
      %v1950 = vpop.f32.mrb[0].mxu0
      %v1951 = vadd.f32 0.0, %v1950
      %v1952 = vpop.f32.mrb[0].mxu0
      %v1953 = vpop.f32.mrb[0].mxu0
      %v1954 = vadd.f32 0.0, %v1953
      %v1955 = vpop.f32.mrb[0].mxu0
      %1956 = vmatprep.mubr.bf16.mxu0 0
      %1957 = vmatmul.mubr.bf16.gmra.mrb[0].mxu0 %v1819
      %v1958 = vpop.f32.mrb[0].mxu0
      %v1959 = vadd.f32 0.0, %v1958
      %v1960 = vpop.f32.mrb[0].mxu0
      %v1961 = vpop.f32.mrb[0].mxu0
      %v1962 = vadd.f32 0.0, %v1961
      %v1963 = vpop.f32.mrb[0].mxu0
      %1964 = vmatprep.mubr.bf16.mxu0 0
      %1965 = vmatmul.mubr.bf16.gmra.mrb[0].mxu0 %v1822
      %v1966 = vpop.f32.mrb[0].mxu0
      %v1967 = vadd.f32 0.0, %v1966
      %v1968 = vpop.f32.mrb[0].mxu0
      %v1969 = vpop.f32.mrb[0].mxu0
      %v1970 = vadd.f32 0.0, %v1969
      %v1971 = vpop.f32.mrb[0].mxu0
      %1972 = vmatprep.mubr.bf16.mxu0 0
      %1973 = vmatmul.mubr.bf16.gmra.mrb[0].mxu0 %v1825
      %v1974 = vpop.f32.mrb[0].mxu0
      %v1975 = vadd.f32 0.0, %v1974
      %v1976 = vpop.f32.mrb[0].mxu0
      %v1977 = vpop.f32.mrb[0].mxu0
      %v1978 = vadd.f32 0.0, %v1977
      %v1979 = vpop.f32.mrb[0].mxu0
      %1980 = vmatprep.mubr.bf16.mxu0 0
      %1981 = vmatmul.mubr.bf16.gmra.mrb[0].mxu0 %v1828
      %v1982 = vpop.f32.mrb[0].mxu0
      %v1983 = vadd.f32 0.0, %v1982
      %v1984 = vpop.f32.mrb[0].mxu0
      %v1985 = vpop.f32.mrb[0].mxu0
      %v1986 = vadd.f32 0.0, %v1985
      %v1987 = vpop.f32.mrb[0].mxu0
      %1988 = vmatprep.mubr.bf16.mxu0 0
      %1989 = vmatmul.mubr.bf16.gmra.mrb[0].mxu0 %v1831
      %v1990 = vpop.f32.mrb[0].mxu0
      %v1991 = vadd.f32 0.0, %v1990
      %v1992 = vpop.f32.mrb[0].mxu0
      %v1993 = vpop.f32.mrb[0].mxu0
      %v1994 = vadd.f32 0.0, %v1993
      %v1995 = vpop.f32.mrb[0].mxu0
      %1996 = vdwg.mxu0
      %v1997 = vadd.f32 %v1638, %v1871
      %v1998 = vadd.f32 %v1639, %v1874
      %v1999 = vadd.f32 %v1640, %v1879
      %v2000 = vadd.f32 %v1641, %v1882
      %v2001 = vadd.f32 %v1642, %v1887
      %v2002 = vadd.f32 %v1643, %v1890
      %v2003 = vadd.f32 %v1644, %v1895
      %v2004 = vadd.f32 %v1645, %v1898
      %v2005 = vadd.f32 %v1646, %v1903
      %v2006 = vadd.f32 %v1647, %v1906
      %v2007 = vadd.f32 %v1648, %v1911
      %v2008 = vadd.f32 %v1649, %v1914
      %v2009 = vadd.f32 %v1650, %v1919
      %v2010 = vadd.f32 %v1651, %v1922
      %v2011 = vadd.f32 %v1652, %v1927
      %v2012 = vadd.f32 %v1653, %v1930
      %v2013 = vadd.f32 %v1654, %v1935
      %v2014 = vadd.f32 %v1655, %v1938
      %v2015 = vadd.f32 %v1656, %v1943
      %v2016 = vadd.f32 %v1657, %v1946
      %v2017 = vadd.f32 %v1658, %v1951
      %v2018 = vadd.f32 %v1659, %v1954
      %v2019 = vadd.f32 %v1660, %v1959
      %v2020 = vadd.f32 %v1661, %v1962
      %v2021 = vadd.f32 %v1662, %v1967
      %v2022 = vadd.f32 %v1663, %v1970
      %v2023 = vadd.f32 %v1664, %v1975
      %v2024 = vadd.f32 %v1665, %v1978
      %v2025 = vadd.f32 %v1666, %v1983
      %v2026 = vadd.f32 %v1667, %v1986
      %v2027 = vadd.f32 %v1668, %v1991
      %v2028 = vadd.f32 %v1669, %v1994
      %v2029 = vld [vmem:[%s1670] sm:$0xf]
      %v2030 = vld [vmem:[%s1670 + $0x4] sm:$0xf]
      %v2031 = vld [vmem:[%s1670 + $0x8] sm:$0x1]
      %v2032 = vld [vmem:[%s1670 + $0xc] sm:$0xf]
      %v2033 = vld [vmem:[%s1670 + $0x10] sm:$0xf]
      %v2034 = vld [vmem:[%s1670 + $0x14] sm:$0x1]
      %v2035 = vld [vmem:[%s1670 + $0x18] sm:$0xf]
      %v2036 = vld [vmem:[%s1670 + $0x1c] sm:$0xf]
      %v2037 = vld [vmem:[%s1670 + $0x20] sm:$0x1]
      %v2038 = vld [vmem:[%s1670 + $0x24] sm:$0xf]
      %v2039 = vld [vmem:[%s1670 + $0x28] sm:$0xf]
      %v2040 = vld [vmem:[%s1670 + $0x2c] sm:$0x1]
      %v2041 = vld [vmem:[%s1670 + $0x30] sm:$0xf]
      %v2042 = vld [vmem:[%s1670 + $0x34] sm:$0xf]
      %v2043 = vld [vmem:[%s1670 + $0x38] sm:$0x1]
      %v2044 = vld [vmem:[%s1670 + $0x3c] sm:$0xf]
      %v2045 = vld [vmem:[%s1670 + $0x40] sm:$0xf]
      %v2046 = vld [vmem:[%s1670 + $0x44] sm:$0x1]
      %v2047 = vld [vmem:[%s1670 + $0x48] sm:$0xf]
      %v2048 = vld [vmem:[%s1670 + $0x4c] sm:$0xf]
      %v2049 = vld [vmem:[%s1670 + $0x50] sm:$0x1]
      %v2050 = vld [vmem:[%s1670 + $0x54] sm:$0xf]
      %v2051 = vld [vmem:[%s1670 + $0x58] sm:$0xf]
      %v2052 = vld [vmem:[%s1670 + $0x5c] sm:$0x1]
      %v2053 = vld [vmem:[%s1670 + $0x60] sm:$0xf]
      %v2054 = vld [vmem:[%s1670 + $0x64] sm:$0xf]
      %v2055 = vld [vmem:[%s1670 + $0x68] sm:$0x1]
      %v2056 = vld [vmem:[%s1670 + $0x6c] sm:$0xf]
      %v2057 = vld [vmem:[%s1670 + $0x70] sm:$0xf]
      %v2058 = vld [vmem:[%s1670 + $0x74] sm:$0x1]
      %v2059 = vld [vmem:[%s1670 + $0x78] sm:$0xf]
      %v2060 = vld [vmem:[%s1670 + $0x7c] sm:$0xf]
      %v2061 = vld [vmem:[%s1670 + $0x80] sm:$0x1]
      %v2062 = vld [vmem:[%s1670 + $0x84] sm:$0xf]
      %v2063 = vld [vmem:[%s1670 + $0x88] sm:$0xf]
      %v2064 = vld [vmem:[%s1670 + $0x8c] sm:$0x1]
      %v2065 = vld [vmem:[%s1670 + $0x90] sm:$0xf]
      %v2066 = vld [vmem:[%s1670 + $0x94] sm:$0xf]
      %v2067 = vld [vmem:[%s1670 + $0x98] sm:$0x1]
      %v2068 = vld [vmem:[%s1670 + $0x9c] sm:$0xf]
      %v2069 = vld [vmem:[%s1670 + $0xa0] sm:$0xf]
      %v2070 = vld [vmem:[%s1670 + $0xa4] sm:$0x1]
      %v2071 = vld [vmem:[%s1670 + $0xa8] sm:$0xf]
      %v2072 = vld [vmem:[%s1670 + $0xac] sm:$0xf]
      %v2073 = vld [vmem:[%s1670 + $0xb0] sm:$0x1]
      %v2074 = vld [vmem:[%s1670 + $0xb4] sm:$0xf]
      %v2075 = vld [vmem:[%s1670 + $0xb8] sm:$0xf]
      %v2076 = vld [vmem:[%s1670 + $0xbc] sm:$0x1]
      %v2078 = vshrl.u32 %v2029, 16
      %v2080 = vrot.slane %v2078, 4
      %v2081 = vshll.u32 %v2029, 16
      %v2083 = vrot.slane %v2081, 5
      %v2084 = vor.u32 %v2080, %v2083
      %v2085 = vrot.slane %v2084, 4
      %v2087 = vshll.u32 %v2030, 16
      %v2089 = vrot.slane %v2087, 5
      %v2090 = vsel %vm272, %v2085, %v2089
      %v2091 = vshrl.u32 %v2030, 16
      %v2093 = vrot.slane %v2091, 4
      %v2094 = vor.u32 %v2093, %v2089
      %v2095 = vrot.slane %v2094, 4
      %v2097 = vshll.u32 %v2031, 16
      %v2099 = vrot.slane %v2097, 5
      %v2100 = vsel %vm272, %v2095, %v2099
      %v2102 = vshrl.u32 %v2032, 16
      %v2104 = vrot.slane %v2102, 4
      %v2105 = vshll.u32 %v2032, 16
      %v2107 = vrot.slane %v2105, 5
      %v2108 = vor.u32 %v2104, %v2107
      %v2109 = vrot.slane %v2108, 4
      %v2111 = vshll.u32 %v2033, 16
      %v2113 = vrot.slane %v2111, 5
      %v2114 = vsel %vm272, %v2109, %v2113
      %v2115 = vshrl.u32 %v2033, 16
      %v2117 = vrot.slane %v2115, 4
      %v2118 = vor.u32 %v2117, %v2113
      %v2119 = vrot.slane %v2118, 4
      %v2121 = vshll.u32 %v2034, 16
      %v2123 = vrot.slane %v2121, 5
      %v2124 = vsel %vm272, %v2119, %v2123
      %v2126 = vshrl.u32 %v2035, 16
      %v2128 = vrot.slane %v2126, 4
      %v2129 = vshll.u32 %v2035, 16
      %v2131 = vrot.slane %v2129, 5
      %v2132 = vor.u32 %v2128, %v2131
      %v2133 = vrot.slane %v2132, 4
      %v2135 = vshll.u32 %v2036, 16
      %v2137 = vrot.slane %v2135, 5
      %v2138 = vsel %vm272, %v2133, %v2137
      %v2139 = vshrl.u32 %v2036, 16
      %v2141 = vrot.slane %v2139, 4
      %v2142 = vor.u32 %v2141, %v2137
      %v2143 = vrot.slane %v2142, 4
      %v2145 = vshll.u32 %v2037, 16
      %v2147 = vrot.slane %v2145, 5
      %v2148 = vsel %vm272, %v2143, %v2147
      %v2150 = vshrl.u32 %v2038, 16
      %v2152 = vrot.slane %v2150, 4
      %v2153 = vshll.u32 %v2038, 16
      %v2155 = vrot.slane %v2153, 5
      %v2156 = vor.u32 %v2152, %v2155
      %v2157 = vrot.slane %v2156, 4
      %v2159 = vshll.u32 %v2039, 16
      %v2161 = vrot.slane %v2159, 5
      %v2162 = vsel %vm272, %v2157, %v2161
      %v2163 = vshrl.u32 %v2039, 16
      %v2165 = vrot.slane %v2163, 4
      %v2166 = vor.u32 %v2165, %v2161
      %v2167 = vrot.slane %v2166, 4
      %v2169 = vshll.u32 %v2040, 16
      %v2171 = vrot.slane %v2169, 5
      %v2172 = vsel %vm272, %v2167, %v2171
      %v2174 = vshrl.u32 %v2041, 16
      %v2176 = vrot.slane %v2174, 4
      %v2177 = vshll.u32 %v2041, 16
      %v2179 = vrot.slane %v2177, 5
      %v2180 = vor.u32 %v2176, %v2179
      %v2181 = vrot.slane %v2180, 4
      %v2183 = vshll.u32 %v2042, 16
      %v2185 = vrot.slane %v2183, 5
      %v2186 = vsel %vm272, %v2181, %v2185
      %v2187 = vshrl.u32 %v2042, 16
      %v2189 = vrot.slane %v2187, 4
      %v2190 = vor.u32 %v2189, %v2185
      %v2191 = vrot.slane %v2190, 4
      %v2193 = vshll.u32 %v2043, 16
      %v2195 = vrot.slane %v2193, 5
      %v2196 = vsel %vm272, %v2191, %v2195
      %v2198 = vshrl.u32 %v2044, 16
      %v2200 = vrot.slane %v2198, 4
      %v2201 = vshll.u32 %v2044, 16
      %v2203 = vrot.slane %v2201, 5
      %v2204 = vor.u32 %v2200, %v2203
      %v2205 = vrot.slane %v2204, 4
      %v2207 = vshll.u32 %v2045, 16
      %v2209 = vrot.slane %v2207, 5
      %v2210 = vsel %vm272, %v2205, %v2209
      %v2211 = vshrl.u32 %v2045, 16
      %v2213 = vrot.slane %v2211, 4
      %v2214 = vor.u32 %v2213, %v2209
      %v2215 = vrot.slane %v2214, 4
      %v2217 = vshll.u32 %v2046, 16
      %v2219 = vrot.slane %v2217, 5
      %v2220 = vsel %vm272, %v2215, %v2219
      %v2222 = vshrl.u32 %v2047, 16
      %v2224 = vrot.slane %v2222, 4
      %v2225 = vshll.u32 %v2047, 16
      %v2227 = vrot.slane %v2225, 5
      %v2228 = vor.u32 %v2224, %v2227
      %v2229 = vrot.slane %v2228, 4
      %v2231 = vshll.u32 %v2048, 16
      %v2233 = vrot.slane %v2231, 5
      %v2234 = vsel %vm272, %v2229, %v2233
      %v2235 = vshrl.u32 %v2048, 16
      %v2237 = vrot.slane %v2235, 4
      %v2238 = vor.u32 %v2237, %v2233
      %v2239 = vrot.slane %v2238, 4
      %v2241 = vshll.u32 %v2049, 16
      %v2243 = vrot.slane %v2241, 5
      %v2244 = vsel %vm272, %v2239, %v2243
      %v2246 = vshrl.u32 %v2050, 16
      %v2248 = vrot.slane %v2246, 4
      %v2249 = vshll.u32 %v2050, 16
      %v2251 = vrot.slane %v2249, 5
      %v2252 = vor.u32 %v2248, %v2251
      %v2253 = vrot.slane %v2252, 4
      %v2255 = vshll.u32 %v2051, 16
      %v2257 = vrot.slane %v2255, 5
      %v2258 = vsel %vm272, %v2253, %v2257
      %v2259 = vshrl.u32 %v2051, 16
      %v2261 = vrot.slane %v2259, 4
      %v2262 = vor.u32 %v2261, %v2257
      %v2263 = vrot.slane %v2262, 4
      %v2265 = vshll.u32 %v2052, 16
      %v2267 = vrot.slane %v2265, 5
      %v2268 = vsel %vm272, %v2263, %v2267
      %v2270 = vshrl.u32 %v2053, 16
      %v2272 = vrot.slane %v2270, 4
      %v2273 = vshll.u32 %v2053, 16
      %v2275 = vrot.slane %v2273, 5
      %v2276 = vor.u32 %v2272, %v2275
      %v2277 = vrot.slane %v2276, 4
      %v2279 = vshll.u32 %v2054, 16
      %v2281 = vrot.slane %v2279, 5
      %v2282 = vsel %vm272, %v2277, %v2281
      %v2283 = vshrl.u32 %v2054, 16
      %v2285 = vrot.slane %v2283, 4
      %v2286 = vor.u32 %v2285, %v2281
      %v2287 = vrot.slane %v2286, 4
      %v2289 = vshll.u32 %v2055, 16
      %v2291 = vrot.slane %v2289, 5
      %v2292 = vsel %vm272, %v2287, %v2291
      %v2294 = vshrl.u32 %v2056, 16
      %v2296 = vrot.slane %v2294, 4
      %v2297 = vshll.u32 %v2056, 16
      %v2299 = vrot.slane %v2297, 5
      %v2300 = vor.u32 %v2296, %v2299
      %v2301 = vrot.slane %v2300, 4
      %v2303 = vshll.u32 %v2057, 16
      %v2305 = vrot.slane %v2303, 5
      %v2306 = vsel %vm272, %v2301, %v2305
      %v2307 = vshrl.u32 %v2057, 16
      %v2309 = vrot.slane %v2307, 4
      %v2310 = vor.u32 %v2309, %v2305
      %v2311 = vrot.slane %v2310, 4
      %v2313 = vshll.u32 %v2058, 16
      %v2315 = vrot.slane %v2313, 5
      %v2316 = vsel %vm272, %v2311, %v2315
      %v2318 = vshrl.u32 %v2059, 16
      %v2320 = vrot.slane %v2318, 4
      %v2321 = vshll.u32 %v2059, 16
      %v2323 = vrot.slane %v2321, 5
      %v2324 = vor.u32 %v2320, %v2323
      %v2325 = vrot.slane %v2324, 4
      %v2327 = vshll.u32 %v2060, 16
      %v2329 = vrot.slane %v2327, 5
      %v2330 = vsel %vm272, %v2325, %v2329
      %v2331 = vshrl.u32 %v2060, 16
      %v2333 = vrot.slane %v2331, 4
      %v2334 = vor.u32 %v2333, %v2329
      %v2335 = vrot.slane %v2334, 4
      %v2337 = vshll.u32 %v2061, 16
      %v2339 = vrot.slane %v2337, 5
      %v2340 = vsel %vm272, %v2335, %v2339
      %v2342 = vshrl.u32 %v2062, 16
      %v2344 = vrot.slane %v2342, 4
      %v2345 = vshll.u32 %v2062, 16
      %v2347 = vrot.slane %v2345, 5
      %v2348 = vor.u32 %v2344, %v2347
      %v2349 = vrot.slane %v2348, 4
      %v2351 = vshll.u32 %v2063, 16
      %v2353 = vrot.slane %v2351, 5
      %v2354 = vsel %vm272, %v2349, %v2353
      %v2355 = vshrl.u32 %v2063, 16
      %v2357 = vrot.slane %v2355, 4
      %v2358 = vor.u32 %v2357, %v2353
      %v2359 = vrot.slane %v2358, 4
      %v2361 = vshll.u32 %v2064, 16
      %v2363 = vrot.slane %v2361, 5
      %v2364 = vsel %vm272, %v2359, %v2363
      %v2366 = vshrl.u32 %v2065, 16
      %v2368 = vrot.slane %v2366, 4
      %v2369 = vshll.u32 %v2065, 16
      %v2371 = vrot.slane %v2369, 5
      %v2372 = vor.u32 %v2368, %v2371
      %v2373 = vrot.slane %v2372, 4
      %v2375 = vshll.u32 %v2066, 16
      %v2377 = vrot.slane %v2375, 5
      %v2378 = vsel %vm272, %v2373, %v2377
      %v2379 = vshrl.u32 %v2066, 16
      %v2381 = vrot.slane %v2379, 4
      %v2382 = vor.u32 %v2381, %v2377
      %v2383 = vrot.slane %v2382, 4
      %v2385 = vshll.u32 %v2067, 16
      %v2387 = vrot.slane %v2385, 5
      %v2388 = vsel %vm272, %v2383, %v2387
      %v2390 = vshrl.u32 %v2068, 16
      %v2392 = vrot.slane %v2390, 4
      %v2393 = vshll.u32 %v2068, 16
      %v2395 = vrot.slane %v2393, 5
      %v2396 = vor.u32 %v2392, %v2395
      %v2397 = vrot.slane %v2396, 4
      %v2399 = vshll.u32 %v2069, 16
      %v2401 = vrot.slane %v2399, 5
      %v2402 = vsel %vm272, %v2397, %v2401
      %v2403 = vshrl.u32 %v2069, 16
      %v2405 = vrot.slane %v2403, 4
      %v2406 = vor.u32 %v2405, %v2401
      %v2407 = vrot.slane %v2406, 4
      %v2409 = vshll.u32 %v2070, 16
      %v2411 = vrot.slane %v2409, 5
      %v2412 = vsel %vm272, %v2407, %v2411
      %v2414 = vshrl.u32 %v2071, 16
      %v2416 = vrot.slane %v2414, 4
      %v2417 = vshll.u32 %v2071, 16
      %v2419 = vrot.slane %v2417, 5
      %v2420 = vor.u32 %v2416, %v2419
      %v2421 = vrot.slane %v2420, 4
      %v2423 = vshll.u32 %v2072, 16
      %v2425 = vrot.slane %v2423, 5
      %v2426 = vsel %vm272, %v2421, %v2425
      %v2427 = vshrl.u32 %v2072, 16
      %v2429 = vrot.slane %v2427, 4
      %v2430 = vor.u32 %v2429, %v2425
      %v2431 = vrot.slane %v2430, 4
      %v2433 = vshll.u32 %v2073, 16
      %v2435 = vrot.slane %v2433, 5
      %v2436 = vsel %vm272, %v2431, %v2435
      %v2438 = vshrl.u32 %v2074, 16
      %v2440 = vrot.slane %v2438, 4
      %v2441 = vshll.u32 %v2074, 16
      %v2443 = vrot.slane %v2441, 5
      %v2444 = vor.u32 %v2440, %v2443
      %v2445 = vrot.slane %v2444, 4
      %v2447 = vshll.u32 %v2075, 16
      %v2449 = vrot.slane %v2447, 5
      %v2450 = vsel %vm272, %v2445, %v2449
      %v2451 = vshrl.u32 %v2075, 16
      %v2453 = vrot.slane %v2451, 4
      %v2454 = vor.u32 %v2453, %v2449
      %v2455 = vrot.slane %v2454, 4
      %v2457 = vshll.u32 %v2076, 16
      %v2459 = vrot.slane %v2457, 5
      %v2460 = vsel %vm272, %v2455, %v2459
      %s2461 = scalar_lea.vmem %s1, 8
      %v2462 = vld [vmem:[%s2461] sm:$0x3]
      %v2463 = vunpack.c.l.b16 %v2090
      %v2464 = vunpack.c.l.b16 %v2100
      %v2465 = vunpack.c.l.b16 %v2114
      %v2466 = vunpack.c.l.b16 %v2124
      %v2467 = vunpack.c.l.b16 %v2138
      %v2468 = vunpack.c.l.b16 %v2148
      %v2469 = vunpack.c.l.b16 %v2162
      %v2470 = vunpack.c.l.b16 %v2172
      %v2471 = vunpack.c.l.b16 %v2186
      %v2472 = vunpack.c.l.b16 %v2196
      %v2473 = vunpack.c.l.b16 %v2210
      %v2474 = vunpack.c.l.b16 %v2220
      %v2475 = vunpack.c.l.b16 %v2234
      %v2476 = vunpack.c.l.b16 %v2244
      %v2477 = vunpack.c.l.b16 %v2258
      %v2478 = vunpack.c.l.b16 %v2268
      %v2479 = vunpack.c.l.b16 %v2282
      %v2480 = vunpack.c.l.b16 %v2292
      %v2481 = vunpack.c.l.b16 %v2306
      %v2482 = vunpack.c.l.b16 %v2316
      %v2483 = vunpack.c.l.b16 %v2330
      %v2484 = vunpack.c.l.b16 %v2340
      %v2485 = vunpack.c.l.b16 %v2354
      %v2486 = vunpack.c.l.b16 %v2364
      %v2487 = vunpack.c.l.b16 %v2378
      %v2488 = vunpack.c.l.b16 %v2388
      %v2489 = vunpack.c.l.b16 %v2402
      %v2490 = vunpack.c.l.b16 %v2412
      %v2491 = vunpack.c.l.b16 %v2426
      %v2492 = vunpack.c.l.b16 %v2436
      %v2493 = vunpack.c.l.b16 %v2450
      %v2494 = vunpack.c.l.b16 %v2460
      %v2495 = vpack.c.b16 %v2464, %v2463
      %v2496 = vpack.c.b16 %v2466, %v2465
      %v2497 = vpack.c.b16 %v2468, %v2467
      %v2498 = vpack.c.b16 %v2470, %v2469
      %v2499 = vpack.c.b16 %v2472, %v2471
      %v2500 = vpack.c.b16 %v2474, %v2473
      %v2501 = vpack.c.b16 %v2476, %v2475
      %v2502 = vpack.c.b16 %v2478, %v2477
      %v2503 = vpack.c.b16 %v2480, %v2479
      %v2504 = vpack.c.b16 %v2482, %v2481
      %v2505 = vpack.c.b16 %v2484, %v2483
      %v2506 = vpack.c.b16 %v2486, %v2485
      %v2507 = vpack.c.b16 %v2488, %v2487
      %v2508 = vpack.c.b16 %v2490, %v2489
      %v2509 = vpack.c.b16 %v2492, %v2491
      %v2510 = vpack.c.b16 %v2494, %v2493
      %v2512 = vsel %vm707, %v2495, 0
      %v2515 = vsel %vm707, %v2496, 0
      %v2518 = vsel %vm707, %v2497, 0
      %v2521 = vsel %vm707, %v2498, 0
      %v2524 = vsel %vm707, %v2499, 0
      %v2527 = vsel %vm707, %v2500, 0
      %v2530 = vsel %vm707, %v2501, 0
      %v2533 = vsel %vm707, %v2502, 0
      %v2536 = vsel %vm707, %v2503, 0
      %v2539 = vsel %vm707, %v2504, 0
      %v2542 = vsel %vm707, %v2505, 0
      %v2545 = vsel %vm707, %v2506, 0
      %v2548 = vsel %vm707, %v2507, 0
      %v2551 = vsel %vm707, %v2508, 0
      %v2554 = vsel %vm707, %v2509, 0
      %v2557 = vsel %vm707, %v2510, 0
      %v2560 = vsel %vm756, %v2462, 0
      %2562 = vmatprep.subr.bf16.mxu0 0
      %2563 = vmatpush1.bf16.msra.mxu0 %v2560
      %2564 = vmatprep.subr.bf16.mxu0 0
      %2565 = vmatpush1.bf16.msra.mxu0 0
      %2566 = vmatprep.subr.bf16.mxu0 0
      %2567 = vmatpush1.bf16.msra.mxu0 0
      %2568 = vmatprep.subr.bf16.mxu0 0
      %2569 = vmatpush1.bf16.msra.mxu0 0
      %2570 = vmatprep.subr.bf16.mxu0 0
      %2571 = vmatpush1.bf16.msra.mxu0 0
      %2572 = vmatprep.subr.bf16.mxu0 0
      %2573 = vmatpush1.bf16.msra.mxu0 0
      %2574 = vmatprep.subr.bf16.mxu0 0
      %2575 = vmatpush1.bf16.msra.mxu0 0
      %2576 = vmatprep.subr.bf16.mxu0 0
      %2577 = vmatpush1.bf16.msra.mxu0 0
      %2578 = vmatprep.subr.bf16.mxu0 0
      %2579 = vmatpush1.bf16.msra.mxu0 0
      %2580 = vmatprep.subr.bf16.mxu0 0
      %2581 = vmatpush1.bf16.msra.mxu0 0
      %2582 = vmatprep.subr.bf16.mxu0 0
      %2583 = vmatpush1.bf16.msra.mxu0 0
      %2584 = vmatprep.subr.bf16.mxu0 0
      %2585 = vmatpush1.bf16.msra.mxu0 0
      %2586 = vmatprep.subr.bf16.mxu0 0
      %2587 = vmatpush1.bf16.msra.mxu0 0
      %2588 = vmatprep.subr.bf16.mxu0 0
      %2589 = vmatpush1.bf16.msra.mxu0 0
      %2590 = vmatprep.subr.bf16.mxu0 0
      %2591 = vmatpush1.bf16.msra.mxu0 0
      %2592 = vmatprep.subr.bf16.mxu0 0
      %2593 = vmatpush1.bf16.msra.mxu0 0
      %2594 = vmatprep.mubr.bf16.mxu0 0
      %2595 = vmatmul.mubr.bf16.gmra.mrb[0].mxu0 %v2512
      %v2596 = vpop.f32.mrb[0].mxu0
      %v2597 = vadd.f32 0.0, %v2596
      %v2598 = vpop.f32.mrb[0].mxu0
      %v2599 = vpop.f32.mrb[0].mxu0
      %v2600 = vadd.f32 0.0, %v2599
      %v2601 = vpop.f32.mrb[0].mxu0
      %2602 = vmatprep.mubr.bf16.mxu0 0
      %2603 = vmatmul.mubr.bf16.gmra.mrb[0].mxu0 %v2515
      %v2604 = vpop.f32.mrb[0].mxu0
      %v2605 = vadd.f32 0.0, %v2604
      %v2606 = vpop.f32.mrb[0].mxu0
      %v2607 = vpop.f32.mrb[0].mxu0
      %v2608 = vadd.f32 0.0, %v2607
      %v2609 = vpop.f32.mrb[0].mxu0
      %2610 = vmatprep.mubr.bf16.mxu0 0
      %2611 = vmatmul.mubr.bf16.gmra.mrb[0].mxu0 %v2518
      %v2612 = vpop.f32.mrb[0].mxu0
      %v2613 = vadd.f32 0.0, %v2612
      %v2614 = vpop.f32.mrb[0].mxu0
      %v2615 = vpop.f32.mrb[0].mxu0
      %v2616 = vadd.f32 0.0, %v2615
      %v2617 = vpop.f32.mrb[0].mxu0
      %2618 = vmatprep.mubr.bf16.mxu0 0
      %2619 = vmatmul.mubr.bf16.gmra.mrb[0].mxu0 %v2521
      %v2620 = vpop.f32.mrb[0].mxu0
      %v2621 = vadd.f32 0.0, %v2620
      %v2622 = vpop.f32.mrb[0].mxu0
      %v2623 = vpop.f32.mrb[0].mxu0
      %v2624 = vadd.f32 0.0, %v2623
      %v2625 = vpop.f32.mrb[0].mxu0
      %2626 = vmatprep.mubr.bf16.mxu0 0
      %2627 = vmatmul.mubr.bf16.gmra.mrb[0].mxu0 %v2524
      %v2628 = vpop.f32.mrb[0].mxu0
      %v2629 = vadd.f32 0.0, %v2628
      %v2630 = vpop.f32.mrb[0].mxu0
      %v2631 = vpop.f32.mrb[0].mxu0
      %v2632 = vadd.f32 0.0, %v2631
      %v2633 = vpop.f32.mrb[0].mxu0
      %2634 = vmatprep.mubr.bf16.mxu0 0
      %2635 = vmatmul.mubr.bf16.gmra.mrb[0].mxu0 %v2527
      %v2636 = vpop.f32.mrb[0].mxu0
      %v2637 = vadd.f32 0.0, %v2636
      %v2638 = vpop.f32.mrb[0].mxu0
      %v2639 = vpop.f32.mrb[0].mxu0
      %v2640 = vadd.f32 0.0, %v2639
      %v2641 = vpop.f32.mrb[0].mxu0
      %2642 = vmatprep.mubr.bf16.mxu0 0
      %2643 = vmatmul.mubr.bf16.gmra.mrb[0].mxu0 %v2530
      %v2644 = vpop.f32.mrb[0].mxu0
      %v2645 = vadd.f32 0.0, %v2644
      %v2646 = vpop.f32.mrb[0].mxu0
      %v2647 = vpop.f32.mrb[0].mxu0
      %v2648 = vadd.f32 0.0, %v2647
      %v2649 = vpop.f32.mrb[0].mxu0
      %2650 = vmatprep.mubr.bf16.mxu0 0
      %2651 = vmatmul.mubr.bf16.gmra.mrb[0].mxu0 %v2533
      %v2652 = vpop.f32.mrb[0].mxu0
      %v2653 = vadd.f32 0.0, %v2652
      %v2654 = vpop.f32.mrb[0].mxu0
      %v2655 = vpop.f32.mrb[0].mxu0
      %v2656 = vadd.f32 0.0, %v2655
      %v2657 = vpop.f32.mrb[0].mxu0
      %2658 = vmatprep.mubr.bf16.mxu0 0
      %2659 = vmatmul.mubr.bf16.gmra.mrb[0].mxu0 %v2536
      %v2660 = vpop.f32.mrb[0].mxu0
      %v2661 = vadd.f32 0.0, %v2660
      %v2662 = vpop.f32.mrb[0].mxu0
      %v2663 = vpop.f32.mrb[0].mxu0
      %v2664 = vadd.f32 0.0, %v2663
      %v2665 = vpop.f32.mrb[0].mxu0
      %2666 = vmatprep.mubr.bf16.mxu0 0
      %2667 = vmatmul.mubr.bf16.gmra.mrb[0].mxu0 %v2539
      %v2668 = vpop.f32.mrb[0].mxu0
      %v2669 = vadd.f32 0.0, %v2668
      %v2670 = vpop.f32.mrb[0].mxu0
      %v2671 = vpop.f32.mrb[0].mxu0
      %v2672 = vadd.f32 0.0, %v2671
      %v2673 = vpop.f32.mrb[0].mxu0
      %2674 = vmatprep.mubr.bf16.mxu0 0
      %2675 = vmatmul.mubr.bf16.gmra.mrb[0].mxu0 %v2542
      %v2676 = vpop.f32.mrb[0].mxu0
      %v2677 = vadd.f32 0.0, %v2676
      %v2678 = vpop.f32.mrb[0].mxu0
      %v2679 = vpop.f32.mrb[0].mxu0
      %v2680 = vadd.f32 0.0, %v2679
      %v2681 = vpop.f32.mrb[0].mxu0
      %2682 = vmatprep.mubr.bf16.mxu0 0
      %2683 = vmatmul.mubr.bf16.gmra.mrb[0].mxu0 %v2545
      %v2684 = vpop.f32.mrb[0].mxu0
      %v2685 = vadd.f32 0.0, %v2684
      %v2686 = vpop.f32.mrb[0].mxu0
      %v2687 = vpop.f32.mrb[0].mxu0
      %v2688 = vadd.f32 0.0, %v2687
      %v2689 = vpop.f32.mrb[0].mxu0
      %2690 = vmatprep.mubr.bf16.mxu0 0
      %2691 = vmatmul.mubr.bf16.gmra.mrb[0].mxu0 %v2548
      %v2692 = vpop.f32.mrb[0].mxu0
      %v2693 = vadd.f32 0.0, %v2692
      %v2694 = vpop.f32.mrb[0].mxu0
      %v2695 = vpop.f32.mrb[0].mxu0
      %v2696 = vadd.f32 0.0, %v2695
      %v2697 = vpop.f32.mrb[0].mxu0
      %2698 = vmatprep.mubr.bf16.mxu0 0
      %2699 = vmatmul.mubr.bf16.gmra.mrb[0].mxu0 %v2551
      %v2700 = vpop.f32.mrb[0].mxu0
      %v2701 = vadd.f32 0.0, %v2700
      %v2702 = vpop.f32.mrb[0].mxu0
      %v2703 = vpop.f32.mrb[0].mxu0
      %v2704 = vadd.f32 0.0, %v2703
      %v2705 = vpop.f32.mrb[0].mxu0
      %2706 = vmatprep.mubr.bf16.mxu0 0
      %2707 = vmatmul.mubr.bf16.gmra.mrb[0].mxu0 %v2554
      %v2708 = vpop.f32.mrb[0].mxu0
      %v2709 = vadd.f32 0.0, %v2708
      %v2710 = vpop.f32.mrb[0].mxu0
      %v2711 = vpop.f32.mrb[0].mxu0
      %v2712 = vadd.f32 0.0, %v2711
      %v2713 = vpop.f32.mrb[0].mxu0
      %2714 = vmatprep.mubr.bf16.mxu0 0
      %2715 = vmatmul.mubr.bf16.gmra.mrb[0].mxu0 %v2557
      %v2716 = vpop.f32.mrb[0].mxu0
      %v2717 = vadd.f32 0.0, %v2716
      %v2718 = vpop.f32.mrb[0].mxu0
      %v2719 = vpop.f32.mrb[0].mxu0
      %v2720 = vadd.f32 0.0, %v2719
      %v2721 = vpop.f32.mrb[0].mxu0
      %2722 = vdwg.mxu0
      %v2723 = vadd.f32 %v1997, %v2597
      %v2724 = vadd.f32 %v1998, %v2600
      %v2725 = vadd.f32 %v1999, %v2605
      %v2726 = vadd.f32 %v2000, %v2608
      %v2727 = vadd.f32 %v2001, %v2613
      %v2728 = vadd.f32 %v2002, %v2616
      %v2729 = vadd.f32 %v2003, %v2621
      %v2730 = vadd.f32 %v2004, %v2624
      %v2731 = vadd.f32 %v2005, %v2629
      %v2732 = vadd.f32 %v2006, %v2632
      %v2733 = vadd.f32 %v2007, %v2637
      %v2734 = vadd.f32 %v2008, %v2640
      %v2735 = vadd.f32 %v2009, %v2645
      %v2736 = vadd.f32 %v2010, %v2648
      %v2737 = vadd.f32 %v2011, %v2653
      %v2738 = vadd.f32 %v2012, %v2656
      %v2739 = vadd.f32 %v2013, %v2661
      %v2740 = vadd.f32 %v2014, %v2664
      %v2741 = vadd.f32 %v2015, %v2669
      %v2742 = vadd.f32 %v2016, %v2672
      %v2743 = vadd.f32 %v2017, %v2677
      %v2744 = vadd.f32 %v2018, %v2680
      %v2745 = vadd.f32 %v2019, %v2685
      %v2746 = vadd.f32 %v2020, %v2688
      %v2747 = vadd.f32 %v2021, %v2693
      %v2748 = vadd.f32 %v2022, %v2696
      %v2749 = vadd.f32 %v2023, %v2701
      %v2750 = vadd.f32 %v2024, %v2704
      %v2751 = vadd.f32 %v2025, %v2709
      %v2752 = vadd.f32 %v2026, %v2712
      %v2753 = vadd.f32 %v2027, %v2717
      %v2754 = vadd.f32 %v2028, %v2720
      %v2755 = vld [vmem:[%s1670] sm:$0xe]
      %v2756 = vld [vmem:[%s1670 + $0xc] sm:$0xe]
      %v2757 = vld [vmem:[%s1670 + $0x18] sm:$0xe]
      %v2758 = vld [vmem:[%s1670 + $0x24] sm:$0xe]
      %v2759 = vld [vmem:[%s1670 + $0x30] sm:$0xe]
      %v2760 = vld [vmem:[%s1670 + $0x3c] sm:$0xe]
      %v2761 = vld [vmem:[%s1670 + $0x48] sm:$0xe]
      %v2762 = vld [vmem:[%s1670 + $0x54] sm:$0xe]
      %v2763 = vld [vmem:[%s1670 + $0x60] sm:$0xe]
      %v2764 = vld [vmem:[%s1670 + $0x6c] sm:$0xe]
      %v2765 = vld [vmem:[%s1670 + $0x78] sm:$0xe]
      %v2766 = vld [vmem:[%s1670 + $0x84] sm:$0xe]
      %v2767 = vld [vmem:[%s1670 + $0x90] sm:$0xe]
      %v2768 = vld [vmem:[%s1670 + $0x9c] sm:$0xe]
      %v2769 = vld [vmem:[%s1670 + $0xa8] sm:$0xe]
      %v2770 = vld [vmem:[%s1670 + $0xb4] sm:$0xe]
      %v2819 = vrot.slane %v2755, 5
      %v2820 = vrot.slane %v2819, 4
      %v2821 = vrot.slane %v2030, 5
      %v2822 = vsel %vm1263, %v2820, %v2821
      %v2823 = vrot.slane %v2821, 4
      %v2824 = vrot.slane %v2031, 5
      %v2825 = vsel %vm1263, %v2823, %v2824
      %v2826 = vrot.slane %v2756, 5
      %v2827 = vrot.slane %v2826, 4
      %v2828 = vrot.slane %v2033, 5
      %v2829 = vsel %vm1263, %v2827, %v2828
      %v2830 = vrot.slane %v2828, 4
      %v2831 = vrot.slane %v2034, 5
      %v2832 = vsel %vm1263, %v2830, %v2831
      %v2833 = vrot.slane %v2757, 5
      %v2834 = vrot.slane %v2833, 4
      %v2835 = vrot.slane %v2036, 5
      %v2836 = vsel %vm1263, %v2834, %v2835
      %v2837 = vrot.slane %v2835, 4
      %v2838 = vrot.slane %v2037, 5
      %v2839 = vsel %vm1263, %v2837, %v2838
      %v2840 = vrot.slane %v2758, 5
      %v2841 = vrot.slane %v2840, 4
      %v2842 = vrot.slane %v2039, 5
      %v2843 = vsel %vm1263, %v2841, %v2842
      %v2844 = vrot.slane %v2842, 4
      %v2845 = vrot.slane %v2040, 5
      %v2846 = vsel %vm1263, %v2844, %v2845
      %v2847 = vrot.slane %v2759, 5
      %v2848 = vrot.slane %v2847, 4
      %v2849 = vrot.slane %v2042, 5
      %v2850 = vsel %vm1263, %v2848, %v2849
      %v2851 = vrot.slane %v2849, 4
      %v2852 = vrot.slane %v2043, 5
      %v2853 = vsel %vm1263, %v2851, %v2852
      %v2854 = vrot.slane %v2760, 5
      %v2855 = vrot.slane %v2854, 4
      %v2856 = vrot.slane %v2045, 5
      %v2857 = vsel %vm1263, %v2855, %v2856
      %v2858 = vrot.slane %v2856, 4
      %v2859 = vrot.slane %v2046, 5
      %v2860 = vsel %vm1263, %v2858, %v2859
      %v2861 = vrot.slane %v2761, 5
      %v2862 = vrot.slane %v2861, 4
      %v2863 = vrot.slane %v2048, 5
      %v2864 = vsel %vm1263, %v2862, %v2863
      %v2865 = vrot.slane %v2863, 4
      %v2866 = vrot.slane %v2049, 5
      %v2867 = vsel %vm1263, %v2865, %v2866
      %v2868 = vrot.slane %v2762, 5
      %v2869 = vrot.slane %v2868, 4
      %v2870 = vrot.slane %v2051, 5
      %v2871 = vsel %vm1263, %v2869, %v2870
      %v2872 = vrot.slane %v2870, 4
      %v2873 = vrot.slane %v2052, 5
      %v2874 = vsel %vm1263, %v2872, %v2873
      %v2875 = vrot.slane %v2763, 5
      %v2876 = vrot.slane %v2875, 4
      %v2877 = vrot.slane %v2054, 5
      %v2878 = vsel %vm1263, %v2876, %v2877
      %v2879 = vrot.slane %v2877, 4
      %v2880 = vrot.slane %v2055, 5
      %v2881 = vsel %vm1263, %v2879, %v2880
      %v2882 = vrot.slane %v2764, 5
      %v2883 = vrot.slane %v2882, 4
      %v2884 = vrot.slane %v2057, 5
      %v2885 = vsel %vm1263, %v2883, %v2884
      %v2886 = vrot.slane %v2884, 4
      %v2887 = vrot.slane %v2058, 5
      %v2888 = vsel %vm1263, %v2886, %v2887
      %v2889 = vrot.slane %v2765, 5
      %v2890 = vrot.slane %v2889, 4
      %v2891 = vrot.slane %v2060, 5
      %v2892 = vsel %vm1263, %v2890, %v2891
      %v2893 = vrot.slane %v2891, 4
      %v2894 = vrot.slane %v2061, 5
      %v2895 = vsel %vm1263, %v2893, %v2894
      %v2896 = vrot.slane %v2766, 5
      %v2897 = vrot.slane %v2896, 4
      %v2898 = vrot.slane %v2063, 5
      %v2899 = vsel %vm1263, %v2897, %v2898
      %v2900 = vrot.slane %v2898, 4
      %v2901 = vrot.slane %v2064, 5
      %v2902 = vsel %vm1263, %v2900, %v2901
      %v2903 = vrot.slane %v2767, 5
      %v2904 = vrot.slane %v2903, 4
      %v2905 = vrot.slane %v2066, 5
      %v2906 = vsel %vm1263, %v2904, %v2905
      %v2907 = vrot.slane %v2905, 4
      %v2908 = vrot.slane %v2067, 5
      %v2909 = vsel %vm1263, %v2907, %v2908
      %v2910 = vrot.slane %v2768, 5
      %v2911 = vrot.slane %v2910, 4
      %v2912 = vrot.slane %v2069, 5
      %v2913 = vsel %vm1263, %v2911, %v2912
      %v2914 = vrot.slane %v2912, 4
      %v2915 = vrot.slane %v2070, 5
      %v2916 = vsel %vm1263, %v2914, %v2915
      %v2917 = vrot.slane %v2769, 5
      %v2918 = vrot.slane %v2917, 4
      %v2919 = vrot.slane %v2072, 5
      %v2920 = vsel %vm1263, %v2918, %v2919
      %v2921 = vrot.slane %v2919, 4
      %v2922 = vrot.slane %v2073, 5
      %v2923 = vsel %vm1263, %v2921, %v2922
      %v2924 = vrot.slane %v2770, 5
      %v2925 = vrot.slane %v2924, 4
      %v2926 = vrot.slane %v2075, 5
      %v2927 = vsel %vm1263, %v2925, %v2926
      %v2928 = vrot.slane %v2926, 4
      %v2929 = vrot.slane %v2076, 5
      %v2930 = vsel %vm1263, %v2928, %v2929
      %s2931 = scalar_lea.vmem %s1, 10
      %v2932 = vld [vmem:[%s2931] sm:$0x3]
      %v2933 = vunpack.c.l.b16 %v2822
      %v2934 = vunpack.c.l.b16 %v2825
      %v2935 = vunpack.c.l.b16 %v2829
      %v2936 = vunpack.c.l.b16 %v2832
      %v2937 = vunpack.c.l.b16 %v2836
      %v2938 = vunpack.c.l.b16 %v2839
      %v2939 = vunpack.c.l.b16 %v2843
      %v2940 = vunpack.c.l.b16 %v2846
      %v2941 = vunpack.c.l.b16 %v2850
      %v2942 = vunpack.c.l.b16 %v2853
      %v2943 = vunpack.c.l.b16 %v2857
      %v2944 = vunpack.c.l.b16 %v2860
      %v2945 = vunpack.c.l.b16 %v2864
      %v2946 = vunpack.c.l.b16 %v2867
      %v2947 = vunpack.c.l.b16 %v2871
      %v2948 = vunpack.c.l.b16 %v2874
      %v2949 = vunpack.c.l.b16 %v2878
      %v2950 = vunpack.c.l.b16 %v2881
      %v2951 = vunpack.c.l.b16 %v2885
      %v2952 = vunpack.c.l.b16 %v2888
      %v2953 = vunpack.c.l.b16 %v2892
      %v2954 = vunpack.c.l.b16 %v2895
      %v2955 = vunpack.c.l.b16 %v2899
      %v2956 = vunpack.c.l.b16 %v2902
      %v2957 = vunpack.c.l.b16 %v2906
      %v2958 = vunpack.c.l.b16 %v2909
      %v2959 = vunpack.c.l.b16 %v2913
      %v2960 = vunpack.c.l.b16 %v2916
      %v2961 = vunpack.c.l.b16 %v2920
      %v2962 = vunpack.c.l.b16 %v2923
      %v2963 = vunpack.c.l.b16 %v2927
      %v2964 = vunpack.c.l.b16 %v2930
      %v2965 = vpack.c.b16 %v2934, %v2933
      %v2966 = vpack.c.b16 %v2936, %v2935
      %v2967 = vpack.c.b16 %v2938, %v2937
      %v2968 = vpack.c.b16 %v2940, %v2939
      %v2969 = vpack.c.b16 %v2942, %v2941
      %v2970 = vpack.c.b16 %v2944, %v2943
      %v2971 = vpack.c.b16 %v2946, %v2945
      %v2972 = vpack.c.b16 %v2948, %v2947
      %v2973 = vpack.c.b16 %v2950, %v2949
      %v2974 = vpack.c.b16 %v2952, %v2951
      %v2975 = vpack.c.b16 %v2954, %v2953
      %v2976 = vpack.c.b16 %v2956, %v2955
      %v2977 = vpack.c.b16 %v2958, %v2957
      %v2978 = vpack.c.b16 %v2960, %v2959
      %v2979 = vpack.c.b16 %v2962, %v2961
      %v2980 = vpack.c.b16 %v2964, %v2963
      %v2982 = vsel %vm707, %v2965, 0
      %v2985 = vsel %vm707, %v2966, 0
      %v2988 = vsel %vm707, %v2967, 0
      %v2991 = vsel %vm707, %v2968, 0
      %v2994 = vsel %vm707, %v2969, 0
      %v2997 = vsel %vm707, %v2970, 0
      %v3000 = vsel %vm707, %v2971, 0
      %v3003 = vsel %vm707, %v2972, 0
      %v3006 = vsel %vm707, %v2973, 0
      %v3009 = vsel %vm707, %v2974, 0
      %v3012 = vsel %vm707, %v2975, 0
      %v3015 = vsel %vm707, %v2976, 0
      %v3018 = vsel %vm707, %v2977, 0
      %v3021 = vsel %vm707, %v2978, 0
      %v3024 = vsel %vm707, %v2979, 0
      %v3027 = vsel %vm707, %v2980, 0
      %v3030 = vsel %vm756, %v2932, 0
      %3032 = vmatprep.subr.bf16.mxu0 0
      %3033 = vmatpush1.bf16.msra.mxu0 %v3030
      %3034 = vmatprep.subr.bf16.mxu0 0
      %3035 = vmatpush1.bf16.msra.mxu0 0
      %3036 = vmatprep.subr.bf16.mxu0 0
      %3037 = vmatpush1.bf16.msra.mxu0 0
      %3038 = vmatprep.subr.bf16.mxu0 0
      %3039 = vmatpush1.bf16.msra.mxu0 0
      %3040 = vmatprep.subr.bf16.mxu0 0
      %3041 = vmatpush1.bf16.msra.mxu0 0
      %3042 = vmatprep.subr.bf16.mxu0 0
      %3043 = vmatpush1.bf16.msra.mxu0 0
      %3044 = vmatprep.subr.bf16.mxu0 0
      %3045 = vmatpush1.bf16.msra.mxu0 0
      %3046 = vmatprep.subr.bf16.mxu0 0
      %3047 = vmatpush1.bf16.msra.mxu0 0
      %3048 = vmatprep.subr.bf16.mxu0 0
      %3049 = vmatpush1.bf16.msra.mxu0 0
      %3050 = vmatprep.subr.bf16.mxu0 0
      %3051 = vmatpush1.bf16.msra.mxu0 0
      %3052 = vmatprep.subr.bf16.mxu0 0
      %3053 = vmatpush1.bf16.msra.mxu0 0
      %3054 = vmatprep.subr.bf16.mxu0 0
      %3055 = vmatpush1.bf16.msra.mxu0 0
      %3056 = vmatprep.subr.bf16.mxu0 0
      %3057 = vmatpush1.bf16.msra.mxu0 0
      %3058 = vmatprep.subr.bf16.mxu0 0
      %3059 = vmatpush1.bf16.msra.mxu0 0
      %3060 = vmatprep.subr.bf16.mxu0 0
      %3061 = vmatpush1.bf16.msra.mxu0 0
      %3062 = vmatprep.subr.bf16.mxu0 0
      %3063 = vmatpush1.bf16.msra.mxu0 0
      %3064 = vmatprep.mubr.bf16.mxu0 0
      %3065 = vmatmul.mubr.bf16.gmra.mrb[0].mxu0 %v2982
      %v3066 = vpop.f32.mrb[0].mxu0
      %v3067 = vadd.f32 0.0, %v3066
      %v3068 = vpop.f32.mrb[0].mxu0
      %v3069 = vpop.f32.mrb[0].mxu0
      %v3070 = vadd.f32 0.0, %v3069
      %v3071 = vpop.f32.mrb[0].mxu0
      %3072 = vmatprep.mubr.bf16.mxu0 0
      %3073 = vmatmul.mubr.bf16.gmra.mrb[0].mxu0 %v2985
      %v3074 = vpop.f32.mrb[0].mxu0
      %v3075 = vadd.f32 0.0, %v3074
      %v3076 = vpop.f32.mrb[0].mxu0
      %v3077 = vpop.f32.mrb[0].mxu0
      %v3078 = vadd.f32 0.0, %v3077
      %v3079 = vpop.f32.mrb[0].mxu0
      %3080 = vmatprep.mubr.bf16.mxu0 0
      %3081 = vmatmul.mubr.bf16.gmra.mrb[0].mxu0 %v2988
      %v3082 = vpop.f32.mrb[0].mxu0
      %v3083 = vadd.f32 0.0, %v3082
      %v3084 = vpop.f32.mrb[0].mxu0
      %v3085 = vpop.f32.mrb[0].mxu0
      %v3086 = vadd.f32 0.0, %v3085
      %v3087 = vpop.f32.mrb[0].mxu0
      %3088 = vmatprep.mubr.bf16.mxu0 0
      %3089 = vmatmul.mubr.bf16.gmra.mrb[0].mxu0 %v2991
      %v3090 = vpop.f32.mrb[0].mxu0
      %v3091 = vadd.f32 0.0, %v3090
      %v3092 = vpop.f32.mrb[0].mxu0
      %v3093 = vpop.f32.mrb[0].mxu0
      %v3094 = vadd.f32 0.0, %v3093
      %v3095 = vpop.f32.mrb[0].mxu0
      %3096 = vmatprep.mubr.bf16.mxu0 0
      %3097 = vmatmul.mubr.bf16.gmra.mrb[0].mxu0 %v2994
      %v3098 = vpop.f32.mrb[0].mxu0
      %v3099 = vadd.f32 0.0, %v3098
      %v3100 = vpop.f32.mrb[0].mxu0
      %v3101 = vpop.f32.mrb[0].mxu0
      %v3102 = vadd.f32 0.0, %v3101
      %v3103 = vpop.f32.mrb[0].mxu0
      %3104 = vmatprep.mubr.bf16.mxu0 0
      %3105 = vmatmul.mubr.bf16.gmra.mrb[0].mxu0 %v2997
      %v3106 = vpop.f32.mrb[0].mxu0
      %v3107 = vadd.f32 0.0, %v3106
      %v3108 = vpop.f32.mrb[0].mxu0
      %v3109 = vpop.f32.mrb[0].mxu0
      %v3110 = vadd.f32 0.0, %v3109
      %v3111 = vpop.f32.mrb[0].mxu0
      %3112 = vmatprep.mubr.bf16.mxu0 0
      %3113 = vmatmul.mubr.bf16.gmra.mrb[0].mxu0 %v3000
      %v3114 = vpop.f32.mrb[0].mxu0
      %v3115 = vadd.f32 0.0, %v3114
      %v3116 = vpop.f32.mrb[0].mxu0
      %v3117 = vpop.f32.mrb[0].mxu0
      %v3118 = vadd.f32 0.0, %v3117
      %v3119 = vpop.f32.mrb[0].mxu0
      %3120 = vmatprep.mubr.bf16.mxu0 0
      %3121 = vmatmul.mubr.bf16.gmra.mrb[0].mxu0 %v3003
      %v3122 = vpop.f32.mrb[0].mxu0
      %v3123 = vadd.f32 0.0, %v3122
      %v3124 = vpop.f32.mrb[0].mxu0
      %v3125 = vpop.f32.mrb[0].mxu0
      %v3126 = vadd.f32 0.0, %v3125
      %v3127 = vpop.f32.mrb[0].mxu0
      %3128 = vmatprep.mubr.bf16.mxu0 0
      %3129 = vmatmul.mubr.bf16.gmra.mrb[0].mxu0 %v3006
      %v3130 = vpop.f32.mrb[0].mxu0
      %v3131 = vadd.f32 0.0, %v3130
      %v3132 = vpop.f32.mrb[0].mxu0
      %v3133 = vpop.f32.mrb[0].mxu0
      %v3134 = vadd.f32 0.0, %v3133
      %v3135 = vpop.f32.mrb[0].mxu0
      %3136 = vmatprep.mubr.bf16.mxu0 0
      %3137 = vmatmul.mubr.bf16.gmra.mrb[0].mxu0 %v3009
      %v3138 = vpop.f32.mrb[0].mxu0
      %v3139 = vadd.f32 0.0, %v3138
      %v3140 = vpop.f32.mrb[0].mxu0
      %v3141 = vpop.f32.mrb[0].mxu0
      %v3142 = vadd.f32 0.0, %v3141
      %v3143 = vpop.f32.mrb[0].mxu0
      %3144 = vmatprep.mubr.bf16.mxu0 0
      %3145 = vmatmul.mubr.bf16.gmra.mrb[0].mxu0 %v3012
      %v3146 = vpop.f32.mrb[0].mxu0
      %v3147 = vadd.f32 0.0, %v3146
      %v3148 = vpop.f32.mrb[0].mxu0
      %v3149 = vpop.f32.mrb[0].mxu0
      %v3150 = vadd.f32 0.0, %v3149
      %v3151 = vpop.f32.mrb[0].mxu0
      %3152 = vmatprep.mubr.bf16.mxu0 0
      %3153 = vmatmul.mubr.bf16.gmra.mrb[0].mxu0 %v3015
      %v3154 = vpop.f32.mrb[0].mxu0
      %v3155 = vadd.f32 0.0, %v3154
      %v3156 = vpop.f32.mrb[0].mxu0
      %v3157 = vpop.f32.mrb[0].mxu0
      %v3158 = vadd.f32 0.0, %v3157
      %v3159 = vpop.f32.mrb[0].mxu0
      %3160 = vmatprep.mubr.bf16.mxu0 0
      %3161 = vmatmul.mubr.bf16.gmra.mrb[0].mxu0 %v3018
      %v3162 = vpop.f32.mrb[0].mxu0
      %v3163 = vadd.f32 0.0, %v3162
      %v3164 = vpop.f32.mrb[0].mxu0
      %v3165 = vpop.f32.mrb[0].mxu0
      %v3166 = vadd.f32 0.0, %v3165
      %v3167 = vpop.f32.mrb[0].mxu0
      %3168 = vmatprep.mubr.bf16.mxu0 0
      %3169 = vmatmul.mubr.bf16.gmra.mrb[0].mxu0 %v3021
      %v3170 = vpop.f32.mrb[0].mxu0
      %v3171 = vadd.f32 0.0, %v3170
      %v3172 = vpop.f32.mrb[0].mxu0
      %v3173 = vpop.f32.mrb[0].mxu0
      %v3174 = vadd.f32 0.0, %v3173
      %v3175 = vpop.f32.mrb[0].mxu0
      %3176 = vmatprep.mubr.bf16.mxu0 0
      %3177 = vmatmul.mubr.bf16.gmra.mrb[0].mxu0 %v3024
      %v3178 = vpop.f32.mrb[0].mxu0
      %v3179 = vadd.f32 0.0, %v3178
      %v3180 = vpop.f32.mrb[0].mxu0
      %v3181 = vpop.f32.mrb[0].mxu0
      %v3182 = vadd.f32 0.0, %v3181
      %v3183 = vpop.f32.mrb[0].mxu0
      %3184 = vmatprep.mubr.bf16.mxu0 0
      %3185 = vmatmul.mubr.bf16.gmra.mrb[0].mxu0 %v3027
      %v3186 = vpop.f32.mrb[0].mxu0
      %v3187 = vadd.f32 0.0, %v3186
      %v3188 = vpop.f32.mrb[0].mxu0
      %v3189 = vpop.f32.mrb[0].mxu0
      %v3190 = vadd.f32 0.0, %v3189
      %v3191 = vpop.f32.mrb[0].mxu0
      %3192 = vdwg.mxu0
      %v3193 = vadd.f32 %v2723, %v3067
      %v3194 = vadd.f32 %v2724, %v3070
      %v3195 = vadd.f32 %v2725, %v3075
      %v3196 = vadd.f32 %v2726, %v3078
      %v3197 = vadd.f32 %v2727, %v3083
      %v3198 = vadd.f32 %v2728, %v3086
      %v3199 = vadd.f32 %v2729, %v3091
      %v3200 = vadd.f32 %v2730, %v3094
      %v3201 = vadd.f32 %v2731, %v3099
      %v3202 = vadd.f32 %v2732, %v3102
      %v3203 = vadd.f32 %v2733, %v3107
      %v3204 = vadd.f32 %v2734, %v3110
      %v3205 = vadd.f32 %v2735, %v3115
      %v3206 = vadd.f32 %v2736, %v3118
      %v3207 = vadd.f32 %v2737, %v3123
      %v3208 = vadd.f32 %v2738, %v3126
      %v3209 = vadd.f32 %v2739, %v3131
      %v3210 = vadd.f32 %v2740, %v3134
      %v3211 = vadd.f32 %v2741, %v3139
      %v3212 = vadd.f32 %v2742, %v3142
      %v3213 = vadd.f32 %v2743, %v3147
      %v3214 = vadd.f32 %v2744, %v3150
      %v3215 = vadd.f32 %v2745, %v3155
      %v3216 = vadd.f32 %v2746, %v3158
      %v3217 = vadd.f32 %v2747, %v3163
      %v3218 = vadd.f32 %v2748, %v3166
      %v3219 = vadd.f32 %v2749, %v3171
      %v3220 = vadd.f32 %v2750, %v3174
      %v3221 = vadd.f32 %v2751, %v3179
      %v3222 = vadd.f32 %v2752, %v3182
      %v3223 = vadd.f32 %v2753, %v3187
      %v3224 = vadd.f32 %v2754, %v3190
      %s3225 = scalar_lea.vmem %s205, 24
      %v3226 = vld [vmem:[%s3225] sm:$0xf]
      %v3227 = vld [vmem:[%s3225 + $0x4] sm:$0xf]
      %v3228 = vld [vmem:[%s3225 + $0xc] sm:$0xf]
      %v3229 = vld [vmem:[%s3225 + $0x10] sm:$0xf]
      %v3230 = vld [vmem:[%s3225 + $0x18] sm:$0xf]
      %v3231 = vld [vmem:[%s3225 + $0x1c] sm:$0xf]
      %v3232 = vld [vmem:[%s3225 + $0x24] sm:$0xf]
      %v3233 = vld [vmem:[%s3225 + $0x28] sm:$0xf]
      %v3234 = vld [vmem:[%s3225 + $0x30] sm:$0xf]
      %v3235 = vld [vmem:[%s3225 + $0x34] sm:$0xf]
      %v3236 = vld [vmem:[%s3225 + $0x3c] sm:$0xf]
      %v3237 = vld [vmem:[%s3225 + $0x40] sm:$0xf]
      %v3238 = vld [vmem:[%s3225 + $0x48] sm:$0xf]
      %v3239 = vld [vmem:[%s3225 + $0x4c] sm:$0xf]
      %v3240 = vld [vmem:[%s3225 + $0x54] sm:$0xf]
      %v3241 = vld [vmem:[%s3225 + $0x58] sm:$0xf]
      %v3242 = vld [vmem:[%s3225 + $0x60] sm:$0xf]
      %v3243 = vld [vmem:[%s3225 + $0x64] sm:$0xf]
      %v3244 = vld [vmem:[%s3225 + $0x6c] sm:$0xf]
      %v3245 = vld [vmem:[%s3225 + $0x70] sm:$0xf]
      %v3246 = vld [vmem:[%s3225 + $0x78] sm:$0xf]
      %v3247 = vld [vmem:[%s3225 + $0x7c] sm:$0xf]
      %v3248 = vld [vmem:[%s3225 + $0x84] sm:$0xf]
      %v3249 = vld [vmem:[%s3225 + $0x88] sm:$0xf]
      %v3250 = vld [vmem:[%s3225 + $0x90] sm:$0xf]
      %v3251 = vld [vmem:[%s3225 + $0x94] sm:$0xf]
      %v3252 = vld [vmem:[%s3225 + $0x9c] sm:$0xf]
      %v3253 = vld [vmem:[%s3225 + $0xa0] sm:$0xf]
      %v3254 = vld [vmem:[%s3225 + $0xa8] sm:$0xf]
      %v3255 = vld [vmem:[%s3225 + $0xac] sm:$0xf]
      %v3256 = vld [vmem:[%s3225 + $0xb4] sm:$0xf]
      %v3257 = vld [vmem:[%s3225 + $0xb8] sm:$0xf]
      %s3258 = scalar_lea.vmem %s1, 12
      %v3259 = vld [vmem:[%s3258] sm:$0x3]
      %v3292 = vunpack.c.l.b16 %v3226
      %v3293 = vunpack.c.l.b16 %v3227
      %v3294 = vunpack.c.l.b16 %v3228
      %v3295 = vunpack.c.l.b16 %v3229
      %v3296 = vunpack.c.l.b16 %v3230
      %v3297 = vunpack.c.l.b16 %v3231
      %v3298 = vunpack.c.l.b16 %v3232
      %v3299 = vunpack.c.l.b16 %v3233
      %v3300 = vunpack.c.l.b16 %v3234
      %v3301 = vunpack.c.l.b16 %v3235
      %v3302 = vunpack.c.l.b16 %v3236
      %v3303 = vunpack.c.l.b16 %v3237
      %v3304 = vunpack.c.l.b16 %v3238
      %v3305 = vunpack.c.l.b16 %v3239
      %v3306 = vunpack.c.l.b16 %v3240
      %v3307 = vunpack.c.l.b16 %v3241
      %v3308 = vunpack.c.l.b16 %v3242
      %v3309 = vunpack.c.l.b16 %v3243
      %v3310 = vunpack.c.l.b16 %v3244
      %v3311 = vunpack.c.l.b16 %v3245
      %v3312 = vunpack.c.l.b16 %v3246
      %v3313 = vunpack.c.l.b16 %v3247
      %v3314 = vunpack.c.l.b16 %v3248
      %v3315 = vunpack.c.l.b16 %v3249
      %v3316 = vunpack.c.l.b16 %v3250
      %v3317 = vunpack.c.l.b16 %v3251
      %v3318 = vunpack.c.l.b16 %v3252
      %v3319 = vunpack.c.l.b16 %v3253
      %v3320 = vunpack.c.l.b16 %v3254
      %v3321 = vunpack.c.l.b16 %v3255
      %v3322 = vunpack.c.l.b16 %v3256
      %v3323 = vunpack.c.l.b16 %v3257
      %v3324 = vpack.c.b16 %v3293, %v3292
      %v3325 = vpack.c.b16 %v3295, %v3294
      %v3326 = vpack.c.b16 %v3297, %v3296
      %v3327 = vpack.c.b16 %v3299, %v3298
      %v3328 = vpack.c.b16 %v3301, %v3300
      %v3329 = vpack.c.b16 %v3303, %v3302
      %v3330 = vpack.c.b16 %v3305, %v3304
      %v3331 = vpack.c.b16 %v3307, %v3306
      %v3332 = vpack.c.b16 %v3309, %v3308
      %v3333 = vpack.c.b16 %v3311, %v3310
      %v3334 = vpack.c.b16 %v3313, %v3312
      %v3335 = vpack.c.b16 %v3315, %v3314
      %v3336 = vpack.c.b16 %v3317, %v3316
      %v3337 = vpack.c.b16 %v3319, %v3318
      %v3338 = vpack.c.b16 %v3321, %v3320
      %v3339 = vpack.c.b16 %v3323, %v3322
      %v3341 = vsel %vm707, %v3324, 0
      %v3344 = vsel %vm707, %v3325, 0
      %v3347 = vsel %vm707, %v3326, 0
      %v3350 = vsel %vm707, %v3327, 0
      %v3353 = vsel %vm707, %v3328, 0
      %v3356 = vsel %vm707, %v3329, 0
      %v3359 = vsel %vm707, %v3330, 0
      %v3362 = vsel %vm707, %v3331, 0
      %v3365 = vsel %vm707, %v3332, 0
      %v3368 = vsel %vm707, %v3333, 0
      %v3371 = vsel %vm707, %v3334, 0
      %v3374 = vsel %vm707, %v3335, 0
      %v3377 = vsel %vm707, %v3336, 0
      %v3380 = vsel %vm707, %v3337, 0
      %v3383 = vsel %vm707, %v3338, 0
      %v3386 = vsel %vm707, %v3339, 0
      %v3389 = vsel %vm756, %v3259, 0
      %3391 = vmatprep.subr.bf16.mxu0 0
      %3392 = vmatpush1.bf16.msra.mxu0 %v3389
      %3393 = vmatprep.subr.bf16.mxu0 0
      %3394 = vmatpush1.bf16.msra.mxu0 0
      %3395 = vmatprep.subr.bf16.mxu0 0
      %3396 = vmatpush1.bf16.msra.mxu0 0
      %3397 = vmatprep.subr.bf16.mxu0 0
      %3398 = vmatpush1.bf16.msra.mxu0 0
      %3399 = vmatprep.subr.bf16.mxu0 0
      %3400 = vmatpush1.bf16.msra.mxu0 0
      %3401 = vmatprep.subr.bf16.mxu0 0
      %3402 = vmatpush1.bf16.msra.mxu0 0
      %3403 = vmatprep.subr.bf16.mxu0 0
      %3404 = vmatpush1.bf16.msra.mxu0 0
      %3405 = vmatprep.subr.bf16.mxu0 0
      %3406 = vmatpush1.bf16.msra.mxu0 0
      %3407 = vmatprep.subr.bf16.mxu0 0
      %3408 = vmatpush1.bf16.msra.mxu0 0
      %3409 = vmatprep.subr.bf16.mxu0 0
      %3410 = vmatpush1.bf16.msra.mxu0 0
      %3411 = vmatprep.subr.bf16.mxu0 0
      %3412 = vmatpush1.bf16.msra.mxu0 0
      %3413 = vmatprep.subr.bf16.mxu0 0
      %3414 = vmatpush1.bf16.msra.mxu0 0
      %3415 = vmatprep.subr.bf16.mxu0 0
      %3416 = vmatpush1.bf16.msra.mxu0 0
      %3417 = vmatprep.subr.bf16.mxu0 0
      %3418 = vmatpush1.bf16.msra.mxu0 0
      %3419 = vmatprep.subr.bf16.mxu0 0
      %3420 = vmatpush1.bf16.msra.mxu0 0
      %3421 = vmatprep.subr.bf16.mxu0 0
      %3422 = vmatpush1.bf16.msra.mxu0 0
      %3423 = vmatprep.mubr.bf16.mxu0 0
      %3424 = vmatmul.mubr.bf16.gmra.mrb[0].mxu0 %v3341
      %v3425 = vpop.f32.mrb[0].mxu0
      %v3426 = vadd.f32 0.0, %v3425
      %v3427 = vpop.f32.mrb[0].mxu0
      %v3428 = vpop.f32.mrb[0].mxu0
      %v3429 = vadd.f32 0.0, %v3428
      %v3430 = vpop.f32.mrb[0].mxu0
      %3431 = vmatprep.mubr.bf16.mxu0 0
      %3432 = vmatmul.mubr.bf16.gmra.mrb[0].mxu0 %v3344
      %v3433 = vpop.f32.mrb[0].mxu0
      %v3434 = vadd.f32 0.0, %v3433
      %v3435 = vpop.f32.mrb[0].mxu0
      %v3436 = vpop.f32.mrb[0].mxu0
      %v3437 = vadd.f32 0.0, %v3436
      %v3438 = vpop.f32.mrb[0].mxu0
      %3439 = vmatprep.mubr.bf16.mxu0 0
      %3440 = vmatmul.mubr.bf16.gmra.mrb[0].mxu0 %v3347
      %v3441 = vpop.f32.mrb[0].mxu0
      %v3442 = vadd.f32 0.0, %v3441
      %v3443 = vpop.f32.mrb[0].mxu0
      %v3444 = vpop.f32.mrb[0].mxu0
      %v3445 = vadd.f32 0.0, %v3444
      %v3446 = vpop.f32.mrb[0].mxu0
      %3447 = vmatprep.mubr.bf16.mxu0 0
      %3448 = vmatmul.mubr.bf16.gmra.mrb[0].mxu0 %v3350
      %v3449 = vpop.f32.mrb[0].mxu0
      %v3450 = vadd.f32 0.0, %v3449
      %v3451 = vpop.f32.mrb[0].mxu0
      %v3452 = vpop.f32.mrb[0].mxu0
      %v3453 = vadd.f32 0.0, %v3452
      %v3454 = vpop.f32.mrb[0].mxu0
      %3455 = vmatprep.mubr.bf16.mxu0 0
      %3456 = vmatmul.mubr.bf16.gmra.mrb[0].mxu0 %v3353
      %v3457 = vpop.f32.mrb[0].mxu0
      %v3458 = vadd.f32 0.0, %v3457
      %v3459 = vpop.f32.mrb[0].mxu0
      %v3460 = vpop.f32.mrb[0].mxu0
      %v3461 = vadd.f32 0.0, %v3460
      %v3462 = vpop.f32.mrb[0].mxu0
      %3463 = vmatprep.mubr.bf16.mxu0 0
      %3464 = vmatmul.mubr.bf16.gmra.mrb[0].mxu0 %v3356
      %v3465 = vpop.f32.mrb[0].mxu0
      %v3466 = vadd.f32 0.0, %v3465
      %v3467 = vpop.f32.mrb[0].mxu0
      %v3468 = vpop.f32.mrb[0].mxu0
      %v3469 = vadd.f32 0.0, %v3468
      %v3470 = vpop.f32.mrb[0].mxu0
      %3471 = vmatprep.mubr.bf16.mxu0 0
      %3472 = vmatmul.mubr.bf16.gmra.mrb[0].mxu0 %v3359
      %v3473 = vpop.f32.mrb[0].mxu0
      %v3474 = vadd.f32 0.0, %v3473
      %v3475 = vpop.f32.mrb[0].mxu0
      %v3476 = vpop.f32.mrb[0].mxu0
      %v3477 = vadd.f32 0.0, %v3476
      %v3478 = vpop.f32.mrb[0].mxu0
      %3479 = vmatprep.mubr.bf16.mxu0 0
      %3480 = vmatmul.mubr.bf16.gmra.mrb[0].mxu0 %v3362
      %v3481 = vpop.f32.mrb[0].mxu0
      %v3482 = vadd.f32 0.0, %v3481
      %v3483 = vpop.f32.mrb[0].mxu0
      %v3484 = vpop.f32.mrb[0].mxu0
      %v3485 = vadd.f32 0.0, %v3484
      %v3486 = vpop.f32.mrb[0].mxu0
      %3487 = vmatprep.mubr.bf16.mxu0 0
      %3488 = vmatmul.mubr.bf16.gmra.mrb[0].mxu0 %v3365
      %v3489 = vpop.f32.mrb[0].mxu0
      %v3490 = vadd.f32 0.0, %v3489
      %v3491 = vpop.f32.mrb[0].mxu0
      %v3492 = vpop.f32.mrb[0].mxu0
      %v3493 = vadd.f32 0.0, %v3492
      %v3494 = vpop.f32.mrb[0].mxu0
      %3495 = vmatprep.mubr.bf16.mxu0 0
      %3496 = vmatmul.mubr.bf16.gmra.mrb[0].mxu0 %v3368
      %v3497 = vpop.f32.mrb[0].mxu0
      %v3498 = vadd.f32 0.0, %v3497
      %v3499 = vpop.f32.mrb[0].mxu0
      %v3500 = vpop.f32.mrb[0].mxu0
      %v3501 = vadd.f32 0.0, %v3500
      %v3502 = vpop.f32.mrb[0].mxu0
      %3503 = vmatprep.mubr.bf16.mxu0 0
      %3504 = vmatmul.mubr.bf16.gmra.mrb[0].mxu0 %v3371
      %v3505 = vpop.f32.mrb[0].mxu0
      %v3506 = vadd.f32 0.0, %v3505
      %v3507 = vpop.f32.mrb[0].mxu0
      %v3508 = vpop.f32.mrb[0].mxu0
      %v3509 = vadd.f32 0.0, %v3508
      %v3510 = vpop.f32.mrb[0].mxu0
      %3511 = vmatprep.mubr.bf16.mxu0 0
      %3512 = vmatmul.mubr.bf16.gmra.mrb[0].mxu0 %v3374
      %v3513 = vpop.f32.mrb[0].mxu0
      %v3514 = vadd.f32 0.0, %v3513
      %v3515 = vpop.f32.mrb[0].mxu0
      %v3516 = vpop.f32.mrb[0].mxu0
      %v3517 = vadd.f32 0.0, %v3516
      %v3518 = vpop.f32.mrb[0].mxu0
      %3519 = vmatprep.mubr.bf16.mxu0 0
      %3520 = vmatmul.mubr.bf16.gmra.mrb[0].mxu0 %v3377
      %v3521 = vpop.f32.mrb[0].mxu0
      %v3522 = vadd.f32 0.0, %v3521
      %v3523 = vpop.f32.mrb[0].mxu0
      %v3524 = vpop.f32.mrb[0].mxu0
      %v3525 = vadd.f32 0.0, %v3524
      %v3526 = vpop.f32.mrb[0].mxu0
      %3527 = vmatprep.mubr.bf16.mxu0 0
      %3528 = vmatmul.mubr.bf16.gmra.mrb[0].mxu0 %v3380
      %v3529 = vpop.f32.mrb[0].mxu0
      %v3530 = vadd.f32 0.0, %v3529
      %v3531 = vpop.f32.mrb[0].mxu0
      %v3532 = vpop.f32.mrb[0].mxu0
      %v3533 = vadd.f32 0.0, %v3532
      %v3534 = vpop.f32.mrb[0].mxu0
      %3535 = vmatprep.mubr.bf16.mxu0 0
      %3536 = vmatmul.mubr.bf16.gmra.mrb[0].mxu0 %v3383
      %v3537 = vpop.f32.mrb[0].mxu0
      %v3538 = vadd.f32 0.0, %v3537
      %v3539 = vpop.f32.mrb[0].mxu0
      %v3540 = vpop.f32.mrb[0].mxu0
      %v3541 = vadd.f32 0.0, %v3540
      %v3542 = vpop.f32.mrb[0].mxu0
      %3543 = vmatprep.mubr.bf16.mxu0 0
      %3544 = vmatmul.mubr.bf16.gmra.mrb[0].mxu0 %v3386
      %v3545 = vpop.f32.mrb[0].mxu0
      %v3546 = vadd.f32 0.0, %v3545
      %v3547 = vpop.f32.mrb[0].mxu0
      %v3548 = vpop.f32.mrb[0].mxu0
      %v3549 = vadd.f32 0.0, %v3548
      %v3550 = vpop.f32.mrb[0].mxu0
      %3551 = vdwg.mxu0
      %v3552 = vadd.f32 %v3193, %v3426
      %v3553 = vadd.f32 %v3194, %v3429
      %v3554 = vadd.f32 %v3195, %v3434
      %v3555 = vadd.f32 %v3196, %v3437
      %v3556 = vadd.f32 %v3197, %v3442
      %v3557 = vadd.f32 %v3198, %v3445
      %v3558 = vadd.f32 %v3199, %v3450
      %v3559 = vadd.f32 %v3200, %v3453
      %v3560 = vadd.f32 %v3201, %v3458
      %v3561 = vadd.f32 %v3202, %v3461
      %v3562 = vadd.f32 %v3203, %v3466
      %v3563 = vadd.f32 %v3204, %v3469
      %v3564 = vadd.f32 %v3205, %v3474
      %v3565 = vadd.f32 %v3206, %v3477
      %v3566 = vadd.f32 %v3207, %v3482
      %v3567 = vadd.f32 %v3208, %v3485
      %v3568 = vadd.f32 %v3209, %v3490
      %v3569 = vadd.f32 %v3210, %v3493
      %v3570 = vadd.f32 %v3211, %v3498
      %v3571 = vadd.f32 %v3212, %v3501
      %v3572 = vadd.f32 %v3213, %v3506
      %v3573 = vadd.f32 %v3214, %v3509
      %v3574 = vadd.f32 %v3215, %v3514
      %v3575 = vadd.f32 %v3216, %v3517
      %v3576 = vadd.f32 %v3217, %v3522
      %v3577 = vadd.f32 %v3218, %v3525
      %v3578 = vadd.f32 %v3219, %v3530
      %v3579 = vadd.f32 %v3220, %v3533
      %v3580 = vadd.f32 %v3221, %v3538
      %v3581 = vadd.f32 %v3222, %v3541
      %v3582 = vadd.f32 %v3223, %v3546
      %v3583 = vadd.f32 %v3224, %v3549
      %v3584 = vld [vmem:[%s3225] sm:$0xf]
      %v3585 = vld [vmem:[%s3225 + $0x4] sm:$0xf]
      %v3586 = vld [vmem:[%s3225 + $0x8] sm:$0x1]
      %v3587 = vld [vmem:[%s3225 + $0xc] sm:$0xf]
      %v3588 = vld [vmem:[%s3225 + $0x10] sm:$0xf]
      %v3589 = vld [vmem:[%s3225 + $0x14] sm:$0x1]
      %v3590 = vld [vmem:[%s3225 + $0x18] sm:$0xf]
      %v3591 = vld [vmem:[%s3225 + $0x1c] sm:$0xf]
      %v3592 = vld [vmem:[%s3225 + $0x20] sm:$0x1]
      %v3593 = vld [vmem:[%s3225 + $0x24] sm:$0xf]
      %v3594 = vld [vmem:[%s3225 + $0x28] sm:$0xf]
      %v3595 = vld [vmem:[%s3225 + $0x2c] sm:$0x1]
      %v3596 = vld [vmem:[%s3225 + $0x30] sm:$0xf]
      %v3597 = vld [vmem:[%s3225 + $0x34] sm:$0xf]
      %v3598 = vld [vmem:[%s3225 + $0x38] sm:$0x1]
      %v3599 = vld [vmem:[%s3225 + $0x3c] sm:$0xf]
      %v3600 = vld [vmem:[%s3225 + $0x40] sm:$0xf]
      %v3601 = vld [vmem:[%s3225 + $0x44] sm:$0x1]
      %v3602 = vld [vmem:[%s3225 + $0x48] sm:$0xf]
      %v3603 = vld [vmem:[%s3225 + $0x4c] sm:$0xf]
      %v3604 = vld [vmem:[%s3225 + $0x50] sm:$0x1]
      %v3605 = vld [vmem:[%s3225 + $0x54] sm:$0xf]
      %v3606 = vld [vmem:[%s3225 + $0x58] sm:$0xf]
      %v3607 = vld [vmem:[%s3225 + $0x5c] sm:$0x1]
      %v3608 = vld [vmem:[%s3225 + $0x60] sm:$0xf]
      %v3609 = vld [vmem:[%s3225 + $0x64] sm:$0xf]
      %v3610 = vld [vmem:[%s3225 + $0x68] sm:$0x1]
      %v3611 = vld [vmem:[%s3225 + $0x6c] sm:$0xf]
      %v3612 = vld [vmem:[%s3225 + $0x70] sm:$0xf]
      %v3613 = vld [vmem:[%s3225 + $0x74] sm:$0x1]
      %v3614 = vld [vmem:[%s3225 + $0x78] sm:$0xf]
      %v3615 = vld [vmem:[%s3225 + $0x7c] sm:$0xf]
      %v3616 = vld [vmem:[%s3225 + $0x80] sm:$0x1]
      %v3617 = vld [vmem:[%s3225 + $0x84] sm:$0xf]
      %v3618 = vld [vmem:[%s3225 + $0x88] sm:$0xf]
      %v3619 = vld [vmem:[%s3225 + $0x8c] sm:$0x1]
      %v3620 = vld [vmem:[%s3225 + $0x90] sm:$0xf]
      %v3621 = vld [vmem:[%s3225 + $0x94] sm:$0xf]
      %v3622 = vld [vmem:[%s3225 + $0x98] sm:$0x1]
      %v3623 = vld [vmem:[%s3225 + $0x9c] sm:$0xf]
      %v3624 = vld [vmem:[%s3225 + $0xa0] sm:$0xf]
      %v3625 = vld [vmem:[%s3225 + $0xa4] sm:$0x1]
      %v3626 = vld [vmem:[%s3225 + $0xa8] sm:$0xf]
      %v3627 = vld [vmem:[%s3225 + $0xac] sm:$0xf]
      %v3628 = vld [vmem:[%s3225 + $0xb0] sm:$0x1]
      %v3629 = vld [vmem:[%s3225 + $0xb4] sm:$0xf]
      %v3630 = vld [vmem:[%s3225 + $0xb8] sm:$0xf]
      %v3631 = vld [vmem:[%s3225 + $0xbc] sm:$0x1]
      %v3633 = vshrl.u32 %v3584, 16
      %v3635 = vrot.slane %v3633, 4
      %v3636 = vshll.u32 %v3584, 16
      %v3638 = vrot.slane %v3636, 5
      %v3639 = vor.u32 %v3635, %v3638
      %v3640 = vrot.slane %v3639, 4
      %v3642 = vshll.u32 %v3585, 16
      %v3644 = vrot.slane %v3642, 5
      %v3645 = vsel %vm272, %v3640, %v3644
      %v3646 = vshrl.u32 %v3585, 16
      %v3648 = vrot.slane %v3646, 4
      %v3649 = vor.u32 %v3648, %v3644
      %v3650 = vrot.slane %v3649, 4
      %v3652 = vshll.u32 %v3586, 16
      %v3654 = vrot.slane %v3652, 5
      %v3655 = vsel %vm272, %v3650, %v3654
      %v3657 = vshrl.u32 %v3587, 16
      %v3659 = vrot.slane %v3657, 4
      %v3660 = vshll.u32 %v3587, 16
      %v3662 = vrot.slane %v3660, 5
      %v3663 = vor.u32 %v3659, %v3662
      %v3664 = vrot.slane %v3663, 4
      %v3666 = vshll.u32 %v3588, 16
      %v3668 = vrot.slane %v3666, 5
      %v3669 = vsel %vm272, %v3664, %v3668
      %v3670 = vshrl.u32 %v3588, 16
      %v3672 = vrot.slane %v3670, 4
      %v3673 = vor.u32 %v3672, %v3668
      %v3674 = vrot.slane %v3673, 4
      %v3676 = vshll.u32 %v3589, 16
      %v3678 = vrot.slane %v3676, 5
      %v3679 = vsel %vm272, %v3674, %v3678
      %v3681 = vshrl.u32 %v3590, 16
      %v3683 = vrot.slane %v3681, 4
      %v3684 = vshll.u32 %v3590, 16
      %v3686 = vrot.slane %v3684, 5
      %v3687 = vor.u32 %v3683, %v3686
      %v3688 = vrot.slane %v3687, 4
      %v3690 = vshll.u32 %v3591, 16
      %v3692 = vrot.slane %v3690, 5
      %v3693 = vsel %vm272, %v3688, %v3692
      %v3694 = vshrl.u32 %v3591, 16
      %v3696 = vrot.slane %v3694, 4
      %v3697 = vor.u32 %v3696, %v3692
      %v3698 = vrot.slane %v3697, 4
      %v3700 = vshll.u32 %v3592, 16
      %v3702 = vrot.slane %v3700, 5
      %v3703 = vsel %vm272, %v3698, %v3702
      %v3705 = vshrl.u32 %v3593, 16
      %v3707 = vrot.slane %v3705, 4
      %v3708 = vshll.u32 %v3593, 16
      %v3710 = vrot.slane %v3708, 5
      %v3711 = vor.u32 %v3707, %v3710
      %v3712 = vrot.slane %v3711, 4
      %v3714 = vshll.u32 %v3594, 16
      %v3716 = vrot.slane %v3714, 5
      %v3717 = vsel %vm272, %v3712, %v3716
      %v3718 = vshrl.u32 %v3594, 16
      %v3720 = vrot.slane %v3718, 4
      %v3721 = vor.u32 %v3720, %v3716
      %v3722 = vrot.slane %v3721, 4
      %v3724 = vshll.u32 %v3595, 16
      %v3726 = vrot.slane %v3724, 5
      %v3727 = vsel %vm272, %v3722, %v3726
      %v3729 = vshrl.u32 %v3596, 16
      %v3731 = vrot.slane %v3729, 4
      %v3732 = vshll.u32 %v3596, 16
      %v3734 = vrot.slane %v3732, 5
      %v3735 = vor.u32 %v3731, %v3734
      %v3736 = vrot.slane %v3735, 4
      %v3738 = vshll.u32 %v3597, 16
      %v3740 = vrot.slane %v3738, 5
      %v3741 = vsel %vm272, %v3736, %v3740
      %v3742 = vshrl.u32 %v3597, 16
      %v3744 = vrot.slane %v3742, 4
      %v3745 = vor.u32 %v3744, %v3740
      %v3746 = vrot.slane %v3745, 4
      %v3748 = vshll.u32 %v3598, 16
      %v3750 = vrot.slane %v3748, 5
      %v3751 = vsel %vm272, %v3746, %v3750
      %v3753 = vshrl.u32 %v3599, 16
      %v3755 = vrot.slane %v3753, 4
      %v3756 = vshll.u32 %v3599, 16
      %v3758 = vrot.slane %v3756, 5
      %v3759 = vor.u32 %v3755, %v3758
      %v3760 = vrot.slane %v3759, 4
      %v3762 = vshll.u32 %v3600, 16
      %v3764 = vrot.slane %v3762, 5
      %v3765 = vsel %vm272, %v3760, %v3764
      %v3766 = vshrl.u32 %v3600, 16
      %v3768 = vrot.slane %v3766, 4
      %v3769 = vor.u32 %v3768, %v3764
      %v3770 = vrot.slane %v3769, 4
      %v3772 = vshll.u32 %v3601, 16
      %v3774 = vrot.slane %v3772, 5
      %v3775 = vsel %vm272, %v3770, %v3774
      %v3777 = vshrl.u32 %v3602, 16
      %v3779 = vrot.slane %v3777, 4
      %v3780 = vshll.u32 %v3602, 16
      %v3782 = vrot.slane %v3780, 5
      %v3783 = vor.u32 %v3779, %v3782
      %v3784 = vrot.slane %v3783, 4
      %v3786 = vshll.u32 %v3603, 16
      %v3788 = vrot.slane %v3786, 5
      %v3789 = vsel %vm272, %v3784, %v3788
      %v3790 = vshrl.u32 %v3603, 16
      %v3792 = vrot.slane %v3790, 4
      %v3793 = vor.u32 %v3792, %v3788
      %v3794 = vrot.slane %v3793, 4
      %v3796 = vshll.u32 %v3604, 16
      %v3798 = vrot.slane %v3796, 5
      %v3799 = vsel %vm272, %v3794, %v3798
      %v3801 = vshrl.u32 %v3605, 16
      %v3803 = vrot.slane %v3801, 4
      %v3804 = vshll.u32 %v3605, 16
      %v3806 = vrot.slane %v3804, 5
      %v3807 = vor.u32 %v3803, %v3806
      %v3808 = vrot.slane %v3807, 4
      %v3810 = vshll.u32 %v3606, 16
      %v3812 = vrot.slane %v3810, 5
      %v3813 = vsel %vm272, %v3808, %v3812
      %v3814 = vshrl.u32 %v3606, 16
      %v3816 = vrot.slane %v3814, 4
      %v3817 = vor.u32 %v3816, %v3812
      %v3818 = vrot.slane %v3817, 4
      %v3820 = vshll.u32 %v3607, 16
      %v3822 = vrot.slane %v3820, 5
      %v3823 = vsel %vm272, %v3818, %v3822
      %v3825 = vshrl.u32 %v3608, 16
      %v3827 = vrot.slane %v3825, 4
      %v3828 = vshll.u32 %v3608, 16
      %v3830 = vrot.slane %v3828, 5
      %v3831 = vor.u32 %v3827, %v3830
      %v3832 = vrot.slane %v3831, 4
      %v3834 = vshll.u32 %v3609, 16
      %v3836 = vrot.slane %v3834, 5
      %v3837 = vsel %vm272, %v3832, %v3836
      %v3838 = vshrl.u32 %v3609, 16
      %v3840 = vrot.slane %v3838, 4
      %v3841 = vor.u32 %v3840, %v3836
      %v3842 = vrot.slane %v3841, 4
      %v3844 = vshll.u32 %v3610, 16
      %v3846 = vrot.slane %v3844, 5
      %v3847 = vsel %vm272, %v3842, %v3846
      %v3849 = vshrl.u32 %v3611, 16
      %v3851 = vrot.slane %v3849, 4
      %v3852 = vshll.u32 %v3611, 16
      %v3854 = vrot.slane %v3852, 5
      %v3855 = vor.u32 %v3851, %v3854
      %v3856 = vrot.slane %v3855, 4
      %v3858 = vshll.u32 %v3612, 16
      %v3860 = vrot.slane %v3858, 5
      %v3861 = vsel %vm272, %v3856, %v3860
      %v3862 = vshrl.u32 %v3612, 16
      %v3864 = vrot.slane %v3862, 4
      %v3865 = vor.u32 %v3864, %v3860
      %v3866 = vrot.slane %v3865, 4
      %v3868 = vshll.u32 %v3613, 16
      %v3870 = vrot.slane %v3868, 5
      %v3871 = vsel %vm272, %v3866, %v3870
      %v3873 = vshrl.u32 %v3614, 16
      %v3875 = vrot.slane %v3873, 4
      %v3876 = vshll.u32 %v3614, 16
      %v3878 = vrot.slane %v3876, 5
      %v3879 = vor.u32 %v3875, %v3878
      %v3880 = vrot.slane %v3879, 4
      %v3882 = vshll.u32 %v3615, 16
      %v3884 = vrot.slane %v3882, 5
      %v3885 = vsel %vm272, %v3880, %v3884
      %v3886 = vshrl.u32 %v3615, 16
      %v3888 = vrot.slane %v3886, 4
      %v3889 = vor.u32 %v3888, %v3884
      %v3890 = vrot.slane %v3889, 4
      %v3892 = vshll.u32 %v3616, 16
      %v3894 = vrot.slane %v3892, 5
      %v3895 = vsel %vm272, %v3890, %v3894
      %v3897 = vshrl.u32 %v3617, 16
      %v3899 = vrot.slane %v3897, 4
      %v3900 = vshll.u32 %v3617, 16
      %v3902 = vrot.slane %v3900, 5
      %v3903 = vor.u32 %v3899, %v3902
      %v3904 = vrot.slane %v3903, 4
      %v3906 = vshll.u32 %v3618, 16
      %v3908 = vrot.slane %v3906, 5
      %v3909 = vsel %vm272, %v3904, %v3908
      %v3910 = vshrl.u32 %v3618, 16
      %v3912 = vrot.slane %v3910, 4
      %v3913 = vor.u32 %v3912, %v3908
      %v3914 = vrot.slane %v3913, 4
      %v3916 = vshll.u32 %v3619, 16
      %v3918 = vrot.slane %v3916, 5
      %v3919 = vsel %vm272, %v3914, %v3918
      %v3921 = vshrl.u32 %v3620, 16
      %v3923 = vrot.slane %v3921, 4
      %v3924 = vshll.u32 %v3620, 16
      %v3926 = vrot.slane %v3924, 5
      %v3927 = vor.u32 %v3923, %v3926
      %v3928 = vrot.slane %v3927, 4
      %v3930 = vshll.u32 %v3621, 16
      %v3932 = vrot.slane %v3930, 5
      %v3933 = vsel %vm272, %v3928, %v3932
      %v3934 = vshrl.u32 %v3621, 16
      %v3936 = vrot.slane %v3934, 4
      %v3937 = vor.u32 %v3936, %v3932
      %v3938 = vrot.slane %v3937, 4
      %v3940 = vshll.u32 %v3622, 16
      %v3942 = vrot.slane %v3940, 5
      %v3943 = vsel %vm272, %v3938, %v3942
      %v3945 = vshrl.u32 %v3623, 16
      %v3947 = vrot.slane %v3945, 4
      %v3948 = vshll.u32 %v3623, 16
      %v3950 = vrot.slane %v3948, 5
      %v3951 = vor.u32 %v3947, %v3950
      %v3952 = vrot.slane %v3951, 4
      %v3954 = vshll.u32 %v3624, 16
      %v3956 = vrot.slane %v3954, 5
      %v3957 = vsel %vm272, %v3952, %v3956
      %v3958 = vshrl.u32 %v3624, 16
      %v3960 = vrot.slane %v3958, 4
      %v3961 = vor.u32 %v3960, %v3956
      %v3962 = vrot.slane %v3961, 4
      %v3964 = vshll.u32 %v3625, 16
      %v3966 = vrot.slane %v3964, 5
      %v3967 = vsel %vm272, %v3962, %v3966
      %v3969 = vshrl.u32 %v3626, 16
      %v3971 = vrot.slane %v3969, 4
      %v3972 = vshll.u32 %v3626, 16
      %v3974 = vrot.slane %v3972, 5
      %v3975 = vor.u32 %v3971, %v3974
      %v3976 = vrot.slane %v3975, 4
      %v3978 = vshll.u32 %v3627, 16
      %v3980 = vrot.slane %v3978, 5
      %v3981 = vsel %vm272, %v3976, %v3980
      %v3982 = vshrl.u32 %v3627, 16
      %v3984 = vrot.slane %v3982, 4
      %v3985 = vor.u32 %v3984, %v3980
      %v3986 = vrot.slane %v3985, 4
      %v3988 = vshll.u32 %v3628, 16
      %v3990 = vrot.slane %v3988, 5
      %v3991 = vsel %vm272, %v3986, %v3990
      %v3993 = vshrl.u32 %v3629, 16
      %v3995 = vrot.slane %v3993, 4
      %v3996 = vshll.u32 %v3629, 16
      %v3998 = vrot.slane %v3996, 5
      %v3999 = vor.u32 %v3995, %v3998
      %v4000 = vrot.slane %v3999, 4
      %v4002 = vshll.u32 %v3630, 16
      %v4004 = vrot.slane %v4002, 5
      %v4005 = vsel %vm272, %v4000, %v4004
      %v4006 = vshrl.u32 %v3630, 16
      %v4008 = vrot.slane %v4006, 4
      %v4009 = vor.u32 %v4008, %v4004
      %v4010 = vrot.slane %v4009, 4
      %v4012 = vshll.u32 %v3631, 16
      %v4014 = vrot.slane %v4012, 5
      %v4015 = vsel %vm272, %v4010, %v4014
      %s4016 = scalar_lea.vmem %s1, 14
      %v4017 = vld [vmem:[%s4016] sm:$0x3]
      %v4018 = vunpack.c.l.b16 %v3645
      %v4019 = vunpack.c.l.b16 %v3655
      %v4020 = vunpack.c.l.b16 %v3669
      %v4021 = vunpack.c.l.b16 %v3679
      %v4022 = vunpack.c.l.b16 %v3693
      %v4023 = vunpack.c.l.b16 %v3703
      %v4024 = vunpack.c.l.b16 %v3717
      %v4025 = vunpack.c.l.b16 %v3727
      %v4026 = vunpack.c.l.b16 %v3741
      %v4027 = vunpack.c.l.b16 %v3751
      %v4028 = vunpack.c.l.b16 %v3765
      %v4029 = vunpack.c.l.b16 %v3775
      %v4030 = vunpack.c.l.b16 %v3789
      %v4031 = vunpack.c.l.b16 %v3799
      %v4032 = vunpack.c.l.b16 %v3813
      %v4033 = vunpack.c.l.b16 %v3823
      %v4034 = vunpack.c.l.b16 %v3837
      %v4035 = vunpack.c.l.b16 %v3847
      %v4036 = vunpack.c.l.b16 %v3861
      %v4037 = vunpack.c.l.b16 %v3871
      %v4038 = vunpack.c.l.b16 %v3885
      %v4039 = vunpack.c.l.b16 %v3895
      %v4040 = vunpack.c.l.b16 %v3909
      %v4041 = vunpack.c.l.b16 %v3919
      %v4042 = vunpack.c.l.b16 %v3933
      %v4043 = vunpack.c.l.b16 %v3943
      %v4044 = vunpack.c.l.b16 %v3957
      %v4045 = vunpack.c.l.b16 %v3967
      %v4046 = vunpack.c.l.b16 %v3981
      %v4047 = vunpack.c.l.b16 %v3991
      %v4048 = vunpack.c.l.b16 %v4005
      %v4049 = vunpack.c.l.b16 %v4015
      %v4050 = vpack.c.b16 %v4019, %v4018
      %v4051 = vpack.c.b16 %v4021, %v4020
      %v4052 = vpack.c.b16 %v4023, %v4022
      %v4053 = vpack.c.b16 %v4025, %v4024
      %v4054 = vpack.c.b16 %v4027, %v4026
      %v4055 = vpack.c.b16 %v4029, %v4028
      %v4056 = vpack.c.b16 %v4031, %v4030
      %v4057 = vpack.c.b16 %v4033, %v4032
      %v4058 = vpack.c.b16 %v4035, %v4034
      %v4059 = vpack.c.b16 %v4037, %v4036
      %v4060 = vpack.c.b16 %v4039, %v4038
      %v4061 = vpack.c.b16 %v4041, %v4040
      %v4062 = vpack.c.b16 %v4043, %v4042
      %v4063 = vpack.c.b16 %v4045, %v4044
      %v4064 = vpack.c.b16 %v4047, %v4046
      %v4065 = vpack.c.b16 %v4049, %v4048
      %v4067 = vsel %vm707, %v4050, 0
      %v4070 = vsel %vm707, %v4051, 0
      %v4073 = vsel %vm707, %v4052, 0
      %v4076 = vsel %vm707, %v4053, 0
      %v4079 = vsel %vm707, %v4054, 0
      %v4082 = vsel %vm707, %v4055, 0
      %v4085 = vsel %vm707, %v4056, 0
      %v4088 = vsel %vm707, %v4057, 0
      %v4091 = vsel %vm707, %v4058, 0
      %v4094 = vsel %vm707, %v4059, 0
      %v4097 = vsel %vm707, %v4060, 0
      %v4100 = vsel %vm707, %v4061, 0
      %v4103 = vsel %vm707, %v4062, 0
      %v4106 = vsel %vm707, %v4063, 0
      %v4109 = vsel %vm707, %v4064, 0
      %v4112 = vsel %vm707, %v4065, 0
      %v4115 = vsel %vm756, %v4017, 0
      %4117 = vmatprep.subr.bf16.mxu0 0
      %4118 = vmatpush1.bf16.msra.mxu0 %v4115
      %4119 = vmatprep.subr.bf16.mxu0 0
      %4120 = vmatpush1.bf16.msra.mxu0 0
      %4121 = vmatprep.subr.bf16.mxu0 0
      %4122 = vmatpush1.bf16.msra.mxu0 0
      %4123 = vmatprep.subr.bf16.mxu0 0
      %4124 = vmatpush1.bf16.msra.mxu0 0
      %4125 = vmatprep.subr.bf16.mxu0 0
      %4126 = vmatpush1.bf16.msra.mxu0 0
      %4127 = vmatprep.subr.bf16.mxu0 0
      %4128 = vmatpush1.bf16.msra.mxu0 0
      %4129 = vmatprep.subr.bf16.mxu0 0
      %4130 = vmatpush1.bf16.msra.mxu0 0
      %4131 = vmatprep.subr.bf16.mxu0 0
      %4132 = vmatpush1.bf16.msra.mxu0 0
      %4133 = vmatprep.subr.bf16.mxu0 0
      %4134 = vmatpush1.bf16.msra.mxu0 0
      %4135 = vmatprep.subr.bf16.mxu0 0
      %4136 = vmatpush1.bf16.msra.mxu0 0
      %4137 = vmatprep.subr.bf16.mxu0 0
      %4138 = vmatpush1.bf16.msra.mxu0 0
      %4139 = vmatprep.subr.bf16.mxu0 0
      %4140 = vmatpush1.bf16.msra.mxu0 0
      %4141 = vmatprep.subr.bf16.mxu0 0
      %4142 = vmatpush1.bf16.msra.mxu0 0
      %4143 = vmatprep.subr.bf16.mxu0 0
      %4144 = vmatpush1.bf16.msra.mxu0 0
      %4145 = vmatprep.subr.bf16.mxu0 0
      %4146 = vmatpush1.bf16.msra.mxu0 0
      %4147 = vmatprep.subr.bf16.mxu0 0
      %4148 = vmatpush1.bf16.msra.mxu0 0
      %4149 = vmatprep.mubr.bf16.mxu0 0
      %4150 = vmatmul.mubr.bf16.gmra.mrb[0].mxu0 %v4067
      %v4151 = vpop.f32.mrb[0].mxu0
      %v4152 = vadd.f32 0.0, %v4151
      %v4153 = vpop.f32.mrb[0].mxu0
      %v4154 = vpop.f32.mrb[0].mxu0
      %v4155 = vadd.f32 0.0, %v4154
      %v4156 = vpop.f32.mrb[0].mxu0
      %4157 = vmatprep.mubr.bf16.mxu0 0
      %4158 = vmatmul.mubr.bf16.gmra.mrb[0].mxu0 %v4070
      %v4159 = vpop.f32.mrb[0].mxu0
      %v4160 = vadd.f32 0.0, %v4159
      %v4161 = vpop.f32.mrb[0].mxu0
      %v4162 = vpop.f32.mrb[0].mxu0
      %v4163 = vadd.f32 0.0, %v4162
      %v4164 = vpop.f32.mrb[0].mxu0
      %4165 = vmatprep.mubr.bf16.mxu0 0
      %4166 = vmatmul.mubr.bf16.gmra.mrb[0].mxu0 %v4073
      %v4167 = vpop.f32.mrb[0].mxu0
      %v4168 = vadd.f32 0.0, %v4167
      %v4169 = vpop.f32.mrb[0].mxu0
      %v4170 = vpop.f32.mrb[0].mxu0
      %v4171 = vadd.f32 0.0, %v4170
      %v4172 = vpop.f32.mrb[0].mxu0
      %4173 = vmatprep.mubr.bf16.mxu0 0
      %4174 = vmatmul.mubr.bf16.gmra.mrb[0].mxu0 %v4076
      %v4175 = vpop.f32.mrb[0].mxu0
      %v4176 = vadd.f32 0.0, %v4175
      %v4177 = vpop.f32.mrb[0].mxu0
      %v4178 = vpop.f32.mrb[0].mxu0
      %v4179 = vadd.f32 0.0, %v4178
      %v4180 = vpop.f32.mrb[0].mxu0
      %4181 = vmatprep.mubr.bf16.mxu0 0
      %4182 = vmatmul.mubr.bf16.gmra.mrb[0].mxu0 %v4079
      %v4183 = vpop.f32.mrb[0].mxu0
      %v4184 = vadd.f32 0.0, %v4183
      %v4185 = vpop.f32.mrb[0].mxu0
      %v4186 = vpop.f32.mrb[0].mxu0
      %v4187 = vadd.f32 0.0, %v4186
      %v4188 = vpop.f32.mrb[0].mxu0
      %4189 = vmatprep.mubr.bf16.mxu0 0
      %4190 = vmatmul.mubr.bf16.gmra.mrb[0].mxu0 %v4082
      %v4191 = vpop.f32.mrb[0].mxu0
      %v4192 = vadd.f32 0.0, %v4191
      %v4193 = vpop.f32.mrb[0].mxu0
      %v4194 = vpop.f32.mrb[0].mxu0
      %v4195 = vadd.f32 0.0, %v4194
      %v4196 = vpop.f32.mrb[0].mxu0
      %4197 = vmatprep.mubr.bf16.mxu0 0
      %4198 = vmatmul.mubr.bf16.gmra.mrb[0].mxu0 %v4085
      %v4199 = vpop.f32.mrb[0].mxu0
      %v4200 = vadd.f32 0.0, %v4199
      %v4201 = vpop.f32.mrb[0].mxu0
      %v4202 = vpop.f32.mrb[0].mxu0
      %v4203 = vadd.f32 0.0, %v4202
      %v4204 = vpop.f32.mrb[0].mxu0
      %4205 = vmatprep.mubr.bf16.mxu0 0
      %4206 = vmatmul.mubr.bf16.gmra.mrb[0].mxu0 %v4088
      %v4207 = vpop.f32.mrb[0].mxu0
      %v4208 = vadd.f32 0.0, %v4207
      %v4209 = vpop.f32.mrb[0].mxu0
      %v4210 = vpop.f32.mrb[0].mxu0
      %v4211 = vadd.f32 0.0, %v4210
      %v4212 = vpop.f32.mrb[0].mxu0
      %4213 = vmatprep.mubr.bf16.mxu0 0
      %4214 = vmatmul.mubr.bf16.gmra.mrb[0].mxu0 %v4091
      %v4215 = vpop.f32.mrb[0].mxu0
      %v4216 = vadd.f32 0.0, %v4215
      %v4217 = vpop.f32.mrb[0].mxu0
      %v4218 = vpop.f32.mrb[0].mxu0
      %v4219 = vadd.f32 0.0, %v4218
      %v4220 = vpop.f32.mrb[0].mxu0
      %4221 = vmatprep.mubr.bf16.mxu0 0
      %4222 = vmatmul.mubr.bf16.gmra.mrb[0].mxu0 %v4094
      %v4223 = vpop.f32.mrb[0].mxu0
      %v4224 = vadd.f32 0.0, %v4223
      %v4225 = vpop.f32.mrb[0].mxu0
      %v4226 = vpop.f32.mrb[0].mxu0
      %v4227 = vadd.f32 0.0, %v4226
      %v4228 = vpop.f32.mrb[0].mxu0
      %4229 = vmatprep.mubr.bf16.mxu0 0
      %4230 = vmatmul.mubr.bf16.gmra.mrb[0].mxu0 %v4097
      %v4231 = vpop.f32.mrb[0].mxu0
      %v4232 = vadd.f32 0.0, %v4231
      %v4233 = vpop.f32.mrb[0].mxu0
      %v4234 = vpop.f32.mrb[0].mxu0
      %v4235 = vadd.f32 0.0, %v4234
      %v4236 = vpop.f32.mrb[0].mxu0
      %4237 = vmatprep.mubr.bf16.mxu0 0
      %4238 = vmatmul.mubr.bf16.gmra.mrb[0].mxu0 %v4100
      %v4239 = vpop.f32.mrb[0].mxu0
      %v4240 = vadd.f32 0.0, %v4239
      %v4241 = vpop.f32.mrb[0].mxu0
      %v4242 = vpop.f32.mrb[0].mxu0
      %v4243 = vadd.f32 0.0, %v4242
      %v4244 = vpop.f32.mrb[0].mxu0
      %4245 = vmatprep.mubr.bf16.mxu0 0
      %4246 = vmatmul.mubr.bf16.gmra.mrb[0].mxu0 %v4103
      %v4247 = vpop.f32.mrb[0].mxu0
      %v4248 = vadd.f32 0.0, %v4247
      %v4249 = vpop.f32.mrb[0].mxu0
      %v4250 = vpop.f32.mrb[0].mxu0
      %v4251 = vadd.f32 0.0, %v4250
      %v4252 = vpop.f32.mrb[0].mxu0
      %4253 = vmatprep.mubr.bf16.mxu0 0
      %4254 = vmatmul.mubr.bf16.gmra.mrb[0].mxu0 %v4106
      %v4255 = vpop.f32.mrb[0].mxu0
      %v4256 = vadd.f32 0.0, %v4255
      %v4257 = vpop.f32.mrb[0].mxu0
      %v4258 = vpop.f32.mrb[0].mxu0
      %v4259 = vadd.f32 0.0, %v4258
      %v4260 = vpop.f32.mrb[0].mxu0
      %4261 = vmatprep.mubr.bf16.mxu0 0
      %4262 = vmatmul.mubr.bf16.gmra.mrb[0].mxu0 %v4109
      %v4263 = vpop.f32.mrb[0].mxu0
      %v4264 = vadd.f32 0.0, %v4263
      %v4265 = vpop.f32.mrb[0].mxu0
      %v4266 = vpop.f32.mrb[0].mxu0
      %v4267 = vadd.f32 0.0, %v4266
      %v4268 = vpop.f32.mrb[0].mxu0
      %4269 = vmatprep.mubr.bf16.mxu0 0
      %4270 = vmatmul.mubr.bf16.gmra.mrb[0].mxu0 %v4112
      %v4271 = vpop.f32.mrb[0].mxu0
      %v4272 = vadd.f32 0.0, %v4271
      %v4273 = vpop.f32.mrb[0].mxu0
      %v4274 = vpop.f32.mrb[0].mxu0
      %v4275 = vadd.f32 0.0, %v4274
      %v4276 = vpop.f32.mrb[0].mxu0
      %4277 = vdwg.mxu0
      %v4278 = vadd.f32 %v3552, %v4152
      %v4279 = vadd.f32 %v3553, %v4155
      %v4280 = vadd.f32 %v3554, %v4160
      %v4281 = vadd.f32 %v3555, %v4163
      %v4282 = vadd.f32 %v3556, %v4168
      %v4283 = vadd.f32 %v3557, %v4171
      %v4284 = vadd.f32 %v3558, %v4176
      %v4285 = vadd.f32 %v3559, %v4179
      %v4286 = vadd.f32 %v3560, %v4184
      %v4287 = vadd.f32 %v3561, %v4187
      %v4288 = vadd.f32 %v3562, %v4192
      %v4289 = vadd.f32 %v3563, %v4195
      %v4290 = vadd.f32 %v3564, %v4200
      %v4291 = vadd.f32 %v3565, %v4203
      %v4292 = vadd.f32 %v3566, %v4208
      %v4293 = vadd.f32 %v3567, %v4211
      %v4294 = vadd.f32 %v3568, %v4216
      %v4295 = vadd.f32 %v3569, %v4219
      %v4296 = vadd.f32 %v3570, %v4224
      %v4297 = vadd.f32 %v3571, %v4227
      %v4298 = vadd.f32 %v3572, %v4232
      %v4299 = vadd.f32 %v3573, %v4235
      %v4300 = vadd.f32 %v3574, %v4240
      %v4301 = vadd.f32 %v3575, %v4243
      %v4302 = vadd.f32 %v3576, %v4248
      %v4303 = vadd.f32 %v3577, %v4251
      %v4304 = vadd.f32 %v3578, %v4256
      %v4305 = vadd.f32 %v3579, %v4259
      %v4306 = vadd.f32 %v3580, %v4264
      %v4307 = vadd.f32 %v3581, %v4267
      %v4308 = vadd.f32 %v3582, %v4272
      %v4309 = vadd.f32 %v3583, %v4275
      %v4310 = vld [vmem:[%s3225] sm:$0xe]
      %v4311 = vld [vmem:[%s3225 + $0xc] sm:$0xe]
      %v4312 = vld [vmem:[%s3225 + $0x18] sm:$0xe]
      %v4313 = vld [vmem:[%s3225 + $0x24] sm:$0xe]
      %v4314 = vld [vmem:[%s3225 + $0x30] sm:$0xe]
      %v4315 = vld [vmem:[%s3225 + $0x3c] sm:$0xe]
      %v4316 = vld [vmem:[%s3225 + $0x48] sm:$0xe]
      %v4317 = vld [vmem:[%s3225 + $0x54] sm:$0xe]
      %v4318 = vld [vmem:[%s3225 + $0x60] sm:$0xe]
      %v4319 = vld [vmem:[%s3225 + $0x6c] sm:$0xe]
      %v4320 = vld [vmem:[%s3225 + $0x78] sm:$0xe]
      %v4321 = vld [vmem:[%s3225 + $0x84] sm:$0xe]
      %v4322 = vld [vmem:[%s3225 + $0x90] sm:$0xe]
      %v4323 = vld [vmem:[%s3225 + $0x9c] sm:$0xe]
      %v4324 = vld [vmem:[%s3225 + $0xa8] sm:$0xe]
      %v4325 = vld [vmem:[%s3225 + $0xb4] sm:$0xe]
      %v4374 = vrot.slane %v4310, 5
      %v4375 = vrot.slane %v4374, 4
      %v4376 = vrot.slane %v3585, 5
      %v4377 = vsel %vm1263, %v4375, %v4376
      %v4378 = vrot.slane %v4376, 4
      %v4379 = vrot.slane %v3586, 5
      %v4380 = vsel %vm1263, %v4378, %v4379
      %v4381 = vrot.slane %v4311, 5
      %v4382 = vrot.slane %v4381, 4
      %v4383 = vrot.slane %v3588, 5
      %v4384 = vsel %vm1263, %v4382, %v4383
      %v4385 = vrot.slane %v4383, 4
      %v4386 = vrot.slane %v3589, 5
      %v4387 = vsel %vm1263, %v4385, %v4386
      %v4388 = vrot.slane %v4312, 5
      %v4389 = vrot.slane %v4388, 4
      %v4390 = vrot.slane %v3591, 5
      %v4391 = vsel %vm1263, %v4389, %v4390
      %v4392 = vrot.slane %v4390, 4
      %v4393 = vrot.slane %v3592, 5
      %v4394 = vsel %vm1263, %v4392, %v4393
      %v4395 = vrot.slane %v4313, 5
      %v4396 = vrot.slane %v4395, 4
      %v4397 = vrot.slane %v3594, 5
      %v4398 = vsel %vm1263, %v4396, %v4397
      %v4399 = vrot.slane %v4397, 4
      %v4400 = vrot.slane %v3595, 5
      %v4401 = vsel %vm1263, %v4399, %v4400
      %v4402 = vrot.slane %v4314, 5
      %v4403 = vrot.slane %v4402, 4
      %v4404 = vrot.slane %v3597, 5
      %v4405 = vsel %vm1263, %v4403, %v4404
      %v4406 = vrot.slane %v4404, 4
      %v4407 = vrot.slane %v3598, 5
      %v4408 = vsel %vm1263, %v4406, %v4407
      %v4409 = vrot.slane %v4315, 5
      %v4410 = vrot.slane %v4409, 4
      %v4411 = vrot.slane %v3600, 5
      %v4412 = vsel %vm1263, %v4410, %v4411
      %v4413 = vrot.slane %v4411, 4
      %v4414 = vrot.slane %v3601, 5
      %v4415 = vsel %vm1263, %v4413, %v4414
      %v4416 = vrot.slane %v4316, 5
      %v4417 = vrot.slane %v4416, 4
      %v4418 = vrot.slane %v3603, 5
      %v4419 = vsel %vm1263, %v4417, %v4418
      %v4420 = vrot.slane %v4418, 4
      %v4421 = vrot.slane %v3604, 5
      %v4422 = vsel %vm1263, %v4420, %v4421
      %v4423 = vrot.slane %v4317, 5
      %v4424 = vrot.slane %v4423, 4
      %v4425 = vrot.slane %v3606, 5
      %v4426 = vsel %vm1263, %v4424, %v4425
      %v4427 = vrot.slane %v4425, 4
      %v4428 = vrot.slane %v3607, 5
      %v4429 = vsel %vm1263, %v4427, %v4428
      %v4430 = vrot.slane %v4318, 5
      %v4431 = vrot.slane %v4430, 4
      %v4432 = vrot.slane %v3609, 5
      %v4433 = vsel %vm1263, %v4431, %v4432
      %v4434 = vrot.slane %v4432, 4
      %v4435 = vrot.slane %v3610, 5
      %v4436 = vsel %vm1263, %v4434, %v4435
      %v4437 = vrot.slane %v4319, 5
      %v4438 = vrot.slane %v4437, 4
      %v4439 = vrot.slane %v3612, 5
      %v4440 = vsel %vm1263, %v4438, %v4439
      %v4441 = vrot.slane %v4439, 4
      %v4442 = vrot.slane %v3613, 5
      %v4443 = vsel %vm1263, %v4441, %v4442
      %v4444 = vrot.slane %v4320, 5
      %v4445 = vrot.slane %v4444, 4
      %v4446 = vrot.slane %v3615, 5
      %v4447 = vsel %vm1263, %v4445, %v4446
      %v4448 = vrot.slane %v4446, 4
      %v4449 = vrot.slane %v3616, 5
      %v4450 = vsel %vm1263, %v4448, %v4449
      %v4451 = vrot.slane %v4321, 5
      %v4452 = vrot.slane %v4451, 4
      %v4453 = vrot.slane %v3618, 5
      %v4454 = vsel %vm1263, %v4452, %v4453
      %v4455 = vrot.slane %v4453, 4
      %v4456 = vrot.slane %v3619, 5
      %v4457 = vsel %vm1263, %v4455, %v4456
      %v4458 = vrot.slane %v4322, 5
      %v4459 = vrot.slane %v4458, 4
      %v4460 = vrot.slane %v3621, 5
      %v4461 = vsel %vm1263, %v4459, %v4460
      %v4462 = vrot.slane %v4460, 4
      %v4463 = vrot.slane %v3622, 5
      %v4464 = vsel %vm1263, %v4462, %v4463
      %v4465 = vrot.slane %v4323, 5
      %v4466 = vrot.slane %v4465, 4
      %v4467 = vrot.slane %v3624, 5
      %v4468 = vsel %vm1263, %v4466, %v4467
      %v4469 = vrot.slane %v4467, 4
      %v4470 = vrot.slane %v3625, 5
      %v4471 = vsel %vm1263, %v4469, %v4470
      %v4472 = vrot.slane %v4324, 5
      %v4473 = vrot.slane %v4472, 4
      %v4474 = vrot.slane %v3627, 5
      %v4475 = vsel %vm1263, %v4473, %v4474
      %v4476 = vrot.slane %v4474, 4
      %v4477 = vrot.slane %v3628, 5
      %v4478 = vsel %vm1263, %v4476, %v4477
      %v4479 = vrot.slane %v4325, 5
      %v4480 = vrot.slane %v4479, 4
      %v4481 = vrot.slane %v3630, 5
      %v4482 = vsel %vm1263, %v4480, %v4481
      %v4483 = vrot.slane %v4481, 4
      %v4484 = vrot.slane %v3631, 5
      %v4485 = vsel %vm1263, %v4483, %v4484
      %s4486 = scalar_lea.vmem %s1, 16
      %v4487 = vld [vmem:[%s4486] sm:$0x3]
      %v4488 = vunpack.c.l.b16 %v4377
      %v4489 = vunpack.c.l.b16 %v4380
      %v4490 = vunpack.c.l.b16 %v4384
      %v4491 = vunpack.c.l.b16 %v4387
      %v4492 = vunpack.c.l.b16 %v4391
      %v4493 = vunpack.c.l.b16 %v4394
      %v4494 = vunpack.c.l.b16 %v4398
      %v4495 = vunpack.c.l.b16 %v4401
      %v4496 = vunpack.c.l.b16 %v4405
      %v4497 = vunpack.c.l.b16 %v4408
      %v4498 = vunpack.c.l.b16 %v4412
      %v4499 = vunpack.c.l.b16 %v4415
      %v4500 = vunpack.c.l.b16 %v4419
      %v4501 = vunpack.c.l.b16 %v4422
      %v4502 = vunpack.c.l.b16 %v4426
      %v4503 = vunpack.c.l.b16 %v4429
      %v4504 = vunpack.c.l.b16 %v4433
      %v4505 = vunpack.c.l.b16 %v4436
      %v4506 = vunpack.c.l.b16 %v4440
      %v4507 = vunpack.c.l.b16 %v4443
      %v4508 = vunpack.c.l.b16 %v4447
      %v4509 = vunpack.c.l.b16 %v4450
      %v4510 = vunpack.c.l.b16 %v4454
      %v4511 = vunpack.c.l.b16 %v4457
      %v4512 = vunpack.c.l.b16 %v4461
      %v4513 = vunpack.c.l.b16 %v4464
      %v4514 = vunpack.c.l.b16 %v4468
      %v4515 = vunpack.c.l.b16 %v4471
      %v4516 = vunpack.c.l.b16 %v4475
      %v4517 = vunpack.c.l.b16 %v4478
      %v4518 = vunpack.c.l.b16 %v4482
      %v4519 = vunpack.c.l.b16 %v4485
      %v4520 = vpack.c.b16 %v4489, %v4488
      %v4521 = vpack.c.b16 %v4491, %v4490
      %v4522 = vpack.c.b16 %v4493, %v4492
      %v4523 = vpack.c.b16 %v4495, %v4494
      %v4524 = vpack.c.b16 %v4497, %v4496
      %v4525 = vpack.c.b16 %v4499, %v4498
      %v4526 = vpack.c.b16 %v4501, %v4500
      %v4527 = vpack.c.b16 %v4503, %v4502
      %v4528 = vpack.c.b16 %v4505, %v4504
      %v4529 = vpack.c.b16 %v4507, %v4506
      %v4530 = vpack.c.b16 %v4509, %v4508
      %v4531 = vpack.c.b16 %v4511, %v4510
      %v4532 = vpack.c.b16 %v4513, %v4512
      %v4533 = vpack.c.b16 %v4515, %v4514
      %v4534 = vpack.c.b16 %v4517, %v4516
      %v4535 = vpack.c.b16 %v4519, %v4518
      %v4537 = vsel %vm707, %v4520, 0
      %v4540 = vsel %vm707, %v4521, 0
      %v4543 = vsel %vm707, %v4522, 0
      %v4546 = vsel %vm707, %v4523, 0
      %v4549 = vsel %vm707, %v4524, 0
      %v4552 = vsel %vm707, %v4525, 0
      %v4555 = vsel %vm707, %v4526, 0
      %v4558 = vsel %vm707, %v4527, 0
      %v4561 = vsel %vm707, %v4528, 0
      %v4564 = vsel %vm707, %v4529, 0
      %v4567 = vsel %vm707, %v4530, 0
      %v4570 = vsel %vm707, %v4531, 0
      %v4573 = vsel %vm707, %v4532, 0
      %v4576 = vsel %vm707, %v4533, 0
      %v4579 = vsel %vm707, %v4534, 0
      %v4582 = vsel %vm707, %v4535, 0
      %v4585 = vsel %vm756, %v4487, 0
      %4587 = vmatprep.subr.bf16.mxu0 0
      %4588 = vmatpush1.bf16.msra.mxu0 %v4585
      %4589 = vmatprep.subr.bf16.mxu0 0
      %4590 = vmatpush1.bf16.msra.mxu0 0
      %4591 = vmatprep.subr.bf16.mxu0 0
      %4592 = vmatpush1.bf16.msra.mxu0 0
      %4593 = vmatprep.subr.bf16.mxu0 0
      %4594 = vmatpush1.bf16.msra.mxu0 0
      %4595 = vmatprep.subr.bf16.mxu0 0
      %4596 = vmatpush1.bf16.msra.mxu0 0
      %4597 = vmatprep.subr.bf16.mxu0 0
      %4598 = vmatpush1.bf16.msra.mxu0 0
      %4599 = vmatprep.subr.bf16.mxu0 0
      %4600 = vmatpush1.bf16.msra.mxu0 0
      %4601 = vmatprep.subr.bf16.mxu0 0
      %4602 = vmatpush1.bf16.msra.mxu0 0
      %4603 = vmatprep.subr.bf16.mxu0 0
      %4604 = vmatpush1.bf16.msra.mxu0 0
      %4605 = vmatprep.subr.bf16.mxu0 0
      %4606 = vmatpush1.bf16.msra.mxu0 0
      %4607 = vmatprep.subr.bf16.mxu0 0
      %4608 = vmatpush1.bf16.msra.mxu0 0
      %4609 = vmatprep.subr.bf16.mxu0 0
      %4610 = vmatpush1.bf16.msra.mxu0 0
      %4611 = vmatprep.subr.bf16.mxu0 0
      %4612 = vmatpush1.bf16.msra.mxu0 0
      %4613 = vmatprep.subr.bf16.mxu0 0
      %4614 = vmatpush1.bf16.msra.mxu0 0
      %4615 = vmatprep.subr.bf16.mxu0 0
      %4616 = vmatpush1.bf16.msra.mxu0 0
      %4617 = vmatprep.subr.bf16.mxu0 0
      %4618 = vmatpush1.bf16.msra.mxu0 0
      %4619 = vmatprep.mubr.bf16.mxu0 0
      %4620 = vmatmul.mubr.bf16.gmra.mrb[0].mxu0 %v4537
      %v4621 = vpop.f32.mrb[0].mxu0
      %v4622 = vadd.f32 0.0, %v4621
      %v4623 = vpop.f32.mrb[0].mxu0
      %v4624 = vpop.f32.mrb[0].mxu0
      %v4625 = vadd.f32 0.0, %v4624
      %v4626 = vpop.f32.mrb[0].mxu0
      %4627 = vmatprep.mubr.bf16.mxu0 0
      %4628 = vmatmul.mubr.bf16.gmra.mrb[0].mxu0 %v4540
      %v4629 = vpop.f32.mrb[0].mxu0
      %v4630 = vadd.f32 0.0, %v4629
      %v4631 = vpop.f32.mrb[0].mxu0
      %v4632 = vpop.f32.mrb[0].mxu0
      %v4633 = vadd.f32 0.0, %v4632
      %v4634 = vpop.f32.mrb[0].mxu0
      %4635 = vmatprep.mubr.bf16.mxu0 0
      %4636 = vmatmul.mubr.bf16.gmra.mrb[0].mxu0 %v4543
      %v4637 = vpop.f32.mrb[0].mxu0
      %v4638 = vadd.f32 0.0, %v4637
      %v4639 = vpop.f32.mrb[0].mxu0
      %v4640 = vpop.f32.mrb[0].mxu0
      %v4641 = vadd.f32 0.0, %v4640
      %v4642 = vpop.f32.mrb[0].mxu0
      %4643 = vmatprep.mubr.bf16.mxu0 0
      %4644 = vmatmul.mubr.bf16.gmra.mrb[0].mxu0 %v4546
      %v4645 = vpop.f32.mrb[0].mxu0
      %v4646 = vadd.f32 0.0, %v4645
      %v4647 = vpop.f32.mrb[0].mxu0
      %v4648 = vpop.f32.mrb[0].mxu0
      %v4649 = vadd.f32 0.0, %v4648
      %v4650 = vpop.f32.mrb[0].mxu0
      %4651 = vmatprep.mubr.bf16.mxu0 0
      %4652 = vmatmul.mubr.bf16.gmra.mrb[0].mxu0 %v4549
      %v4653 = vpop.f32.mrb[0].mxu0
      %v4654 = vadd.f32 0.0, %v4653
      %v4655 = vpop.f32.mrb[0].mxu0
      %v4656 = vpop.f32.mrb[0].mxu0
      %v4657 = vadd.f32 0.0, %v4656
      %v4658 = vpop.f32.mrb[0].mxu0
      %4659 = vmatprep.mubr.bf16.mxu0 0
      %4660 = vmatmul.mubr.bf16.gmra.mrb[0].mxu0 %v4552
      %v4661 = vpop.f32.mrb[0].mxu0
      %v4662 = vadd.f32 0.0, %v4661
      %v4663 = vpop.f32.mrb[0].mxu0
      %v4664 = vpop.f32.mrb[0].mxu0
      %v4665 = vadd.f32 0.0, %v4664
      %v4666 = vpop.f32.mrb[0].mxu0
      %4667 = vmatprep.mubr.bf16.mxu0 0
      %4668 = vmatmul.mubr.bf16.gmra.mrb[0].mxu0 %v4555
      %v4669 = vpop.f32.mrb[0].mxu0
      %v4670 = vadd.f32 0.0, %v4669
      %v4671 = vpop.f32.mrb[0].mxu0
      %v4672 = vpop.f32.mrb[0].mxu0
      %v4673 = vadd.f32 0.0, %v4672
      %v4674 = vpop.f32.mrb[0].mxu0
      %4675 = vmatprep.mubr.bf16.mxu0 0
      %4676 = vmatmul.mubr.bf16.gmra.mrb[0].mxu0 %v4558
      %v4677 = vpop.f32.mrb[0].mxu0
      %v4678 = vadd.f32 0.0, %v4677
      %v4679 = vpop.f32.mrb[0].mxu0
      %v4680 = vpop.f32.mrb[0].mxu0
      %v4681 = vadd.f32 0.0, %v4680
      %v4682 = vpop.f32.mrb[0].mxu0
      %4683 = vmatprep.mubr.bf16.mxu0 0
      %4684 = vmatmul.mubr.bf16.gmra.mrb[0].mxu0 %v4561
      %v4685 = vpop.f32.mrb[0].mxu0
      %v4686 = vadd.f32 0.0, %v4685
      %v4687 = vpop.f32.mrb[0].mxu0
      %v4688 = vpop.f32.mrb[0].mxu0
      %v4689 = vadd.f32 0.0, %v4688
      %v4690 = vpop.f32.mrb[0].mxu0
      %4691 = vmatprep.mubr.bf16.mxu0 0
      %4692 = vmatmul.mubr.bf16.gmra.mrb[0].mxu0 %v4564
      %v4693 = vpop.f32.mrb[0].mxu0
      %v4694 = vadd.f32 0.0, %v4693
      %v4695 = vpop.f32.mrb[0].mxu0
      %v4696 = vpop.f32.mrb[0].mxu0
      %v4697 = vadd.f32 0.0, %v4696
      %v4698 = vpop.f32.mrb[0].mxu0
      %4699 = vmatprep.mubr.bf16.mxu0 0
      %4700 = vmatmul.mubr.bf16.gmra.mrb[0].mxu0 %v4567
      %v4701 = vpop.f32.mrb[0].mxu0
      %v4702 = vadd.f32 0.0, %v4701
      %v4703 = vpop.f32.mrb[0].mxu0
      %v4704 = vpop.f32.mrb[0].mxu0
      %v4705 = vadd.f32 0.0, %v4704
      %v4706 = vpop.f32.mrb[0].mxu0
      %4707 = vmatprep.mubr.bf16.mxu0 0
      %4708 = vmatmul.mubr.bf16.gmra.mrb[0].mxu0 %v4570
      %v4709 = vpop.f32.mrb[0].mxu0
      %v4710 = vadd.f32 0.0, %v4709
      %v4711 = vpop.f32.mrb[0].mxu0
      %v4712 = vpop.f32.mrb[0].mxu0
      %v4713 = vadd.f32 0.0, %v4712
      %v4714 = vpop.f32.mrb[0].mxu0
      %4715 = vmatprep.mubr.bf16.mxu0 0
      %4716 = vmatmul.mubr.bf16.gmra.mrb[0].mxu0 %v4573
      %v4717 = vpop.f32.mrb[0].mxu0
      %v4718 = vadd.f32 0.0, %v4717
      %v4719 = vpop.f32.mrb[0].mxu0
      %v4720 = vpop.f32.mrb[0].mxu0
      %v4721 = vadd.f32 0.0, %v4720
      %v4722 = vpop.f32.mrb[0].mxu0
      %4723 = vmatprep.mubr.bf16.mxu0 0
      %4724 = vmatmul.mubr.bf16.gmra.mrb[0].mxu0 %v4576
      %v4725 = vpop.f32.mrb[0].mxu0
      %v4726 = vadd.f32 0.0, %v4725
      %v4727 = vpop.f32.mrb[0].mxu0
      %v4728 = vpop.f32.mrb[0].mxu0
      %v4729 = vadd.f32 0.0, %v4728
      %v4730 = vpop.f32.mrb[0].mxu0
      %4731 = vmatprep.mubr.bf16.mxu0 0
      %4732 = vmatmul.mubr.bf16.gmra.mrb[0].mxu0 %v4579
      %v4733 = vpop.f32.mrb[0].mxu0
      %v4734 = vadd.f32 0.0, %v4733
      %v4735 = vpop.f32.mrb[0].mxu0
      %v4736 = vpop.f32.mrb[0].mxu0
      %v4737 = vadd.f32 0.0, %v4736
      %v4738 = vpop.f32.mrb[0].mxu0
      %4739 = vmatprep.mubr.bf16.mxu0 0
      %4740 = vmatmul.mubr.bf16.gmra.mrb[0].mxu0 %v4582
      %v4741 = vpop.f32.mrb[0].mxu0
      %v4742 = vadd.f32 0.0, %v4741
      %v4743 = vpop.f32.mrb[0].mxu0
      %v4744 = vpop.f32.mrb[0].mxu0
      %v4745 = vadd.f32 0.0, %v4744
      %v4746 = vpop.f32.mrb[0].mxu0
      %4747 = vdwg.mxu0
      %v4748 = vadd.f32 %v4278, %v4622
      %v4749 = vadd.f32 %v4279, %v4625
      %v4750 = vadd.f32 %v4280, %v4630
      %v4751 = vadd.f32 %v4281, %v4633
      %v4752 = vadd.f32 %v4282, %v4638
      %v4753 = vadd.f32 %v4283, %v4641
      %v4754 = vadd.f32 %v4284, %v4646
      %v4755 = vadd.f32 %v4285, %v4649
      %v4756 = vadd.f32 %v4286, %v4654
      %v4757 = vadd.f32 %v4287, %v4657
      %v4758 = vadd.f32 %v4288, %v4662
      %v4759 = vadd.f32 %v4289, %v4665
      %v4760 = vadd.f32 %v4290, %v4670
      %v4761 = vadd.f32 %v4291, %v4673
      %v4762 = vadd.f32 %v4292, %v4678
      %v4763 = vadd.f32 %v4293, %v4681
      %v4764 = vadd.f32 %v4294, %v4686
      %v4765 = vadd.f32 %v4295, %v4689
      %v4766 = vadd.f32 %v4296, %v4694
      %v4767 = vadd.f32 %v4297, %v4697
      %v4768 = vadd.f32 %v4298, %v4702
      %v4769 = vadd.f32 %v4299, %v4705
      %v4770 = vadd.f32 %v4300, %v4710
      %v4771 = vadd.f32 %v4301, %v4713
      %v4772 = vadd.f32 %v4302, %v4718
      %v4773 = vadd.f32 %v4303, %v4721
      %v4774 = vadd.f32 %v4304, %v4726
      %v4775 = vadd.f32 %v4305, %v4729
      %v4776 = vadd.f32 %v4306, %v4734
      %v4777 = vadd.f32 %v4307, %v4737
      %v4778 = vadd.f32 %v4308, %v4742
      %v4779 = vadd.f32 %v4309, %v4745
      %v4780 = vpack.c.bf16 %v4749, %v4748
      %v4781 = vpack.c.bf16 %v4751, %v4750
      %v4782 = vpack.c.bf16 %v4753, %v4752
      %v4783 = vpack.c.bf16 %v4755, %v4754
      %v4784 = vpack.c.bf16 %v4757, %v4756
      %v4785 = vpack.c.bf16 %v4759, %v4758
      %v4786 = vpack.c.bf16 %v4761, %v4760
      %v4787 = vpack.c.bf16 %v4763, %v4762
      %v4788 = vpack.c.bf16 %v4765, %v4764
      %v4789 = vpack.c.bf16 %v4767, %v4766
      %v4790 = vpack.c.bf16 %v4769, %v4768
      %v4791 = vpack.c.bf16 %v4771, %v4770
      %v4792 = vpack.c.bf16 %v4773, %v4772
      %v4793 = vpack.c.bf16 %v4775, %v4774
      %v4794 = vpack.c.bf16 %v4777, %v4776
      %v4795 = vpack.c.bf16 %v4779, %v4778
      %v4812 = vunpack.c.l.b16 %v4780
      %v4813 = vunpack.c.h.b16 %v4780
      %v4814 = vunpack.c.l.b16 %v4781
      %v4815 = vunpack.c.h.b16 %v4781
      %v4816 = vunpack.c.l.b16 %v4782
      %v4817 = vunpack.c.h.b16 %v4782
      %v4818 = vunpack.c.l.b16 %v4783
      %v4819 = vunpack.c.h.b16 %v4783
      %v4820 = vunpack.c.l.b16 %v4784
      %v4821 = vunpack.c.h.b16 %v4784
      %v4822 = vunpack.c.l.b16 %v4785
      %v4823 = vunpack.c.h.b16 %v4785
      %v4824 = vunpack.c.l.b16 %v4786
      %v4825 = vunpack.c.h.b16 %v4786
      %v4826 = vunpack.c.l.b16 %v4787
      %v4827 = vunpack.c.h.b16 %v4787
      %v4828 = vunpack.c.l.b16 %v4788
      %v4829 = vunpack.c.h.b16 %v4788
      %v4830 = vunpack.c.l.b16 %v4789
      %v4831 = vunpack.c.h.b16 %v4789
      %v4832 = vunpack.c.l.b16 %v4790
      %v4833 = vunpack.c.h.b16 %v4790
      %v4834 = vunpack.c.l.b16 %v4791
      %v4835 = vunpack.c.h.b16 %v4791
      %v4836 = vunpack.c.l.b16 %v4792
      %v4837 = vunpack.c.h.b16 %v4792
      %v4838 = vunpack.c.l.b16 %v4793
      %v4839 = vunpack.c.h.b16 %v4793
      %v4840 = vunpack.c.l.b16 %v4794
      %v4841 = vunpack.c.h.b16 %v4794
      %v4842 = vunpack.c.l.b16 %v4795
      %v4843 = vunpack.c.h.b16 %v4795
      %v4844 = vpack.c.b16 %v4812, %v4812
      %v4845 = vpack.c.b16 %v4813, %v4813
      %v4846 = vpack.c.b16 %v4814, %v4814
      %v4847 = vpack.c.b16 %v4815, %v4815
      %v4848 = vpack.c.b16 %v4816, %v4816
      %v4849 = vpack.c.b16 %v4817, %v4817
      %v4850 = vpack.c.b16 %v4818, %v4818
      %v4851 = vpack.c.b16 %v4819, %v4819
      %v4852 = vpack.c.b16 %v4820, %v4820
      %v4853 = vpack.c.b16 %v4821, %v4821
      %v4854 = vpack.c.b16 %v4822, %v4822
      %v4855 = vpack.c.b16 %v4823, %v4823
      %v4856 = vpack.c.b16 %v4824, %v4824
      %v4857 = vpack.c.b16 %v4825, %v4825
      %v4858 = vpack.c.b16 %v4826, %v4826
      %v4859 = vpack.c.b16 %v4827, %v4827
      %v4860 = vpack.c.b16 %v4828, %v4828
      %v4861 = vpack.c.b16 %v4829, %v4829
      %v4862 = vpack.c.b16 %v4830, %v4830
      %v4863 = vpack.c.b16 %v4831, %v4831
      %v4864 = vpack.c.b16 %v4832, %v4832
      %v4865 = vpack.c.b16 %v4833, %v4833
      %v4866 = vpack.c.b16 %v4834, %v4834
      %v4867 = vpack.c.b16 %v4835, %v4835
      %v4868 = vpack.c.b16 %v4836, %v4836
      %v4869 = vpack.c.b16 %v4837, %v4837
      %v4870 = vpack.c.b16 %v4838, %v4838
      %v4871 = vpack.c.b16 %v4839, %v4839
      %v4872 = vpack.c.b16 %v4840, %v4840
      %v4873 = vpack.c.b16 %v4841, %v4841
      %v4874 = vpack.c.b16 %v4842, %v4842
      %v4875 = vpack.c.b16 %v4843, %v4843
      %4908 = vst [vmem:[%s210] sm:$0xf] %v4844
      %4909 = vst [vmem:[%s210 + $0x4] sm:$0xf] %v4845
      %4910 = vst [vmem:[%s210 + $0x8] sm:$0xf] %v4846
      %4911 = vst [vmem:[%s210 + $0xc] sm:$0xf] %v4847
      %4912 = vst [vmem:[%s210 + $0x10] sm:$0xf] %v4848
      %4913 = vst [vmem:[%s210 + $0x14] sm:$0xf] %v4849
      %4914 = vst [vmem:[%s210 + $0x18] sm:$0xf] %v4850
      %4915 = vst [vmem:[%s210 + $0x1c] sm:$0xf] %v4851
      %4916 = vst [vmem:[%s210 + $0x20] sm:$0xf] %v4852
      %4917 = vst [vmem:[%s210 + $0x24] sm:$0xf] %v4853
      %4918 = vst [vmem:[%s210 + $0x28] sm:$0xf] %v4854
      %4919 = vst [vmem:[%s210 + $0x2c] sm:$0xf] %v4855
      %4920 = vst [vmem:[%s210 + $0x30] sm:$0xf] %v4856
      %4921 = vst [vmem:[%s210 + $0x34] sm:$0xf] %v4857
      %4922 = vst [vmem:[%s210 + $0x38] sm:$0xf] %v4858
      %4923 = vst [vmem:[%s210 + $0x3c] sm:$0xf] %v4859
      %4924 = vst [vmem:[%s210 + $0x40] sm:$0xf] %v4860
      %4925 = vst [vmem:[%s210 + $0x44] sm:$0xf] %v4861
      %4926 = vst [vmem:[%s210 + $0x48] sm:$0xf] %v4862
      %4927 = vst [vmem:[%s210 + $0x4c] sm:$0xf] %v4863
      %4928 = vst [vmem:[%s210 + $0x50] sm:$0xf] %v4864
      %4929 = vst [vmem:[%s210 + $0x54] sm:$0xf] %v4865
      %4930 = vst [vmem:[%s210 + $0x58] sm:$0xf] %v4866
      %4931 = vst [vmem:[%s210 + $0x5c] sm:$0xf] %v4867
      %4932 = vst [vmem:[%s210 + $0x60] sm:$0xf] %v4868
      %4933 = vst [vmem:[%s210 + $0x64] sm:$0xf] %v4869
      %4934 = vst [vmem:[%s210 + $0x68] sm:$0xf] %v4870
      %4935 = vst [vmem:[%s210 + $0x6c] sm:$0xf] %v4871
      %4936 = vst [vmem:[%s210 + $0x70] sm:$0xf] %v4872
      %4937 = vst [vmem:[%s210 + $0x74] sm:$0xf] %v4873
      %4938 = vst [vmem:[%s210 + $0x78] sm:$0xf] %v4874
      %4939 = vst [vmem:[%s210 + $0x7c] sm:$0xf] %v4875
      %v4940 = vadd.f32 %v4748, %v4749
      %v4941 = vadd.f32 %v4940, %v4750
      %v4942 = vadd.f32 %v4941, %v4751
      %v4943 = vadd.f32 %v4942, %v4752
      %v4944 = vadd.f32 %v4943, %v4753
      %v4945 = vadd.f32 %v4944, %v4754
      %v4946 = vadd.f32 %v4945, %v4755
      %v4947 = vadd.f32 %v4946, %v4756
      %v4948 = vadd.f32 %v4947, %v4757
      %v4949 = vadd.f32 %v4948, %v4758
      %v4950 = vadd.f32 %v4949, %v4759
      %v4951 = vadd.f32 %v4950, %v4760
      %v4952 = vadd.f32 %v4951, %v4761
      %v4953 = vadd.f32 %v4952, %v4762
      %v4954 = vadd.f32 %v4953, %v4763
      %v4955 = vadd.f32 %v4954, %v4764
      %v4956 = vadd.f32 %v4955, %v4765
      %v4957 = vadd.f32 %v4956, %v4766
      %v4958 = vadd.f32 %v4957, %v4767
      %v4959 = vadd.f32 %v4958, %v4768
      %v4960 = vadd.f32 %v4959, %v4769
      %v4961 = vadd.f32 %v4960, %v4770
      %v4962 = vadd.f32 %v4961, %v4771
      %v4963 = vadd.f32 %v4962, %v4772
      %v4964 = vadd.f32 %v4963, %v4773
      %v4965 = vadd.f32 %v4964, %v4774
      %v4966 = vadd.f32 %v4965, %v4775
      %v4967 = vadd.f32 %v4966, %v4776
      %v4968 = vadd.f32 %v4967, %v4777
      %v4969 = vadd.f32 %v4968, %v4778
      %v4970 = vadd.f32 %v4969, %v4779
      %v4971 = vrot.slane %v4970, 4
      %v4972 = vadd.f32 %v4970, %v4971
      %v4973 = vrot.slane %v4972, 2
      %v4974 = vadd.f32 %v4972, %v4973
      %v4975 = vrot.slane %v4974, 1
      %v4976 = vadd.f32 %v4974, %v4975
      %v4977 = vmul.f32 %v4748, %v4748
      %v4978 = vmul.f32 %v4749, %v4749
      %v4979 = vmul.f32 %v4750, %v4750
      %v4980 = vmul.f32 %v4751, %v4751
      %v4981 = vmul.f32 %v4752, %v4752
      %v4982 = vmul.f32 %v4753, %v4753
      %v4983 = vmul.f32 %v4754, %v4754
      %v4984 = vmul.f32 %v4755, %v4755
      %v4985 = vmul.f32 %v4756, %v4756
      %v4986 = vmul.f32 %v4757, %v4757
      %v4987 = vmul.f32 %v4758, %v4758
      %v4988 = vmul.f32 %v4759, %v4759
      %v4989 = vmul.f32 %v4760, %v4760
      %v4990 = vmul.f32 %v4761, %v4761
      %v4991 = vmul.f32 %v4762, %v4762
      %v4992 = vmul.f32 %v4763, %v4763
      %v4993 = vmul.f32 %v4764, %v4764
      %v4994 = vmul.f32 %v4765, %v4765
      %v4995 = vmul.f32 %v4766, %v4766
      %v4996 = vmul.f32 %v4767, %v4767
      %v4997 = vmul.f32 %v4768, %v4768
      %v4998 = vmul.f32 %v4769, %v4769
      %v4999 = vmul.f32 %v4770, %v4770
      %v5000 = vmul.f32 %v4771, %v4771
      %v5001 = vmul.f32 %v4772, %v4772
      %v5002 = vmul.f32 %v4773, %v4773
      %v5003 = vmul.f32 %v4774, %v4774
      %v5004 = vmul.f32 %v4775, %v4775
      %v5005 = vmul.f32 %v4776, %v4776
      %v5006 = vmul.f32 %v4777, %v4777
      %v5007 = vmul.f32 %v4778, %v4778
      %v5008 = vmul.f32 %v4779, %v4779
      %v5009 = vadd.f32 %v4977, %v4978
      %v5010 = vadd.f32 %v5009, %v4979
      %v5011 = vadd.f32 %v5010, %v4980
      %v5012 = vadd.f32 %v5011, %v4981
      %v5013 = vadd.f32 %v5012, %v4982
      %v5014 = vadd.f32 %v5013, %v4983
      %v5015 = vadd.f32 %v5014, %v4984
      %v5016 = vadd.f32 %v5015, %v4985
      %v5017 = vadd.f32 %v5016, %v4986
      %v5018 = vadd.f32 %v5017, %v4987
      %v5019 = vadd.f32 %v5018, %v4988
      %v5020 = vadd.f32 %v5019, %v4989
      %v5021 = vadd.f32 %v5020, %v4990
      %v5022 = vadd.f32 %v5021, %v4991
      %v5023 = vadd.f32 %v5022, %v4992
      %v5024 = vadd.f32 %v5023, %v4993
      %v5025 = vadd.f32 %v5024, %v4994
      %v5026 = vadd.f32 %v5025, %v4995
      %v5027 = vadd.f32 %v5026, %v4996
      %v5028 = vadd.f32 %v5027, %v4997
      %v5029 = vadd.f32 %v5028, %v4998
      %v5030 = vadd.f32 %v5029, %v4999
      %v5031 = vadd.f32 %v5030, %v5000
      %v5032 = vadd.f32 %v5031, %v5001
      %v5033 = vadd.f32 %v5032, %v5002
      %v5034 = vadd.f32 %v5033, %v5003
      %v5035 = vadd.f32 %v5034, %v5004
      %v5036 = vadd.f32 %v5035, %v5005
      %v5037 = vadd.f32 %v5036, %v5006
      %v5038 = vadd.f32 %v5037, %v5007
      %v5039 = vadd.f32 %v5038, %v5008
      %v5040 = vrot.slane %v5039, 4
      %v5041 = vadd.f32 %v5039, %v5040
      %v5042 = vrot.slane %v5041, 2
      %v5043 = vadd.f32 %v5041, %v5042
      %v5044 = vrot.slane %v5043, 1
      %v5045 = vadd.f32 %v5043, %v5044
      %5046 = vst [vmem:[%s215] sm:$0xff] %v4976
      %5047 = vst [vmem:[%s219] sm:$0xff] %v5045
      %s5048 = smul.u32 32, %s16
      %p5049 = scmp.lt.s32.totalorder %s5048, 63
      %s5050 = scalar_select %p5049, %s5048, 63
      %s5051 = smul.addr %s5050, 4
      %s5052 = scalar_lea.vmem %s2, %s5051
      %p5053 = scmp.lt.s32.totalorder %s16, 1
      %s5054 = scalar_select %p5053, %s16, 1
      %s5055 = smul.addr %s5054, 8
      %s5056 = scalar_lea.vmem %s3, %s5055
      %p5057 = scmp.lt.s32.totalorder %s16, 1
      %s5058 = scalar_select %p5057, %s16, 1
      %s5059 = smul.addr %s5058, 8
      %s5060 = scalar_lea.vmem %s4, %s5059
      // Predicated region
      $region29: #{downsample_layer.3} parent=27 // pred_check
        %p5061 = pneg %p81
      $region30: #{downsample_layer.3} parent=27 // pred_check_branch
        %5063 = sbr.rel (%p5061) target = $region32
      $region31: #{downsample_layer.3} parent=27 // pred_region
        %s5064 = smul.u32 32, %s16
      $region32: #{downsample_layer.3} parent=27 // pred_fallthru
        _
      // Predicated region
      $region33: #{downsample_layer.3} parent=27 // pred_check
        %p5065 = pneg %p107
      $region34: #{downsample_layer.3} parent=27 // pred_check_branch
        %5067 = sbr.rel (%p5065) target = $region36
      $region35: #{downsample_layer.3} parent=27 // pred_region
        _
      $region36: #{downsample_layer.3} parent=27 // pred_fallthru
        _
      // Predicated region
      $region37: #{downsample_layer.3} parent=27 // pred_check
        %p5068 = pneg %p133
      $region38: #{downsample_layer.3} parent=27 // pred_check_branch
        %5070 = sbr.rel (%p5068) target = $region40
      $region39: #{downsample_layer.3} parent=27 // pred_region
        _
      $region40: #{downsample_layer.3} parent=27 // pred_fallthru
        _
    $region28: #{downsample_layer.3} parent=5 // pred_fallthru
      _
    %p5071 = scmp.le.s32.totalorder 2, %s11
    // Predicated region
    $region41: #{downsample_layer.3} parent=5 // pred_check
      %p5072 = pneg %p5071
    $region42: #{downsample_layer.3} parent=5 // pred_check_branch
      %5074 = sbr.rel (%p5072) target = $region44
    $region43: #{downsample_layer.3} parent=5 // pred_region
      %s5075 = ssub.s32 %s11, 2
      // Predicated region
      $region45: #{downsample_layer.3} parent=43 // pred_check
        %p5076 = pneg %p87
      $region46: #{downsample_layer.3} parent=43 // pred_check_branch
        %5078 = sbr.rel (%p5076) target = $region48
      $region47: #{downsample_layer.3} parent=43 // pred_region
        %s5079 = smul.u32 32, %s17
        %p5080 = scmp.lt.s32.totalorder %s5079, 63
        %s5081 = scalar_select %p5080, %s5079, 63
        %s5082 = smul.addr %s5081, 4
        %s5083 = scalar_lea.vmem %s2, %s5082
      $region48: #{downsample_layer.3} parent=43 // pred_fallthru
        _
      // Predicated region
      $region49: #{downsample_layer.3} parent=43 // pred_check
        %p5084 = pneg %p113
      $region50: #{downsample_layer.3} parent=43 // pred_check_branch
        %5086 = sbr.rel (%p5084) target = $region52
      $region51: #{downsample_layer.3} parent=43 // pred_region
        %p5087 = scmp.lt.s32.totalorder %s17, 1
        %s5088 = scalar_select %p5087, %s17, 1
        %s5089 = smul.addr %s5088, 8
        %s5090 = scalar_lea.vmem %s3, %s5089
      $region52: #{downsample_layer.3} parent=43 // pred_fallthru
        _
      // Predicated region
      $region53: #{downsample_layer.3} parent=43 // pred_check
        %p5091 = pneg %p139
      $region54: #{downsample_layer.3} parent=43 // pred_check_branch
        %5093 = sbr.rel (%p5091) target = $region56
      $region55: #{downsample_layer.3} parent=43 // pred_region
        %p5094 = scmp.lt.s32.totalorder %s17, 1
        %s5095 = scalar_select %p5094, %s17, 1
        %s5096 = smul.addr %s5095, 8
        %s5097 = scalar_lea.vmem %s4, %s5096
      $region56: #{downsample_layer.3} parent=43 // pred_fallthru
        _
    $region44: #{downsample_layer.3} parent=5 // pred_fallthru
      _
  $region6: #{downsample_layer.3} parent=0 // loop_footer
    %s15 = sadd.s32 1, %s11
  $region7: #{downsample_layer.3} parent=0 // loop_footer_branch
    %10 = sbr.rel target = $region3
  $region8: #{downsample_layer.3} parent=0 // loop_exit
    _

</llo_original>
